<compile_context>
chip_gen: v6e
topology: v6e:2x2x1
jax: 0.10.0
libtpu: 0.0.40
codegen_flags: <defaults>
</compile_context>

<pallas_src>
import numpy as np
import jax
import jax.numpy as jnp
from jax import lax
from jax.experimental import pallas as pl
from jax.experimental.pallas import tpu as pltpu

DZ = 8          # latent dim        (args.dz)
DX = 16         # observation dim   (args.dx); dim_h == dim_x in the module
DH = DX
T = 8           # sequence length   (args.T)

_THRESH = 1e-5
_POS_CONST = 1e-6
_PIVOT_FLOOR = 1e-12     # NaN guard for rsqrt (reference would NaN here anyway)
_OUT_LANES = 128         # lane-dense output slab width


def _full_spec(shape):
    """BlockSpec covering the whole array as a single block (grid=(1,))."""
    n = len(shape)
    return pl.BlockSpec(shape, lambda i, _n=n: (0,) * _n)


def _mm(a, b):
    return jnp.dot(a, b, preferred_element_type=jnp.float32)


def _mmt(a, b):
    # a @ b.T via a transposed-RHS contraction.
    return lax.dot_general(a, b, (((1,), (1,)), ((), ())),
                           preferred_element_type=jnp.float32)


def _svae_kernel(xe_ref, bslab_ref, wenc_ref, wkron_ref, out_ref):
    f32 = jnp.float32
    dz, dh, t_len = DZ, DH, T

    # ------------------- unpack packed input slabs (once) -------------------
    xe = xe_ref[...]                          # (T, dx + dz) = [x | eps]
    x = xe[:, :DX]                            # (T, dx)
    eps = xe[:, DX:DX + dz]                   # (T, dz)

    bslab = bslab_ref[...]                    # (dz, 2*dz) = [bA+I | bB]
    bA_eye = bslab[:, :dz]
    bB_blk = bslab[:, dz:2 * dz]

    wenc = wenc_ref[...]                      # (24, 24)
    w1t = wenc[:dh, :dh]                      # fc1 weight (in, out)
    wmut = wenc[:dh, dh:dh + dz]              # fc_mu weight (in, out)
    b1 = wenc[dh:dh + 1, :dh]                 # fc1 bias
    bmu = wenc[dh:dh + 1, dh:dh + dz]         # fc_mu bias

    # ------------------------- encode (two MXU pushes) ----------------------
    h = jnp.maximum(_mm(x, w1t) + b1, 0.0)    # (T, dh)
    mu = _mm(h, wmut) + bmu                   # (T, dz)

    # ------ ALL per-step (dz,dz) head blocks via ONE kron matmul ------------
    # lhs[t*dz + i, i*dh + c] = h[t, c]; rhs[i*dh + c, j] = W_head[i*dz+j, c]
    # -> kout[t*dz + i, j] = head_block_t[i, j]  for heads [A | P | Q].
    h_rep = jnp.concatenate(
        [jnp.broadcast_to(h[t:t + 1, :], (dz, dh)) for t in range(t_len)],
        axis=0)                                                  # (T*dz, dh)
    h_tiled = jnp.concatenate([h_rep] * dz, axis=1)              # (T*dz, dz*dh)
    lane_k = lax.broadcasted_iota(jnp.int32, (t_len * dz, dz * dh), 1)
    sub_k = lax.broadcasted_iota(jnp.int32, (t_len * dz, dz * dh), 0)
    lhs = jnp.where((lane_k >> 4) == (sub_k & (dz - 1)), h_tiled, 0.0)
    kout = _mm(lhs, wkron_ref[...])                              # (T*dz, 3*dz)

    # Add biases once (A block gets bA + I, P block gets bB, Q block none).
    bias24 = jnp.concatenate([bA_eye, bB_blk, jnp.zeros((dz, dz), f32)], axis=1)
    kout = kout + jnp.concatenate([bias24] * t_len, axis=0)

    A_all = kout[:, :dz]                      # rows [t*dz:(t+1)*dz] = A_t
    P_all = kout[:, dz:2 * dz]                # fc_B(h_t) half (+ bias)
    Q_all = kout[:, 2 * dz:3 * dz]            # fc_B(h_{t-1}) half
    Bp_all = P_all[dz:, :] + Q_all[:-dz, :]   # ((T-1)*dz, dz): block t-1 = B[t-1]

    # ----------------------- recurrence constants ---------------------------
    lane_z = lax.broadcasted_iota(jnp.int32, (dz, dz), 1)
    sub_z = lax.broadcasted_iota(jnp.int32, (dz, dz), 0)
    eye = jnp.where(lane_z == sub_z, 1.0, 0.0).astype(f32)
    pos_eye = _POS_CONST * eye
    sub_col = lax.broadcasted_iota(jnp.int32, (dz, 1), 0)
    gt_masks = [sub_col > k for k in range(dz)]
    eq_masks = [sub_col == k for k in range(dz)]

    def fused_chol_solve(D, rhs):
        """X = chol(D)^{-1} @ rhs via one augmented elimination sweep."""
        m = jnp.concatenate([D, rhs], axis=1)                 # (dz, dz + n)
        for k in range(dz):                                   # unrolled, k static
            colk = m[:, k:k + 1]                              # (dz, 1)
            pivot = colk[k:k + 1, :]                          # (1, 1)
            inv_d = lax.rsqrt(jnp.maximum(pivot, _PIVOT_FLOOR))
            rowk = m[k:k + 1, :] * inv_d                      # (1, dz + n)
            lcol = jnp.where(gt_masks[k], colk * inv_d, 0.0)  # strictly below k
            m = jnp.where(eq_masks[k], rowk, m - lcol * rowk)
        return m[:, dz:]

    # ---- block-tridiagonal Cholesky + forward substitution (unrolled T) ----
    r_list = []
    M_prev = None          # Linv_{t-1} @ A_{t-1}
    r_prev = None
    for t in range(t_len):
        A_t = A_all[t * dz:(t + 1) * dz, :]
        if t == 0:
            D_t = _mmt(A_t, A_t) + pos_eye
            rhs = jnp.concatenate([eye, A_t], axis=1)
        else:
            Bp_t = Bp_all[(t - 1) * dz:t * dz, :]             # B[t-1]
            G_t = jnp.concatenate([A_t, Bp_t], axis=1)        # merged Gram operand
            GG = _mmt(G_t, G_t)                               # A A^T + B B^T
            C_t = _mmt(Bp_t, M_prev)                          # B A_prev^T Linv_prev^T
            CC = _mmt(C_t, C_t)
            Cr = _mm(C_t, r_prev)
            D_t = GG - CC + pos_eye
            rhs = jnp.concatenate([eye - Cr, A_t], axis=1)
        X = fused_chol_solve(D_t, rhs)                        # (dz, 2*dz)
        r_t = X[:, :dz]
        r_list.append(r_t)
        r_prev = r_t
        if t + 1 < t_len:
            M_prev = X[:, dz:]

    # ------------- finalize: threshold, sample, entropy (deferred) ----------
    R = jnp.concatenate(r_list, axis=0)                       # (T*dz, dz)
    # NOTE: the module thresholds ALL of r (not just the diagonal).
    r_thr = jnp.maximum(R - _THRESH, 0.0) + _THRESH

    # sample_z = mu + block-diag(eps) @ R_thr  (one MXU push for all T steps)
    eps_rep = jnp.concatenate([eps] * t_len, axis=1)          # (T, T*dz)
    lane_e = lax.broadcasted_iota(jnp.int32, (t_len, t_len * dz), 1)
    sub_e = lax.broadcasted_iota(jnp.int32, (t_len, t_len * dz), 0)
    e_blk = jnp.where((lane_e >> 3) == sub_e, eps_rep, 0.0)
    z = mu + _mm(e_blk, r_thr)                                # (T, dz)

    # entropy: single log + reduce over the stacked block diagonals.
    sub_r = lax.broadcasted_iota(jnp.int32, (t_len * dz, dz), 0)
    lane_r = lax.broadcasted_iota(jnp.int32, (t_len * dz, dz), 1)
    diag_mask = (sub_r & (dz - 1)) == lane_r
    ld = -jnp.sum(jnp.log(jnp.where(diag_mask, r_thr, 1.0)), axis=1, keepdims=True)
    ld = jnp.sum(ld, axis=0, keepdims=True)                   # (1, 1)
    # NOTE: the module uses dim_x (not dim_z) in the entropy constant.
    entropy = ld + (DX * t_len / 2.0) * (1.0 + np.log(2.0 * np.pi))

    # Single lane-dense (T, 128) store: [ sample_z | entropy (bcast) | zeros ].
    out_ref[...] = jnp.concatenate(
        [z, jnp.broadcast_to(entropy, (t_len, dz)),
         jnp.zeros((t_len, _OUT_LANES - 2 * dz), f32)], axis=1)


def sequential_vae_forward(params, X_t, key):
    """X_t: (T, dim_x) time-major observations (the module's self.X = X.t())."""
    eps = jax.random.normal(key, (T, DZ), dtype=jnp.float32)   # eps = randn_like(mu)
    xe = jnp.concatenate([X_t.astype(jnp.float32), eps], axis=1)   # (T, dx + dz)
    ins = (xe, params['bslab'], params['wenc'], params['wkron'])
    slab = pl.pallas_call(
        _svae_kernel,
        out_shape=jax.ShapeDtypeStruct((T, _OUT_LANES), jnp.float32),
        grid=(1,),
        in_specs=[_full_spec(a.shape) for a in ins],
        out_specs=_full_spec((T, _OUT_LANES)),
        compiler_params=pltpu.CompilerParams(dimension_semantics=("arbitrary",)),
    )(*ins)
    sample_z = slab[:, :DZ]
    entropy = slab[0, DZ]
    return entropy, sample_z


# ----------------------------------------------------------------------------
# Deterministic parameter init (nn.Linear shapes), packed into the kernel's
# 3 weight slabs (pure setup cost, no runtime glue):
#   wenc  (24, 24):  rows 0..15 = [W1^T | Wmu^T], row 16 = [b1 | bmu]
#   wkron (128, 24): kron-rearranged [fc_A | fc_B(h_t) | fc_B(h_{t-1})] weights
#   bslab (8, 16):   [reshape(bA)+I | reshape(bB)]
# ----------------------------------------------------------------------------
def init_params(key):
    dx, dh, dz = DX, DH, DZ
    dzz = dz * dz
    ks = jax.random.split(key, 4)

    def lin(k, fan_in, fan_out):
        kw, kb = jax.random.split(k)
        bound = 1.0 / np.sqrt(fan_in)
        W = jax.random.uniform(kw, (fan_out, fan_in), jnp.float32, -bound, bound)
        b = jax.random.uniform(kb, (fan_out,), jnp.float32, -bound, bound)
        return W, b

    W1, b1 = lin(ks[0], dx, dh)          # fc1
    Wmu, bmu = lin(ks[1], dh, dz)        # fc_mu
    WA, bA = lin(ks[2], dh, dzz)         # fc_A
    WB, bB = lin(ks[3], 2 * dh, dzz)     # fc_B

    # Encoder slab.
    top = jnp.concatenate([W1.T, Wmu.T], axis=1)                        # (16, 24)
    brow = jnp.concatenate([b1[None, :], bmu[None, :]], axis=1)         # (1, 24)
    wenc = jnp.concatenate([top, brow, jnp.zeros((7, 24), jnp.float32)], axis=0)

    # Kron-rearranged head weights: out[(i*dh + c), j] = W[i*dz + j, c].
    def kron_rhs(W):                      # W: (dz*dz, dh), row-major i*dz+j
        return jnp.transpose(W.reshape(dz, dz, dh), (0, 2, 1)).reshape(dz * dh, dz)

    wkron = jnp.concatenate([kron_rhs(WA),
                             kron_rhs(WB[:, :dh]),       # acts on h[t]
                             kron_rhs(WB[:, dh:])],      # acts on h[t-1]
                            axis=1)                      # (128, 24)

    bA_eye = bA.reshape(dz, dz) + jnp.eye(dz, dtype=jnp.float32)
    bB_blk = bB.reshape(dz, dz)
    bslab = jnp.concatenate([bA_eye, bB_blk], axis=1)    # (8, 16)

    return dict(wenc=wenc, wkron=wkron, bslab=bslab)


if __name__ == "__main__":
    key = jax.random.PRNGKey(0)
    kp, kx, ke = jax.random.split(key, 3)

    params = init_params(kp)
    # The PyTorch module receives X of shape (dim_x, T) and stores X.t().
    X = jax.random.normal(kx, (DX, T), dtype=jnp.float32)
    X_t = X.T                                   # (T, dim_x)

    fwd = jax.jit(sequential_vae_forward)
    entropy, sample_z = fwd(params, X_t, ke)
    jax.block_until_ready((entropy, sample_z))

    assert sample_z.shape == (T, DZ)
    assert bool(jnp.isfinite(entropy)) and bool(jnp.all(jnp.isfinite(sample_z)))
    print("KERNEL_OK")
</pallas_src>

<mosaic_0001>
module attributes {stable_mosaic.version = 11 : i64} {
  func.func @_svae_kernel(%arg0: i32, %arg1: memref<8x24xf32, #tpu.memory_space<vmem>>, %arg2: memref<8x16xf32, #tpu.memory_space<vmem>>, %arg3: memref<24x24xf32, #tpu.memory_space<vmem>>, %arg4: memref<128x24xf32, #tpu.memory_space<vmem>>, %arg5: memref<8x128xf32, #tpu.memory_space<vmem>>) attributes {dimension_semantics = [#tpu.dimension_semantics<arbitrary>], iteration_bounds = array<i64: 1>, scalar_prefetch = 0 : i64, scratch_operands = 0 : i64, tpu.core_type = #tpu.core_type<tc>, window_params = [{pipeline_mode = #tpu.pipeline_mode<synchronous>, transform_indices = @transform_0, window_bounds = array<i64: 8, 24>}, {pipeline_mode = #tpu.pipeline_mode<synchronous>, transform_indices = @transform_1, window_bounds = array<i64: 8, 16>}, {pipeline_mode = #tpu.pipeline_mode<synchronous>, transform_indices = @transform_2, window_bounds = array<i64: 24, 24>}, {pipeline_mode = #tpu.pipeline_mode<synchronous>, transform_indices = @transform_3, window_bounds = array<i64: 128, 24>}, {pipeline_mode = #tpu.pipeline_mode<synchronous>, transform_indices = @transform_4, window_bounds = array<i64: 8, 128>}]} {
    %c0 = arith.constant 0 : index
    %c0_0 = arith.constant 0 : index
    %0 = vector.load %arg1[%c0, %c0_0] : memref<8x24xf32, #tpu.memory_space<vmem>>, vector<8x24xf32>
    %1 = vector.extract_strided_slice %0 {offsets = [0, 0], sizes = [8, 16], strides = [1, 1]} : vector<8x24xf32> to vector<8x16xf32>
    %2 = vector.extract_strided_slice %0 {offsets = [0, 16], sizes = [8, 8], strides = [1, 1]} : vector<8x24xf32> to vector<8x8xf32>
    %c0_1 = arith.constant 0 : index
    %c0_2 = arith.constant 0 : index
    %3 = vector.load %arg2[%c0_1, %c0_2] : memref<8x16xf32, #tpu.memory_space<vmem>>, vector<8x16xf32>
    %4 = vector.extract_strided_slice %3 {offsets = [0, 0], sizes = [8, 8], strides = [1, 1]} : vector<8x16xf32> to vector<8x8xf32>
    %5 = vector.extract_strided_slice %3 {offsets = [0, 8], sizes = [8, 8], strides = [1, 1]} : vector<8x16xf32> to vector<8x8xf32>
    %c0_3 = arith.constant 0 : index
    %c0_4 = arith.constant 0 : index
    %6 = vector.load %arg3[%c0_3, %c0_4] : memref<24x24xf32, #tpu.memory_space<vmem>>, vector<24x24xf32>
    %7 = vector.extract_strided_slice %6 {offsets = [0, 0], sizes = [16, 16], strides = [1, 1]} : vector<24x24xf32> to vector<16x16xf32>
    %8 = vector.extract_strided_slice %6 {offsets = [0, 16], sizes = [16, 8], strides = [1, 1]} : vector<24x24xf32> to vector<16x8xf32>
    %9 = vector.extract_strided_slice %6 {offsets = [16, 0], sizes = [1, 16], strides = [1, 1]} : vector<24x24xf32> to vector<1x16xf32>
    %10 = vector.extract_strided_slice %6 {offsets = [16, 16], sizes = [1, 8], strides = [1, 1]} : vector<24x24xf32> to vector<1x8xf32>
    %cst = arith.constant dense<0.000000e+00> : vector<8x16xf32>
    %11 = tpu.matmul %1, %7, %cst {dimension_numbers = #tpu.dot_dimension_numbers<[1], [0], [0], [1], [0, 0, 1, 1], [], []>} : vector<8x16xf32>, vector<16x16xf32>, vector<8x16xf32> -> vector<8x16xf32>
    %12 = vector.broadcast %9 : vector<1x16xf32> to vector<8x16xf32>
    %13 = arith.addf %11, %12 : vector<8x16xf32>
    %cst_5 = arith.constant 0.000000e+00 : f32
    %14 = vector.broadcast %cst_5 : f32 to vector<8x16xf32>
    %15 = arith.maximumf %13, %14 : vector<8x16xf32>
    %cst_6 = arith.constant dense<0.000000e+00> : vector<8x8xf32>
    %16 = tpu.matmul %15, %8, %cst_6 {dimension_numbers = #tpu.dot_dimension_numbers<[1], [0], [0], [1], [0, 0, 1, 1], [], []>} : vector<8x16xf32>, vector<16x8xf32>, vector<8x8xf32> -> vector<8x8xf32>
    %17 = vector.broadcast %10 : vector<1x8xf32> to vector<8x8xf32>
    %18 = arith.addf %16, %17 : vector<8x8xf32>
    %19 = vector.extract_strided_slice %15 {offsets = [0, 0], sizes = [1, 16], strides = [1, 1]} : vector<8x16xf32> to vector<1x16xf32>
    %20 = vector.shape_cast %19 : vector<1x16xf32> to vector<1x16xf32>
    %21 = vector.broadcast %20 : vector<1x16xf32> to vector<8x16xf32>
    %22 = vector.extract_strided_slice %15 {offsets = [1, 0], sizes = [1, 16], strides = [1, 1]} : vector<8x16xf32> to vector<1x16xf32>
    %23 = vector.shape_cast %22 : vector<1x16xf32> to vector<1x16xf32>
    %24 = vector.broadcast %23 : vector<1x16xf32> to vector<8x16xf32>
    %25 = vector.extract_strided_slice %15 {offsets = [2, 0], sizes = [1, 16], strides = [1, 1]} : vector<8x16xf32> to vector<1x16xf32>
    %26 = vector.shape_cast %25 : vector<1x16xf32> to vector<1x16xf32>
    %27 = vector.broadcast %26 : vector<1x16xf32> to vector<8x16xf32>
    %28 = vector.extract_strided_slice %15 {offsets = [3, 0], sizes = [1, 16], strides = [1, 1]} : vector<8x16xf32> to vector<1x16xf32>
    %29 = vector.shape_cast %28 : vector<1x16xf32> to vector<1x16xf32>
    %30 = vector.broadcast %29 : vector<1x16xf32> to vector<8x16xf32>
    %31 = vector.extract_strided_slice %15 {offsets = [4, 0], sizes = [1, 16], strides = [1, 1]} : vector<8x16xf32> to vector<1x16xf32>
    %32 = vector.shape_cast %31 : vector<1x16xf32> to vector<1x16xf32>
    %33 = vector.broadcast %32 : vector<1x16xf32> to vector<8x16xf32>
    %34 = vector.extract_strided_slice %15 {offsets = [5, 0], sizes = [1, 16], strides = [1, 1]} : vector<8x16xf32> to vector<1x16xf32>
    %35 = vector.shape_cast %34 : vector<1x16xf32> to vector<1x16xf32>
    %36 = vector.broadcast %35 : vector<1x16xf32> to vector<8x16xf32>
    %37 = vector.extract_strided_slice %15 {offsets = [6, 0], sizes = [1, 16], strides = [1, 1]} : vector<8x16xf32> to vector<1x16xf32>
    %38 = vector.shape_cast %37 : vector<1x16xf32> to vector<1x16xf32>
    %39 = vector.broadcast %38 : vector<1x16xf32> to vector<8x16xf32>
    %40 = vector.extract_strided_slice %15 {offsets = [7, 0], sizes = [1, 16], strides = [1, 1]} : vector<8x16xf32> to vector<1x16xf32>
    %41 = vector.shape_cast %40 : vector<1x16xf32> to vector<1x16xf32>
    %42 = vector.broadcast %41 : vector<1x16xf32> to vector<8x16xf32>
    %43 = tpu.concatenate %21, %24, %27, %30, %33, %36, %39, %42 in 0 : vector<8x16xf32>, vector<8x16xf32>, vector<8x16xf32>, vector<8x16xf32>, vector<8x16xf32>, vector<8x16xf32>, vector<8x16xf32>, vector<8x16xf32> -> vector<64x16xf32>
    %44 = tpu.concatenate %43, %43, %43, %43, %43, %43, %43, %43 in 1 : vector<64x16xf32>, vector<64x16xf32>, vector<64x16xf32>, vector<64x16xf32>, vector<64x16xf32>, vector<64x16xf32>, vector<64x16xf32>, vector<64x16xf32> -> vector<64x128xf32>
    %45 = tpu.iota {dimensions = array<i32: 1>} : vector<64x128xi32>
    %46 = tpu.iota {dimensions = array<i32: 0>} : vector<64x128xi32>
    %c4_i32 = arith.constant 4 : i32
    %47 = vector.broadcast %c4_i32 : i32 to vector<64x128xi32>
    %48 = arith.shrsi %45, %47 : vector<64x128xi32>
    %c7_i32 = arith.constant 7 : i32
    %49 = vector.broadcast %c7_i32 : i32 to vector<64x128xi32>
    %50 = arith.andi %46, %49 : vector<64x128xi32>
    %51 = arith.cmpi eq, %48, %50 : vector<64x128xi32>
    %cst_7 = arith.constant 0.000000e+00 : f32
    %52 = vector.broadcast %cst_7 : f32 to vector<64x128xf32>
    %53 = arith.select %51, %44, %52 : vector<64x128xi1>, vector<64x128xf32>
    %c0_8 = arith.constant 0 : index
    %c0_9 = arith.constant 0 : index
    %54 = vector.load %arg4[%c0_8, %c0_9] : memref<128x24xf32, #tpu.memory_space<vmem>>, vector<128x24xf32>
    %cst_10 = arith.constant dense<0.000000e+00> : vector<64x24xf32>
    %55 = tpu.matmul %53, %54, %cst_10 {dimension_numbers = #tpu.dot_dimension_numbers<[1], [0], [0], [1], [0, 0, 1, 1], [], []>} : vector<64x128xf32>, vector<128x24xf32>, vector<64x24xf32> -> vector<64x24xf32>
    %cst_11 = arith.constant 0.000000e+00 : f32
    %56 = vector.broadcast %cst_11 : f32 to vector<8x8xf32>
    %57 = tpu.concatenate %4, %5, %56 in 1 : vector<8x8xf32>, vector<8x8xf32>, vector<8x8xf32> -> vector<8x24xf32>
    %58 = tpu.concatenate %57, %57, %57, %57, %57, %57, %57, %57 in 0 : vector<8x24xf32>, vector<8x24xf32>, vector<8x24xf32>, vector<8x24xf32>, vector<8x24xf32>, vector<8x24xf32>, vector<8x24xf32>, vector<8x24xf32> -> vector<64x24xf32>
    %59 = arith.addf %55, %58 : vector<64x24xf32>
    %60 = vector.extract_strided_slice %59 {offsets = [0, 0], sizes = [64, 8], strides = [1, 1]} : vector<64x24xf32> to vector<64x8xf32>
    %61 = vector.extract_strided_slice %59 {offsets = [0, 8], sizes = [64, 8], strides = [1, 1]} : vector<64x24xf32> to vector<64x8xf32>
    %62 = vector.extract_strided_slice %59 {offsets = [0, 16], sizes = [64, 8], strides = [1, 1]} : vector<64x24xf32> to vector<64x8xf32>
    %63 = vector.extract_strided_slice %61 {offsets = [8, 0], sizes = [56, 8], strides = [1, 1]} : vector<64x8xf32> to vector<56x8xf32>
    %64 = vector.extract_strided_slice %62 {offsets = [0, 0], sizes = [56, 8], strides = [1, 1]} : vector<64x8xf32> to vector<56x8xf32>
    %65 = arith.addf %63, %64 : vector<56x8xf32>
    %66 = tpu.iota {dimensions = array<i32: 1>} : vector<8x8xi32>
    %67 = tpu.iota {dimensions = array<i32: 0>} : vector<8x8xi32>
    %68 = arith.cmpi eq, %66, %67 : vector<8x8xi32>
    %cst_12 = arith.constant 1.000000e+00 : f32
    %cst_13 = arith.constant 0.000000e+00 : f32
    %69 = vector.broadcast %cst_12 : f32 to vector<8x8xf32>
    %70 = vector.broadcast %cst_13 : f32 to vector<8x8xf32>
    %71 = arith.select %68, %69, %70 : vector<8x8xi1>, vector<8x8xf32>
    %cst_14 = arith.constant 9.99999997E-7 : f32
    %72 = vector.broadcast %cst_14 : f32 to vector<8x8xf32>
    %73 = arith.mulf %72, %71 : vector<8x8xf32>
    %74 = tpu.iota {dimensions = array<i32: 0>} : vector<8x1xi32>
    %c0_i32 = arith.constant 0 : i32
    %75 = vector.broadcast %c0_i32 : i32 to vector<8x1xi32>
    %76 = arith.cmpi sgt, %74, %75 : vector<8x1xi32>
    %c1_i32 = arith.constant 1 : i32
    %77 = vector.broadcast %c1_i32 : i32 to vector<8x1xi32>
    %78 = arith.cmpi sgt, %74, %77 : vector<8x1xi32>
    %c2_i32 = arith.constant 2 : i32
    %79 = vector.broadcast %c2_i32 : i32 to vector<8x1xi32>
    %80 = arith.cmpi sgt, %74, %79 : vector<8x1xi32>
    %c3_i32 = arith.constant 3 : i32
    %81 = vector.broadcast %c3_i32 : i32 to vector<8x1xi32>
    %82 = arith.cmpi sgt, %74, %81 : vector<8x1xi32>
    %c4_i32_15 = arith.constant 4 : i32
    %83 = vector.broadcast %c4_i32_15 : i32 to vector<8x1xi32>
    %84 = arith.cmpi sgt, %74, %83 : vector<8x1xi32>
    %c5_i32 = arith.constant 5 : i32
    %85 = vector.broadcast %c5_i32 : i32 to vector<8x1xi32>
    %86 = arith.cmpi sgt, %74, %85 : vector<8x1xi32>
    %c6_i32 = arith.constant 6 : i32
    %87 = vector.broadcast %c6_i32 : i32 to vector<8x1xi32>
    %88 = arith.cmpi sgt, %74, %87 : vector<8x1xi32>
    %c7_i32_16 = arith.constant 7 : i32
    %89 = vector.broadcast %c7_i32_16 : i32 to vector<8x1xi32>
    %90 = arith.cmpi sgt, %74, %89 : vector<8x1xi32>
    %c0_i32_17 = arith.constant 0 : i32
    %91 = vector.broadcast %c0_i32_17 : i32 to vector<8x1xi32>
    %92 = arith.cmpi eq, %74, %91 : vector<8x1xi32>
    %c1_i32_18 = arith.constant 1 : i32
    %93 = vector.broadcast %c1_i32_18 : i32 to vector<8x1xi32>
    %94 = arith.cmpi eq, %74, %93 : vector<8x1xi32>
    %c2_i32_19 = arith.constant 2 : i32
    %95 = vector.broadcast %c2_i32_19 : i32 to vector<8x1xi32>
    %96 = arith.cmpi eq, %74, %95 : vector<8x1xi32>
    %c3_i32_20 = arith.constant 3 : i32
    %97 = vector.broadcast %c3_i32_20 : i32 to vector<8x1xi32>
    %98 = arith.cmpi eq, %74, %97 : vector<8x1xi32>
    %c4_i32_21 = arith.constant 4 : i32
    %99 = vector.broadcast %c4_i32_21 : i32 to vector<8x1xi32>
    %100 = arith.cmpi eq, %74, %99 : vector<8x1xi32>
    %c5_i32_22 = arith.constant 5 : i32
    %101 = vector.broadcast %c5_i32_22 : i32 to vector<8x1xi32>
    %102 = arith.cmpi eq, %74, %101 : vector<8x1xi32>
    %c6_i32_23 = arith.constant 6 : i32
    %103 = vector.broadcast %c6_i32_23 : i32 to vector<8x1xi32>
    %104 = arith.cmpi eq, %74, %103 : vector<8x1xi32>
    %c7_i32_24 = arith.constant 7 : i32
    %105 = vector.broadcast %c7_i32_24 : i32 to vector<8x1xi32>
    %106 = arith.cmpi eq, %74, %105 : vector<8x1xi32>
    %107 = vector.extract_strided_slice %60 {offsets = [0, 0], sizes = [8, 8], strides = [1, 1]} : vector<64x8xf32> to vector<8x8xf32>
    %cst_25 = arith.constant dense<0.000000e+00> : vector<8x8xf32>
    %108 = tpu.matmul %107, %107, %cst_25 {dimension_numbers = #tpu.dot_dimension_numbers<[1], [1], [0], [0], [0, 0, 1, 0], [], []>} : vector<8x8xf32>, vector<8x8xf32>, vector<8x8xf32> -> vector<8x8xf32>
    %109 = arith.addf %108, %73 : vector<8x8xf32>
    %110 = tpu.concatenate %71, %107 in 1 : vector<8x8xf32>, vector<8x8xf32> -> vector<8x16xf32>
    %111 = tpu.concatenate %109, %110 in 1 : vector<8x8xf32>, vector<8x16xf32> -> vector<8x24xf32>
    %112 = vector.extract_strided_slice %111 {offsets = [0, 0], sizes = [8, 1], strides = [1, 1]} : vector<8x24xf32> to vector<8x1xf32>
    %113 = vector.extract_strided_slice %112 {offsets = [0, 0], sizes = [1, 1], strides = [1, 1]} : vector<8x1xf32> to vector<1x1xf32>
    %cst_26 = arith.constant 9.99999996E-13 : f32
    %114 = vector.broadcast %cst_26 : f32 to vector<1x1xf32>
    %115 = arith.maximumf %113, %114 : vector<1x1xf32>
    %116 = math.rsqrt %115 : vector<1x1xf32>
    %117 = vector.extract_strided_slice %111 {offsets = [0, 0], sizes = [1, 24], strides = [1, 1]} : vector<8x24xf32> to vector<1x24xf32>
    %118 = vector.broadcast %116 : vector<1x1xf32> to vector<1x24xf32>
    %119 = arith.mulf %117, %118 : vector<1x24xf32>
    %120 = vector.broadcast %116 : vector<1x1xf32> to vector<8x1xf32>
    %121 = arith.mulf %112, %120 : vector<8x1xf32>
    %cst_27 = arith.constant 0.000000e+00 : f32
    %122 = vector.broadcast %cst_27 : f32 to vector<8x1xf32>
    %123 = arith.select %76, %121, %122 : vector<8x1xi1>, vector<8x1xf32>
    %124 = vector.broadcast %123 : vector<8x1xf32> to vector<8x24xf32>
    %125 = vector.broadcast %119 : vector<1x24xf32> to vector<8x24xf32>
    %126 = arith.mulf %124, %125 : vector<8x24xf32>
    %127 = arith.subf %111, %126 : vector<8x24xf32>
    %128 = vector.shape_cast %92 : vector<8x1xi1> to vector<8x1xi1>
    %129 = vector.broadcast %128 : vector<8x1xi1> to vector<8x24xi1>
    %130 = vector.shape_cast %119 : vector<1x24xf32> to vector<1x24xf32>
    %131 = vector.broadcast %130 : vector<1x24xf32> to vector<8x24xf32>
    %132 = arith.select %129, %131, %127 : vector<8x24xi1>, vector<8x24xf32>
    %133 = vector.extract_strided_slice %132 {offsets = [0, 1], sizes = [8, 1], strides = [1, 1]} : vector<8x24xf32> to vector<8x1xf32>
    %134 = vector.extract_strided_slice %133 {offsets = [1, 0], sizes = [1, 1], strides = [1, 1]} : vector<8x1xf32> to vector<1x1xf32>
    %cst_28 = arith.constant 9.99999996E-13 : f32
    %135 = vector.broadcast %cst_28 : f32 to vector<1x1xf32>
    %136 = arith.maximumf %134, %135 : vector<1x1xf32>
    %137 = math.rsqrt %136 : vector<1x1xf32>
    %138 = vector.extract_strided_slice %132 {offsets = [1, 0], sizes = [1, 24], strides = [1, 1]} : vector<8x24xf32> to vector<1x24xf32>
    %139 = vector.broadcast %137 : vector<1x1xf32> to vector<1x24xf32>
    %140 = arith.mulf %138, %139 : vector<1x24xf32>
    %141 = vector.broadcast %137 : vector<1x1xf32> to vector<8x1xf32>
    %142 = arith.mulf %133, %141 : vector<8x1xf32>
    %cst_29 = arith.constant 0.000000e+00 : f32
    %143 = vector.broadcast %cst_29 : f32 to vector<8x1xf32>
    %144 = arith.select %78, %142, %143 : vector<8x1xi1>, vector<8x1xf32>
    %145 = vector.broadcast %144 : vector<8x1xf32> to vector<8x24xf32>
    %146 = vector.broadcast %140 : vector<1x24xf32> to vector<8x24xf32>
    %147 = arith.mulf %145, %146 : vector<8x24xf32>
    %148 = arith.subf %132, %147 : vector<8x24xf32>
    %149 = vector.shape_cast %94 : vector<8x1xi1> to vector<8x1xi1>
    %150 = vector.broadcast %149 : vector<8x1xi1> to vector<8x24xi1>
    %151 = vector.shape_cast %140 : vector<1x24xf32> to vector<1x24xf32>
    %152 = vector.broadcast %151 : vector<1x24xf32> to vector<8x24xf32>
    %153 = arith.select %150, %152, %148 : vector<8x24xi1>, vector<8x24xf32>
    %154 = vector.extract_strided_slice %153 {offsets = [0, 2], sizes = [8, 1], strides = [1, 1]} : vector<8x24xf32> to vector<8x1xf32>
    %155 = vector.extract_strided_slice %154 {offsets = [2, 0], sizes = [1, 1], strides = [1, 1]} : vector<8x1xf32> to vector<1x1xf32>
    %cst_30 = arith.constant 9.99999996E-13 : f32
    %156 = vector.broadcast %cst_30 : f32 to vector<1x1xf32>
    %157 = arith.maximumf %155, %156 : vector<1x1xf32>
    %158 = math.rsqrt %157 : vector<1x1xf32>
    %159 = vector.extract_strided_slice %153 {offsets = [2, 0], sizes = [1, 24], strides = [1, 1]} : vector<8x24xf32> to vector<1x24xf32>
    %160 = vector.broadcast %158 : vector<1x1xf32> to vector<1x24xf32>
    %161 = arith.mulf %159, %160 : vector<1x24xf32>
    %162 = vector.broadcast %158 : vector<1x1xf32> to vector<8x1xf32>
    %163 = arith.mulf %154, %162 : vector<8x1xf32>
    %cst_31 = arith.constant 0.000000e+00 : f32
    %164 = vector.broadcast %cst_31 : f32 to vector<8x1xf32>
    %165 = arith.select %80, %163, %164 : vector<8x1xi1>, vector<8x1xf32>
    %166 = vector.broadcast %165 : vector<8x1xf32> to vector<8x24xf32>
    %167 = vector.broadcast %161 : vector<1x24xf32> to vector<8x24xf32>
    %168 = arith.mulf %166, %167 : vector<8x24xf32>
    %169 = arith.subf %153, %168 : vector<8x24xf32>
    %170 = vector.shape_cast %96 : vector<8x1xi1> to vector<8x1xi1>
    %171 = vector.broadcast %170 : vector<8x1xi1> to vector<8x24xi1>
    %172 = vector.shape_cast %161 : vector<1x24xf32> to vector<1x24xf32>
    %173 = vector.broadcast %172 : vector<1x24xf32> to vector<8x24xf32>
    %174 = arith.select %171, %173, %169 : vector<8x24xi1>, vector<8x24xf32>
    %175 = vector.extract_strided_slice %174 {offsets = [0, 3], sizes = [8, 1], strides = [1, 1]} : vector<8x24xf32> to vector<8x1xf32>
    %176 = vector.extract_strided_slice %175 {offsets = [3, 0], sizes = [1, 1], strides = [1, 1]} : vector<8x1xf32> to vector<1x1xf32>
    %cst_32 = arith.constant 9.99999996E-13 : f32
    %177 = vector.broadcast %cst_32 : f32 to vector<1x1xf32>
    %178 = arith.maximumf %176, %177 : vector<1x1xf32>
    %179 = math.rsqrt %178 : vector<1x1xf32>
    %180 = vector.extract_strided_slice %174 {offsets = [3, 0], sizes = [1, 24], strides = [1, 1]} : vector<8x24xf32> to vector<1x24xf32>
    %181 = vector.broadcast %179 : vector<1x1xf32> to vector<1x24xf32>
    %182 = arith.mulf %180, %181 : vector<1x24xf32>
    %183 = vector.broadcast %179 : vector<1x1xf32> to vector<8x1xf32>
    %184 = arith.mulf %175, %183 : vector<8x1xf32>
    %cst_33 = arith.constant 0.000000e+00 : f32
    %185 = vector.broadcast %cst_33 : f32 to vector<8x1xf32>
    %186 = arith.select %82, %184, %185 : vector<8x1xi1>, vector<8x1xf32>
    %187 = vector.broadcast %186 : vector<8x1xf32> to vector<8x24xf32>
    %188 = vector.broadcast %182 : vector<1x24xf32> to vector<8x24xf32>
    %189 = arith.mulf %187, %188 : vector<8x24xf32>
    %190 = arith.subf %174, %189 : vector<8x24xf32>
    %191 = vector.shape_cast %98 : vector<8x1xi1> to vector<8x1xi1>
    %192 = vector.broadcast %191 : vector<8x1xi1> to vector<8x24xi1>
    %193 = vector.shape_cast %182 : vector<1x24xf32> to vector<1x24xf32>
    %194 = vector.broadcast %193 : vector<1x24xf32> to vector<8x24xf32>
    %195 = arith.select %192, %194, %190 : vector<8x24xi1>, vector<8x24xf32>
    %196 = vector.extract_strided_slice %195 {offsets = [0, 4], sizes = [8, 1], strides = [1, 1]} : vector<8x24xf32> to vector<8x1xf32>
    %197 = vector.extract_strided_slice %196 {offsets = [4, 0], sizes = [1, 1], strides = [1, 1]} : vector<8x1xf32> to vector<1x1xf32>
    %cst_34 = arith.constant 9.99999996E-13 : f32
    %198 = vector.broadcast %cst_34 : f32 to vector<1x1xf32>
    %199 = arith.maximumf %197, %198 : vector<1x1xf32>
    %200 = math.rsqrt %199 : vector<1x1xf32>
    %201 = vector.extract_strided_slice %195 {offsets = [4, 0], sizes = [1, 24], strides = [1, 1]} : vector<8x24xf32> to vector<1x24xf32>
    %202 = vector.broadcast %200 : vector<1x1xf32> to vector<1x24xf32>
    %203 = arith.mulf %201, %202 : vector<1x24xf32>
    %204 = vector.broadcast %200 : vector<1x1xf32> to vector<8x1xf32>
    %205 = arith.mulf %196, %204 : vector<8x1xf32>
    %cst_35 = arith.constant 0.000000e+00 : f32
    %206 = vector.broadcast %cst_35 : f32 to vector<8x1xf32>
    %207 = arith.select %84, %205, %206 : vector<8x1xi1>, vector<8x1xf32>
    %208 = vector.broadcast %207 : vector<8x1xf32> to vector<8x24xf32>
    %209 = vector.broadcast %203 : vector<1x24xf32> to vector<8x24xf32>
    %210 = arith.mulf %208, %209 : vector<8x24xf32>
    %211 = arith.subf %195, %210 : vector<8x24xf32>
    %212 = vector.shape_cast %100 : vector<8x1xi1> to vector<8x1xi1>
    %213 = vector.broadcast %212 : vector<8x1xi1> to vector<8x24xi1>
    %214 = vector.shape_cast %203 : vector<1x24xf32> to vector<1x24xf32>
    %215 = vector.broadcast %214 : vector<1x24xf32> to vector<8x24xf32>
    %216 = arith.select %213, %215, %211 : vector<8x24xi1>, vector<8x24xf32>
    %217 = vector.extract_strided_slice %216 {offsets = [0, 5], sizes = [8, 1], strides = [1, 1]} : vector<8x24xf32> to vector<8x1xf32>
    %218 = vector.extract_strided_slice %217 {offsets = [5, 0], sizes = [1, 1], strides = [1, 1]} : vector<8x1xf32> to vector<1x1xf32>
    %cst_36 = arith.constant 9.99999996E-13 : f32
    %219 = vector.broadcast %cst_36 : f32 to vector<1x1xf32>
    %220 = arith.maximumf %218, %219 : vector<1x1xf32>
    %221 = math.rsqrt %220 : vector<1x1xf32>
    %222 = vector.extract_strided_slice %216 {offsets = [5, 0], sizes = [1, 24], strides = [1, 1]} : vector<8x24xf32> to vector<1x24xf32>
    %223 = vector.broadcast %221 : vector<1x1xf32> to vector<1x24xf32>
    %224 = arith.mulf %222, %223 : vector<1x24xf32>
    %225 = vector.broadcast %221 : vector<1x1xf32> to vector<8x1xf32>
    %226 = arith.mulf %217, %225 : vector<8x1xf32>
    %cst_37 = arith.constant 0.000000e+00 : f32
    %227 = vector.broadcast %cst_37 : f32 to vector<8x1xf32>
    %228 = arith.select %86, %226, %227 : vector<8x1xi1>, vector<8x1xf32>
    %229 = vector.broadcast %228 : vector<8x1xf32> to vector<8x24xf32>
    %230 = vector.broadcast %224 : vector<1x24xf32> to vector<8x24xf32>
    %231 = arith.mulf %229, %230 : vector<8x24xf32>
    %232 = arith.subf %216, %231 : vector<8x24xf32>
    %233 = vector.shape_cast %102 : vector<8x1xi1> to vector<8x1xi1>
    %234 = vector.broadcast %233 : vector<8x1xi1> to vector<8x24xi1>
    %235 = vector.shape_cast %224 : vector<1x24xf32> to vector<1x24xf32>
    %236 = vector.broadcast %235 : vector<1x24xf32> to vector<8x24xf32>
    %237 = arith.select %234, %236, %232 : vector<8x24xi1>, vector<8x24xf32>
    %238 = vector.extract_strided_slice %237 {offsets = [0, 6], sizes = [8, 1], strides = [1, 1]} : vector<8x24xf32> to vector<8x1xf32>
    %239 = vector.extract_strided_slice %238 {offsets = [6, 0], sizes = [1, 1], strides = [1, 1]} : vector<8x1xf32> to vector<1x1xf32>
    %cst_38 = arith.constant 9.99999996E-13 : f32
    %240 = vector.broadcast %cst_38 : f32 to vector<1x1xf32>
    %241 = arith.maximumf %239, %240 : vector<1x1xf32>
    %242 = math.rsqrt %241 : vector<1x1xf32>
    %243 = vector.extract_strided_slice %237 {offsets = [6, 0], sizes = [1, 24], strides = [1, 1]} : vector<8x24xf32> to vector<1x24xf32>
    %244 = vector.broadcast %242 : vector<1x1xf32> to vector<1x24xf32>
    %245 = arith.mulf %243, %244 : vector<1x24xf32>
    %246 = vector.broadcast %242 : vector<1x1xf32> to vector<8x1xf32>
    %247 = arith.mulf %238, %246 : vector<8x1xf32>
    %cst_39 = arith.constant 0.000000e+00 : f32
    %248 = vector.broadcast %cst_39 : f32 to vector<8x1xf32>
    %249 = arith.select %88, %247, %248 : vector<8x1xi1>, vector<8x1xf32>
    %250 = vector.broadcast %249 : vector<8x1xf32> to vector<8x24xf32>
    %251 = vector.broadcast %245 : vector<1x24xf32> to vector<8x24xf32>
    %252 = arith.mulf %250, %251 : vector<8x24xf32>
    %253 = arith.subf %237, %252 : vector<8x24xf32>
    %254 = vector.shape_cast %104 : vector<8x1xi1> to vector<8x1xi1>
    %255 = vector.broadcast %254 : vector<8x1xi1> to vector<8x24xi1>
    %256 = vector.shape_cast %245 : vector<1x24xf32> to vector<1x24xf32>
    %257 = vector.broadcast %256 : vector<1x24xf32> to vector<8x24xf32>
    %258 = arith.select %255, %257, %253 : vector<8x24xi1>, vector<8x24xf32>
    %259 = vector.extract_strided_slice %258 {offsets = [0, 7], sizes = [8, 1], strides = [1, 1]} : vector<8x24xf32> to vector<8x1xf32>
    %260 = vector.extract_strided_slice %259 {offsets = [7, 0], sizes = [1, 1], strides = [1, 1]} : vector<8x1xf32> to vector<1x1xf32>
    %cst_40 = arith.constant 9.99999996E-13 : f32
    %261 = vector.broadcast %cst_40 : f32 to vector<1x1xf32>
    %262 = arith.maximumf %260, %261 : vector<1x1xf32>
    %263 = math.rsqrt %262 : vector<1x1xf32>
    %264 = vector.extract_strided_slice %258 {offsets = [7, 0], sizes = [1, 24], strides = [1, 1]} : vector<8x24xf32> to vector<1x24xf32>
    %265 = vector.broadcast %263 : vector<1x1xf32> to vector<1x24xf32>
    %266 = arith.mulf %264, %265 : vector<1x24xf32>
    %267 = vector.broadcast %263 : vector<1x1xf32> to vector<8x1xf32>
    %268 = arith.mulf %259, %267 : vector<8x1xf32>
    %cst_41 = arith.constant 0.000000e+00 : f32
    %269 = vector.broadcast %cst_41 : f32 to vector<8x1xf32>
    %270 = arith.select %90, %268, %269 : vector<8x1xi1>, vector<8x1xf32>
    %271 = vector.broadcast %270 : vector<8x1xf32> to vector<8x24xf32>
    %272 = vector.broadcast %266 : vector<1x24xf32> to vector<8x24xf32>
    %273 = arith.mulf %271, %272 : vector<8x24xf32>
    %274 = arith.subf %258, %273 : vector<8x24xf32>
    %275 = vector.shape_cast %106 : vector<8x1xi1> to vector<8x1xi1>
    %276 = vector.broadcast %275 : vector<8x1xi1> to vector<8x24xi1>
    %277 = vector.shape_cast %266 : vector<1x24xf32> to vector<1x24xf32>
    %278 = vector.broadcast %277 : vector<1x24xf32> to vector<8x24xf32>
    %279 = arith.select %276, %278, %274 : vector<8x24xi1>, vector<8x24xf32>
    %280 = vector.extract_strided_slice %279 {offsets = [0, 8], sizes = [8, 16], strides = [1, 1]} : vector<8x24xf32> to vector<8x16xf32>
    %281 = vector.extract_strided_slice %280 {offsets = [0, 0], sizes = [8, 8], strides = [1, 1]} : vector<8x16xf32> to vector<8x8xf32>
    %282 = vector.extract_strided_slice %280 {offsets = [0, 8], sizes = [8, 8], strides = [1, 1]} : vector<8x16xf32> to vector<8x8xf32>
    %283 = vector.extract_strided_slice %60 {offsets = [8, 0], sizes = [8, 8], strides = [1, 1]} : vector<64x8xf32> to vector<8x8xf32>
    %284 = vector.extract_strided_slice %65 {offsets = [0, 0], sizes = [8, 8], strides = [1, 1]} : vector<56x8xf32> to vector<8x8xf32>
    %285 = tpu.concatenate %283, %284 in 1 : vector<8x8xf32>, vector<8x8xf32> -> vector<8x16xf32>
    %cst_42 = arith.constant dense<0.000000e+00> : vector<8x8xf32>
    %286 = tpu.matmul %285, %285, %cst_42 {dimension_numbers = #tpu.dot_dimension_numbers<[1], [1], [0], [0], [0, 0, 1, 0], [], []>} : vector<8x16xf32>, vector<8x16xf32>, vector<8x8xf32> -> vector<8x8xf32>
    %cst_43 = arith.constant dense<0.000000e+00> : vector<8x8xf32>
    %287 = tpu.matmul %284, %282, %cst_43 {dimension_numbers = #tpu.dot_dimension_numbers<[1], [1], [0], [0], [0, 0, 1, 0], [], []>} : vector<8x8xf32>, vector<8x8xf32>, vector<8x8xf32> -> vector<8x8xf32>
    %cst_44 = arith.constant dense<0.000000e+00> : vector<8x8xf32>
    %288 = tpu.matmul %287, %287, %cst_44 {dimension_numbers = #tpu.dot_dimension_numbers<[1], [1], [0], [0], [0, 0, 1, 0], [], []>} : vector<8x8xf32>, vector<8x8xf32>, vector<8x8xf32> -> vector<8x8xf32>
    %cst_45 = arith.constant dense<0.000000e+00> : vector<8x8xf32>
    %289 = tpu.matmul %287, %281, %cst_45 {dimension_numbers = #tpu.dot_dimension_numbers<[1], [0], [0], [1], [0, 0, 1, 1], [], []>} : vector<8x8xf32>, vector<8x8xf32>, vector<8x8xf32> -> vector<8x8xf32>
    %290 = arith.subf %286, %288 : vector<8x8xf32>
    %291 = arith.addf %290, %73 : vector<8x8xf32>
    %292 = arith.subf %71, %289 : vector<8x8xf32>
    %293 = tpu.concatenate %292, %283 in 1 : vector<8x8xf32>, vector<8x8xf32> -> vector<8x16xf32>
    %294 = tpu.concatenate %291, %293 in 1 : vector<8x8xf32>, vector<8x16xf32> -> vector<8x24xf32>
    %295 = vector.extract_strided_slice %294 {offsets = [0, 0], sizes = [8, 1], strides = [1, 1]} : vector<8x24xf32> to vector<8x1xf32>
    %296 = vector.extract_strided_slice %295 {offsets = [0, 0], sizes = [1, 1], strides = [1, 1]} : vector<8x1xf32> to vector<1x1xf32>
    %cst_46 = arith.constant 9.99999996E-13 : f32
    %297 = vector.broadcast %cst_46 : f32 to vector<1x1xf32>
    %298 = arith.maximumf %296, %297 : vector<1x1xf32>
    %299 = math.rsqrt %298 : vector<1x1xf32>
    %300 = vector.extract_strided_slice %294 {offsets = [0, 0], sizes = [1, 24], strides = [1, 1]} : vector<8x24xf32> to vector<1x24xf32>
    %301 = vector.broadcast %299 : vector<1x1xf32> to vector<1x24xf32>
    %302 = arith.mulf %300, %301 : vector<1x24xf32>
    %303 = vector.broadcast %299 : vector<1x1xf32> to vector<8x1xf32>
    %304 = arith.mulf %295, %303 : vector<8x1xf32>
    %cst_47 = arith.constant 0.000000e+00 : f32
    %305 = vector.broadcast %cst_47 : f32 to vector<8x1xf32>
    %306 = arith.select %76, %304, %305 : vector<8x1xi1>, vector<8x1xf32>
    %307 = vector.broadcast %306 : vector<8x1xf32> to vector<8x24xf32>
    %308 = vector.broadcast %302 : vector<1x24xf32> to vector<8x24xf32>
    %309 = arith.mulf %307, %308 : vector<8x24xf32>
    %310 = arith.subf %294, %309 : vector<8x24xf32>
    %311 = vector.shape_cast %92 : vector<8x1xi1> to vector<8x1xi1>
    %312 = vector.broadcast %311 : vector<8x1xi1> to vector<8x24xi1>
    %313 = vector.shape_cast %302 : vector<1x24xf32> to vector<1x24xf32>
    %314 = vector.broadcast %313 : vector<1x24xf32> to vector<8x24xf32>
    %315 = arith.select %312, %314, %310 : vector<8x24xi1>, vector<8x24xf32>
    %316 = vector.extract_strided_slice %315 {offsets = [0, 1], sizes = [8, 1], strides = [1, 1]} : vector<8x24xf32> to vector<8x1xf32>
    %317 = vector.extract_strided_slice %316 {offsets = [1, 0], sizes = [1, 1], strides = [1, 1]} : vector<8x1xf32> to vector<1x1xf32>
    %cst_48 = arith.constant 9.99999996E-13 : f32
    %318 = vector.broadcast %cst_48 : f32 to vector<1x1xf32>
    %319 = arith.maximumf %317, %318 : vector<1x1xf32>
    %320 = math.rsqrt %319 : vector<1x1xf32>
    %321 = vector.extract_strided_slice %315 {offsets = [1, 0], sizes = [1, 24], strides = [1, 1]} : vector<8x24xf32> to vector<1x24xf32>
    %322 = vector.broadcast %320 : vector<1x1xf32> to vector<1x24xf32>
    %323 = arith.mulf %321, %322 : vector<1x24xf32>
    %324 = vector.broadcast %320 : vector<1x1xf32> to vector<8x1xf32>
    %325 = arith.mulf %316, %324 : vector<8x1xf32>
    %cst_49 = arith.constant 0.000000e+00 : f32
    %326 = vector.broadcast %cst_49 : f32 to vector<8x1xf32>
    %327 = arith.select %78, %325, %326 : vector<8x1xi1>, vector<8x1xf32>
    %328 = vector.broadcast %327 : vector<8x1xf32> to vector<8x24xf32>
    %329 = vector.broadcast %323 : vector<1x24xf32> to vector<8x24xf32>
    %330 = arith.mulf %328, %329 : vector<8x24xf32>
    %331 = arith.subf %315, %330 : vector<8x24xf32>
    %332 = vector.shape_cast %94 : vector<8x1xi1> to vector<8x1xi1>
    %333 = vector.broadcast %332 : vector<8x1xi1> to vector<8x24xi1>
    %334 = vector.shape_cast %323 : vector<1x24xf32> to vector<1x24xf32>
    %335 = vector.broadcast %334 : vector<1x24xf32> to vector<8x24xf32>
    %336 = arith.select %333, %335, %331 : vector<8x24xi1>, vector<8x24xf32>
    %337 = vector.extract_strided_slice %336 {offsets = [0, 2], sizes = [8, 1], strides = [1, 1]} : vector<8x24xf32> to vector<8x1xf32>
    %338 = vector.extract_strided_slice %337 {offsets = [2, 0], sizes = [1, 1], strides = [1, 1]} : vector<8x1xf32> to vector<1x1xf32>
    %cst_50 = arith.constant 9.99999996E-13 : f32
    %339 = vector.broadcast %cst_50 : f32 to vector<1x1xf32>
    %340 = arith.maximumf %338, %339 : vector<1x1xf32>
    %341 = math.rsqrt %340 : vector<1x1xf32>
    %342 = vector.extract_strided_slice %336 {offsets = [2, 0], sizes = [1, 24], strides = [1, 1]} : vector<8x24xf32> to vector<1x24xf32>
    %343 = vector.broadcast %341 : vector<1x1xf32> to vector<1x24xf32>
    %344 = arith.mulf %342, %343 : vector<1x24xf32>
    %345 = vector.broadcast %341 : vector<1x1xf32> to vector<8x1xf32>
    %346 = arith.mulf %337, %345 : vector<8x1xf32>
    %cst_51 = arith.constant 0.000000e+00 : f32
    %347 = vector.broadcast %cst_51 : f32 to vector<8x1xf32>
    %348 = arith.select %80, %346, %347 : vector<8x1xi1>, vector<8x1xf32>
    %349 = vector.broadcast %348 : vector<8x1xf32> to vector<8x24xf32>
    %350 = vector.broadcast %344 : vector<1x24xf32> to vector<8x24xf32>
    %351 = arith.mulf %349, %350 : vector<8x24xf32>
    %352 = arith.subf %336, %351 : vector<8x24xf32>
    %353 = vector.shape_cast %96 : vector<8x1xi1> to vector<8x1xi1>
    %354 = vector.broadcast %353 : vector<8x1xi1> to vector<8x24xi1>
    %355 = vector.shape_cast %344 : vector<1x24xf32> to vector<1x24xf32>
    %356 = vector.broadcast %355 : vector<1x24xf32> to vector<8x24xf32>
    %357 = arith.select %354, %356, %352 : vector<8x24xi1>, vector<8x24xf32>
    %358 = vector.extract_strided_slice %357 {offsets = [0, 3], sizes = [8, 1], strides = [1, 1]} : vector<8x24xf32> to vector<8x1xf32>
    %359 = vector.extract_strided_slice %358 {offsets = [3, 0], sizes = [1, 1], strides = [1, 1]} : vector<8x1xf32> to vector<1x1xf32>
    %cst_52 = arith.constant 9.99999996E-13 : f32
    %360 = vector.broadcast %cst_52 : f32 to vector<1x1xf32>
    %361 = arith.maximumf %359, %360 : vector<1x1xf32>
    %362 = math.rsqrt %361 : vector<1x1xf32>
    %363 = vector.extract_strided_slice %357 {offsets = [3, 0], sizes = [1, 24], strides = [1, 1]} : vector<8x24xf32> to vector<1x24xf32>
    %364 = vector.broadcast %362 : vector<1x1xf32> to vector<1x24xf32>
    %365 = arith.mulf %363, %364 : vector<1x24xf32>
    %366 = vector.broadcast %362 : vector<1x1xf32> to vector<8x1xf32>
    %367 = arith.mulf %358, %366 : vector<8x1xf32>
    %cst_53 = arith.constant 0.000000e+00 : f32
    %368 = vector.broadcast %cst_53 : f32 to vector<8x1xf32>
    %369 = arith.select %82, %367, %368 : vector<8x1xi1>, vector<8x1xf32>
    %370 = vector.broadcast %369 : vector<8x1xf32> to vector<8x24xf32>
    %371 = vector.broadcast %365 : vector<1x24xf32> to vector<8x24xf32>
    %372 = arith.mulf %370, %371 : vector<8x24xf32>
    %373 = arith.subf %357, %372 : vector<8x24xf32>
    %374 = vector.shape_cast %98 : vector<8x1xi1> to vector<8x1xi1>
    %375 = vector.broadcast %374 : vector<8x1xi1> to vector<8x24xi1>
    %376 = vector.shape_cast %365 : vector<1x24xf32> to vector<1x24xf32>
    %377 = vector.broadcast %376 : vector<1x24xf32> to vector<8x24xf32>
    %378 = arith.select %375, %377, %373 : vector<8x24xi1>, vector<8x24xf32>
    %379 = vector.extract_strided_slice %378 {offsets = [0, 4], sizes = [8, 1], strides = [1, 1]} : vector<8x24xf32> to vector<8x1xf32>
    %380 = vector.extract_strided_slice %379 {offsets = [4, 0], sizes = [1, 1], strides = [1, 1]} : vector<8x1xf32> to vector<1x1xf32>
    %cst_54 = arith.constant 9.99999996E-13 : f32
    %381 = vector.broadcast %cst_54 : f32 to vector<1x1xf32>
    %382 = arith.maximumf %380, %381 : vector<1x1xf32>
    %383 = math.rsqrt %382 : vector<1x1xf32>
    %384 = vector.extract_strided_slice %378 {offsets = [4, 0], sizes = [1, 24], strides = [1, 1]} : vector<8x24xf32> to vector<1x24xf32>
    %385 = vector.broadcast %383 : vector<1x1xf32> to vector<1x24xf32>
    %386 = arith.mulf %384, %385 : vector<1x24xf32>
    %387 = vector.broadcast %383 : vector<1x1xf32> to vector<8x1xf32>
    %388 = arith.mulf %379, %387 : vector<8x1xf32>
    %cst_55 = arith.constant 0.000000e+00 : f32
    %389 = vector.broadcast %cst_55 : f32 to vector<8x1xf32>
    %390 = arith.select %84, %388, %389 : vector<8x1xi1>, vector<8x1xf32>
    %391 = vector.broadcast %390 : vector<8x1xf32> to vector<8x24xf32>
    %392 = vector.broadcast %386 : vector<1x24xf32> to vector<8x24xf32>
    %393 = arith.mulf %391, %392 : vector<8x24xf32>
    %394 = arith.subf %378, %393 : vector<8x24xf32>
    %395 = vector.shape_cast %100 : vector<8x1xi1> to vector<8x1xi1>
    %396 = vector.broadcast %395 : vector<8x1xi1> to vector<8x24xi1>
    %397 = vector.shape_cast %386 : vector<1x24xf32> to vector<1x24xf32>
    %398 = vector.broadcast %397 : vector<1x24xf32> to vector<8x24xf32>
    %399 = arith.select %396, %398, %394 : vector<8x24xi1>, vector<8x24xf32>
    %400 = vector.extract_strided_slice %399 {offsets = [0, 5], sizes = [8, 1], strides = [1, 1]} : vector<8x24xf32> to vector<8x1xf32>
    %401 = vector.extract_strided_slice %400 {offsets = [5, 0], sizes = [1, 1], strides = [1, 1]} : vector<8x1xf32> to vector<1x1xf32>
    %cst_56 = arith.constant 9.99999996E-13 : f32
    %402 = vector.broadcast %cst_56 : f32 to vector<1x1xf32>
    %403 = arith.maximumf %401, %402 : vector<1x1xf32>
    %404 = math.rsqrt %403 : vector<1x1xf32>
    %405 = vector.extract_strided_slice %399 {offsets = [5, 0], sizes = [1, 24], strides = [1, 1]} : vector<8x24xf32> to vector<1x24xf32>
    %406 = vector.broadcast %404 : vector<1x1xf32> to vector<1x24xf32>
    %407 = arith.mulf %405, %406 : vector<1x24xf32>
    %408 = vector.broadcast %404 : vector<1x1xf32> to vector<8x1xf32>
    %409 = arith.mulf %400, %408 : vector<8x1xf32>
    %cst_57 = arith.constant 0.000000e+00 : f32
    %410 = vector.broadcast %cst_57 : f32 to vector<8x1xf32>
    %411 = arith.select %86, %409, %410 : vector<8x1xi1>, vector<8x1xf32>
    %412 = vector.broadcast %411 : vector<8x1xf32> to vector<8x24xf32>
    %413 = vector.broadcast %407 : vector<1x24xf32> to vector<8x24xf32>
    %414 = arith.mulf %412, %413 : vector<8x24xf32>
    %415 = arith.subf %399, %414 : vector<8x24xf32>
    %416 = vector.shape_cast %102 : vector<8x1xi1> to vector<8x1xi1>
    %417 = vector.broadcast %416 : vector<8x1xi1> to vector<8x24xi1>
    %418 = vector.shape_cast %407 : vector<1x24xf32> to vector<1x24xf32>
    %419 = vector.broadcast %418 : vector<1x24xf32> to vector<8x24xf32>
    %420 = arith.select %417, %419, %415 : vector<8x24xi1>, vector<8x24xf32>
    %421 = vector.extract_strided_slice %420 {offsets = [0, 6], sizes = [8, 1], strides = [1, 1]} : vector<8x24xf32> to vector<8x1xf32>
    %422 = vector.extract_strided_slice %421 {offsets = [6, 0], sizes = [1, 1], strides = [1, 1]} : vector<8x1xf32> to vector<1x1xf32>
    %cst_58 = arith.constant 9.99999996E-13 : f32
    %423 = vector.broadcast %cst_58 : f32 to vector<1x1xf32>
    %424 = arith.maximumf %422, %423 : vector<1x1xf32>
    %425 = math.rsqrt %424 : vector<1x1xf32>
    %426 = vector.extract_strided_slice %420 {offsets = [6, 0], sizes = [1, 24], strides = [1, 1]} : vector<8x24xf32> to vector<1x24xf32>
    %427 = vector.broadcast %425 : vector<1x1xf32> to vector<1x24xf32>
    %428 = arith.mulf %426, %427 : vector<1x24xf32>
    %429 = vector.broadcast %425 : vector<1x1xf32> to vector<8x1xf32>
    %430 = arith.mulf %421, %429 : vector<8x1xf32>
    %cst_59 = arith.constant 0.000000e+00 : f32
    %431 = vector.broadcast %cst_59 : f32 to vector<8x1xf32>
    %432 = arith.select %88, %430, %431 : vector<8x1xi1>, vector<8x1xf32>
    %433 = vector.broadcast %432 : vector<8x1xf32> to vector<8x24xf32>
    %434 = vector.broadcast %428 : vector<1x24xf32> to vector<8x24xf32>
    %435 = arith.mulf %433, %434 : vector<8x24xf32>
    %436 = arith.subf %420, %435 : vector<8x24xf32>
    %437 = vector.shape_cast %104 : vector<8x1xi1> to vector<8x1xi1>
    %438 = vector.broadcast %437 : vector<8x1xi1> to vector<8x24xi1>
    %439 = vector.shape_cast %428 : vector<1x24xf32> to vector<1x24xf32>
    %440 = vector.broadcast %439 : vector<1x24xf32> to vector<8x24xf32>
    %441 = arith.select %438, %440, %436 : vector<8x24xi1>, vector<8x24xf32>
    %442 = vector.extract_strided_slice %441 {offsets = [0, 7], sizes = [8, 1], strides = [1, 1]} : vector<8x24xf32> to vector<8x1xf32>
    %443 = vector.extract_strided_slice %442 {offsets = [7, 0], sizes = [1, 1], strides = [1, 1]} : vector<8x1xf32> to vector<1x1xf32>
    %cst_60 = arith.constant 9.99999996E-13 : f32
    %444 = vector.broadcast %cst_60 : f32 to vector<1x1xf32>
    %445 = arith.maximumf %443, %444 : vector<1x1xf32>
    %446 = math.rsqrt %445 : vector<1x1xf32>
    %447 = vector.extract_strided_slice %441 {offsets = [7, 0], sizes = [1, 24], strides = [1, 1]} : vector<8x24xf32> to vector<1x24xf32>
    %448 = vector.broadcast %446 : vector<1x1xf32> to vector<1x24xf32>
    %449 = arith.mulf %447, %448 : vector<1x24xf32>
    %450 = vector.broadcast %446 : vector<1x1xf32> to vector<8x1xf32>
    %451 = arith.mulf %442, %450 : vector<8x1xf32>
    %cst_61 = arith.constant 0.000000e+00 : f32
    %452 = vector.broadcast %cst_61 : f32 to vector<8x1xf32>
    %453 = arith.select %90, %451, %452 : vector<8x1xi1>, vector<8x1xf32>
    %454 = vector.broadcast %453 : vector<8x1xf32> to vector<8x24xf32>
    %455 = vector.broadcast %449 : vector<1x24xf32> to vector<8x24xf32>
    %456 = arith.mulf %454, %455 : vector<8x24xf32>
    %457 = arith.subf %441, %456 : vector<8x24xf32>
    %458 = vector.shape_cast %106 : vector<8x1xi1> to vector<8x1xi1>
    %459 = vector.broadcast %458 : vector<8x1xi1> to vector<8x24xi1>
    %460 = vector.shape_cast %449 : vector<1x24xf32> to vector<1x24xf32>
    %461 = vector.broadcast %460 : vector<1x24xf32> to vector<8x24xf32>
    %462 = arith.select %459, %461, %457 : vector<8x24xi1>, vector<8x24xf32>
    %463 = vector.extract_strided_slice %462 {offsets = [0, 8], sizes = [8, 16], strides = [1, 1]} : vector<8x24xf32> to vector<8x16xf32>
    %464 = vector.extract_strided_slice %463 {offsets = [0, 0], sizes = [8, 8], strides = [1, 1]} : vector<8x16xf32> to vector<8x8xf32>
    %465 = vector.extract_strided_slice %463 {offsets = [0, 8], sizes = [8, 8], strides = [1, 1]} : vector<8x16xf32> to vector<8x8xf32>
    %466 = vector.extract_strided_slice %60 {offsets = [16, 0], sizes = [8, 8], strides = [1, 1]} : vector<64x8xf32> to vector<8x8xf32>
    %467 = vector.extract_strided_slice %65 {offsets = [8, 0], sizes = [8, 8], strides = [1, 1]} : vector<56x8xf32> to vector<8x8xf32>
    %468 = tpu.concatenate %466, %467 in 1 : vector<8x8xf32>, vector<8x8xf32> -> vector<8x16xf32>
    %cst_62 = arith.constant dense<0.000000e+00> : vector<8x8xf32>
    %469 = tpu.matmul %468, %468, %cst_62 {dimension_numbers = #tpu.dot_dimension_numbers<[1], [1], [0], [0], [0, 0, 1, 0], [], []>} : vector<8x16xf32>, vector<8x16xf32>, vector<8x8xf32> -> vector<8x8xf32>
    %cst_63 = arith.constant dense<0.000000e+00> : vector<8x8xf32>
    %470 = tpu.matmul %467, %465, %cst_63 {dimension_numbers = #tpu.dot_dimension_numbers<[1], [1], [0], [0], [0, 0, 1, 0], [], []>} : vector<8x8xf32>, vector<8x8xf32>, vector<8x8xf32> -> vector<8x8xf32>
    %cst_64 = arith.constant dense<0.000000e+00> : vector<8x8xf32>
    %471 = tpu.matmul %470, %470, %cst_64 {dimension_numbers = #tpu.dot_dimension_numbers<[1], [1], [0], [0], [0, 0, 1, 0], [], []>} : vector<8x8xf32>, vector<8x8xf32>, vector<8x8xf32> -> vector<8x8xf32>
    %cst_65 = arith.constant dense<0.000000e+00> : vector<8x8xf32>
    %472 = tpu.matmul %470, %464, %cst_65 {dimension_numbers = #tpu.dot_dimension_numbers<[1], [0], [0], [1], [0, 0, 1, 1], [], []>} : vector<8x8xf32>, vector<8x8xf32>, vector<8x8xf32> -> vector<8x8xf32>
    %473 = arith.subf %469, %471 : vector<8x8xf32>
    %474 = arith.addf %473, %73 : vector<8x8xf32>
    %475 = arith.subf %71, %472 : vector<8x8xf32>
    %476 = tpu.concatenate %475, %466 in 1 : vector<8x8xf32>, vector<8x8xf32> -> vector<8x16xf32>
    %477 = tpu.concatenate %474, %476 in 1 : vector<8x8xf32>, vector<8x16xf32> -> vector<8x24xf32>
    %478 = vector.extract_strided_slice %477 {offsets = [0, 0], sizes = [8, 1], strides = [1, 1]} : vector<8x24xf32> to vector<8x1xf32>
    %479 = vector.extract_strided_slice %478 {offsets = [0, 0], sizes = [1, 1], strides = [1, 1]} : vector<8x1xf32> to vector<1x1xf32>
    %cst_66 = arith.constant 9.99999996E-13 : f32
    %480 = vector.broadcast %cst_66 : f32 to vector<1x1xf32>
    %481 = arith.maximumf %479, %480 : vector<1x1xf32>
    %482 = math.rsqrt %481 : vector<1x1xf32>
    %483 = vector.extract_strided_slice %477 {offsets = [0, 0], sizes = [1, 24], strides = [1, 1]} : vector<8x24xf32> to vector<1x24xf32>
    %484 = vector.broadcast %482 : vector<1x1xf32> to vector<1x24xf32>
    %485 = arith.mulf %483, %484 : vector<1x24xf32>
    %486 = vector.broadcast %482 : vector<1x1xf32> to vector<8x1xf32>
    %487 = arith.mulf %478, %486 : vector<8x1xf32>
    %cst_67 = arith.constant 0.000000e+00 : f32
    %488 = vector.broadcast %cst_67 : f32 to vector<8x1xf32>
    %489 = arith.select %76, %487, %488 : vector<8x1xi1>, vector<8x1xf32>
    %490 = vector.broadcast %489 : vector<8x1xf32> to vector<8x24xf32>
    %491 = vector.broadcast %485 : vector<1x24xf32> to vector<8x24xf32>
    %492 = arith.mulf %490, %491 : vector<8x24xf32>
    %493 = arith.subf %477, %492 : vector<8x24xf32>
    %494 = vector.shape_cast %92 : vector<8x1xi1> to vector<8x1xi1>
    %495 = vector.broadcast %494 : vector<8x1xi1> to vector<8x24xi1>
    %496 = vector.shape_cast %485 : vector<1x24xf32> to vector<1x24xf32>
    %497 = vector.broadcast %496 : vector<1x24xf32> to vector<8x24xf32>
    %498 = arith.select %495, %497, %493 : vector<8x24xi1>, vector<8x24xf32>
    %499 = vector.extract_strided_slice %498 {offsets = [0, 1], sizes = [8, 1], strides = [1, 1]} : vector<8x24xf32> to vector<8x1xf32>
    %500 = vector.extract_strided_slice %499 {offsets = [1, 0], sizes = [1, 1], strides = [1, 1]} : vector<8x1xf32> to vector<1x1xf32>
    %cst_68 = arith.constant 9.99999996E-13 : f32
    %501 = vector.broadcast %cst_68 : f32 to vector<1x1xf32>
    %502 = arith.maximumf %500, %501 : vector<1x1xf32>
    %503 = math.rsqrt %502 : vector<1x1xf32>
    %504 = vector.extract_strided_slice %498 {offsets = [1, 0], sizes = [1, 24], strides = [1, 1]} : vector<8x24xf32> to vector<1x24xf32>
    %505 = vector.broadcast %503 : vector<1x1xf32> to vector<1x24xf32>
    %506 = arith.mulf %504, %505 : vector<1x24xf32>
    %507 = vector.broadcast %503 : vector<1x1xf32> to vector<8x1xf32>
    %508 = arith.mulf %499, %507 : vector<8x1xf32>
    %cst_69 = arith.constant 0.000000e+00 : f32
    %509 = vector.broadcast %cst_69 : f32 to vector<8x1xf32>
    %510 = arith.select %78, %508, %509 : vector<8x1xi1>, vector<8x1xf32>
    %511 = vector.broadcast %510 : vector<8x1xf32> to vector<8x24xf32>
    %512 = vector.broadcast %506 : vector<1x24xf32> to vector<8x24xf32>
    %513 = arith.mulf %511, %512 : vector<8x24xf32>
    %514 = arith.subf %498, %513 : vector<8x24xf32>
    %515 = vector.shape_cast %94 : vector<8x1xi1> to vector<8x1xi1>
    %516 = vector.broadcast %515 : vector<8x1xi1> to vector<8x24xi1>
    %517 = vector.shape_cast %506 : vector<1x24xf32> to vector<1x24xf32>
    %518 = vector.broadcast %517 : vector<1x24xf32> to vector<8x24xf32>
    %519 = arith.select %516, %518, %514 : vector<8x24xi1>, vector<8x24xf32>
    %520 = vector.extract_strided_slice %519 {offsets = [0, 2], sizes = [8, 1], strides = [1, 1]} : vector<8x24xf32> to vector<8x1xf32>
    %521 = vector.extract_strided_slice %520 {offsets = [2, 0], sizes = [1, 1], strides = [1, 1]} : vector<8x1xf32> to vector<1x1xf32>
    %cst_70 = arith.constant 9.99999996E-13 : f32
    %522 = vector.broadcast %cst_70 : f32 to vector<1x1xf32>
    %523 = arith.maximumf %521, %522 : vector<1x1xf32>
    %524 = math.rsqrt %523 : vector<1x1xf32>
    %525 = vector.extract_strided_slice %519 {offsets = [2, 0], sizes = [1, 24], strides = [1, 1]} : vector<8x24xf32> to vector<1x24xf32>
    %526 = vector.broadcast %524 : vector<1x1xf32> to vector<1x24xf32>
    %527 = arith.mulf %525, %526 : vector<1x24xf32>
    %528 = vector.broadcast %524 : vector<1x1xf32> to vector<8x1xf32>
    %529 = arith.mulf %520, %528 : vector<8x1xf32>
    %cst_71 = arith.constant 0.000000e+00 : f32
    %530 = vector.broadcast %cst_71 : f32 to vector<8x1xf32>
    %531 = arith.select %80, %529, %530 : vector<8x1xi1>, vector<8x1xf32>
    %532 = vector.broadcast %531 : vector<8x1xf32> to vector<8x24xf32>
    %533 = vector.broadcast %527 : vector<1x24xf32> to vector<8x24xf32>
    %534 = arith.mulf %532, %533 : vector<8x24xf32>
    %535 = arith.subf %519, %534 : vector<8x24xf32>
    %536 = vector.shape_cast %96 : vector<8x1xi1> to vector<8x1xi1>
    %537 = vector.broadcast %536 : vector<8x1xi1> to vector<8x24xi1>
    %538 = vector.shape_cast %527 : vector<1x24xf32> to vector<1x24xf32>
    %539 = vector.broadcast %538 : vector<1x24xf32> to vector<8x24xf32>
    %540 = arith.select %537, %539, %535 : vector<8x24xi1>, vector<8x24xf32>
    %541 = vector.extract_strided_slice %540 {offsets = [0, 3], sizes = [8, 1], strides = [1, 1]} : vector<8x24xf32> to vector<8x1xf32>
    %542 = vector.extract_strided_slice %541 {offsets = [3, 0], sizes = [1, 1], strides = [1, 1]} : vector<8x1xf32> to vector<1x1xf32>
    %cst_72 = arith.constant 9.99999996E-13 : f32
    %543 = vector.broadcast %cst_72 : f32 to vector<1x1xf32>
    %544 = arith.maximumf %542, %543 : vector<1x1xf32>
    %545 = math.rsqrt %544 : vector<1x1xf32>
    %546 = vector.extract_strided_slice %540 {offsets = [3, 0], sizes = [1, 24], strides = [1, 1]} : vector<8x24xf32> to vector<1x24xf32>
    %547 = vector.broadcast %545 : vector<1x1xf32> to vector<1x24xf32>
    %548 = arith.mulf %546, %547 : vector<1x24xf32>
    %549 = vector.broadcast %545 : vector<1x1xf32> to vector<8x1xf32>
    %550 = arith.mulf %541, %549 : vector<8x1xf32>
    %cst_73 = arith.constant 0.000000e+00 : f32
    %551 = vector.broadcast %cst_73 : f32 to vector<8x1xf32>
    %552 = arith.select %82, %550, %551 : vector<8x1xi1>, vector<8x1xf32>
    %553 = vector.broadcast %552 : vector<8x1xf32> to vector<8x24xf32>
    %554 = vector.broadcast %548 : vector<1x24xf32> to vector<8x24xf32>
    %555 = arith.mulf %553, %554 : vector<8x24xf32>
    %556 = arith.subf %540, %555 : vector<8x24xf32>
    %557 = vector.shape_cast %98 : vector<8x1xi1> to vector<8x1xi1>
    %558 = vector.broadcast %557 : vector<8x1xi1> to vector<8x24xi1>
    %559 = vector.shape_cast %548 : vector<1x24xf32> to vector<1x24xf32>
    %560 = vector.broadcast %559 : vector<1x24xf32> to vector<8x24xf32>
    %561 = arith.select %558, %560, %556 : vector<8x24xi1>, vector<8x24xf32>
    %562 = vector.extract_strided_slice %561 {offsets = [0, 4], sizes = [8, 1], strides = [1, 1]} : vector<8x24xf32> to vector<8x1xf32>
    %563 = vector.extract_strided_slice %562 {offsets = [4, 0], sizes = [1, 1], strides = [1, 1]} : vector<8x1xf32> to vector<1x1xf32>
    %cst_74 = arith.constant 9.99999996E-13 : f32
    %564 = vector.broadcast %cst_74 : f32 to vector<1x1xf32>
    %565 = arith.maximumf %563, %564 : vector<1x1xf32>
    %566 = math.rsqrt %565 : vector<1x1xf32>
    %567 = vector.extract_strided_slice %561 {offsets = [4, 0], sizes = [1, 24], strides = [1, 1]} : vector<8x24xf32> to vector<1x24xf32>
    %568 = vector.broadcast %566 : vector<1x1xf32> to vector<1x24xf32>
    %569 = arith.mulf %567, %568 : vector<1x24xf32>
    %570 = vector.broadcast %566 : vector<1x1xf32> to vector<8x1xf32>
    %571 = arith.mulf %562, %570 : vector<8x1xf32>
    %cst_75 = arith.constant 0.000000e+00 : f32
    %572 = vector.broadcast %cst_75 : f32 to vector<8x1xf32>
    %573 = arith.select %84, %571, %572 : vector<8x1xi1>, vector<8x1xf32>
    %574 = vector.broadcast %573 : vector<8x1xf32> to vector<8x24xf32>
    %575 = vector.broadcast %569 : vector<1x24xf32> to vector<8x24xf32>
    %576 = arith.mulf %574, %575 : vector<8x24xf32>
    %577 = arith.subf %561, %576 : vector<8x24xf32>
    %578 = vector.shape_cast %100 : vector<8x1xi1> to vector<8x1xi1>
    %579 = vector.broadcast %578 : vector<8x1xi1> to vector<8x24xi1>
    %580 = vector.shape_cast %569 : vector<1x24xf32> to vector<1x24xf32>
    %581 = vector.broadcast %580 : vector<1x24xf32> to vector<8x24xf32>
    %582 = arith.select %579, %581, %577 : vector<8x24xi1>, vector<8x24xf32>
    %583 = vector.extract_strided_slice %582 {offsets = [0, 5], sizes = [8, 1], strides = [1, 1]} : vector<8x24xf32> to vector<8x1xf32>
    %584 = vector.extract_strided_slice %583 {offsets = [5, 0], sizes = [1, 1], strides = [1, 1]} : vector<8x1xf32> to vector<1x1xf32>
    %cst_76 = arith.constant 9.99999996E-13 : f32
    %585 = vector.broadcast %cst_76 : f32 to vector<1x1xf32>
    %586 = arith.maximumf %584, %585 : vector<1x1xf32>
    %587 = math.rsqrt %586 : vector<1x1xf32>
    %588 = vector.extract_strided_slice %582 {offsets = [5, 0], sizes = [1, 24], strides = [1, 1]} : vector<8x24xf32> to vector<1x24xf32>
    %589 = vector.broadcast %587 : vector<1x1xf32> to vector<1x24xf32>
    %590 = arith.mulf %588, %589 : vector<1x24xf32>
    %591 = vector.broadcast %587 : vector<1x1xf32> to vector<8x1xf32>
    %592 = arith.mulf %583, %591 : vector<8x1xf32>
    %cst_77 = arith.constant 0.000000e+00 : f32
    %593 = vector.broadcast %cst_77 : f32 to vector<8x1xf32>
    %594 = arith.select %86, %592, %593 : vector<8x1xi1>, vector<8x1xf32>
    %595 = vector.broadcast %594 : vector<8x1xf32> to vector<8x24xf32>
    %596 = vector.broadcast %590 : vector<1x24xf32> to vector<8x24xf32>
    %597 = arith.mulf %595, %596 : vector<8x24xf32>
    %598 = arith.subf %582, %597 : vector<8x24xf32>
    %599 = vector.shape_cast %102 : vector<8x1xi1> to vector<8x1xi1>
    %600 = vector.broadcast %599 : vector<8x1xi1> to vector<8x24xi1>
    %601 = vector.shape_cast %590 : vector<1x24xf32> to vector<1x24xf32>
    %602 = vector.broadcast %601 : vector<1x24xf32> to vector<8x24xf32>
    %603 = arith.select %600, %602, %598 : vector<8x24xi1>, vector<8x24xf32>
    %604 = vector.extract_strided_slice %603 {offsets = [0, 6], sizes = [8, 1], strides = [1, 1]} : vector<8x24xf32> to vector<8x1xf32>
    %605 = vector.extract_strided_slice %604 {offsets = [6, 0], sizes = [1, 1], strides = [1, 1]} : vector<8x1xf32> to vector<1x1xf32>
    %cst_78 = arith.constant 9.99999996E-13 : f32
    %606 = vector.broadcast %cst_78 : f32 to vector<1x1xf32>
    %607 = arith.maximumf %605, %606 : vector<1x1xf32>
    %608 = math.rsqrt %607 : vector<1x1xf32>
    %609 = vector.extract_strided_slice %603 {offsets = [6, 0], sizes = [1, 24], strides = [1, 1]} : vector<8x24xf32> to vector<1x24xf32>
    %610 = vector.broadcast %608 : vector<1x1xf32> to vector<1x24xf32>
    %611 = arith.mulf %609, %610 : vector<1x24xf32>
    %612 = vector.broadcast %608 : vector<1x1xf32> to vector<8x1xf32>
    %613 = arith.mulf %604, %612 : vector<8x1xf32>
    %cst_79 = arith.constant 0.000000e+00 : f32
    %614 = vector.broadcast %cst_79 : f32 to vector<8x1xf32>
    %615 = arith.select %88, %613, %614 : vector<8x1xi1>, vector<8x1xf32>
    %616 = vector.broadcast %615 : vector<8x1xf32> to vector<8x24xf32>
    %617 = vector.broadcast %611 : vector<1x24xf32> to vector<8x24xf32>
    %618 = arith.mulf %616, %617 : vector<8x24xf32>
    %619 = arith.subf %603, %618 : vector<8x24xf32>
    %620 = vector.shape_cast %104 : vector<8x1xi1> to vector<8x1xi1>
    %621 = vector.broadcast %620 : vector<8x1xi1> to vector<8x24xi1>
    %622 = vector.shape_cast %611 : vector<1x24xf32> to vector<1x24xf32>
    %623 = vector.broadcast %622 : vector<1x24xf32> to vector<8x24xf32>
    %624 = arith.select %621, %623, %619 : vector<8x24xi1>, vector<8x24xf32>
    %625 = vector.extract_strided_slice %624 {offsets = [0, 7], sizes = [8, 1], strides = [1, 1]} : vector<8x24xf32> to vector<8x1xf32>
    %626 = vector.extract_strided_slice %625 {offsets = [7, 0], sizes = [1, 1], strides = [1, 1]} : vector<8x1xf32> to vector<1x1xf32>
    %cst_80 = arith.constant 9.99999996E-13 : f32
    %627 = vector.broadcast %cst_80 : f32 to vector<1x1xf32>
    %628 = arith.maximumf %626, %627 : vector<1x1xf32>
    %629 = math.rsqrt %628 : vector<1x1xf32>
    %630 = vector.extract_strided_slice %624 {offsets = [7, 0], sizes = [1, 24], strides = [1, 1]} : vector<8x24xf32> to vector<1x24xf32>
    %631 = vector.broadcast %629 : vector<1x1xf32> to vector<1x24xf32>
    %632 = arith.mulf %630, %631 : vector<1x24xf32>
    %633 = vector.broadcast %629 : vector<1x1xf32> to vector<8x1xf32>
    %634 = arith.mulf %625, %633 : vector<8x1xf32>
    %cst_81 = arith.constant 0.000000e+00 : f32
    %635 = vector.broadcast %cst_81 : f32 to vector<8x1xf32>
    %636 = arith.select %90, %634, %635 : vector<8x1xi1>, vector<8x1xf32>
    %637 = vector.broadcast %636 : vector<8x1xf32> to vector<8x24xf32>
    %638 = vector.broadcast %632 : vector<1x24xf32> to vector<8x24xf32>
    %639 = arith.mulf %637, %638 : vector<8x24xf32>
    %640 = arith.subf %624, %639 : vector<8x24xf32>
    %641 = vector.shape_cast %106 : vector<8x1xi1> to vector<8x1xi1>
    %642 = vector.broadcast %641 : vector<8x1xi1> to vector<8x24xi1>
    %643 = vector.shape_cast %632 : vector<1x24xf32> to vector<1x24xf32>
    %644 = vector.broadcast %643 : vector<1x24xf32> to vector<8x24xf32>
    %645 = arith.select %642, %644, %640 : vector<8x24xi1>, vector<8x24xf32>
    %646 = vector.extract_strided_slice %645 {offsets = [0, 8], sizes = [8, 16], strides = [1, 1]} : vector<8x24xf32> to vector<8x16xf32>
    %647 = vector.extract_strided_slice %646 {offsets = [0, 0], sizes = [8, 8], strides = [1, 1]} : vector<8x16xf32> to vector<8x8xf32>
    %648 = vector.extract_strided_slice %646 {offsets = [0, 8], sizes = [8, 8], strides = [1, 1]} : vector<8x16xf32> to vector<8x8xf32>
    %649 = vector.extract_strided_slice %60 {offsets = [24, 0], sizes = [8, 8], strides = [1, 1]} : vector<64x8xf32> to vector<8x8xf32>
    %650 = vector.extract_strided_slice %65 {offsets = [16, 0], sizes = [8, 8], strides = [1, 1]} : vector<56x8xf32> to vector<8x8xf32>
    %651 = tpu.concatenate %649, %650 in 1 : vector<8x8xf32>, vector<8x8xf32> -> vector<8x16xf32>
    %cst_82 = arith.constant dense<0.000000e+00> : vector<8x8xf32>
    %652 = tpu.matmul %651, %651, %cst_82 {dimension_numbers = #tpu.dot_dimension_numbers<[1], [1], [0], [0], [0, 0, 1, 0], [], []>} : vector<8x16xf32>, vector<8x16xf32>, vector<8x8xf32> -> vector<8x8xf32>
    %cst_83 = arith.constant dense<0.000000e+00> : vector<8x8xf32>
    %653 = tpu.matmul %650, %648, %cst_83 {dimension_numbers = #tpu.dot_dimension_numbers<[1], [1], [0], [0], [0, 0, 1, 0], [], []>} : vector<8x8xf32>, vector<8x8xf32>, vector<8x8xf32> -> vector<8x8xf32>
    %cst_84 = arith.constant dense<0.000000e+00> : vector<8x8xf32>
    %654 = tpu.matmul %653, %653, %cst_84 {dimension_numbers = #tpu.dot_dimension_numbers<[1], [1], [0], [0], [0, 0, 1, 0], [], []>} : vector<8x8xf32>, vector<8x8xf32>, vector<8x8xf32> -> vector<8x8xf32>
    %cst_85 = arith.constant dense<0.000000e+00> : vector<8x8xf32>
    %655 = tpu.matmul %653, %647, %cst_85 {dimension_numbers = #tpu.dot_dimension_numbers<[1], [0], [0], [1], [0, 0, 1, 1], [], []>} : vector<8x8xf32>, vector<8x8xf32>, vector<8x8xf32> -> vector<8x8xf32>
    %656 = arith.subf %652, %654 : vector<8x8xf32>
    %657 = arith.addf %656, %73 : vector<8x8xf32>
    %658 = arith.subf %71, %655 : vector<8x8xf32>
    %659 = tpu.concatenate %658, %649 in 1 : vector<8x8xf32>, vector<8x8xf32> -> vector<8x16xf32>
    %660 = tpu.concatenate %657, %659 in 1 : vector<8x8xf32>, vector<8x16xf32> -> vector<8x24xf32>
    %661 = vector.extract_strided_slice %660 {offsets = [0, 0], sizes = [8, 1], strides = [1, 1]} : vector<8x24xf32> to vector<8x1xf32>
    %662 = vector.extract_strided_slice %661 {offsets = [0, 0], sizes = [1, 1], strides = [1, 1]} : vector<8x1xf32> to vector<1x1xf32>
    %cst_86 = arith.constant 9.99999996E-13 : f32
    %663 = vector.broadcast %cst_86 : f32 to vector<1x1xf32>
    %664 = arith.maximumf %662, %663 : vector<1x1xf32>
    %665 = math.rsqrt %664 : vector<1x1xf32>
    %666 = vector.extract_strided_slice %660 {offsets = [0, 0], sizes = [1, 24], strides = [1, 1]} : vector<8x24xf32> to vector<1x24xf32>
    %667 = vector.broadcast %665 : vector<1x1xf32> to vector<1x24xf32>
    %668 = arith.mulf %666, %667 : vector<1x24xf32>
    %669 = vector.broadcast %665 : vector<1x1xf32> to vector<8x1xf32>
    %670 = arith.mulf %661, %669 : vector<8x1xf32>
    %cst_87 = arith.constant 0.000000e+00 : f32
    %671 = vector.broadcast %cst_87 : f32 to vector<8x1xf32>
    %672 = arith.select %76, %670, %671 : vector<8x1xi1>, vector<8x1xf32>
    %673 = vector.broadcast %672 : vector<8x1xf32> to vector<8x24xf32>
    %674 = vector.broadcast %668 : vector<1x24xf32> to vector<8x24xf32>
    %675 = arith.mulf %673, %674 : vector<8x24xf32>
    %676 = arith.subf %660, %675 : vector<8x24xf32>
    %677 = vector.shape_cast %92 : vector<8x1xi1> to vector<8x1xi1>
    %678 = vector.broadcast %677 : vector<8x1xi1> to vector<8x24xi1>
    %679 = vector.shape_cast %668 : vector<1x24xf32> to vector<1x24xf32>
    %680 = vector.broadcast %679 : vector<1x24xf32> to vector<8x24xf32>
    %681 = arith.select %678, %680, %676 : vector<8x24xi1>, vector<8x24xf32>
    %682 = vector.extract_strided_slice %681 {offsets = [0, 1], sizes = [8, 1], strides = [1, 1]} : vector<8x24xf32> to vector<8x1xf32>
    %683 = vector.extract_strided_slice %682 {offsets = [1, 0], sizes = [1, 1], strides = [1, 1]} : vector<8x1xf32> to vector<1x1xf32>
    %cst_88 = arith.constant 9.99999996E-13 : f32
    %684 = vector.broadcast %cst_88 : f32 to vector<1x1xf32>
    %685 = arith.maximumf %683, %684 : vector<1x1xf32>
    %686 = math.rsqrt %685 : vector<1x1xf32>
    %687 = vector.extract_strided_slice %681 {offsets = [1, 0], sizes = [1, 24], strides = [1, 1]} : vector<8x24xf32> to vector<1x24xf32>
    %688 = vector.broadcast %686 : vector<1x1xf32> to vector<1x24xf32>
    %689 = arith.mulf %687, %688 : vector<1x24xf32>
    %690 = vector.broadcast %686 : vector<1x1xf32> to vector<8x1xf32>
    %691 = arith.mulf %682, %690 : vector<8x1xf32>
    %cst_89 = arith.constant 0.000000e+00 : f32
    %692 = vector.broadcast %cst_89 : f32 to vector<8x1xf32>
    %693 = arith.select %78, %691, %692 : vector<8x1xi1>, vector<8x1xf32>
    %694 = vector.broadcast %693 : vector<8x1xf32> to vector<8x24xf32>
    %695 = vector.broadcast %689 : vector<1x24xf32> to vector<8x24xf32>
    %696 = arith.mulf %694, %695 : vector<8x24xf32>
    %697 = arith.subf %681, %696 : vector<8x24xf32>
    %698 = vector.shape_cast %94 : vector<8x1xi1> to vector<8x1xi1>
    %699 = vector.broadcast %698 : vector<8x1xi1> to vector<8x24xi1>
    %700 = vector.shape_cast %689 : vector<1x24xf32> to vector<1x24xf32>
    %701 = vector.broadcast %700 : vector<1x24xf32> to vector<8x24xf32>
    %702 = arith.select %699, %701, %697 : vector<8x24xi1>, vector<8x24xf32>
    %703 = vector.extract_strided_slice %702 {offsets = [0, 2], sizes = [8, 1], strides = [1, 1]} : vector<8x24xf32> to vector<8x1xf32>
    %704 = vector.extract_strided_slice %703 {offsets = [2, 0], sizes = [1, 1], strides = [1, 1]} : vector<8x1xf32> to vector<1x1xf32>
    %cst_90 = arith.constant 9.99999996E-13 : f32
    %705 = vector.broadcast %cst_90 : f32 to vector<1x1xf32>
    %706 = arith.maximumf %704, %705 : vector<1x1xf32>
    %707 = math.rsqrt %706 : vector<1x1xf32>
    %708 = vector.extract_strided_slice %702 {offsets = [2, 0], sizes = [1, 24], strides = [1, 1]} : vector<8x24xf32> to vector<1x24xf32>
    %709 = vector.broadcast %707 : vector<1x1xf32> to vector<1x24xf32>
    %710 = arith.mulf %708, %709 : vector<1x24xf32>
    %711 = vector.broadcast %707 : vector<1x1xf32> to vector<8x1xf32>
    %712 = arith.mulf %703, %711 : vector<8x1xf32>
    %cst_91 = arith.constant 0.000000e+00 : f32
    %713 = vector.broadcast %cst_91 : f32 to vector<8x1xf32>
    %714 = arith.select %80, %712, %713 : vector<8x1xi1>, vector<8x1xf32>
    %715 = vector.broadcast %714 : vector<8x1xf32> to vector<8x24xf32>
    %716 = vector.broadcast %710 : vector<1x24xf32> to vector<8x24xf32>
    %717 = arith.mulf %715, %716 : vector<8x24xf32>
    %718 = arith.subf %702, %717 : vector<8x24xf32>
    %719 = vector.shape_cast %96 : vector<8x1xi1> to vector<8x1xi1>
    %720 = vector.broadcast %719 : vector<8x1xi1> to vector<8x24xi1>
    %721 = vector.shape_cast %710 : vector<1x24xf32> to vector<1x24xf32>
    %722 = vector.broadcast %721 : vector<1x24xf32> to vector<8x24xf32>
    %723 = arith.select %720, %722, %718 : vector<8x24xi1>, vector<8x24xf32>
    %724 = vector.extract_strided_slice %723 {offsets = [0, 3], sizes = [8, 1], strides = [1, 1]} : vector<8x24xf32> to vector<8x1xf32>
    %725 = vector.extract_strided_slice %724 {offsets = [3, 0], sizes = [1, 1], strides = [1, 1]} : vector<8x1xf32> to vector<1x1xf32>
    %cst_92 = arith.constant 9.99999996E-13 : f32
    %726 = vector.broadcast %cst_92 : f32 to vector<1x1xf32>
    %727 = arith.maximumf %725, %726 : vector<1x1xf32>
    %728 = math.rsqrt %727 : vector<1x1xf32>
    %729 = vector.extract_strided_slice %723 {offsets = [3, 0], sizes = [1, 24], strides = [1, 1]} : vector<8x24xf32> to vector<1x24xf32>
    %730 = vector.broadcast %728 : vector<1x1xf32> to vector<1x24xf32>
    %731 = arith.mulf %729, %730 : vector<1x24xf32>
    %732 = vector.broadcast %728 : vector<1x1xf32> to vector<8x1xf32>
    %733 = arith.mulf %724, %732 : vector<8x1xf32>
    %cst_93 = arith.constant 0.000000e+00 : f32
    %734 = vector.broadcast %cst_93 : f32 to vector<8x1xf32>
    %735 = arith.select %82, %733, %734 : vector<8x1xi1>, vector<8x1xf32>
    %736 = vector.broadcast %735 : vector<8x1xf32> to vector<8x24xf32>
    %737 = vector.broadcast %731 : vector<1x24xf32> to vector<8x24xf32>
    %738 = arith.mulf %736, %737 : vector<8x24xf32>
    %739 = arith.subf %723, %738 : vector<8x24xf32>
    %740 = vector.shape_cast %98 : vector<8x1xi1> to vector<8x1xi1>
    %741 = vector.broadcast %740 : vector<8x1xi1> to vector<8x24xi1>
    %742 = vector.shape_cast %731 : vector<1x24xf32> to vector<1x24xf32>
    %743 = vector.broadcast %742 : vector<1x24xf32> to vector<8x24xf32>
    %744 = arith.select %741, %743, %739 : vector<8x24xi1>, vector<8x24xf32>
    %745 = vector.extract_strided_slice %744 {offsets = [0, 4], sizes = [8, 1], strides = [1, 1]} : vector<8x24xf32> to vector<8x1xf32>
    %746 = vector.extract_strided_slice %745 {offsets = [4, 0], sizes = [1, 1], strides = [1, 1]} : vector<8x1xf32> to vector<1x1xf32>
    %cst_94 = arith.constant 9.99999996E-13 : f32
    %747 = vector.broadcast %cst_94 : f32 to vector<1x1xf32>
    %748 = arith.maximumf %746, %747 : vector<1x1xf32>
    %749 = math.rsqrt %748 : vector<1x1xf32>
    %750 = vector.extract_strided_slice %744 {offsets = [4, 0], sizes = [1, 24], strides = [1, 1]} : vector<8x24xf32> to vector<1x24xf32>
    %751 = vector.broadcast %749 : vector<1x1xf32> to vector<1x24xf32>
    %752 = arith.mulf %750, %751 : vector<1x24xf32>
    %753 = vector.broadcast %749 : vector<1x1xf32> to vector<8x1xf32>
    %754 = arith.mulf %745, %753 : vector<8x1xf32>
    %cst_95 = arith.constant 0.000000e+00 : f32
    %755 = vector.broadcast %cst_95 : f32 to vector<8x1xf32>
    %756 = arith.select %84, %754, %755 : vector<8x1xi1>, vector<8x1xf32>
    %757 = vector.broadcast %756 : vector<8x1xf32> to vector<8x24xf32>
    %758 = vector.broadcast %752 : vector<1x24xf32> to vector<8x24xf32>
    %759 = arith.mulf %757, %758 : vector<8x24xf32>
    %760 = arith.subf %744, %759 : vector<8x24xf32>
    %761 = vector.shape_cast %100 : vector<8x1xi1> to vector<8x1xi1>
    %762 = vector.broadcast %761 : vector<8x1xi1> to vector<8x24xi1>
    %763 = vector.shape_cast %752 : vector<1x24xf32> to vector<1x24xf32>
    %764 = vector.broadcast %763 : vector<1x24xf32> to vector<8x24xf32>
    %765 = arith.select %762, %764, %760 : vector<8x24xi1>, vector<8x24xf32>
    %766 = vector.extract_strided_slice %765 {offsets = [0, 5], sizes = [8, 1], strides = [1, 1]} : vector<8x24xf32> to vector<8x1xf32>
    %767 = vector.extract_strided_slice %766 {offsets = [5, 0], sizes = [1, 1], strides = [1, 1]} : vector<8x1xf32> to vector<1x1xf32>
    %cst_96 = arith.constant 9.99999996E-13 : f32
    %768 = vector.broadcast %cst_96 : f32 to vector<1x1xf32>
    %769 = arith.maximumf %767, %768 : vector<1x1xf32>
    %770 = math.rsqrt %769 : vector<1x1xf32>
    %771 = vector.extract_strided_slice %765 {offsets = [5, 0], sizes = [1, 24], strides = [1, 1]} : vector<8x24xf32> to vector<1x24xf32>
    %772 = vector.broadcast %770 : vector<1x1xf32> to vector<1x24xf32>
    %773 = arith.mulf %771, %772 : vector<1x24xf32>
    %774 = vector.broadcast %770 : vector<1x1xf32> to vector<8x1xf32>
    %775 = arith.mulf %766, %774 : vector<8x1xf32>
    %cst_97 = arith.constant 0.000000e+00 : f32
    %776 = vector.broadcast %cst_97 : f32 to vector<8x1xf32>
    %777 = arith.select %86, %775, %776 : vector<8x1xi1>, vector<8x1xf32>
    %778 = vector.broadcast %777 : vector<8x1xf32> to vector<8x24xf32>
    %779 = vector.broadcast %773 : vector<1x24xf32> to vector<8x24xf32>
    %780 = arith.mulf %778, %779 : vector<8x24xf32>
    %781 = arith.subf %765, %780 : vector<8x24xf32>
    %782 = vector.shape_cast %102 : vector<8x1xi1> to vector<8x1xi1>
    %783 = vector.broadcast %782 : vector<8x1xi1> to vector<8x24xi1>
    %784 = vector.shape_cast %773 : vector<1x24xf32> to vector<1x24xf32>
    %785 = vector.broadcast %784 : vector<1x24xf32> to vector<8x24xf32>
    %786 = arith.select %783, %785, %781 : vector<8x24xi1>, vector<8x24xf32>
    %787 = vector.extract_strided_slice %786 {offsets = [0, 6], sizes = [8, 1], strides = [1, 1]} : vector<8x24xf32> to vector<8x1xf32>
    %788 = vector.extract_strided_slice %787 {offsets = [6, 0], sizes = [1, 1], strides = [1, 1]} : vector<8x1xf32> to vector<1x1xf32>
    %cst_98 = arith.constant 9.99999996E-13 : f32
    %789 = vector.broadcast %cst_98 : f32 to vector<1x1xf32>
    %790 = arith.maximumf %788, %789 : vector<1x1xf32>
    %791 = math.rsqrt %790 : vector<1x1xf32>
    %792 = vector.extract_strided_slice %786 {offsets = [6, 0], sizes = [1, 24], strides = [1, 1]} : vector<8x24xf32> to vector<1x24xf32>
    %793 = vector.broadcast %791 : vector<1x1xf32> to vector<1x24xf32>
    %794 = arith.mulf %792, %793 : vector<1x24xf32>
    %795 = vector.broadcast %791 : vector<1x1xf32> to vector<8x1xf32>
    %796 = arith.mulf %787, %795 : vector<8x1xf32>
    %cst_99 = arith.constant 0.000000e+00 : f32
    %797 = vector.broadcast %cst_99 : f32 to vector<8x1xf32>
    %798 = arith.select %88, %796, %797 : vector<8x1xi1>, vector<8x1xf32>
    %799 = vector.broadcast %798 : vector<8x1xf32> to vector<8x24xf32>
    %800 = vector.broadcast %794 : vector<1x24xf32> to vector<8x24xf32>
    %801 = arith.mulf %799, %800 : vector<8x24xf32>
    %802 = arith.subf %786, %801 : vector<8x24xf32>
    %803 = vector.shape_cast %104 : vector<8x1xi1> to vector<8x1xi1>
    %804 = vector.broadcast %803 : vector<8x1xi1> to vector<8x24xi1>
    %805 = vector.shape_cast %794 : vector<1x24xf32> to vector<1x24xf32>
    %806 = vector.broadcast %805 : vector<1x24xf32> to vector<8x24xf32>
    %807 = arith.select %804, %806, %802 : vector<8x24xi1>, vector<8x24xf32>
    %808 = vector.extract_strided_slice %807 {offsets = [0, 7], sizes = [8, 1], strides = [1, 1]} : vector<8x24xf32> to vector<8x1xf32>
    %809 = vector.extract_strided_slice %808 {offsets = [7, 0], sizes = [1, 1], strides = [1, 1]} : vector<8x1xf32> to vector<1x1xf32>
    %cst_100 = arith.constant 9.99999996E-13 : f32
    %810 = vector.broadcast %cst_100 : f32 to vector<1x1xf32>
    %811 = arith.maximumf %809, %810 : vector<1x1xf32>
    %812 = math.rsqrt %811 : vector<1x1xf32>
    %813 = vector.extract_strided_slice %807 {offsets = [7, 0], sizes = [1, 24], strides = [1, 1]} : vector<8x24xf32> to vector<1x24xf32>
    %814 = vector.broadcast %812 : vector<1x1xf32> to vector<1x24xf32>
    %815 = arith.mulf %813, %814 : vector<1x24xf32>
    %816 = vector.broadcast %812 : vector<1x1xf32> to vector<8x1xf32>
    %817 = arith.mulf %808, %816 : vector<8x1xf32>
    %cst_101 = arith.constant 0.000000e+00 : f32
    %818 = vector.broadcast %cst_101 : f32 to vector<8x1xf32>
    %819 = arith.select %90, %817, %818 : vector<8x1xi1>, vector<8x1xf32>
    %820 = vector.broadcast %819 : vector<8x1xf32> to vector<8x24xf32>
    %821 = vector.broadcast %815 : vector<1x24xf32> to vector<8x24xf32>
    %822 = arith.mulf %820, %821 : vector<8x24xf32>
    %823 = arith.subf %807, %822 : vector<8x24xf32>
    %824 = vector.shape_cast %106 : vector<8x1xi1> to vector<8x1xi1>
    %825 = vector.broadcast %824 : vector<8x1xi1> to vector<8x24xi1>
    %826 = vector.shape_cast %815 : vector<1x24xf32> to vector<1x24xf32>
    %827 = vector.broadcast %826 : vector<1x24xf32> to vector<8x24xf32>
    %828 = arith.select %825, %827, %823 : vector<8x24xi1>, vector<8x24xf32>
    %829 = vector.extract_strided_slice %828 {offsets = [0, 8], sizes = [8, 16], strides = [1, 1]} : vector<8x24xf32> to vector<8x16xf32>
    %830 = vector.extract_strided_slice %829 {offsets = [0, 0], sizes = [8, 8], strides = [1, 1]} : vector<8x16xf32> to vector<8x8xf32>
    %831 = vector.extract_strided_slice %829 {offsets = [0, 8], sizes = [8, 8], strides = [1, 1]} : vector<8x16xf32> to vector<8x8xf32>
    %832 = vector.extract_strided_slice %60 {offsets = [32, 0], sizes = [8, 8], strides = [1, 1]} : vector<64x8xf32> to vector<8x8xf32>
    %833 = vector.extract_strided_slice %65 {offsets = [24, 0], sizes = [8, 8], strides = [1, 1]} : vector<56x8xf32> to vector<8x8xf32>
    %834 = tpu.concatenate %832, %833 in 1 : vector<8x8xf32>, vector<8x8xf32> -> vector<8x16xf32>
    %cst_102 = arith.constant dense<0.000000e+00> : vector<8x8xf32>
    %835 = tpu.matmul %834, %834, %cst_102 {dimension_numbers = #tpu.dot_dimension_numbers<[1], [1], [0], [0], [0, 0, 1, 0], [], []>} : vector<8x16xf32>, vector<8x16xf32>, vector<8x8xf32> -> vector<8x8xf32>
    %cst_103 = arith.constant dense<0.000000e+00> : vector<8x8xf32>
    %836 = tpu.matmul %833, %831, %cst_103 {dimension_numbers = #tpu.dot_dimension_numbers<[1], [1], [0], [0], [0, 0, 1, 0], [], []>} : vector<8x8xf32>, vector<8x8xf32>, vector<8x8xf32> -> vector<8x8xf32>
    %cst_104 = arith.constant dense<0.000000e+00> : vector<8x8xf32>
    %837 = tpu.matmul %836, %836, %cst_104 {dimension_numbers = #tpu.dot_dimension_numbers<[1], [1], [0], [0], [0, 0, 1, 0], [], []>} : vector<8x8xf32>, vector<8x8xf32>, vector<8x8xf32> -> vector<8x8xf32>
    %cst_105 = arith.constant dense<0.000000e+00> : vector<8x8xf32>
    %838 = tpu.matmul %836, %830, %cst_105 {dimension_numbers = #tpu.dot_dimension_numbers<[1], [0], [0], [1], [0, 0, 1, 1], [], []>} : vector<8x8xf32>, vector<8x8xf32>, vector<8x8xf32> -> vector<8x8xf32>
    %839 = arith.subf %835, %837 : vector<8x8xf32>
    %840 = arith.addf %839, %73 : vector<8x8xf32>
    %841 = arith.subf %71, %838 : vector<8x8xf32>
    %842 = tpu.concatenate %841, %832 in 1 : vector<8x8xf32>, vector<8x8xf32> -> vector<8x16xf32>
    %843 = tpu.concatenate %840, %842 in 1 : vector<8x8xf32>, vector<8x16xf32> -> vector<8x24xf32>
    %844 = vector.extract_strided_slice %843 {offsets = [0, 0], sizes = [8, 1], strides = [1, 1]} : vector<8x24xf32> to vector<8x1xf32>
    %845 = vector.extract_strided_slice %844 {offsets = [0, 0], sizes = [1, 1], strides = [1, 1]} : vector<8x1xf32> to vector<1x1xf32>
    %cst_106 = arith.constant 9.99999996E-13 : f32
    %846 = vector.broadcast %cst_106 : f32 to vector<1x1xf32>
    %847 = arith.maximumf %845, %846 : vector<1x1xf32>
    %848 = math.rsqrt %847 : vector<1x1xf32>
    %849 = vector.extract_strided_slice %843 {offsets = [0, 0], sizes = [1, 24], strides = [1, 1]} : vector<8x24xf32> to vector<1x24xf32>
    %850 = vector.broadcast %848 : vector<1x1xf32> to vector<1x24xf32>
    %851 = arith.mulf %849, %850 : vector<1x24xf32>
    %852 = vector.broadcast %848 : vector<1x1xf32> to vector<8x1xf32>
    %853 = arith.mulf %844, %852 : vector<8x1xf32>
    %cst_107 = arith.constant 0.000000e+00 : f32
    %854 = vector.broadcast %cst_107 : f32 to vector<8x1xf32>
    %855 = arith.select %76, %853, %854 : vector<8x1xi1>, vector<8x1xf32>
    %856 = vector.broadcast %855 : vector<8x1xf32> to vector<8x24xf32>
    %857 = vector.broadcast %851 : vector<1x24xf32> to vector<8x24xf32>
    %858 = arith.mulf %856, %857 : vector<8x24xf32>
    %859 = arith.subf %843, %858 : vector<8x24xf32>
    %860 = vector.shape_cast %92 : vector<8x1xi1> to vector<8x1xi1>
    %861 = vector.broadcast %860 : vector<8x1xi1> to vector<8x24xi1>
    %862 = vector.shape_cast %851 : vector<1x24xf32> to vector<1x24xf32>
    %863 = vector.broadcast %862 : vector<1x24xf32> to vector<8x24xf32>
    %864 = arith.select %861, %863, %859 : vector<8x24xi1>, vector<8x24xf32>
    %865 = vector.extract_strided_slice %864 {offsets = [0, 1], sizes = [8, 1], strides = [1, 1]} : vector<8x24xf32> to vector<8x1xf32>
    %866 = vector.extract_strided_slice %865 {offsets = [1, 0], sizes = [1, 1], strides = [1, 1]} : vector<8x1xf32> to vector<1x1xf32>
    %cst_108 = arith.constant 9.99999996E-13 : f32
    %867 = vector.broadcast %cst_108 : f32 to vector<1x1xf32>
    %868 = arith.maximumf %866, %867 : vector<1x1xf32>
    %869 = math.rsqrt %868 : vector<1x1xf32>
    %870 = vector.extract_strided_slice %864 {offsets = [1, 0], sizes = [1, 24], strides = [1, 1]} : vector<8x24xf32> to vector<1x24xf32>
    %871 = vector.broadcast %869 : vector<1x1xf32> to vector<1x24xf32>
    %872 = arith.mulf %870, %871 : vector<1x24xf32>
    %873 = vector.broadcast %869 : vector<1x1xf32> to vector<8x1xf32>
    %874 = arith.mulf %865, %873 : vector<8x1xf32>
    %cst_109 = arith.constant 0.000000e+00 : f32
    %875 = vector.broadcast %cst_109 : f32 to vector<8x1xf32>
    %876 = arith.select %78, %874, %875 : vector<8x1xi1>, vector<8x1xf32>
    %877 = vector.broadcast %876 : vector<8x1xf32> to vector<8x24xf32>
    %878 = vector.broadcast %872 : vector<1x24xf32> to vector<8x24xf32>
    %879 = arith.mulf %877, %878 : vector<8x24xf32>
    %880 = arith.subf %864, %879 : vector<8x24xf32>
    %881 = vector.shape_cast %94 : vector<8x1xi1> to vector<8x1xi1>
    %882 = vector.broadcast %881 : vector<8x1xi1> to vector<8x24xi1>
    %883 = vector.shape_cast %872 : vector<1x24xf32> to vector<1x24xf32>
    %884 = vector.broadcast %883 : vector<1x24xf32> to vector<8x24xf32>
    %885 = arith.select %882, %884, %880 : vector<8x24xi1>, vector<8x24xf32>
    %886 = vector.extract_strided_slice %885 {offsets = [0, 2], sizes = [8, 1], strides = [1, 1]} : vector<8x24xf32> to vector<8x1xf32>
    %887 = vector.extract_strided_slice %886 {offsets = [2, 0], sizes = [1, 1], strides = [1, 1]} : vector<8x1xf32> to vector<1x1xf32>
    %cst_110 = arith.constant 9.99999996E-13 : f32
    %888 = vector.broadcast %cst_110 : f32 to vector<1x1xf32>
    %889 = arith.maximumf %887, %888 : vector<1x1xf32>
    %890 = math.rsqrt %889 : vector<1x1xf32>
    %891 = vector.extract_strided_slice %885 {offsets = [2, 0], sizes = [1, 24], strides = [1, 1]} : vector<8x24xf32> to vector<1x24xf32>
    %892 = vector.broadcast %890 : vector<1x1xf32> to vector<1x24xf32>
    %893 = arith.mulf %891, %892 : vector<1x24xf32>
    %894 = vector.broadcast %890 : vector<1x1xf32> to vector<8x1xf32>
    %895 = arith.mulf %886, %894 : vector<8x1xf32>
    %cst_111 = arith.constant 0.000000e+00 : f32
    %896 = vector.broadcast %cst_111 : f32 to vector<8x1xf32>
    %897 = arith.select %80, %895, %896 : vector<8x1xi1>, vector<8x1xf32>
    %898 = vector.broadcast %897 : vector<8x1xf32> to vector<8x24xf32>
    %899 = vector.broadcast %893 : vector<1x24xf32> to vector<8x24xf32>
    %900 = arith.mulf %898, %899 : vector<8x24xf32>
    %901 = arith.subf %885, %900 : vector<8x24xf32>
    %902 = vector.shape_cast %96 : vector<8x1xi1> to vector<8x1xi1>
    %903 = vector.broadcast %902 : vector<8x1xi1> to vector<8x24xi1>
    %904 = vector.shape_cast %893 : vector<1x24xf32> to vector<1x24xf32>
    %905 = vector.broadcast %904 : vector<1x24xf32> to vector<8x24xf32>
    %906 = arith.select %903, %905, %901 : vector<8x24xi1>, vector<8x24xf32>
    %907 = vector.extract_strided_slice %906 {offsets = [0, 3], sizes = [8, 1], strides = [1, 1]} : vector<8x24xf32> to vector<8x1xf32>
    %908 = vector.extract_strided_slice %907 {offsets = [3, 0], sizes = [1, 1], strides = [1, 1]} : vector<8x1xf32> to vector<1x1xf32>
    %cst_112 = arith.constant 9.99999996E-13 : f32
    %909 = vector.broadcast %cst_112 : f32 to vector<1x1xf32>
    %910 = arith.maximumf %908, %909 : vector<1x1xf32>
    %911 = math.rsqrt %910 : vector<1x1xf32>
    %912 = vector.extract_strided_slice %906 {offsets = [3, 0], sizes = [1, 24], strides = [1, 1]} : vector<8x24xf32> to vector<1x24xf32>
    %913 = vector.broadcast %911 : vector<1x1xf32> to vector<1x24xf32>
    %914 = arith.mulf %912, %913 : vector<1x24xf32>
    %915 = vector.broadcast %911 : vector<1x1xf32> to vector<8x1xf32>
    %916 = arith.mulf %907, %915 : vector<8x1xf32>
    %cst_113 = arith.constant 0.000000e+00 : f32
    %917 = vector.broadcast %cst_113 : f32 to vector<8x1xf32>
    %918 = arith.select %82, %916, %917 : vector<8x1xi1>, vector<8x1xf32>
    %919 = vector.broadcast %918 : vector<8x1xf32> to vector<8x24xf32>
    %920 = vector.broadcast %914 : vector<1x24xf32> to vector<8x24xf32>
    %921 = arith.mulf %919, %920 : vector<8x24xf32>
    %922 = arith.subf %906, %921 : vector<8x24xf32>
    %923 = vector.shape_cast %98 : vector<8x1xi1> to vector<8x1xi1>
    %924 = vector.broadcast %923 : vector<8x1xi1> to vector<8x24xi1>
    %925 = vector.shape_cast %914 : vector<1x24xf32> to vector<1x24xf32>
    %926 = vector.broadcast %925 : vector<1x24xf32> to vector<8x24xf32>
    %927 = arith.select %924, %926, %922 : vector<8x24xi1>, vector<8x24xf32>
    %928 = vector.extract_strided_slice %927 {offsets = [0, 4], sizes = [8, 1], strides = [1, 1]} : vector<8x24xf32> to vector<8x1xf32>
    %929 = vector.extract_strided_slice %928 {offsets = [4, 0], sizes = [1, 1], strides = [1, 1]} : vector<8x1xf32> to vector<1x1xf32>
    %cst_114 = arith.constant 9.99999996E-13 : f32
    %930 = vector.broadcast %cst_114 : f32 to vector<1x1xf32>
    %931 = arith.maximumf %929, %930 : vector<1x1xf32>
    %932 = math.rsqrt %931 : vector<1x1xf32>
    %933 = vector.extract_strided_slice %927 {offsets = [4, 0], sizes = [1, 24], strides = [1, 1]} : vector<8x24xf32> to vector<1x24xf32>
    %934 = vector.broadcast %932 : vector<1x1xf32> to vector<1x24xf32>
    %935 = arith.mulf %933, %934 : vector<1x24xf32>
    %936 = vector.broadcast %932 : vector<1x1xf32> to vector<8x1xf32>
    %937 = arith.mulf %928, %936 : vector<8x1xf32>
    %cst_115 = arith.constant 0.000000e+00 : f32
    %938 = vector.broadcast %cst_115 : f32 to vector<8x1xf32>
    %939 = arith.select %84, %937, %938 : vector<8x1xi1>, vector<8x1xf32>
    %940 = vector.broadcast %939 : vector<8x1xf32> to vector<8x24xf32>
    %941 = vector.broadcast %935 : vector<1x24xf32> to vector<8x24xf32>
    %942 = arith.mulf %940, %941 : vector<8x24xf32>
    %943 = arith.subf %927, %942 : vector<8x24xf32>
    %944 = vector.shape_cast %100 : vector<8x1xi1> to vector<8x1xi1>
    %945 = vector.broadcast %944 : vector<8x1xi1> to vector<8x24xi1>
    %946 = vector.shape_cast %935 : vector<1x24xf32> to vector<1x24xf32>
    %947 = vector.broadcast %946 : vector<1x24xf32> to vector<8x24xf32>
    %948 = arith.select %945, %947, %943 : vector<8x24xi1>, vector<8x24xf32>
    %949 = vector.extract_strided_slice %948 {offsets = [0, 5], sizes = [8, 1], strides = [1, 1]} : vector<8x24xf32> to vector<8x1xf32>
    %950 = vector.extract_strided_slice %949 {offsets = [5, 0], sizes = [1, 1], strides = [1, 1]} : vector<8x1xf32> to vector<1x1xf32>
    %cst_116 = arith.constant 9.99999996E-13 : f32
    %951 = vector.broadcast %cst_116 : f32 to vector<1x1xf32>
    %952 = arith.maximumf %950, %951 : vector<1x1xf32>
    %953 = math.rsqrt %952 : vector<1x1xf32>
    %954 = vector.extract_strided_slice %948 {offsets = [5, 0], sizes = [1, 24], strides = [1, 1]} : vector<8x24xf32> to vector<1x24xf32>
    %955 = vector.broadcast %953 : vector<1x1xf32> to vector<1x24xf32>
    %956 = arith.mulf %954, %955 : vector<1x24xf32>
    %957 = vector.broadcast %953 : vector<1x1xf32> to vector<8x1xf32>
    %958 = arith.mulf %949, %957 : vector<8x1xf32>
    %cst_117 = arith.constant 0.000000e+00 : f32
    %959 = vector.broadcast %cst_117 : f32 to vector<8x1xf32>
    %960 = arith.select %86, %958, %959 : vector<8x1xi1>, vector<8x1xf32>
    %961 = vector.broadcast %960 : vector<8x1xf32> to vector<8x24xf32>
    %962 = vector.broadcast %956 : vector<1x24xf32> to vector<8x24xf32>
    %963 = arith.mulf %961, %962 : vector<8x24xf32>
    %964 = arith.subf %948, %963 : vector<8x24xf32>
    %965 = vector.shape_cast %102 : vector<8x1xi1> to vector<8x1xi1>
    %966 = vector.broadcast %965 : vector<8x1xi1> to vector<8x24xi1>
    %967 = vector.shape_cast %956 : vector<1x24xf32> to vector<1x24xf32>
    %968 = vector.broadcast %967 : vector<1x24xf32> to vector<8x24xf32>
    %969 = arith.select %966, %968, %964 : vector<8x24xi1>, vector<8x24xf32>
    %970 = vector.extract_strided_slice %969 {offsets = [0, 6], sizes = [8, 1], strides = [1, 1]} : vector<8x24xf32> to vector<8x1xf32>
    %971 = vector.extract_strided_slice %970 {offsets = [6, 0], sizes = [1, 1], strides = [1, 1]} : vector<8x1xf32> to vector<1x1xf32>
    %cst_118 = arith.constant 9.99999996E-13 : f32
    %972 = vector.broadcast %cst_118 : f32 to vector<1x1xf32>
    %973 = arith.maximumf %971, %972 : vector<1x1xf32>
    %974 = math.rsqrt %973 : vector<1x1xf32>
    %975 = vector.extract_strided_slice %969 {offsets = [6, 0], sizes = [1, 24], strides = [1, 1]} : vector<8x24xf32> to vector<1x24xf32>
    %976 = vector.broadcast %974 : vector<1x1xf32> to vector<1x24xf32>
    %977 = arith.mulf %975, %976 : vector<1x24xf32>
    %978 = vector.broadcast %974 : vector<1x1xf32> to vector<8x1xf32>
    %979 = arith.mulf %970, %978 : vector<8x1xf32>
    %cst_119 = arith.constant 0.000000e+00 : f32
    %980 = vector.broadcast %cst_119 : f32 to vector<8x1xf32>
    %981 = arith.select %88, %979, %980 : vector<8x1xi1>, vector<8x1xf32>
    %982 = vector.broadcast %981 : vector<8x1xf32> to vector<8x24xf32>
    %983 = vector.broadcast %977 : vector<1x24xf32> to vector<8x24xf32>
    %984 = arith.mulf %982, %983 : vector<8x24xf32>
    %985 = arith.subf %969, %984 : vector<8x24xf32>
    %986 = vector.shape_cast %104 : vector<8x1xi1> to vector<8x1xi1>
    %987 = vector.broadcast %986 : vector<8x1xi1> to vector<8x24xi1>
    %988 = vector.shape_cast %977 : vector<1x24xf32> to vector<1x24xf32>
    %989 = vector.broadcast %988 : vector<1x24xf32> to vector<8x24xf32>
    %990 = arith.select %987, %989, %985 : vector<8x24xi1>, vector<8x24xf32>
    %991 = vector.extract_strided_slice %990 {offsets = [0, 7], sizes = [8, 1], strides = [1, 1]} : vector<8x24xf32> to vector<8x1xf32>
    %992 = vector.extract_strided_slice %991 {offsets = [7, 0], sizes = [1, 1], strides = [1, 1]} : vector<8x1xf32> to vector<1x1xf32>
    %cst_120 = arith.constant 9.99999996E-13 : f32
    %993 = vector.broadcast %cst_120 : f32 to vector<1x1xf32>
    %994 = arith.maximumf %992, %993 : vector<1x1xf32>
    %995 = math.rsqrt %994 : vector<1x1xf32>
    %996 = vector.extract_strided_slice %990 {offsets = [7, 0], sizes = [1, 24], strides = [1, 1]} : vector<8x24xf32> to vector<1x24xf32>
    %997 = vector.broadcast %995 : vector<1x1xf32> to vector<1x24xf32>
    %998 = arith.mulf %996, %997 : vector<1x24xf32>
    %999 = vector.broadcast %995 : vector<1x1xf32> to vector<8x1xf32>
    %1000 = arith.mulf %991, %999 : vector<8x1xf32>
    %cst_121 = arith.constant 0.000000e+00 : f32
    %1001 = vector.broadcast %cst_121 : f32 to vector<8x1xf32>
    %1002 = arith.select %90, %1000, %1001 : vector<8x1xi1>, vector<8x1xf32>
    %1003 = vector.broadcast %1002 : vector<8x1xf32> to vector<8x24xf32>
    %1004 = vector.broadcast %998 : vector<1x24xf32> to vector<8x24xf32>
    %1005 = arith.mulf %1003, %1004 : vector<8x24xf32>
    %1006 = arith.subf %990, %1005 : vector<8x24xf32>
    %1007 = vector.shape_cast %106 : vector<8x1xi1> to vector<8x1xi1>
    %1008 = vector.broadcast %1007 : vector<8x1xi1> to vector<8x24xi1>
    %1009 = vector.shape_cast %998 : vector<1x24xf32> to vector<1x24xf32>
    %1010 = vector.broadcast %1009 : vector<1x24xf32> to vector<8x24xf32>
    %1011 = arith.select %1008, %1010, %1006 : vector<8x24xi1>, vector<8x24xf32>
    %1012 = vector.extract_strided_slice %1011 {offsets = [0, 8], sizes = [8, 16], strides = [1, 1]} : vector<8x24xf32> to vector<8x16xf32>
    %1013 = vector.extract_strided_slice %1012 {offsets = [0, 0], sizes = [8, 8], strides = [1, 1]} : vector<8x16xf32> to vector<8x8xf32>
    %1014 = vector.extract_strided_slice %1012 {offsets = [0, 8], sizes = [8, 8], strides = [1, 1]} : vector<8x16xf32> to vector<8x8xf32>
    %1015 = vector.extract_strided_slice %60 {offsets = [40, 0], sizes = [8, 8], strides = [1, 1]} : vector<64x8xf32> to vector<8x8xf32>
    %1016 = vector.extract_strided_slice %65 {offsets = [32, 0], sizes = [8, 8], strides = [1, 1]} : vector<56x8xf32> to vector<8x8xf32>
    %1017 = tpu.concatenate %1015, %1016 in 1 : vector<8x8xf32>, vector<8x8xf32> -> vector<8x16xf32>
    %cst_122 = arith.constant dense<0.000000e+00> : vector<8x8xf32>
    %1018 = tpu.matmul %1017, %1017, %cst_122 {dimension_numbers = #tpu.dot_dimension_numbers<[1], [1], [0], [0], [0, 0, 1, 0], [], []>} : vector<8x16xf32>, vector<8x16xf32>, vector<8x8xf32> -> vector<8x8xf32>
    %cst_123 = arith.constant dense<0.000000e+00> : vector<8x8xf32>
    %1019 = tpu.matmul %1016, %1014, %cst_123 {dimension_numbers = #tpu.dot_dimension_numbers<[1], [1], [0], [0], [0, 0, 1, 0], [], []>} : vector<8x8xf32>, vector<8x8xf32>, vector<8x8xf32> -> vector<8x8xf32>
    %cst_124 = arith.constant dense<0.000000e+00> : vector<8x8xf32>
    %1020 = tpu.matmul %1019, %1019, %cst_124 {dimension_numbers = #tpu.dot_dimension_numbers<[1], [1], [0], [0], [0, 0, 1, 0], [], []>} : vector<8x8xf32>, vector<8x8xf32>, vector<8x8xf32> -> vector<8x8xf32>
    %cst_125 = arith.constant dense<0.000000e+00> : vector<8x8xf32>
    %1021 = tpu.matmul %1019, %1013, %cst_125 {dimension_numbers = #tpu.dot_dimension_numbers<[1], [0], [0], [1], [0, 0, 1, 1], [], []>} : vector<8x8xf32>, vector<8x8xf32>, vector<8x8xf32> -> vector<8x8xf32>
    %1022 = arith.subf %1018, %1020 : vector<8x8xf32>
    %1023 = arith.addf %1022, %73 : vector<8x8xf32>
    %1024 = arith.subf %71, %1021 : vector<8x8xf32>
    %1025 = tpu.concatenate %1024, %1015 in 1 : vector<8x8xf32>, vector<8x8xf32> -> vector<8x16xf32>
    %1026 = tpu.concatenate %1023, %1025 in 1 : vector<8x8xf32>, vector<8x16xf32> -> vector<8x24xf32>
    %1027 = vector.extract_strided_slice %1026 {offsets = [0, 0], sizes = [8, 1], strides = [1, 1]} : vector<8x24xf32> to vector<8x1xf32>
    %1028 = vector.extract_strided_slice %1027 {offsets = [0, 0], sizes = [1, 1], strides = [1, 1]} : vector<8x1xf32> to vector<1x1xf32>
    %cst_126 = arith.constant 9.99999996E-13 : f32
    %1029 = vector.broadcast %cst_126 : f32 to vector<1x1xf32>
    %1030 = arith.maximumf %1028, %1029 : vector<1x1xf32>
    %1031 = math.rsqrt %1030 : vector<1x1xf32>
    %1032 = vector.extract_strided_slice %1026 {offsets = [0, 0], sizes = [1, 24], strides = [1, 1]} : vector<8x24xf32> to vector<1x24xf32>
    %1033 = vector.broadcast %1031 : vector<1x1xf32> to vector<1x24xf32>
    %1034 = arith.mulf %1032, %1033 : vector<1x24xf32>
    %1035 = vector.broadcast %1031 : vector<1x1xf32> to vector<8x1xf32>
    %1036 = arith.mulf %1027, %1035 : vector<8x1xf32>
    %cst_127 = arith.constant 0.000000e+00 : f32
    %1037 = vector.broadcast %cst_127 : f32 to vector<8x1xf32>
    %1038 = arith.select %76, %1036, %1037 : vector<8x1xi1>, vector<8x1xf32>
    %1039 = vector.broadcast %1038 : vector<8x1xf32> to vector<8x24xf32>
    %1040 = vector.broadcast %1034 : vector<1x24xf32> to vector<8x24xf32>
    %1041 = arith.mulf %1039, %1040 : vector<8x24xf32>
    %1042 = arith.subf %1026, %1041 : vector<8x24xf32>
    %1043 = vector.shape_cast %92 : vector<8x1xi1> to vector<8x1xi1>
    %1044 = vector.broadcast %1043 : vector<8x1xi1> to vector<8x24xi1>
    %1045 = vector.shape_cast %1034 : vector<1x24xf32> to vector<1x24xf32>
    %1046 = vector.broadcast %1045 : vector<1x24xf32> to vector<8x24xf32>
    %1047 = arith.select %1044, %1046, %1042 : vector<8x24xi1>, vector<8x24xf32>
    %1048 = vector.extract_strided_slice %1047 {offsets = [0, 1], sizes = [8, 1], strides = [1, 1]} : vector<8x24xf32> to vector<8x1xf32>
    %1049 = vector.extract_strided_slice %1048 {offsets = [1, 0], sizes = [1, 1], strides = [1, 1]} : vector<8x1xf32> to vector<1x1xf32>
    %cst_128 = arith.constant 9.99999996E-13 : f32
    %1050 = vector.broadcast %cst_128 : f32 to vector<1x1xf32>
    %1051 = arith.maximumf %1049, %1050 : vector<1x1xf32>
    %1052 = math.rsqrt %1051 : vector<1x1xf32>
    %1053 = vector.extract_strided_slice %1047 {offsets = [1, 0], sizes = [1, 24], strides = [1, 1]} : vector<8x24xf32> to vector<1x24xf32>
    %1054 = vector.broadcast %1052 : vector<1x1xf32> to vector<1x24xf32>
    %1055 = arith.mulf %1053, %1054 : vector<1x24xf32>
    %1056 = vector.broadcast %1052 : vector<1x1xf32> to vector<8x1xf32>
    %1057 = arith.mulf %1048, %1056 : vector<8x1xf32>
    %cst_129 = arith.constant 0.000000e+00 : f32
    %1058 = vector.broadcast %cst_129 : f32 to vector<8x1xf32>
    %1059 = arith.select %78, %1057, %1058 : vector<8x1xi1>, vector<8x1xf32>
    %1060 = vector.broadcast %1059 : vector<8x1xf32> to vector<8x24xf32>
    %1061 = vector.broadcast %1055 : vector<1x24xf32> to vector<8x24xf32>
    %1062 = arith.mulf %1060, %1061 : vector<8x24xf32>
    %1063 = arith.subf %1047, %1062 : vector<8x24xf32>
    %1064 = vector.shape_cast %94 : vector<8x1xi1> to vector<8x1xi1>
    %1065 = vector.broadcast %1064 : vector<8x1xi1> to vector<8x24xi1>
    %1066 = vector.shape_cast %1055 : vector<1x24xf32> to vector<1x24xf32>
    %1067 = vector.broadcast %1066 : vector<1x24xf32> to vector<8x24xf32>
    %1068 = arith.select %1065, %1067, %1063 : vector<8x24xi1>, vector<8x24xf32>
    %1069 = vector.extract_strided_slice %1068 {offsets = [0, 2], sizes = [8, 1], strides = [1, 1]} : vector<8x24xf32> to vector<8x1xf32>
    %1070 = vector.extract_strided_slice %1069 {offsets = [2, 0], sizes = [1, 1], strides = [1, 1]} : vector<8x1xf32> to vector<1x1xf32>
    %cst_130 = arith.constant 9.99999996E-13 : f32
    %1071 = vector.broadcast %cst_130 : f32 to vector<1x1xf32>
    %1072 = arith.maximumf %1070, %1071 : vector<1x1xf32>
    %1073 = math.rsqrt %1072 : vector<1x1xf32>
    %1074 = vector.extract_strided_slice %1068 {offsets = [2, 0], sizes = [1, 24], strides = [1, 1]} : vector<8x24xf32> to vector<1x24xf32>
    %1075 = vector.broadcast %1073 : vector<1x1xf32> to vector<1x24xf32>
    %1076 = arith.mulf %1074, %1075 : vector<1x24xf32>
    %1077 = vector.broadcast %1073 : vector<1x1xf32> to vector<8x1xf32>
    %1078 = arith.mulf %1069, %1077 : vector<8x1xf32>
    %cst_131 = arith.constant 0.000000e+00 : f32
    %1079 = vector.broadcast %cst_131 : f32 to vector<8x1xf32>
    %1080 = arith.select %80, %1078, %1079 : vector<8x1xi1>, vector<8x1xf32>
    %1081 = vector.broadcast %1080 : vector<8x1xf32> to vector<8x24xf32>
    %1082 = vector.broadcast %1076 : vector<1x24xf32> to vector<8x24xf32>
    %1083 = arith.mulf %1081, %1082 : vector<8x24xf32>
    %1084 = arith.subf %1068, %1083 : vector<8x24xf32>
    %1085 = vector.shape_cast %96 : vector<8x1xi1> to vector<8x1xi1>
    %1086 = vector.broadcast %1085 : vector<8x1xi1> to vector<8x24xi1>
    %1087 = vector.shape_cast %1076 : vector<1x24xf32> to vector<1x24xf32>
    %1088 = vector.broadcast %1087 : vector<1x24xf32> to vector<8x24xf32>
    %1089 = arith.select %1086, %1088, %1084 : vector<8x24xi1>, vector<8x24xf32>
    %1090 = vector.extract_strided_slice %1089 {offsets = [0, 3], sizes = [8, 1], strides = [1, 1]} : vector<8x24xf32> to vector<8x1xf32>
    %1091 = vector.extract_strided_slice %1090 {offsets = [3, 0], sizes = [1, 1], strides = [1, 1]} : vector<8x1xf32> to vector<1x1xf32>
    %cst_132 = arith.constant 9.99999996E-13 : f32
    %1092 = vector.broadcast %cst_132 : f32 to vector<1x1xf32>
    %1093 = arith.maximumf %1091, %1092 : vector<1x1xf32>
    %1094 = math.rsqrt %1093 : vector<1x1xf32>
    %1095 = vector.extract_strided_slice %1089 {offsets = [3, 0], sizes = [1, 24], strides = [1, 1]} : vector<8x24xf32> to vector<1x24xf32>
    %1096 = vector.broadcast %1094 : vector<1x1xf32> to vector<1x24xf32>
    %1097 = arith.mulf %1095, %1096 : vector<1x24xf32>
    %1098 = vector.broadcast %1094 : vector<1x1xf32> to vector<8x1xf32>
    %1099 = arith.mulf %1090, %1098 : vector<8x1xf32>
    %cst_133 = arith.constant 0.000000e+00 : f32
    %1100 = vector.broadcast %cst_133 : f32 to vector<8x1xf32>
    %1101 = arith.select %82, %1099, %1100 : vector<8x1xi1>, vector<8x1xf32>
    %1102 = vector.broadcast %1101 : vector<8x1xf32> to vector<8x24xf32>
    %1103 = vector.broadcast %1097 : vector<1x24xf32> to vector<8x24xf32>
    %1104 = arith.mulf %1102, %1103 : vector<8x24xf32>
    %1105 = arith.subf %1089, %1104 : vector<8x24xf32>
    %1106 = vector.shape_cast %98 : vector<8x1xi1> to vector<8x1xi1>
    %1107 = vector.broadcast %1106 : vector<8x1xi1> to vector<8x24xi1>
    %1108 = vector.shape_cast %1097 : vector<1x24xf32> to vector<1x24xf32>
    %1109 = vector.broadcast %1108 : vector<1x24xf32> to vector<8x24xf32>
    %1110 = arith.select %1107, %1109, %1105 : vector<8x24xi1>, vector<8x24xf32>
    %1111 = vector.extract_strided_slice %1110 {offsets = [0, 4], sizes = [8, 1], strides = [1, 1]} : vector<8x24xf32> to vector<8x1xf32>
    %1112 = vector.extract_strided_slice %1111 {offsets = [4, 0], sizes = [1, 1], strides = [1, 1]} : vector<8x1xf32> to vector<1x1xf32>
    %cst_134 = arith.constant 9.99999996E-13 : f32
    %1113 = vector.broadcast %cst_134 : f32 to vector<1x1xf32>
    %1114 = arith.maximumf %1112, %1113 : vector<1x1xf32>
    %1115 = math.rsqrt %1114 : vector<1x1xf32>
    %1116 = vector.extract_strided_slice %1110 {offsets = [4, 0], sizes = [1, 24], strides = [1, 1]} : vector<8x24xf32> to vector<1x24xf32>
    %1117 = vector.broadcast %1115 : vector<1x1xf32> to vector<1x24xf32>
    %1118 = arith.mulf %1116, %1117 : vector<1x24xf32>
    %1119 = vector.broadcast %1115 : vector<1x1xf32> to vector<8x1xf32>
    %1120 = arith.mulf %1111, %1119 : vector<8x1xf32>
    %cst_135 = arith.constant 0.000000e+00 : f32
    %1121 = vector.broadcast %cst_135 : f32 to vector<8x1xf32>
    %1122 = arith.select %84, %1120, %1121 : vector<8x1xi1>, vector<8x1xf32>
    %1123 = vector.broadcast %1122 : vector<8x1xf32> to vector<8x24xf32>
    %1124 = vector.broadcast %1118 : vector<1x24xf32> to vector<8x24xf32>
    %1125 = arith.mulf %1123, %1124 : vector<8x24xf32>
    %1126 = arith.subf %1110, %1125 : vector<8x24xf32>
    %1127 = vector.shape_cast %100 : vector<8x1xi1> to vector<8x1xi1>
    %1128 = vector.broadcast %1127 : vector<8x1xi1> to vector<8x24xi1>
    %1129 = vector.shape_cast %1118 : vector<1x24xf32> to vector<1x24xf32>
    %1130 = vector.broadcast %1129 : vector<1x24xf32> to vector<8x24xf32>
    %1131 = arith.select %1128, %1130, %1126 : vector<8x24xi1>, vector<8x24xf32>
    %1132 = vector.extract_strided_slice %1131 {offsets = [0, 5], sizes = [8, 1], strides = [1, 1]} : vector<8x24xf32> to vector<8x1xf32>
    %1133 = vector.extract_strided_slice %1132 {offsets = [5, 0], sizes = [1, 1], strides = [1, 1]} : vector<8x1xf32> to vector<1x1xf32>
    %cst_136 = arith.constant 9.99999996E-13 : f32
    %1134 = vector.broadcast %cst_136 : f32 to vector<1x1xf32>
    %1135 = arith.maximumf %1133, %1134 : vector<1x1xf32>
    %1136 = math.rsqrt %1135 : vector<1x1xf32>
    %1137 = vector.extract_strided_slice %1131 {offsets = [5, 0], sizes = [1, 24], strides = [1, 1]} : vector<8x24xf32> to vector<1x24xf32>
    %1138 = vector.broadcast %1136 : vector<1x1xf32> to vector<1x24xf32>
    %1139 = arith.mulf %1137, %1138 : vector<1x24xf32>
    %1140 = vector.broadcast %1136 : vector<1x1xf32> to vector<8x1xf32>
    %1141 = arith.mulf %1132, %1140 : vector<8x1xf32>
    %cst_137 = arith.constant 0.000000e+00 : f32
    %1142 = vector.broadcast %cst_137 : f32 to vector<8x1xf32>
    %1143 = arith.select %86, %1141, %1142 : vector<8x1xi1>, vector<8x1xf32>
    %1144 = vector.broadcast %1143 : vector<8x1xf32> to vector<8x24xf32>
    %1145 = vector.broadcast %1139 : vector<1x24xf32> to vector<8x24xf32>
    %1146 = arith.mulf %1144, %1145 : vector<8x24xf32>
    %1147 = arith.subf %1131, %1146 : vector<8x24xf32>
    %1148 = vector.shape_cast %102 : vector<8x1xi1> to vector<8x1xi1>
    %1149 = vector.broadcast %1148 : vector<8x1xi1> to vector<8x24xi1>
    %1150 = vector.shape_cast %1139 : vector<1x24xf32> to vector<1x24xf32>
    %1151 = vector.broadcast %1150 : vector<1x24xf32> to vector<8x24xf32>
    %1152 = arith.select %1149, %1151, %1147 : vector<8x24xi1>, vector<8x24xf32>
    %1153 = vector.extract_strided_slice %1152 {offsets = [0, 6], sizes = [8, 1], strides = [1, 1]} : vector<8x24xf32> to vector<8x1xf32>
    %1154 = vector.extract_strided_slice %1153 {offsets = [6, 0], sizes = [1, 1], strides = [1, 1]} : vector<8x1xf32> to vector<1x1xf32>
    %cst_138 = arith.constant 9.99999996E-13 : f32
    %1155 = vector.broadcast %cst_138 : f32 to vector<1x1xf32>
    %1156 = arith.maximumf %1154, %1155 : vector<1x1xf32>
    %1157 = math.rsqrt %1156 : vector<1x1xf32>
    %1158 = vector.extract_strided_slice %1152 {offsets = [6, 0], sizes = [1, 24], strides = [1, 1]} : vector<8x24xf32> to vector<1x24xf32>
    %1159 = vector.broadcast %1157 : vector<1x1xf32> to vector<1x24xf32>
    %1160 = arith.mulf %1158, %1159 : vector<1x24xf32>
    %1161 = vector.broadcast %1157 : vector<1x1xf32> to vector<8x1xf32>
    %1162 = arith.mulf %1153, %1161 : vector<8x1xf32>
    %cst_139 = arith.constant 0.000000e+00 : f32
    %1163 = vector.broadcast %cst_139 : f32 to vector<8x1xf32>
    %1164 = arith.select %88, %1162, %1163 : vector<8x1xi1>, vector<8x1xf32>
    %1165 = vector.broadcast %1164 : vector<8x1xf32> to vector<8x24xf32>
    %1166 = vector.broadcast %1160 : vector<1x24xf32> to vector<8x24xf32>
    %1167 = arith.mulf %1165, %1166 : vector<8x24xf32>
    %1168 = arith.subf %1152, %1167 : vector<8x24xf32>
    %1169 = vector.shape_cast %104 : vector<8x1xi1> to vector<8x1xi1>
    %1170 = vector.broadcast %1169 : vector<8x1xi1> to vector<8x24xi1>
    %1171 = vector.shape_cast %1160 : vector<1x24xf32> to vector<1x24xf32>
    %1172 = vector.broadcast %1171 : vector<1x24xf32> to vector<8x24xf32>
    %1173 = arith.select %1170, %1172, %1168 : vector<8x24xi1>, vector<8x24xf32>
    %1174 = vector.extract_strided_slice %1173 {offsets = [0, 7], sizes = [8, 1], strides = [1, 1]} : vector<8x24xf32> to vector<8x1xf32>
    %1175 = vector.extract_strided_slice %1174 {offsets = [7, 0], sizes = [1, 1], strides = [1, 1]} : vector<8x1xf32> to vector<1x1xf32>
    %cst_140 = arith.constant 9.99999996E-13 : f32
    %1176 = vector.broadcast %cst_140 : f32 to vector<1x1xf32>
    %1177 = arith.maximumf %1175, %1176 : vector<1x1xf32>
    %1178 = math.rsqrt %1177 : vector<1x1xf32>
    %1179 = vector.extract_strided_slice %1173 {offsets = [7, 0], sizes = [1, 24], strides = [1, 1]} : vector<8x24xf32> to vector<1x24xf32>
    %1180 = vector.broadcast %1178 : vector<1x1xf32> to vector<1x24xf32>
    %1181 = arith.mulf %1179, %1180 : vector<1x24xf32>
    %1182 = vector.broadcast %1178 : vector<1x1xf32> to vector<8x1xf32>
    %1183 = arith.mulf %1174, %1182 : vector<8x1xf32>
    %cst_141 = arith.constant 0.000000e+00 : f32
    %1184 = vector.broadcast %cst_141 : f32 to vector<8x1xf32>
    %1185 = arith.select %90, %1183, %1184 : vector<8x1xi1>, vector<8x1xf32>
    %1186 = vector.broadcast %1185 : vector<8x1xf32> to vector<8x24xf32>
    %1187 = vector.broadcast %1181 : vector<1x24xf32> to vector<8x24xf32>
    %1188 = arith.mulf %1186, %1187 : vector<8x24xf32>
    %1189 = arith.subf %1173, %1188 : vector<8x24xf32>
    %1190 = vector.shape_cast %106 : vector<8x1xi1> to vector<8x1xi1>
    %1191 = vector.broadcast %1190 : vector<8x1xi1> to vector<8x24xi1>
    %1192 = vector.shape_cast %1181 : vector<1x24xf32> to vector<1x24xf32>
    %1193 = vector.broadcast %1192 : vector<1x24xf32> to vector<8x24xf32>
    %1194 = arith.select %1191, %1193, %1189 : vector<8x24xi1>, vector<8x24xf32>
    %1195 = vector.extract_strided_slice %1194 {offsets = [0, 8], sizes = [8, 16], strides = [1, 1]} : vector<8x24xf32> to vector<8x16xf32>
    %1196 = vector.extract_strided_slice %1195 {offsets = [0, 0], sizes = [8, 8], strides = [1, 1]} : vector<8x16xf32> to vector<8x8xf32>
    %1197 = vector.extract_strided_slice %1195 {offsets = [0, 8], sizes = [8, 8], strides = [1, 1]} : vector<8x16xf32> to vector<8x8xf32>
    %1198 = vector.extract_strided_slice %60 {offsets = [48, 0], sizes = [8, 8], strides = [1, 1]} : vector<64x8xf32> to vector<8x8xf32>
    %1199 = vector.extract_strided_slice %65 {offsets = [40, 0], sizes = [8, 8], strides = [1, 1]} : vector<56x8xf32> to vector<8x8xf32>
    %1200 = tpu.concatenate %1198, %1199 in 1 : vector<8x8xf32>, vector<8x8xf32> -> vector<8x16xf32>
    %cst_142 = arith.constant dense<0.000000e+00> : vector<8x8xf32>
    %1201 = tpu.matmul %1200, %1200, %cst_142 {dimension_numbers = #tpu.dot_dimension_numbers<[1], [1], [0], [0], [0, 0, 1, 0], [], []>} : vector<8x16xf32>, vector<8x16xf32>, vector<8x8xf32> -> vector<8x8xf32>
    %cst_143 = arith.constant dense<0.000000e+00> : vector<8x8xf32>
    %1202 = tpu.matmul %1199, %1197, %cst_143 {dimension_numbers = #tpu.dot_dimension_numbers<[1], [1], [0], [0], [0, 0, 1, 0], [], []>} : vector<8x8xf32>, vector<8x8xf32>, vector<8x8xf32> -> vector<8x8xf32>
    %cst_144 = arith.constant dense<0.000000e+00> : vector<8x8xf32>
    %1203 = tpu.matmul %1202, %1202, %cst_144 {dimension_numbers = #tpu.dot_dimension_numbers<[1], [1], [0], [0], [0, 0, 1, 0], [], []>} : vector<8x8xf32>, vector<8x8xf32>, vector<8x8xf32> -> vector<8x8xf32>
    %cst_145 = arith.constant dense<0.000000e+00> : vector<8x8xf32>
    %1204 = tpu.matmul %1202, %1196, %cst_145 {dimension_numbers = #tpu.dot_dimension_numbers<[1], [0], [0], [1], [0, 0, 1, 1], [], []>} : vector<8x8xf32>, vector<8x8xf32>, vector<8x8xf32> -> vector<8x8xf32>
    %1205 = arith.subf %1201, %1203 : vector<8x8xf32>
    %1206 = arith.addf %1205, %73 : vector<8x8xf32>
    %1207 = arith.subf %71, %1204 : vector<8x8xf32>
    %1208 = tpu.concatenate %1207, %1198 in 1 : vector<8x8xf32>, vector<8x8xf32> -> vector<8x16xf32>
    %1209 = tpu.concatenate %1206, %1208 in 1 : vector<8x8xf32>, vector<8x16xf32> -> vector<8x24xf32>
    %1210 = vector.extract_strided_slice %1209 {offsets = [0, 0], sizes = [8, 1], strides = [1, 1]} : vector<8x24xf32> to vector<8x1xf32>
    %1211 = vector.extract_strided_slice %1210 {offsets = [0, 0], sizes = [1, 1], strides = [1, 1]} : vector<8x1xf32> to vector<1x1xf32>
    %cst_146 = arith.constant 9.99999996E-13 : f32
    %1212 = vector.broadcast %cst_146 : f32 to vector<1x1xf32>
    %1213 = arith.maximumf %1211, %1212 : vector<1x1xf32>
    %1214 = math.rsqrt %1213 : vector<1x1xf32>
    %1215 = vector.extract_strided_slice %1209 {offsets = [0, 0], sizes = [1, 24], strides = [1, 1]} : vector<8x24xf32> to vector<1x24xf32>
    %1216 = vector.broadcast %1214 : vector<1x1xf32> to vector<1x24xf32>
    %1217 = arith.mulf %1215, %1216 : vector<1x24xf32>
    %1218 = vector.broadcast %1214 : vector<1x1xf32> to vector<8x1xf32>
    %1219 = arith.mulf %1210, %1218 : vector<8x1xf32>
    %cst_147 = arith.constant 0.000000e+00 : f32
    %1220 = vector.broadcast %cst_147 : f32 to vector<8x1xf32>
    %1221 = arith.select %76, %1219, %1220 : vector<8x1xi1>, vector<8x1xf32>
    %1222 = vector.broadcast %1221 : vector<8x1xf32> to vector<8x24xf32>
    %1223 = vector.broadcast %1217 : vector<1x24xf32> to vector<8x24xf32>
    %1224 = arith.mulf %1222, %1223 : vector<8x24xf32>
    %1225 = arith.subf %1209, %1224 : vector<8x24xf32>
    %1226 = vector.shape_cast %92 : vector<8x1xi1> to vector<8x1xi1>
    %1227 = vector.broadcast %1226 : vector<8x1xi1> to vector<8x24xi1>
    %1228 = vector.shape_cast %1217 : vector<1x24xf32> to vector<1x24xf32>
    %1229 = vector.broadcast %1228 : vector<1x24xf32> to vector<8x24xf32>
    %1230 = arith.select %1227, %1229, %1225 : vector<8x24xi1>, vector<8x24xf32>
    %1231 = vector.extract_strided_slice %1230 {offsets = [0, 1], sizes = [8, 1], strides = [1, 1]} : vector<8x24xf32> to vector<8x1xf32>
    %1232 = vector.extract_strided_slice %1231 {offsets = [1, 0], sizes = [1, 1], strides = [1, 1]} : vector<8x1xf32> to vector<1x1xf32>
    %cst_148 = arith.constant 9.99999996E-13 : f32
    %1233 = vector.broadcast %cst_148 : f32 to vector<1x1xf32>
    %1234 = arith.maximumf %1232, %1233 : vector<1x1xf32>
    %1235 = math.rsqrt %1234 : vector<1x1xf32>
    %1236 = vector.extract_strided_slice %1230 {offsets = [1, 0], sizes = [1, 24], strides = [1, 1]} : vector<8x24xf32> to vector<1x24xf32>
    %1237 = vector.broadcast %1235 : vector<1x1xf32> to vector<1x24xf32>
    %1238 = arith.mulf %1236, %1237 : vector<1x24xf32>
    %1239 = vector.broadcast %1235 : vector<1x1xf32> to vector<8x1xf32>
    %1240 = arith.mulf %1231, %1239 : vector<8x1xf32>
    %cst_149 = arith.constant 0.000000e+00 : f32
    %1241 = vector.broadcast %cst_149 : f32 to vector<8x1xf32>
    %1242 = arith.select %78, %1240, %1241 : vector<8x1xi1>, vector<8x1xf32>
    %1243 = vector.broadcast %1242 : vector<8x1xf32> to vector<8x24xf32>
    %1244 = vector.broadcast %1238 : vector<1x24xf32> to vector<8x24xf32>
    %1245 = arith.mulf %1243, %1244 : vector<8x24xf32>
    %1246 = arith.subf %1230, %1245 : vector<8x24xf32>
    %1247 = vector.shape_cast %94 : vector<8x1xi1> to vector<8x1xi1>
    %1248 = vector.broadcast %1247 : vector<8x1xi1> to vector<8x24xi1>
    %1249 = vector.shape_cast %1238 : vector<1x24xf32> to vector<1x24xf32>
    %1250 = vector.broadcast %1249 : vector<1x24xf32> to vector<8x24xf32>
    %1251 = arith.select %1248, %1250, %1246 : vector<8x24xi1>, vector<8x24xf32>
    %1252 = vector.extract_strided_slice %1251 {offsets = [0, 2], sizes = [8, 1], strides = [1, 1]} : vector<8x24xf32> to vector<8x1xf32>
    %1253 = vector.extract_strided_slice %1252 {offsets = [2, 0], sizes = [1, 1], strides = [1, 1]} : vector<8x1xf32> to vector<1x1xf32>
    %cst_150 = arith.constant 9.99999996E-13 : f32
    %1254 = vector.broadcast %cst_150 : f32 to vector<1x1xf32>
    %1255 = arith.maximumf %1253, %1254 : vector<1x1xf32>
    %1256 = math.rsqrt %1255 : vector<1x1xf32>
    %1257 = vector.extract_strided_slice %1251 {offsets = [2, 0], sizes = [1, 24], strides = [1, 1]} : vector<8x24xf32> to vector<1x24xf32>
    %1258 = vector.broadcast %1256 : vector<1x1xf32> to vector<1x24xf32>
    %1259 = arith.mulf %1257, %1258 : vector<1x24xf32>
    %1260 = vector.broadcast %1256 : vector<1x1xf32> to vector<8x1xf32>
    %1261 = arith.mulf %1252, %1260 : vector<8x1xf32>
    %cst_151 = arith.constant 0.000000e+00 : f32
    %1262 = vector.broadcast %cst_151 : f32 to vector<8x1xf32>
    %1263 = arith.select %80, %1261, %1262 : vector<8x1xi1>, vector<8x1xf32>
    %1264 = vector.broadcast %1263 : vector<8x1xf32> to vector<8x24xf32>
    %1265 = vector.broadcast %1259 : vector<1x24xf32> to vector<8x24xf32>
    %1266 = arith.mulf %1264, %1265 : vector<8x24xf32>
    %1267 = arith.subf %1251, %1266 : vector<8x24xf32>
    %1268 = vector.shape_cast %96 : vector<8x1xi1> to vector<8x1xi1>
    %1269 = vector.broadcast %1268 : vector<8x1xi1> to vector<8x24xi1>
    %1270 = vector.shape_cast %1259 : vector<1x24xf32> to vector<1x24xf32>
    %1271 = vector.broadcast %1270 : vector<1x24xf32> to vector<8x24xf32>
    %1272 = arith.select %1269, %1271, %1267 : vector<8x24xi1>, vector<8x24xf32>
    %1273 = vector.extract_strided_slice %1272 {offsets = [0, 3], sizes = [8, 1], strides = [1, 1]} : vector<8x24xf32> to vector<8x1xf32>
    %1274 = vector.extract_strided_slice %1273 {offsets = [3, 0], sizes = [1, 1], strides = [1, 1]} : vector<8x1xf32> to vector<1x1xf32>
    %cst_152 = arith.constant 9.99999996E-13 : f32
    %1275 = vector.broadcast %cst_152 : f32 to vector<1x1xf32>
    %1276 = arith.maximumf %1274, %1275 : vector<1x1xf32>
    %1277 = math.rsqrt %1276 : vector<1x1xf32>
    %1278 = vector.extract_strided_slice %1272 {offsets = [3, 0], sizes = [1, 24], strides = [1, 1]} : vector<8x24xf32> to vector<1x24xf32>
    %1279 = vector.broadcast %1277 : vector<1x1xf32> to vector<1x24xf32>
    %1280 = arith.mulf %1278, %1279 : vector<1x24xf32>
    %1281 = vector.broadcast %1277 : vector<1x1xf32> to vector<8x1xf32>
    %1282 = arith.mulf %1273, %1281 : vector<8x1xf32>
    %cst_153 = arith.constant 0.000000e+00 : f32
    %1283 = vector.broadcast %cst_153 : f32 to vector<8x1xf32>
    %1284 = arith.select %82, %1282, %1283 : vector<8x1xi1>, vector<8x1xf32>
    %1285 = vector.broadcast %1284 : vector<8x1xf32> to vector<8x24xf32>
    %1286 = vector.broadcast %1280 : vector<1x24xf32> to vector<8x24xf32>
    %1287 = arith.mulf %1285, %1286 : vector<8x24xf32>
    %1288 = arith.subf %1272, %1287 : vector<8x24xf32>
    %1289 = vector.shape_cast %98 : vector<8x1xi1> to vector<8x1xi1>
    %1290 = vector.broadcast %1289 : vector<8x1xi1> to vector<8x24xi1>
    %1291 = vector.shape_cast %1280 : vector<1x24xf32> to vector<1x24xf32>
    %1292 = vector.broadcast %1291 : vector<1x24xf32> to vector<8x24xf32>
    %1293 = arith.select %1290, %1292, %1288 : vector<8x24xi1>, vector<8x24xf32>
    %1294 = vector.extract_strided_slice %1293 {offsets = [0, 4], sizes = [8, 1], strides = [1, 1]} : vector<8x24xf32> to vector<8x1xf32>
    %1295 = vector.extract_strided_slice %1294 {offsets = [4, 0], sizes = [1, 1], strides = [1, 1]} : vector<8x1xf32> to vector<1x1xf32>
    %cst_154 = arith.constant 9.99999996E-13 : f32
    %1296 = vector.broadcast %cst_154 : f32 to vector<1x1xf32>
    %1297 = arith.maximumf %1295, %1296 : vector<1x1xf32>
    %1298 = math.rsqrt %1297 : vector<1x1xf32>
    %1299 = vector.extract_strided_slice %1293 {offsets = [4, 0], sizes = [1, 24], strides = [1, 1]} : vector<8x24xf32> to vector<1x24xf32>
    %1300 = vector.broadcast %1298 : vector<1x1xf32> to vector<1x24xf32>
    %1301 = arith.mulf %1299, %1300 : vector<1x24xf32>
    %1302 = vector.broadcast %1298 : vector<1x1xf32> to vector<8x1xf32>
    %1303 = arith.mulf %1294, %1302 : vector<8x1xf32>
    %cst_155 = arith.constant 0.000000e+00 : f32
    %1304 = vector.broadcast %cst_155 : f32 to vector<8x1xf32>
    %1305 = arith.select %84, %1303, %1304 : vector<8x1xi1>, vector<8x1xf32>
    %1306 = vector.broadcast %1305 : vector<8x1xf32> to vector<8x24xf32>
    %1307 = vector.broadcast %1301 : vector<1x24xf32> to vector<8x24xf32>
    %1308 = arith.mulf %1306, %1307 : vector<8x24xf32>
    %1309 = arith.subf %1293, %1308 : vector<8x24xf32>
    %1310 = vector.shape_cast %100 : vector<8x1xi1> to vector<8x1xi1>
    %1311 = vector.broadcast %1310 : vector<8x1xi1> to vector<8x24xi1>
    %1312 = vector.shape_cast %1301 : vector<1x24xf32> to vector<1x24xf32>
    %1313 = vector.broadcast %1312 : vector<1x24xf32> to vector<8x24xf32>
    %1314 = arith.select %1311, %1313, %1309 : vector<8x24xi1>, vector<8x24xf32>
    %1315 = vector.extract_strided_slice %1314 {offsets = [0, 5], sizes = [8, 1], strides = [1, 1]} : vector<8x24xf32> to vector<8x1xf32>
    %1316 = vector.extract_strided_slice %1315 {offsets = [5, 0], sizes = [1, 1], strides = [1, 1]} : vector<8x1xf32> to vector<1x1xf32>
    %cst_156 = arith.constant 9.99999996E-13 : f32
    %1317 = vector.broadcast %cst_156 : f32 to vector<1x1xf32>
    %1318 = arith.maximumf %1316, %1317 : vector<1x1xf32>
    %1319 = math.rsqrt %1318 : vector<1x1xf32>
    %1320 = vector.extract_strided_slice %1314 {offsets = [5, 0], sizes = [1, 24], strides = [1, 1]} : vector<8x24xf32> to vector<1x24xf32>
    %1321 = vector.broadcast %1319 : vector<1x1xf32> to vector<1x24xf32>
    %1322 = arith.mulf %1320, %1321 : vector<1x24xf32>
    %1323 = vector.broadcast %1319 : vector<1x1xf32> to vector<8x1xf32>
    %1324 = arith.mulf %1315, %1323 : vector<8x1xf32>
    %cst_157 = arith.constant 0.000000e+00 : f32
    %1325 = vector.broadcast %cst_157 : f32 to vector<8x1xf32>
    %1326 = arith.select %86, %1324, %1325 : vector<8x1xi1>, vector<8x1xf32>
    %1327 = vector.broadcast %1326 : vector<8x1xf32> to vector<8x24xf32>
    %1328 = vector.broadcast %1322 : vector<1x24xf32> to vector<8x24xf32>
    %1329 = arith.mulf %1327, %1328 : vector<8x24xf32>
    %1330 = arith.subf %1314, %1329 : vector<8x24xf32>
    %1331 = vector.shape_cast %102 : vector<8x1xi1> to vector<8x1xi1>
    %1332 = vector.broadcast %1331 : vector<8x1xi1> to vector<8x24xi1>
    %1333 = vector.shape_cast %1322 : vector<1x24xf32> to vector<1x24xf32>
    %1334 = vector.broadcast %1333 : vector<1x24xf32> to vector<8x24xf32>
    %1335 = arith.select %1332, %1334, %1330 : vector<8x24xi1>, vector<8x24xf32>
    %1336 = vector.extract_strided_slice %1335 {offsets = [0, 6], sizes = [8, 1], strides = [1, 1]} : vector<8x24xf32> to vector<8x1xf32>
    %1337 = vector.extract_strided_slice %1336 {offsets = [6, 0], sizes = [1, 1], strides = [1, 1]} : vector<8x1xf32> to vector<1x1xf32>
    %cst_158 = arith.constant 9.99999996E-13 : f32
    %1338 = vector.broadcast %cst_158 : f32 to vector<1x1xf32>
    %1339 = arith.maximumf %1337, %1338 : vector<1x1xf32>
    %1340 = math.rsqrt %1339 : vector<1x1xf32>
    %1341 = vector.extract_strided_slice %1335 {offsets = [6, 0], sizes = [1, 24], strides = [1, 1]} : vector<8x24xf32> to vector<1x24xf32>
    %1342 = vector.broadcast %1340 : vector<1x1xf32> to vector<1x24xf32>
    %1343 = arith.mulf %1341, %1342 : vector<1x24xf32>
    %1344 = vector.broadcast %1340 : vector<1x1xf32> to vector<8x1xf32>
    %1345 = arith.mulf %1336, %1344 : vector<8x1xf32>
    %cst_159 = arith.constant 0.000000e+00 : f32
    %1346 = vector.broadcast %cst_159 : f32 to vector<8x1xf32>
    %1347 = arith.select %88, %1345, %1346 : vector<8x1xi1>, vector<8x1xf32>
    %1348 = vector.broadcast %1347 : vector<8x1xf32> to vector<8x24xf32>
    %1349 = vector.broadcast %1343 : vector<1x24xf32> to vector<8x24xf32>
    %1350 = arith.mulf %1348, %1349 : vector<8x24xf32>
    %1351 = arith.subf %1335, %1350 : vector<8x24xf32>
    %1352 = vector.shape_cast %104 : vector<8x1xi1> to vector<8x1xi1>
    %1353 = vector.broadcast %1352 : vector<8x1xi1> to vector<8x24xi1>
    %1354 = vector.shape_cast %1343 : vector<1x24xf32> to vector<1x24xf32>
    %1355 = vector.broadcast %1354 : vector<1x24xf32> to vector<8x24xf32>
    %1356 = arith.select %1353, %1355, %1351 : vector<8x24xi1>, vector<8x24xf32>
    %1357 = vector.extract_strided_slice %1356 {offsets = [0, 7], sizes = [8, 1], strides = [1, 1]} : vector<8x24xf32> to vector<8x1xf32>
    %1358 = vector.extract_strided_slice %1357 {offsets = [7, 0], sizes = [1, 1], strides = [1, 1]} : vector<8x1xf32> to vector<1x1xf32>
    %cst_160 = arith.constant 9.99999996E-13 : f32
    %1359 = vector.broadcast %cst_160 : f32 to vector<1x1xf32>
    %1360 = arith.maximumf %1358, %1359 : vector<1x1xf32>
    %1361 = math.rsqrt %1360 : vector<1x1xf32>
    %1362 = vector.extract_strided_slice %1356 {offsets = [7, 0], sizes = [1, 24], strides = [1, 1]} : vector<8x24xf32> to vector<1x24xf32>
    %1363 = vector.broadcast %1361 : vector<1x1xf32> to vector<1x24xf32>
    %1364 = arith.mulf %1362, %1363 : vector<1x24xf32>
    %1365 = vector.broadcast %1361 : vector<1x1xf32> to vector<8x1xf32>
    %1366 = arith.mulf %1357, %1365 : vector<8x1xf32>
    %cst_161 = arith.constant 0.000000e+00 : f32
    %1367 = vector.broadcast %cst_161 : f32 to vector<8x1xf32>
    %1368 = arith.select %90, %1366, %1367 : vector<8x1xi1>, vector<8x1xf32>
    %1369 = vector.broadcast %1368 : vector<8x1xf32> to vector<8x24xf32>
    %1370 = vector.broadcast %1364 : vector<1x24xf32> to vector<8x24xf32>
    %1371 = arith.mulf %1369, %1370 : vector<8x24xf32>
    %1372 = arith.subf %1356, %1371 : vector<8x24xf32>
    %1373 = vector.shape_cast %106 : vector<8x1xi1> to vector<8x1xi1>
    %1374 = vector.broadcast %1373 : vector<8x1xi1> to vector<8x24xi1>
    %1375 = vector.shape_cast %1364 : vector<1x24xf32> to vector<1x24xf32>
    %1376 = vector.broadcast %1375 : vector<1x24xf32> to vector<8x24xf32>
    %1377 = arith.select %1374, %1376, %1372 : vector<8x24xi1>, vector<8x24xf32>
    %1378 = vector.extract_strided_slice %1377 {offsets = [0, 8], sizes = [8, 16], strides = [1, 1]} : vector<8x24xf32> to vector<8x16xf32>
    %1379 = vector.extract_strided_slice %1378 {offsets = [0, 0], sizes = [8, 8], strides = [1, 1]} : vector<8x16xf32> to vector<8x8xf32>
    %1380 = vector.extract_strided_slice %1378 {offsets = [0, 8], sizes = [8, 8], strides = [1, 1]} : vector<8x16xf32> to vector<8x8xf32>
    %1381 = vector.extract_strided_slice %60 {offsets = [56, 0], sizes = [8, 8], strides = [1, 1]} : vector<64x8xf32> to vector<8x8xf32>
    %1382 = vector.extract_strided_slice %65 {offsets = [48, 0], sizes = [8, 8], strides = [1, 1]} : vector<56x8xf32> to vector<8x8xf32>
    %1383 = tpu.concatenate %1381, %1382 in 1 : vector<8x8xf32>, vector<8x8xf32> -> vector<8x16xf32>
    %cst_162 = arith.constant dense<0.000000e+00> : vector<8x8xf32>
    %1384 = tpu.matmul %1383, %1383, %cst_162 {dimension_numbers = #tpu.dot_dimension_numbers<[1], [1], [0], [0], [0, 0, 1, 0], [], []>} : vector<8x16xf32>, vector<8x16xf32>, vector<8x8xf32> -> vector<8x8xf32>
    %cst_163 = arith.constant dense<0.000000e+00> : vector<8x8xf32>
    %1385 = tpu.matmul %1382, %1380, %cst_163 {dimension_numbers = #tpu.dot_dimension_numbers<[1], [1], [0], [0], [0, 0, 1, 0], [], []>} : vector<8x8xf32>, vector<8x8xf32>, vector<8x8xf32> -> vector<8x8xf32>
    %cst_164 = arith.constant dense<0.000000e+00> : vector<8x8xf32>
    %1386 = tpu.matmul %1385, %1385, %cst_164 {dimension_numbers = #tpu.dot_dimension_numbers<[1], [1], [0], [0], [0, 0, 1, 0], [], []>} : vector<8x8xf32>, vector<8x8xf32>, vector<8x8xf32> -> vector<8x8xf32>
    %cst_165 = arith.constant dense<0.000000e+00> : vector<8x8xf32>
    %1387 = tpu.matmul %1385, %1379, %cst_165 {dimension_numbers = #tpu.dot_dimension_numbers<[1], [0], [0], [1], [0, 0, 1, 1], [], []>} : vector<8x8xf32>, vector<8x8xf32>, vector<8x8xf32> -> vector<8x8xf32>
    %1388 = arith.subf %1384, %1386 : vector<8x8xf32>
    %1389 = arith.addf %1388, %73 : vector<8x8xf32>
    %1390 = arith.subf %71, %1387 : vector<8x8xf32>
    %1391 = tpu.concatenate %1390, %1381 in 1 : vector<8x8xf32>, vector<8x8xf32> -> vector<8x16xf32>
    %1392 = tpu.concatenate %1389, %1391 in 1 : vector<8x8xf32>, vector<8x16xf32> -> vector<8x24xf32>
    %1393 = vector.extract_strided_slice %1392 {offsets = [0, 0], sizes = [8, 1], strides = [1, 1]} : vector<8x24xf32> to vector<8x1xf32>
    %1394 = vector.extract_strided_slice %1393 {offsets = [0, 0], sizes = [1, 1], strides = [1, 1]} : vector<8x1xf32> to vector<1x1xf32>
    %cst_166 = arith.constant 9.99999996E-13 : f32
    %1395 = vector.broadcast %cst_166 : f32 to vector<1x1xf32>
    %1396 = arith.maximumf %1394, %1395 : vector<1x1xf32>
    %1397 = math.rsqrt %1396 : vector<1x1xf32>
    %1398 = vector.extract_strided_slice %1392 {offsets = [0, 0], sizes = [1, 24], strides = [1, 1]} : vector<8x24xf32> to vector<1x24xf32>
    %1399 = vector.broadcast %1397 : vector<1x1xf32> to vector<1x24xf32>
    %1400 = arith.mulf %1398, %1399 : vector<1x24xf32>
    %1401 = vector.broadcast %1397 : vector<1x1xf32> to vector<8x1xf32>
    %1402 = arith.mulf %1393, %1401 : vector<8x1xf32>
    %cst_167 = arith.constant 0.000000e+00 : f32
    %1403 = vector.broadcast %cst_167 : f32 to vector<8x1xf32>
    %1404 = arith.select %76, %1402, %1403 : vector<8x1xi1>, vector<8x1xf32>
    %1405 = vector.broadcast %1404 : vector<8x1xf32> to vector<8x24xf32>
    %1406 = vector.broadcast %1400 : vector<1x24xf32> to vector<8x24xf32>
    %1407 = arith.mulf %1405, %1406 : vector<8x24xf32>
    %1408 = arith.subf %1392, %1407 : vector<8x24xf32>
    %1409 = vector.shape_cast %92 : vector<8x1xi1> to vector<8x1xi1>
    %1410 = vector.broadcast %1409 : vector<8x1xi1> to vector<8x24xi1>
    %1411 = vector.shape_cast %1400 : vector<1x24xf32> to vector<1x24xf32>
    %1412 = vector.broadcast %1411 : vector<1x24xf32> to vector<8x24xf32>
    %1413 = arith.select %1410, %1412, %1408 : vector<8x24xi1>, vector<8x24xf32>
    %1414 = vector.extract_strided_slice %1413 {offsets = [0, 1], sizes = [8, 1], strides = [1, 1]} : vector<8x24xf32> to vector<8x1xf32>
    %1415 = vector.extract_strided_slice %1414 {offsets = [1, 0], sizes = [1, 1], strides = [1, 1]} : vector<8x1xf32> to vector<1x1xf32>
    %cst_168 = arith.constant 9.99999996E-13 : f32
    %1416 = vector.broadcast %cst_168 : f32 to vector<1x1xf32>
    %1417 = arith.maximumf %1415, %1416 : vector<1x1xf32>
    %1418 = math.rsqrt %1417 : vector<1x1xf32>
    %1419 = vector.extract_strided_slice %1413 {offsets = [1, 0], sizes = [1, 24], strides = [1, 1]} : vector<8x24xf32> to vector<1x24xf32>
    %1420 = vector.broadcast %1418 : vector<1x1xf32> to vector<1x24xf32>
    %1421 = arith.mulf %1419, %1420 : vector<1x24xf32>
    %1422 = vector.broadcast %1418 : vector<1x1xf32> to vector<8x1xf32>
    %1423 = arith.mulf %1414, %1422 : vector<8x1xf32>
    %cst_169 = arith.constant 0.000000e+00 : f32
    %1424 = vector.broadcast %cst_169 : f32 to vector<8x1xf32>
    %1425 = arith.select %78, %1423, %1424 : vector<8x1xi1>, vector<8x1xf32>
    %1426 = vector.broadcast %1425 : vector<8x1xf32> to vector<8x24xf32>
    %1427 = vector.broadcast %1421 : vector<1x24xf32> to vector<8x24xf32>
    %1428 = arith.mulf %1426, %1427 : vector<8x24xf32>
    %1429 = arith.subf %1413, %1428 : vector<8x24xf32>
    %1430 = vector.shape_cast %94 : vector<8x1xi1> to vector<8x1xi1>
    %1431 = vector.broadcast %1430 : vector<8x1xi1> to vector<8x24xi1>
    %1432 = vector.shape_cast %1421 : vector<1x24xf32> to vector<1x24xf32>
    %1433 = vector.broadcast %1432 : vector<1x24xf32> to vector<8x24xf32>
    %1434 = arith.select %1431, %1433, %1429 : vector<8x24xi1>, vector<8x24xf32>
    %1435 = vector.extract_strided_slice %1434 {offsets = [0, 2], sizes = [8, 1], strides = [1, 1]} : vector<8x24xf32> to vector<8x1xf32>
    %1436 = vector.extract_strided_slice %1435 {offsets = [2, 0], sizes = [1, 1], strides = [1, 1]} : vector<8x1xf32> to vector<1x1xf32>
    %cst_170 = arith.constant 9.99999996E-13 : f32
    %1437 = vector.broadcast %cst_170 : f32 to vector<1x1xf32>
    %1438 = arith.maximumf %1436, %1437 : vector<1x1xf32>
    %1439 = math.rsqrt %1438 : vector<1x1xf32>
    %1440 = vector.extract_strided_slice %1434 {offsets = [2, 0], sizes = [1, 24], strides = [1, 1]} : vector<8x24xf32> to vector<1x24xf32>
    %1441 = vector.broadcast %1439 : vector<1x1xf32> to vector<1x24xf32>
    %1442 = arith.mulf %1440, %1441 : vector<1x24xf32>
    %1443 = vector.broadcast %1439 : vector<1x1xf32> to vector<8x1xf32>
    %1444 = arith.mulf %1435, %1443 : vector<8x1xf32>
    %cst_171 = arith.constant 0.000000e+00 : f32
    %1445 = vector.broadcast %cst_171 : f32 to vector<8x1xf32>
    %1446 = arith.select %80, %1444, %1445 : vector<8x1xi1>, vector<8x1xf32>
    %1447 = vector.broadcast %1446 : vector<8x1xf32> to vector<8x24xf32>
    %1448 = vector.broadcast %1442 : vector<1x24xf32> to vector<8x24xf32>
    %1449 = arith.mulf %1447, %1448 : vector<8x24xf32>
    %1450 = arith.subf %1434, %1449 : vector<8x24xf32>
    %1451 = vector.shape_cast %96 : vector<8x1xi1> to vector<8x1xi1>
    %1452 = vector.broadcast %1451 : vector<8x1xi1> to vector<8x24xi1>
    %1453 = vector.shape_cast %1442 : vector<1x24xf32> to vector<1x24xf32>
    %1454 = vector.broadcast %1453 : vector<1x24xf32> to vector<8x24xf32>
    %1455 = arith.select %1452, %1454, %1450 : vector<8x24xi1>, vector<8x24xf32>
    %1456 = vector.extract_strided_slice %1455 {offsets = [0, 3], sizes = [8, 1], strides = [1, 1]} : vector<8x24xf32> to vector<8x1xf32>
    %1457 = vector.extract_strided_slice %1456 {offsets = [3, 0], sizes = [1, 1], strides = [1, 1]} : vector<8x1xf32> to vector<1x1xf32>
    %cst_172 = arith.constant 9.99999996E-13 : f32
    %1458 = vector.broadcast %cst_172 : f32 to vector<1x1xf32>
    %1459 = arith.maximumf %1457, %1458 : vector<1x1xf32>
    %1460 = math.rsqrt %1459 : vector<1x1xf32>
    %1461 = vector.extract_strided_slice %1455 {offsets = [3, 0], sizes = [1, 24], strides = [1, 1]} : vector<8x24xf32> to vector<1x24xf32>
    %1462 = vector.broadcast %1460 : vector<1x1xf32> to vector<1x24xf32>
    %1463 = arith.mulf %1461, %1462 : vector<1x24xf32>
    %1464 = vector.broadcast %1460 : vector<1x1xf32> to vector<8x1xf32>
    %1465 = arith.mulf %1456, %1464 : vector<8x1xf32>
    %cst_173 = arith.constant 0.000000e+00 : f32
    %1466 = vector.broadcast %cst_173 : f32 to vector<8x1xf32>
    %1467 = arith.select %82, %1465, %1466 : vector<8x1xi1>, vector<8x1xf32>
    %1468 = vector.broadcast %1467 : vector<8x1xf32> to vector<8x24xf32>
    %1469 = vector.broadcast %1463 : vector<1x24xf32> to vector<8x24xf32>
    %1470 = arith.mulf %1468, %1469 : vector<8x24xf32>
    %1471 = arith.subf %1455, %1470 : vector<8x24xf32>
    %1472 = vector.shape_cast %98 : vector<8x1xi1> to vector<8x1xi1>
    %1473 = vector.broadcast %1472 : vector<8x1xi1> to vector<8x24xi1>
    %1474 = vector.shape_cast %1463 : vector<1x24xf32> to vector<1x24xf32>
    %1475 = vector.broadcast %1474 : vector<1x24xf32> to vector<8x24xf32>
    %1476 = arith.select %1473, %1475, %1471 : vector<8x24xi1>, vector<8x24xf32>
    %1477 = vector.extract_strided_slice %1476 {offsets = [0, 4], sizes = [8, 1], strides = [1, 1]} : vector<8x24xf32> to vector<8x1xf32>
    %1478 = vector.extract_strided_slice %1477 {offsets = [4, 0], sizes = [1, 1], strides = [1, 1]} : vector<8x1xf32> to vector<1x1xf32>
    %cst_174 = arith.constant 9.99999996E-13 : f32
    %1479 = vector.broadcast %cst_174 : f32 to vector<1x1xf32>
    %1480 = arith.maximumf %1478, %1479 : vector<1x1xf32>
    %1481 = math.rsqrt %1480 : vector<1x1xf32>
    %1482 = vector.extract_strided_slice %1476 {offsets = [4, 0], sizes = [1, 24], strides = [1, 1]} : vector<8x24xf32> to vector<1x24xf32>
    %1483 = vector.broadcast %1481 : vector<1x1xf32> to vector<1x24xf32>
    %1484 = arith.mulf %1482, %1483 : vector<1x24xf32>
    %1485 = vector.broadcast %1481 : vector<1x1xf32> to vector<8x1xf32>
    %1486 = arith.mulf %1477, %1485 : vector<8x1xf32>
    %cst_175 = arith.constant 0.000000e+00 : f32
    %1487 = vector.broadcast %cst_175 : f32 to vector<8x1xf32>
    %1488 = arith.select %84, %1486, %1487 : vector<8x1xi1>, vector<8x1xf32>
    %1489 = vector.broadcast %1488 : vector<8x1xf32> to vector<8x24xf32>
    %1490 = vector.broadcast %1484 : vector<1x24xf32> to vector<8x24xf32>
    %1491 = arith.mulf %1489, %1490 : vector<8x24xf32>
    %1492 = arith.subf %1476, %1491 : vector<8x24xf32>
    %1493 = vector.shape_cast %100 : vector<8x1xi1> to vector<8x1xi1>
    %1494 = vector.broadcast %1493 : vector<8x1xi1> to vector<8x24xi1>
    %1495 = vector.shape_cast %1484 : vector<1x24xf32> to vector<1x24xf32>
    %1496 = vector.broadcast %1495 : vector<1x24xf32> to vector<8x24xf32>
    %1497 = arith.select %1494, %1496, %1492 : vector<8x24xi1>, vector<8x24xf32>
    %1498 = vector.extract_strided_slice %1497 {offsets = [0, 5], sizes = [8, 1], strides = [1, 1]} : vector<8x24xf32> to vector<8x1xf32>
    %1499 = vector.extract_strided_slice %1498 {offsets = [5, 0], sizes = [1, 1], strides = [1, 1]} : vector<8x1xf32> to vector<1x1xf32>
    %cst_176 = arith.constant 9.99999996E-13 : f32
    %1500 = vector.broadcast %cst_176 : f32 to vector<1x1xf32>
    %1501 = arith.maximumf %1499, %1500 : vector<1x1xf32>
    %1502 = math.rsqrt %1501 : vector<1x1xf32>
    %1503 = vector.extract_strided_slice %1497 {offsets = [5, 0], sizes = [1, 24], strides = [1, 1]} : vector<8x24xf32> to vector<1x24xf32>
    %1504 = vector.broadcast %1502 : vector<1x1xf32> to vector<1x24xf32>
    %1505 = arith.mulf %1503, %1504 : vector<1x24xf32>
    %1506 = vector.broadcast %1502 : vector<1x1xf32> to vector<8x1xf32>
    %1507 = arith.mulf %1498, %1506 : vector<8x1xf32>
    %cst_177 = arith.constant 0.000000e+00 : f32
    %1508 = vector.broadcast %cst_177 : f32 to vector<8x1xf32>
    %1509 = arith.select %86, %1507, %1508 : vector<8x1xi1>, vector<8x1xf32>
    %1510 = vector.broadcast %1509 : vector<8x1xf32> to vector<8x24xf32>
    %1511 = vector.broadcast %1505 : vector<1x24xf32> to vector<8x24xf32>
    %1512 = arith.mulf %1510, %1511 : vector<8x24xf32>
    %1513 = arith.subf %1497, %1512 : vector<8x24xf32>
    %1514 = vector.shape_cast %102 : vector<8x1xi1> to vector<8x1xi1>
    %1515 = vector.broadcast %1514 : vector<8x1xi1> to vector<8x24xi1>
    %1516 = vector.shape_cast %1505 : vector<1x24xf32> to vector<1x24xf32>
    %1517 = vector.broadcast %1516 : vector<1x24xf32> to vector<8x24xf32>
    %1518 = arith.select %1515, %1517, %1513 : vector<8x24xi1>, vector<8x24xf32>
    %1519 = vector.extract_strided_slice %1518 {offsets = [0, 6], sizes = [8, 1], strides = [1, 1]} : vector<8x24xf32> to vector<8x1xf32>
    %1520 = vector.extract_strided_slice %1519 {offsets = [6, 0], sizes = [1, 1], strides = [1, 1]} : vector<8x1xf32> to vector<1x1xf32>
    %cst_178 = arith.constant 9.99999996E-13 : f32
    %1521 = vector.broadcast %cst_178 : f32 to vector<1x1xf32>
    %1522 = arith.maximumf %1520, %1521 : vector<1x1xf32>
    %1523 = math.rsqrt %1522 : vector<1x1xf32>
    %1524 = vector.extract_strided_slice %1518 {offsets = [6, 0], sizes = [1, 24], strides = [1, 1]} : vector<8x24xf32> to vector<1x24xf32>
    %1525 = vector.broadcast %1523 : vector<1x1xf32> to vector<1x24xf32>
    %1526 = arith.mulf %1524, %1525 : vector<1x24xf32>
    %1527 = vector.broadcast %1523 : vector<1x1xf32> to vector<8x1xf32>
    %1528 = arith.mulf %1519, %1527 : vector<8x1xf32>
    %cst_179 = arith.constant 0.000000e+00 : f32
    %1529 = vector.broadcast %cst_179 : f32 to vector<8x1xf32>
    %1530 = arith.select %88, %1528, %1529 : vector<8x1xi1>, vector<8x1xf32>
    %1531 = vector.broadcast %1530 : vector<8x1xf32> to vector<8x24xf32>
    %1532 = vector.broadcast %1526 : vector<1x24xf32> to vector<8x24xf32>
    %1533 = arith.mulf %1531, %1532 : vector<8x24xf32>
    %1534 = arith.subf %1518, %1533 : vector<8x24xf32>
    %1535 = vector.shape_cast %104 : vector<8x1xi1> to vector<8x1xi1>
    %1536 = vector.broadcast %1535 : vector<8x1xi1> to vector<8x24xi1>
    %1537 = vector.shape_cast %1526 : vector<1x24xf32> to vector<1x24xf32>
    %1538 = vector.broadcast %1537 : vector<1x24xf32> to vector<8x24xf32>
    %1539 = arith.select %1536, %1538, %1534 : vector<8x24xi1>, vector<8x24xf32>
    %1540 = vector.extract_strided_slice %1539 {offsets = [0, 7], sizes = [8, 1], strides = [1, 1]} : vector<8x24xf32> to vector<8x1xf32>
    %1541 = vector.extract_strided_slice %1540 {offsets = [7, 0], sizes = [1, 1], strides = [1, 1]} : vector<8x1xf32> to vector<1x1xf32>
    %cst_180 = arith.constant 9.99999996E-13 : f32
    %1542 = vector.broadcast %cst_180 : f32 to vector<1x1xf32>
    %1543 = arith.maximumf %1541, %1542 : vector<1x1xf32>
    %1544 = math.rsqrt %1543 : vector<1x1xf32>
    %1545 = vector.extract_strided_slice %1539 {offsets = [7, 0], sizes = [1, 24], strides = [1, 1]} : vector<8x24xf32> to vector<1x24xf32>
    %1546 = vector.broadcast %1544 : vector<1x1xf32> to vector<1x24xf32>
    %1547 = arith.mulf %1545, %1546 : vector<1x24xf32>
    %1548 = vector.broadcast %1544 : vector<1x1xf32> to vector<8x1xf32>
    %1549 = arith.mulf %1540, %1548 : vector<8x1xf32>
    %cst_181 = arith.constant 0.000000e+00 : f32
    %1550 = vector.broadcast %cst_181 : f32 to vector<8x1xf32>
    %1551 = arith.select %90, %1549, %1550 : vector<8x1xi1>, vector<8x1xf32>
    %1552 = vector.broadcast %1551 : vector<8x1xf32> to vector<8x24xf32>
    %1553 = vector.broadcast %1547 : vector<1x24xf32> to vector<8x24xf32>
    %1554 = arith.mulf %1552, %1553 : vector<8x24xf32>
    %1555 = arith.subf %1539, %1554 : vector<8x24xf32>
    %1556 = vector.shape_cast %106 : vector<8x1xi1> to vector<8x1xi1>
    %1557 = vector.broadcast %1556 : vector<8x1xi1> to vector<8x24xi1>
    %1558 = vector.shape_cast %1547 : vector<1x24xf32> to vector<1x24xf32>
    %1559 = vector.broadcast %1558 : vector<1x24xf32> to vector<8x24xf32>
    %1560 = arith.select %1557, %1559, %1555 : vector<8x24xi1>, vector<8x24xf32>
    %1561 = vector.extract_strided_slice %1560 {offsets = [0, 8], sizes = [8, 16], strides = [1, 1]} : vector<8x24xf32> to vector<8x16xf32>
    %1562 = vector.extract_strided_slice %1561 {offsets = [0, 0], sizes = [8, 8], strides = [1, 1]} : vector<8x16xf32> to vector<8x8xf32>
    %1563 = tpu.concatenate %281, %464, %647, %830, %1013, %1196, %1379, %1562 in 0 : vector<8x8xf32>, vector<8x8xf32>, vector<8x8xf32>, vector<8x8xf32>, vector<8x8xf32>, vector<8x8xf32>, vector<8x8xf32>, vector<8x8xf32> -> vector<64x8xf32>
    %cst_182 = arith.constant 9.99999974E-6 : f32
    %1564 = vector.broadcast %cst_182 : f32 to vector<64x8xf32>
    %1565 = arith.subf %1563, %1564 : vector<64x8xf32>
    %cst_183 = arith.constant 0.000000e+00 : f32
    %1566 = vector.broadcast %cst_183 : f32 to vector<64x8xf32>
    %1567 = arith.maximumf %1565, %1566 : vector<64x8xf32>
    %cst_184 = arith.constant 9.99999974E-6 : f32
    %1568 = vector.broadcast %cst_184 : f32 to vector<64x8xf32>
    %1569 = arith.addf %1567, %1568 : vector<64x8xf32>
    %1570 = tpu.concatenate %2, %2, %2, %2, %2, %2, %2, %2 in 1 : vector<8x8xf32>, vector<8x8xf32>, vector<8x8xf32>, vector<8x8xf32>, vector<8x8xf32>, vector<8x8xf32>, vector<8x8xf32>, vector<8x8xf32> -> vector<8x64xf32>
    %1571 = tpu.iota {dimensions = array<i32: 1>} : vector<8x64xi32>
    %1572 = tpu.iota {dimensions = array<i32: 0>} : vector<8x64xi32>
    %c3_i32_185 = arith.constant 3 : i32
    %1573 = vector.broadcast %c3_i32_185 : i32 to vector<8x64xi32>
    %1574 = arith.shrsi %1571, %1573 : vector<8x64xi32>
    %1575 = arith.cmpi eq, %1574, %1572 : vector<8x64xi32>
    %cst_186 = arith.constant 0.000000e+00 : f32
    %1576 = vector.broadcast %cst_186 : f32 to vector<8x64xf32>
    %1577 = arith.select %1575, %1570, %1576 : vector<8x64xi1>, vector<8x64xf32>
    %cst_187 = arith.constant dense<0.000000e+00> : vector<8x8xf32>
    %1578 = tpu.matmul %1577, %1569, %cst_187 {dimension_numbers = #tpu.dot_dimension_numbers<[1], [0], [0], [1], [0, 0, 1, 1], [], []>} : vector<8x64xf32>, vector<64x8xf32>, vector<8x8xf32> -> vector<8x8xf32>
    %1579 = arith.addf %18, %1578 : vector<8x8xf32>
    %1580 = tpu.iota {dimensions = array<i32: 0>} : vector<64x8xi32>
    %1581 = tpu.iota {dimensions = array<i32: 1>} : vector<64x8xi32>
    %c7_i32_188 = arith.constant 7 : i32
    %1582 = vector.broadcast %c7_i32_188 : i32 to vector<64x8xi32>
    %1583 = arith.andi %1580, %1582 : vector<64x8xi32>
    %1584 = arith.cmpi eq, %1583, %1581 : vector<64x8xi32>
    %cst_189 = arith.constant 1.000000e+00 : f32
    %1585 = vector.broadcast %cst_189 : f32 to vector<64x8xf32>
    %1586 = arith.select %1584, %1569, %1585 : vector<64x8xi1>, vector<64x8xf32>
    %1587 = math.log %1586 : vector<64x8xf32>
    %cst_190 = arith.constant dense<0.000000e+00> : vector<64xf32>
    %1588 = vector.multi_reduction <add>, %1587, %cst_190 [1] : vector<64x8xf32> to vector<64xf32>
    %1589 = vector.shape_cast %1588 : vector<64xf32> to vector<64x1xf32>
    %cst_191 = arith.constant 0.000000e+00 : f32
    %1590 = vector.broadcast %cst_191 : f32 to vector<64x1xf32>
    %1591 = arith.subf %1590, %1589 : vector<64x1xf32>
    %cst_192 = arith.constant dense<0.000000e+00> : vector<1xf32>
    %1592 = vector.multi_reduction <add>, %1591, %cst_192 [0] : vector<64x1xf32> to vector<1xf32>
    %1593 = vector.shape_cast %1592 : vector<1xf32> to vector<1x1xf32>
    %cst_193 = arith.constant 181.62413 : f32
    %1594 = vector.broadcast %cst_193 : f32 to vector<1x1xf32>
    %1595 = arith.addf %1593, %1594 : vector<1x1xf32>
    %1596 = vector.shape_cast %1595 : vector<1x1xf32> to vector<1x1xf32>
    %1597 = vector.broadcast %1596 : vector<1x1xf32> to vector<8x8xf32>
    %cst_194 = arith.constant 0.000000e+00 : f32
    %1598 = vector.broadcast %cst_194 : f32 to vector<8x112xf32>
    %1599 = tpu.concatenate %1579, %1597, %1598 in 1 : vector<8x8xf32>, vector<8x8xf32>, vector<8x112xf32> -> vector<8x128xf32>
    %c0_195 = arith.constant 0 : index
    %c0_196 = arith.constant 0 : index
    %1600 = vector.load %arg5[%c0_195, %c0_196] : memref<8x128xf32, #tpu.memory_space<vmem>>, vector<8x128xf32>
    tpu.vector_store %arg5[%c0_195, %c0_196], %1599 {strides = array<i32>} : memref<8x128xf32, #tpu.memory_space<vmem>>, vector<8x128xf32>,
    return
  }
  func.func @transform_0(%arg0: i32) -> (i32, i32) {
    %c0_i32 = arith.constant 0 : i32
    %c0_i32_0 = arith.constant 0 : i32
    %c0_i32_1 = arith.constant 0 : i32
    return %c0_i32, %c0_i32_0 : i32, i32
  }
  func.func @transform_1(%arg0: i32) -> (i32, i32) {
    %c0_i32 = arith.constant 0 : i32
    %c0_i32_0 = arith.constant 0 : i32
    %c0_i32_1 = arith.constant 0 : i32
    return %c0_i32, %c0_i32_0 : i32, i32
  }
  func.func @transform_2(%arg0: i32) -> (i32, i32) {
    %c0_i32 = arith.constant 0 : i32
    %c0_i32_0 = arith.constant 0 : i32
    %c0_i32_1 = arith.constant 0 : i32
    return %c0_i32, %c0_i32_0 : i32, i32
  }
  func.func @transform_3(%arg0: i32) -> (i32, i32) {
    %c0_i32 = arith.constant 0 : i32
    %c0_i32_0 = arith.constant 0 : i32
    %c0_i32_1 = arith.constant 0 : i32
    return %c0_i32, %c0_i32_0 : i32, i32
  }
  func.func @transform_4(%arg0: i32) -> (i32, i32) {
    %c0_i32 = arith.constant 0 : i32
    %c0_i32_0 = arith.constant 0 : i32
    %c0_i32_1 = arith.constant 0 : i32
    return %c0_i32, %c0_i32_0 : i32, i32
  }
}

</mosaic_0001>

<llo_original>
// kernel: sequential_vae_forward.1
$region0: #{sequential_vae_forward.1}
  #allocation0 [shape = 'u32[]', space=smem, size = 0x4, offset = 0x4, fixed_abs, tag = 'smem constant byte address 0x4 - core index']
  #allocation1 [shape = 'u32[144,128]{1,0:T(1,128)}', space=vmem, size = 0x12000, scoped, tag = 'internal scratch']
  %s0 = inlined_call_operand.vmem [shape: f32[8,24], index: 0, kind: input, shape index: {}]
  %s1 = inlined_call_operand.vmem [shape: f32[8,16], index: 1, kind: input, shape index: {}]
  %s2 = inlined_call_operand.vmem [shape: f32[24,24], index: 2, kind: input, shape index: {}]
  %s3 = inlined_call_operand.vmem [shape: f32[128,24], index: 3, kind: input, shape index: {}]
  %s4 = inlined_call_operand.vmem [shape: f32[8,128], index: 4, kind: output, shape index: {}]
  %s5 = sld [smem:[#allocation0]]
  $region26: #{sequential_vae_forward.1} parent=0
    _
  %s7 = ssub.s32 1, %s5
  %s8 = scalar_select 0, %s7, %s5
  // Predicated region
  $region2: #{sequential_vae_forward.1} parent=0 // pred_check
    _
  $region3: #{sequential_vae_forward.1} parent=0 // pred_check_branch
    %10 = sbr.rel (0) target = $region5
  $region4: #{sequential_vae_forward.1} parent=0 // pred_region
    _
  $region5: #{sequential_vae_forward.1} parent=0 // pred_fallthru
    _
  // Predicated region
  $region6: #{sequential_vae_forward.1} parent=0 // pred_check
    _
  $region7: #{sequential_vae_forward.1} parent=0 // pred_check_branch
    %12 = sbr.rel (0) target = $region9
  $region8: #{sequential_vae_forward.1} parent=0 // pred_region
    _
  $region9: #{sequential_vae_forward.1} parent=0 // pred_fallthru
    _
  // Predicated region
  $region10: #{sequential_vae_forward.1} parent=0 // pred_check
    _
  $region11: #{sequential_vae_forward.1} parent=0 // pred_check_branch
    %14 = sbr.rel (0) target = $region13
  $region12: #{sequential_vae_forward.1} parent=0 // pred_region
    _
  $region13: #{sequential_vae_forward.1} parent=0 // pred_fallthru
    _
  // Predicated region
  $region14: #{sequential_vae_forward.1} parent=0 // pred_check
    _
  $region15: #{sequential_vae_forward.1} parent=0 // pred_check_branch
    %16 = sbr.rel (0) target = $region17
  $region16: #{sequential_vae_forward.1} parent=0 // pred_region
    _
  $region17: #{sequential_vae_forward.1} parent=0 // pred_fallthru
    _
  %v17 = vld [vmem:[%s0] sm:$0xff]
  %v18 = vld [vmem:[%s1] sm:$0xff]
  %v19 = vld [vmem:[%s2] sm:$0xff]
  %v20 = vld [vmem:[%s2 + $0x8] sm:$0xff]
  %v21 = vld [vmem:[%s2 + $0x10] sm:$0xff]
  %v22 = vlaneseq
  %v23 = vshrl.u32 %v22, 7
  %v24 = vsub.s32 0, %v23
  %v25 = vrot.slane %v21, %v24
  %vm26 = vcmask 130048
  %v28 = vsel %vm26, %v17, 0
  %30 = vmatprep.subr.mxu0 0.0
  %31 = vmatpush1.msra.mxu0 0.0
  %32 = vmatprep.subr.mxu0 0.0
  %33 = vmatpush1.msra.mxu0 0.0
  %34 = vmatprep.subr.mxu0 0.0
  %35 = vmatpush1.msra.mxu0 0.0
  %36 = vmatprep.subr.mxu0 0.0
  %37 = vmatpush1.msra.mxu0 0.0
  %38 = vmatprep.subr.mxu0 0.0
  %39 = vmatpush1.msra.mxu0 0.0
  %40 = vmatprep.subr.mxu0 0.0
  %41 = vmatpush1.msra.mxu0 0.0
  %42 = vmatprep.subr.mxu0 0.0
  %43 = vmatpush1.msra.mxu0 0.0
  %44 = vmatprep.subr.mxu0 0.0
  %45 = vmatpush1.msra.mxu0 0.0
  %46 = vmatprep.subr.mxu0 0.0
  %47 = vmatpush1.msra.mxu0 0.0
  %48 = vmatprep.subr.mxu0 0.0
  %49 = vmatpush1.msra.mxu0 0.0
  %50 = vmatprep.subr.mxu0 0.0
  %51 = vmatpush1.msra.mxu0 0.0
  %52 = vmatprep.subr.mxu0 0.0
  %53 = vmatpush1.msra.mxu0 0.0
  %54 = vmatprep.subr.mxu0 0.0
  %55 = vmatpush1.msra.mxu0 0.0
  %56 = vmatprep.subr.mxu0 0.0
  %57 = vmatpush1.msra.mxu0 0.0
  %58 = vmatprep.subr.mxu0 0.0
  %59 = vmatpush1.msra.mxu0 %v20
  %60 = vmatprep.subr.mxu0 0.0
  %61 = vmatpush1.msra.mxu0 %v19
  %62 = vmatprep.subr.mxu0 0.0
  %63 = vmatpush2.msra.mxu0 0.0
  %64 = vmatprep.subr.mxu0 0.0
  %65 = vmatpush2.msra.mxu0 0.0
  %66 = vmatprep.subr.mxu0 0.0
  %67 = vmatpush2.msra.mxu0 0.0
  %68 = vmatprep.subr.mxu0 0.0
  %69 = vmatpush2.msra.mxu0 0.0
  %70 = vmatprep.subr.mxu0 0.0
  %71 = vmatpush2.msra.mxu0 0.0
  %72 = vmatprep.subr.mxu0 0.0
  %73 = vmatpush2.msra.mxu0 0.0
  %74 = vmatprep.subr.mxu0 0.0
  %75 = vmatpush2.msra.mxu0 0.0
  %76 = vmatprep.subr.mxu0 0.0
  %77 = vmatpush2.msra.mxu0 0.0
  %78 = vmatprep.subr.mxu0 0.0
  %79 = vmatpush2.msra.mxu0 0.0
  %80 = vmatprep.subr.mxu0 0.0
  %81 = vmatpush2.msra.mxu0 0.0
  %82 = vmatprep.subr.mxu0 0.0
  %83 = vmatpush2.msra.mxu0 0.0
  %84 = vmatprep.subr.mxu0 0.0
  %85 = vmatpush2.msra.mxu0 0.0
  %86 = vmatprep.subr.mxu0 0.0
  %87 = vmatpush2.msra.mxu0 0.0
  %88 = vmatprep.subr.mxu0 0.0
  %89 = vmatpush2.msra.mxu0 0.0
  %90 = vmatprep.subr.mxu0 0.0
  %91 = vmatpush2.msra.mxu0 0.0
  %92 = vmatprep.subr.mxu0 0.0
  %93 = vmatpush2.msra.mxu0 0.0
  %94 = vmatprep.mubr.f32.mxu0 0.0
  %95 = vmatmul.mubr.f32.gmra.mxu0 %v28
  %v96 = vpop.f32.mrf.mxu0
  %v97 = vadd.f32 %v25, %v96
  %v98 = vpop.f32.mrf.mxu0
  %99 = vdwg.mxu0
  %v100 = vmax.f32 %v97, 0.0
  %103 = vrot.lane.b32.xlu0 %v19, 112
  %v104 = vpop.permute.xlu0 %103
  %105 = vrot.lane.b32.xlu0 %v20, 112
  %v106 = vpop.permute.xlu0 %105
  %110 = vrot.lane.b32.xlu0 %v25, 112
  %v111 = vpop.permute.xlu0 %110
  %v114 = vsel %vm26, %v100, 0
  %116 = vmatprep.subr.mxu0 0.0
  %117 = vmatpush1.msra.mxu0 0.0
  %118 = vmatprep.subr.mxu0 0.0
  %119 = vmatpush1.msra.mxu0 0.0
  %120 = vmatprep.subr.mxu0 0.0
  %121 = vmatpush1.msra.mxu0 0.0
  %122 = vmatprep.subr.mxu0 0.0
  %123 = vmatpush1.msra.mxu0 0.0
  %124 = vmatprep.subr.mxu0 0.0
  %125 = vmatpush1.msra.mxu0 0.0
  %126 = vmatprep.subr.mxu0 0.0
  %127 = vmatpush1.msra.mxu0 0.0
  %128 = vmatprep.subr.mxu0 0.0
  %129 = vmatpush1.msra.mxu0 0.0
  %130 = vmatprep.subr.mxu0 0.0
  %131 = vmatpush1.msra.mxu0 0.0
  %132 = vmatprep.subr.mxu0 0.0
  %133 = vmatpush1.msra.mxu0 0.0
  %134 = vmatprep.subr.mxu0 0.0
  %135 = vmatpush1.msra.mxu0 0.0
  %136 = vmatprep.subr.mxu0 0.0
  %137 = vmatpush1.msra.mxu0 0.0
  %138 = vmatprep.subr.mxu0 0.0
  %139 = vmatpush1.msra.mxu0 0.0
  %140 = vmatprep.subr.mxu0 0.0
  %141 = vmatpush1.msra.mxu0 0.0
  %142 = vmatprep.subr.mxu0 0.0
  %143 = vmatpush1.msra.mxu0 0.0
  %144 = vmatprep.subr.mxu0 0.0
  %145 = vmatpush1.msra.mxu0 %v106
  %146 = vmatprep.subr.mxu0 0.0
  %147 = vmatpush1.msra.mxu0 %v104
  %148 = vmatprep.subr.mxu0 0.0
  %149 = vmatpush2.msra.mxu0 0.0
  %150 = vmatprep.subr.mxu0 0.0
  %151 = vmatpush2.msra.mxu0 0.0
  %152 = vmatprep.subr.mxu0 0.0
  %153 = vmatpush2.msra.mxu0 0.0
  %154 = vmatprep.subr.mxu0 0.0
  %155 = vmatpush2.msra.mxu0 0.0
  %156 = vmatprep.subr.mxu0 0.0
  %157 = vmatpush2.msra.mxu0 0.0
  %158 = vmatprep.subr.mxu0 0.0
  %159 = vmatpush2.msra.mxu0 0.0
  %160 = vmatprep.subr.mxu0 0.0
  %161 = vmatpush2.msra.mxu0 0.0
  %162 = vmatprep.subr.mxu0 0.0
  %163 = vmatpush2.msra.mxu0 0.0
  %164 = vmatprep.subr.mxu0 0.0
  %165 = vmatpush2.msra.mxu0 0.0
  %166 = vmatprep.subr.mxu0 0.0
  %167 = vmatpush2.msra.mxu0 0.0
  %168 = vmatprep.subr.mxu0 0.0
  %169 = vmatpush2.msra.mxu0 0.0
  %170 = vmatprep.subr.mxu0 0.0
  %171 = vmatpush2.msra.mxu0 0.0
  %172 = vmatprep.subr.mxu0 0.0
  %173 = vmatpush2.msra.mxu0 0.0
  %174 = vmatprep.subr.mxu0 0.0
  %175 = vmatpush2.msra.mxu0 0.0
  %176 = vmatprep.subr.mxu0 0.0
  %177 = vmatpush2.msra.mxu0 0.0
  %178 = vmatprep.subr.mxu0 0.0
  %179 = vmatpush2.msra.mxu0 0.0
  %180 = vmatprep.mubr.f32.mxu0 0.0
  %181 = vmatmul.mubr.f32.gmra.mxu0 %v114
  %v182 = vpop.f32.mrf.mxu0
  %v183 = vadd.f32 %v111, %v182
  %v184 = vpop.f32.mrf.mxu0
  %185 = vdwg.mxu0
  %v186 = vlaneseq
  %v187 = vshrl.u32 %v186, 7
  %v188 = vsub.s32 0, %v187
  %v189 = vrot.slane %v100, %v188
  %v190 = vlaneseq
  %v191 = vshrl.u32 %v190, 7
  %v192 = vsub.s32 1, %v191
  %v193 = vrot.slane %v100, %v192
  %v194 = vlaneseq
  %v195 = vshrl.u32 %v194, 7
  %v196 = vsub.s32 2, %v195
  %v197 = vrot.slane %v100, %v196
  %v198 = vlaneseq
  %v199 = vshrl.u32 %v198, 7
  %v200 = vsub.s32 3, %v199
  %v201 = vrot.slane %v100, %v200
  %v202 = vlaneseq
  %v203 = vshrl.u32 %v202, 7
  %v204 = vsub.s32 4, %v203
  %v205 = vrot.slane %v100, %v204
  %v206 = vlaneseq
  %v207 = vshrl.u32 %v206, 7
  %v208 = vsub.s32 5, %v207
  %v209 = vrot.slane %v100, %v208
  %v210 = vlaneseq
  %v211 = vshrl.u32 %v210, 7
  %v212 = vsub.s32 6, %v211
  %v213 = vrot.slane %v100, %v212
  %v214 = vlaneseq
  %v215 = vshrl.u32 %v214, 7
  %v216 = vsub.s32 7, %v215
  %v217 = vrot.slane %v100, %v216
  %226 = vrot.lane.b32.xlu0 %v189, 16
  %v227 = vpop.permute.xlu0 %226
  %228 = vrot.lane.b32.xlu0 %v193, 16
  %v229 = vpop.permute.xlu0 %228
  %230 = vrot.lane.b32.xlu0 %v197, 16
  %v231 = vpop.permute.xlu0 %230
  %232 = vrot.lane.b32.xlu0 %v201, 16
  %v233 = vpop.permute.xlu0 %232
  %234 = vrot.lane.b32.xlu0 %v205, 16
  %v235 = vpop.permute.xlu0 %234
  %236 = vrot.lane.b32.xlu0 %v209, 16
  %v237 = vpop.permute.xlu0 %236
  %238 = vrot.lane.b32.xlu0 %v213, 16
  %v239 = vpop.permute.xlu0 %238
  %240 = vrot.lane.b32.xlu0 %v217, 16
  %v241 = vpop.permute.xlu0 %240
  %250 = vrot.lane.b32.xlu0 %v189, 32
  %v251 = vpop.permute.xlu0 %250
  %252 = vrot.lane.b32.xlu0 %v193, 32
  %v253 = vpop.permute.xlu0 %252
  %254 = vrot.lane.b32.xlu0 %v197, 32
  %v255 = vpop.permute.xlu0 %254
  %256 = vrot.lane.b32.xlu0 %v201, 32
  %v257 = vpop.permute.xlu0 %256
  %258 = vrot.lane.b32.xlu0 %v205, 32
  %v259 = vpop.permute.xlu0 %258
  %260 = vrot.lane.b32.xlu0 %v209, 32
  %v261 = vpop.permute.xlu0 %260
  %262 = vrot.lane.b32.xlu0 %v213, 32
  %v263 = vpop.permute.xlu0 %262
  %264 = vrot.lane.b32.xlu0 %v217, 32
  %v265 = vpop.permute.xlu0 %264
  %274 = vrot.lane.b32.xlu0 %v189, 48
  %v275 = vpop.permute.xlu0 %274
  %276 = vrot.lane.b32.xlu0 %v193, 48
  %v277 = vpop.permute.xlu0 %276
  %278 = vrot.lane.b32.xlu0 %v197, 48
  %v279 = vpop.permute.xlu0 %278
  %280 = vrot.lane.b32.xlu0 %v201, 48
  %v281 = vpop.permute.xlu0 %280
  %282 = vrot.lane.b32.xlu0 %v205, 48
  %v283 = vpop.permute.xlu0 %282
  %284 = vrot.lane.b32.xlu0 %v209, 48
  %v285 = vpop.permute.xlu0 %284
  %286 = vrot.lane.b32.xlu0 %v213, 48
  %v287 = vpop.permute.xlu0 %286
  %288 = vrot.lane.b32.xlu0 %v217, 48
  %v289 = vpop.permute.xlu0 %288
  %298 = vrot.lane.b32.xlu0 %v189, 64
  %v299 = vpop.permute.xlu0 %298
  %300 = vrot.lane.b32.xlu0 %v193, 64
  %v301 = vpop.permute.xlu0 %300
  %302 = vrot.lane.b32.xlu0 %v197, 64
  %v303 = vpop.permute.xlu0 %302
  %304 = vrot.lane.b32.xlu0 %v201, 64
  %v305 = vpop.permute.xlu0 %304
  %306 = vrot.lane.b32.xlu0 %v205, 64
  %v307 = vpop.permute.xlu0 %306
  %308 = vrot.lane.b32.xlu0 %v209, 64
  %v309 = vpop.permute.xlu0 %308
  %310 = vrot.lane.b32.xlu0 %v213, 64
  %v311 = vpop.permute.xlu0 %310
  %312 = vrot.lane.b32.xlu0 %v217, 64
  %v313 = vpop.permute.xlu0 %312
  %322 = vrot.lane.b32.xlu0 %v189, 80
  %v323 = vpop.permute.xlu0 %322
  %324 = vrot.lane.b32.xlu0 %v193, 80
  %v325 = vpop.permute.xlu0 %324
  %326 = vrot.lane.b32.xlu0 %v197, 80
  %v327 = vpop.permute.xlu0 %326
  %328 = vrot.lane.b32.xlu0 %v201, 80
  %v329 = vpop.permute.xlu0 %328
  %330 = vrot.lane.b32.xlu0 %v205, 80
  %v331 = vpop.permute.xlu0 %330
  %332 = vrot.lane.b32.xlu0 %v209, 80
  %v333 = vpop.permute.xlu0 %332
  %334 = vrot.lane.b32.xlu0 %v213, 80
  %v335 = vpop.permute.xlu0 %334
  %336 = vrot.lane.b32.xlu0 %v217, 80
  %v337 = vpop.permute.xlu0 %336
  %346 = vrot.lane.b32.xlu0 %v189, 96
  %v347 = vpop.permute.xlu0 %346
  %348 = vrot.lane.b32.xlu0 %v193, 96
  %v349 = vpop.permute.xlu0 %348
  %350 = vrot.lane.b32.xlu0 %v197, 96
  %v351 = vpop.permute.xlu0 %350
  %352 = vrot.lane.b32.xlu0 %v201, 96
  %v353 = vpop.permute.xlu0 %352
  %354 = vrot.lane.b32.xlu0 %v205, 96
  %v355 = vpop.permute.xlu0 %354
  %356 = vrot.lane.b32.xlu0 %v209, 96
  %v357 = vpop.permute.xlu0 %356
  %358 = vrot.lane.b32.xlu0 %v213, 96
  %v359 = vpop.permute.xlu0 %358
  %360 = vrot.lane.b32.xlu0 %v217, 96
  %v361 = vpop.permute.xlu0 %360
  %370 = vrot.lane.b32.xlu0 %v189, 112
  %v371 = vpop.permute.xlu0 %370
  %372 = vrot.lane.b32.xlu0 %v193, 112
  %v373 = vpop.permute.xlu0 %372
  %374 = vrot.lane.b32.xlu0 %v197, 112
  %v375 = vpop.permute.xlu0 %374
  %376 = vrot.lane.b32.xlu0 %v201, 112
  %v377 = vpop.permute.xlu0 %376
  %378 = vrot.lane.b32.xlu0 %v205, 112
  %v379 = vpop.permute.xlu0 %378
  %380 = vrot.lane.b32.xlu0 %v209, 112
  %v381 = vpop.permute.xlu0 %380
  %382 = vrot.lane.b32.xlu0 %v213, 112
  %v383 = vpop.permute.xlu0 %382
  %384 = vrot.lane.b32.xlu0 %v217, 112
  %v385 = vpop.permute.xlu0 %384
  %v394 = vsel %vm26, %v189, %v227
  %v395 = vsel %vm26, %v193, %v229
  %v396 = vsel %vm26, %v197, %v231
  %v397 = vsel %vm26, %v201, %v233
  %v398 = vsel %vm26, %v205, %v235
  %v399 = vsel %vm26, %v209, %v237
  %v400 = vsel %vm26, %v213, %v239
  %v401 = vsel %vm26, %v217, %v241
  %vm402 = vcmask 261120
  %v403 = vsel %vm402, %v394, %v251
  %v404 = vsel %vm402, %v395, %v253
  %v405 = vsel %vm402, %v396, %v255
  %v406 = vsel %vm402, %v397, %v257
  %v407 = vsel %vm402, %v398, %v259
  %v408 = vsel %vm402, %v399, %v261
  %v409 = vsel %vm402, %v400, %v263
  %v410 = vsel %vm402, %v401, %v265
  %vm411 = vcmask 392192
  %v412 = vsel %vm411, %v403, %v275
  %v413 = vsel %vm411, %v404, %v277
  %v414 = vsel %vm411, %v405, %v279
  %v415 = vsel %vm411, %v406, %v281
  %v416 = vsel %vm411, %v407, %v283
  %v417 = vsel %vm411, %v408, %v285
  %v418 = vsel %vm411, %v409, %v287
  %v419 = vsel %vm411, %v410, %v289
  %vm420 = vcmask 523264
  %v421 = vsel %vm420, %v412, %v299
  %v422 = vsel %vm420, %v413, %v301
  %v423 = vsel %vm420, %v414, %v303
  %v424 = vsel %vm420, %v415, %v305
  %v425 = vsel %vm420, %v416, %v307
  %v426 = vsel %vm420, %v417, %v309
  %v427 = vsel %vm420, %v418, %v311
  %v428 = vsel %vm420, %v419, %v313
  %vm429 = vcmask 654336
  %v430 = vsel %vm429, %v421, %v323
  %v431 = vsel %vm429, %v422, %v325
  %v432 = vsel %vm429, %v423, %v327
  %v433 = vsel %vm429, %v424, %v329
  %v434 = vsel %vm429, %v425, %v331
  %v435 = vsel %vm429, %v426, %v333
  %v436 = vsel %vm429, %v427, %v335
  %v437 = vsel %vm429, %v428, %v337
  %vm438 = vcmask 785408
  %v439 = vsel %vm438, %v430, %v347
  %v440 = vsel %vm438, %v431, %v349
  %v441 = vsel %vm438, %v432, %v351
  %v442 = vsel %vm438, %v433, %v353
  %v443 = vsel %vm438, %v434, %v355
  %v444 = vsel %vm438, %v435, %v357
  %v445 = vsel %vm438, %v436, %v359
  %v446 = vsel %vm438, %v437, %v361
  %vm447 = vcmask 916480
  %v448 = vsel %vm447, %v439, %v371
  %v449 = vsel %vm447, %v440, %v373
  %v450 = vsel %vm447, %v441, %v375
  %v451 = vsel %vm447, %v442, %v377
  %v452 = vsel %vm447, %v443, %v379
  %v453 = vsel %vm447, %v444, %v381
  %v454 = vsel %vm447, %v445, %v383
  %v455 = vsel %vm447, %v446, %v385
  %v456 = vlaneseq
  %v457 = vand.u32 %v456, 127
  %v458 = vlaneseq
  %v459 = vshrl.u32 %v458, 7
  %v460 = vadd.s32 %v459, 8
  %v461 = vadd.s32 %v459, 16
  %v462 = vadd.s32 %v459, 24
  %v463 = vadd.s32 %v459, 32
  %v464 = vadd.s32 %v459, 40
  %v465 = vadd.s32 %v459, 48
  %v466 = vadd.s32 %v459, 56
  %v467 = vshra.s32 %v457, 4
  %v468 = vand.u32 %v459, 7
  %v469 = vand.u32 %v460, 7
  %v470 = vand.u32 %v461, 7
  %v471 = vand.u32 %v462, 7
  %v472 = vand.u32 %v463, 7
  %v473 = vand.u32 %v464, 7
  %v474 = vand.u32 %v465, 7
  %v475 = vand.u32 %v466, 7
  %vm476 = vcmp.eq.s32.totalorder %v467, %v468
  %vm477 = vcmp.eq.s32.totalorder %v467, %v469
  %vm478 = vcmp.eq.s32.totalorder %v467, %v470
  %vm479 = vcmp.eq.s32.totalorder %v467, %v471
  %vm480 = vcmp.eq.s32.totalorder %v467, %v472
  %vm481 = vcmp.eq.s32.totalorder %v467, %v473
  %vm482 = vcmp.eq.s32.totalorder %v467, %v474
  %vm483 = vcmp.eq.s32.totalorder %v467, %v475
  %v484 = vsel %vm476, %v448, 0.0
  %v485 = vsel %vm477, %v449, 0.0
  %v486 = vsel %vm478, %v450, 0.0
  %v487 = vsel %vm479, %v451, 0.0
  %v488 = vsel %vm480, %v452, 0.0
  %v489 = vsel %vm481, %v453, 0.0
  %v490 = vsel %vm482, %v454, 0.0
  %v491 = vsel %vm483, %v455, 0.0
  %v492 = vld [vmem:[%s3] sm:$0xff]
  %v493 = vld [vmem:[%s3 + $0x8] sm:$0xff]
  %v494 = vld [vmem:[%s3 + $0x10] sm:$0xff]
  %v495 = vld [vmem:[%s3 + $0x18] sm:$0xff]
  %v496 = vld [vmem:[%s3 + $0x20] sm:$0xff]
  %v497 = vld [vmem:[%s3 + $0x28] sm:$0xff]
  %v498 = vld [vmem:[%s3 + $0x30] sm:$0xff]
  %v499 = vld [vmem:[%s3 + $0x38] sm:$0xff]
  %v500 = vld [vmem:[%s3 + $0x40] sm:$0xff]
  %v501 = vld [vmem:[%s3 + $0x48] sm:$0xff]
  %v502 = vld [vmem:[%s3 + $0x50] sm:$0xff]
  %v503 = vld [vmem:[%s3 + $0x58] sm:$0xff]
  %v504 = vld [vmem:[%s3 + $0x60] sm:$0xff]
  %v505 = vld [vmem:[%s3 + $0x68] sm:$0xff]
  %v506 = vld [vmem:[%s3 + $0x70] sm:$0xff]
  %v507 = vld [vmem:[%s3 + $0x78] sm:$0xff]
  %v508 = vsel %vm26, %v18, 0.0
  %509 = vmatprep.subr.mxu0 0.0
  %510 = vmatpush1.msra.mxu0 %v507
  %511 = vmatprep.subr.mxu0 0.0
  %512 = vmatpush1.msra.mxu0 %v506
  %513 = vmatprep.subr.mxu0 0.0
  %514 = vmatpush1.msra.mxu0 %v505
  %515 = vmatprep.subr.mxu0 0.0
  %516 = vmatpush1.msra.mxu0 %v504
  %517 = vmatprep.subr.mxu0 0.0
  %518 = vmatpush1.msra.mxu0 %v503
  %519 = vmatprep.subr.mxu0 0.0
  %520 = vmatpush1.msra.mxu0 %v502
  %521 = vmatprep.subr.mxu0 0.0
  %522 = vmatpush1.msra.mxu0 %v501
  %523 = vmatprep.subr.mxu0 0.0
  %524 = vmatpush1.msra.mxu0 %v500
  %525 = vmatprep.subr.mxu0 0.0
  %526 = vmatpush1.msra.mxu0 %v499
  %527 = vmatprep.subr.mxu0 0.0
  %528 = vmatpush1.msra.mxu0 %v498
  %529 = vmatprep.subr.mxu0 0.0
  %530 = vmatpush1.msra.mxu0 %v497
  %531 = vmatprep.subr.mxu0 0.0
  %532 = vmatpush1.msra.mxu0 %v496
  %533 = vmatprep.subr.mxu0 0.0
  %534 = vmatpush1.msra.mxu0 %v495
  %535 = vmatprep.subr.mxu0 0.0
  %536 = vmatpush1.msra.mxu0 %v494
  %537 = vmatprep.subr.mxu0 0.0
  %538 = vmatpush1.msra.mxu0 %v493
  %539 = vmatprep.subr.mxu0 0.0
  %540 = vmatpush1.msra.mxu0 %v492
  %541 = vmatprep.subr.mxu0 0.0
  %542 = vmatpush2.msra.mxu0 0.0
  %543 = vmatprep.subr.mxu0 0.0
  %544 = vmatpush2.msra.mxu0 0.0
  %545 = vmatprep.subr.mxu0 0.0
  %546 = vmatpush2.msra.mxu0 0.0
  %547 = vmatprep.subr.mxu0 0.0
  %548 = vmatpush2.msra.mxu0 0.0
  %549 = vmatprep.subr.mxu0 0.0
  %550 = vmatpush2.msra.mxu0 0.0
  %551 = vmatprep.subr.mxu0 0.0
  %552 = vmatpush2.msra.mxu0 0.0
  %553 = vmatprep.subr.mxu0 0.0
  %554 = vmatpush2.msra.mxu0 0.0
  %555 = vmatprep.subr.mxu0 0.0
  %556 = vmatpush2.msra.mxu0 0.0
  %557 = vmatprep.subr.mxu0 0.0
  %558 = vmatpush2.msra.mxu0 0.0
  %559 = vmatprep.subr.mxu0 0.0
  %560 = vmatpush2.msra.mxu0 0.0
  %561 = vmatprep.subr.mxu0 0.0
  %562 = vmatpush2.msra.mxu0 0.0
  %563 = vmatprep.subr.mxu0 0.0
  %564 = vmatpush2.msra.mxu0 0.0
  %565 = vmatprep.subr.mxu0 0.0
  %566 = vmatpush2.msra.mxu0 0.0
  %567 = vmatprep.subr.mxu0 0.0
  %568 = vmatpush2.msra.mxu0 0.0
  %569 = vmatprep.subr.mxu0 0.0
  %570 = vmatpush2.msra.mxu0 0.0
  %571 = vmatprep.subr.mxu0 0.0
  %572 = vmatpush2.msra.mxu0 0.0
  %573 = vmatprep.mubr.f32.mxu0 0.0
  %574 = vmatmul.mubr.f32.gmra.mxu0 %v484
  %v575 = vpop.f32.mrf.mxu0
  %v576 = vadd.f32 %v508, %v575
  %v577 = vpop.f32.mrf.mxu0
  %578 = vmatprep.mubr.f32.mxu0 0.0
  %579 = vmatmul.mubr.f32.gmra.mxu0 %v485
  %v580 = vpop.f32.mrf.mxu0
  %v581 = vadd.f32 %v508, %v580
  %v582 = vpop.f32.mrf.mxu0
  %583 = vmatprep.mubr.f32.mxu0 0.0
  %584 = vmatmul.mubr.f32.gmra.mxu0 %v486
  %v585 = vpop.f32.mrf.mxu0
  %v586 = vadd.f32 %v508, %v585
  %v587 = vpop.f32.mrf.mxu0
  %588 = vmatprep.mubr.f32.mxu0 0.0
  %589 = vmatmul.mubr.f32.gmra.mxu0 %v487
  %v590 = vpop.f32.mrf.mxu0
  %v591 = vadd.f32 %v508, %v590
  %v592 = vpop.f32.mrf.mxu0
  %593 = vmatprep.mubr.f32.mxu0 0.0
  %594 = vmatmul.mubr.f32.gmra.mxu0 %v488
  %v595 = vpop.f32.mrf.mxu0
  %v596 = vadd.f32 %v508, %v595
  %v597 = vpop.f32.mrf.mxu0
  %598 = vmatprep.mubr.f32.mxu0 0.0
  %599 = vmatmul.mubr.f32.gmra.mxu0 %v489
  %v600 = vpop.f32.mrf.mxu0
  %v601 = vadd.f32 %v508, %v600
  %v602 = vpop.f32.mrf.mxu0
  %603 = vmatprep.mubr.f32.mxu0 0.0
  %604 = vmatmul.mubr.f32.gmra.mxu0 %v490
  %v605 = vpop.f32.mrf.mxu0
  %v606 = vadd.f32 %v508, %v605
  %v607 = vpop.f32.mrf.mxu0
  %608 = vmatprep.mubr.f32.mxu0 0.0
  %609 = vmatmul.mubr.f32.gmra.mxu0 %v491
  %v610 = vpop.f32.mrf.mxu0
  %v611 = vadd.f32 %v508, %v610
  %v612 = vpop.f32.mrf.mxu0
  %613 = vdwg.mxu0
  %621 = vrot.lane.b32.xlu0 %v576, 120
  %v622 = vpop.permute.xlu0 %621
  %623 = vrot.lane.b32.xlu0 %v581, 120
  %v624 = vpop.permute.xlu0 %623
  %625 = vrot.lane.b32.xlu0 %v586, 120
  %v626 = vpop.permute.xlu0 %625
  %627 = vrot.lane.b32.xlu0 %v591, 120
  %v628 = vpop.permute.xlu0 %627
  %629 = vrot.lane.b32.xlu0 %v596, 120
  %v630 = vpop.permute.xlu0 %629
  %631 = vrot.lane.b32.xlu0 %v601, 120
  %v632 = vpop.permute.xlu0 %631
  %633 = vrot.lane.b32.xlu0 %v606, 120
  %v634 = vpop.permute.xlu0 %633
  %v642 = vadd.f32 %v581, %v622
  %v643 = vadd.f32 %v586, %v624
  %v644 = vadd.f32 %v591, %v626
  %v645 = vadd.f32 %v596, %v628
  %v646 = vadd.f32 %v601, %v630
  %v647 = vadd.f32 %v606, %v632
  %v648 = vadd.f32 %v611, %v634
  %vm649 = vcmp.eq.s32.totalorder %v457, %v459
  %v650 = vsel %vm649, 1.0, 0.0
  %v651 = vmul.f32 %v650, 1e-06
  %vm652 = vcmp.gt.s32.totalorder %v459, 0
  %vm653 = vcmp.gt.s32.totalorder %v459, 1
  %vm654 = vcmp.gt.s32.totalorder %v459, 2
  %vm655 = vcmp.gt.s32.totalorder %v459, 3
  %vm656 = vcmp.gt.s32.totalorder %v459, 4
  %vm657 = vcmp.gt.s32.totalorder %v459, 5
  %vm658 = vcmp.gt.s32.totalorder %v459, 6
  %vm659 = vcmp.gt.s32.totalorder %v459, 7
  %vm660 = vcmp.eq.s32.totalorder %v459, 0
  %vm661 = vcmp.eq.s32.totalorder %v459, 1
  %vm662 = vcmp.eq.s32.totalorder %v459, 2
  %vm663 = vcmp.eq.s32.totalorder %v459, 3
  %vm664 = vcmp.eq.s32.totalorder %v459, 4
  %vm665 = vcmp.eq.s32.totalorder %v459, 5
  %vm666 = vcmp.eq.s32.totalorder %v459, 6
  %vm667 = vcmp.eq.s32.totalorder %v459, 7
  %vm668 = vcmask 64512
  %v669 = vsel %vm668, %v576, 0
  %671 = vmatprep.subr.mxu0 0.0
  %672 = vmatpush1.xpose.msra.mxu0 0.0
  %673 = vmatprep.subr.mxu0 0.0
  %674 = vmatpush1.xpose.msra.mxu0 0.0
  %675 = vmatprep.subr.mxu0 0.0
  %676 = vmatpush1.xpose.msra.mxu0 0.0
  %677 = vmatprep.subr.mxu0 0.0
  %678 = vmatpush1.xpose.msra.mxu0 0.0
  %679 = vmatprep.subr.mxu0 0.0
  %680 = vmatpush1.xpose.msra.mxu0 0.0
  %681 = vmatprep.subr.mxu0 0.0
  %682 = vmatpush1.xpose.msra.mxu0 0.0
  %683 = vmatprep.subr.mxu0 0.0
  %684 = vmatpush1.xpose.msra.mxu0 0.0
  %685 = vmatprep.subr.mxu0 0.0
  %686 = vmatpush1.xpose.msra.mxu0 0.0
  %687 = vmatprep.subr.mxu0 0.0
  %688 = vmatpush1.xpose.msra.mxu0 0.0
  %689 = vmatprep.subr.mxu0 0.0
  %690 = vmatpush1.xpose.msra.mxu0 0.0
  %691 = vmatprep.subr.mxu0 0.0
  %692 = vmatpush1.xpose.msra.mxu0 0.0
  %693 = vmatprep.subr.mxu0 0.0
  %694 = vmatpush1.xpose.msra.mxu0 0.0
  %695 = vmatprep.subr.mxu0 0.0
  %696 = vmatpush1.xpose.msra.mxu0 0.0
  %697 = vmatprep.subr.mxu0 0.0
  %698 = vmatpush1.xpose.msra.mxu0 0.0
  %699 = vmatprep.subr.mxu0 0.0
  %700 = vmatpush1.xpose.msra.mxu0 0.0
  %701 = vmatprep.subr.mxu0 0.0
  %702 = vmatpush1.xpose.msra.mxu0 %v669
  %703 = vmatprep.subr.mxu0 0.0
  %704 = vmatpush2.xpose.msra.mxu0 0.0
  %705 = vmatprep.subr.mxu0 0.0
  %706 = vmatpush2.xpose.msra.mxu0 0.0
  %707 = vmatprep.subr.mxu0 0.0
  %708 = vmatpush2.xpose.msra.mxu0 0.0
  %709 = vmatprep.subr.mxu0 0.0
  %710 = vmatpush2.xpose.msra.mxu0 0.0
  %711 = vmatprep.subr.mxu0 0.0
  %712 = vmatpush2.xpose.msra.mxu0 0.0
  %713 = vmatprep.subr.mxu0 0.0
  %714 = vmatpush2.xpose.msra.mxu0 0.0
  %715 = vmatprep.subr.mxu0 0.0
  %716 = vmatpush2.xpose.msra.mxu0 0.0
  %717 = vmatprep.subr.mxu0 0.0
  %718 = vmatpush2.xpose.msra.mxu0 0.0
  %719 = vmatprep.subr.mxu0 0.0
  %720 = vmatpush2.xpose.msra.mxu0 0.0
  %721 = vmatprep.subr.mxu0 0.0
  %722 = vmatpush2.xpose.msra.mxu0 0.0
  %723 = vmatprep.subr.mxu0 0.0
  %724 = vmatpush2.xpose.msra.mxu0 0.0
  %725 = vmatprep.subr.mxu0 0.0
  %726 = vmatpush2.xpose.msra.mxu0 0.0
  %727 = vmatprep.subr.mxu0 0.0
  %728 = vmatpush2.xpose.msra.mxu0 0.0
  %729 = vmatprep.subr.mxu0 0.0
  %730 = vmatpush2.xpose.msra.mxu0 0.0
  %731 = vmatprep.subr.mxu0 0.0
  %732 = vmatpush2.xpose.msra.mxu0 0.0
  %733 = vmatprep.subr.mxu0 0.0
  %734 = vmatpush2.xpose.msra.mxu0 0.0
  %735 = vmatprep.mubr.f32.mxu0 0.0
  %736 = vmatmul.mubr.f32.gmra.mxu0 %v669
  %v737 = vpop.f32.mrf.mxu0
  %v738 = vadd.f32 %v651, %v737
  %v739 = vpop.f32.mrf.mxu0
  %740 = vdwg.mxu0
  %741 = vrot.lane.b32.xlu0 %v576, 8
  %v742 = vpop.permute.xlu0 %741
  %v744 = vsel %vm668, %v650, %v742
  %746 = vrot.lane.b32.xlu0 %v744, 8
  %v747 = vpop.permute.xlu0 %746
  %v749 = vsel %vm668, %v738, %v747
  %v750 = vmax.f32 %v749, 1e-12
  %v751 = vrsqrt.pop %v750
  %753 = vset.pattern.permute.xlu0 0
  %754 = vperm.xlu0 %753, %v751
  %v755 = vpop.permute.xlu0 %754
  %v757 = vmul.f32 %v749, %v755
  %v758 = vlaneseq
  %v759 = vshrl.u32 %v758, 7
  %v760 = vsub.s32 0, %v759
  %v761 = vrot.slane %v751, %v760
  %v762 = vmul.f32 %v749, %v761
  %v763 = vsel %vm652, %v762, 0.0
  %765 = vset.pattern.permute.xlu0 0
  %766 = vperm.xlu0 %765, %v763
  %v767 = vpop.permute.xlu0 %766
  %v769 = vlaneseq
  %v770 = vshrl.u32 %v769, 7
  %v771 = vsub.s32 0, %v770
  %v772 = vrot.slane %v757, %v771
  %v773 = vmul.f32 %v767, %v772
  %v774 = vsub.f32 %v749, %v773
  %v775 = vsel %vm660, 1, 0
  %vm776 = vcmp.eq.s32.totalorder %v775, 1
  %v777 = vsel %vm776, %v772, %v774
  %v778 = vmax.f32 %v777, 1e-12
  %v779 = vrsqrt.pop %v778
  %781 = vset.pattern.permute.xlu0 1
  %782 = vperm.xlu0 %781, %v779
  %v783 = vpop.permute.xlu0 %782
  %v785 = vmul.f32 %v777, %v783
  %v786 = vlaneseq
  %v787 = vshrl.u32 %v786, 7
  %v788 = vsub.s32 1, %v787
  %v789 = vrot.slane %v779, %v788
  %v790 = vmul.f32 %v777, %v789
  %v791 = vsel %vm653, %v790, 0.0
  %793 = vset.pattern.permute.xlu0 1
  %794 = vperm.xlu0 %793, %v791
  %v795 = vpop.permute.xlu0 %794
  %v797 = vlaneseq
  %v798 = vshrl.u32 %v797, 7
  %v799 = vsub.s32 1, %v798
  %v800 = vrot.slane %v785, %v799
  %v801 = vmul.f32 %v795, %v800
  %v802 = vsub.f32 %v777, %v801
  %v803 = vsel %vm661, 1, 0
  %vm804 = vcmp.eq.s32.totalorder %v803, 1
  %v805 = vsel %vm804, %v800, %v802
  %v806 = vmax.f32 %v805, 1e-12
  %v807 = vrsqrt.pop %v806
  %809 = vset.pattern.permute.xlu0 2
  %810 = vperm.xlu0 %809, %v807
  %v811 = vpop.permute.xlu0 %810
  %v813 = vmul.f32 %v805, %v811
  %v814 = vlaneseq
  %v815 = vshrl.u32 %v814, 7
  %v816 = vsub.s32 2, %v815
  %v817 = vrot.slane %v807, %v816
  %v818 = vmul.f32 %v805, %v817
  %v819 = vsel %vm654, %v818, 0.0
  %821 = vset.pattern.permute.xlu0 2
  %822 = vperm.xlu0 %821, %v819
  %v823 = vpop.permute.xlu0 %822
  %v825 = vlaneseq
  %v826 = vshrl.u32 %v825, 7
  %v827 = vsub.s32 2, %v826
  %v828 = vrot.slane %v813, %v827
  %v829 = vmul.f32 %v823, %v828
  %v830 = vsub.f32 %v805, %v829
  %v831 = vsel %vm662, 1, 0
  %vm832 = vcmp.eq.s32.totalorder %v831, 1
  %v833 = vsel %vm832, %v828, %v830
  %v834 = vmax.f32 %v833, 1e-12
  %v835 = vrsqrt.pop %v834
  %837 = vset.pattern.permute.xlu0 3
  %838 = vperm.xlu0 %837, %v835
  %v839 = vpop.permute.xlu0 %838
  %v841 = vmul.f32 %v833, %v839
  %v842 = vlaneseq
  %v843 = vshrl.u32 %v842, 7
  %v844 = vsub.s32 3, %v843
  %v845 = vrot.slane %v835, %v844
  %v846 = vmul.f32 %v833, %v845
  %v847 = vsel %vm655, %v846, 0.0
  %849 = vset.pattern.permute.xlu0 3
  %850 = vperm.xlu0 %849, %v847
  %v851 = vpop.permute.xlu0 %850
  %v853 = vlaneseq
  %v854 = vshrl.u32 %v853, 7
  %v855 = vsub.s32 3, %v854
  %v856 = vrot.slane %v841, %v855
  %v857 = vmul.f32 %v851, %v856
  %v858 = vsub.f32 %v833, %v857
  %v859 = vsel %vm663, 1, 0
  %vm860 = vcmp.eq.s32.totalorder %v859, 1
  %v861 = vsel %vm860, %v856, %v858
  %v862 = vmax.f32 %v861, 1e-12
  %v863 = vrsqrt.pop %v862
  %865 = vset.pattern.permute.xlu0 4
  %866 = vperm.xlu0 %865, %v863
  %v867 = vpop.permute.xlu0 %866
  %v869 = vmul.f32 %v861, %v867
  %v870 = vlaneseq
  %v871 = vshrl.u32 %v870, 7
  %v872 = vsub.s32 4, %v871
  %v873 = vrot.slane %v863, %v872
  %v874 = vmul.f32 %v861, %v873
  %v875 = vsel %vm656, %v874, 0.0
  %877 = vset.pattern.permute.xlu0 4
  %878 = vperm.xlu0 %877, %v875
  %v879 = vpop.permute.xlu0 %878
  %v881 = vlaneseq
  %v882 = vshrl.u32 %v881, 7
  %v883 = vsub.s32 4, %v882
  %v884 = vrot.slane %v869, %v883
  %v885 = vmul.f32 %v879, %v884
  %v886 = vsub.f32 %v861, %v885
  %v887 = vsel %vm664, 1, 0
  %vm888 = vcmp.eq.s32.totalorder %v887, 1
  %v889 = vsel %vm888, %v884, %v886
  %v890 = vmax.f32 %v889, 1e-12
  %v891 = vrsqrt.pop %v890
  %893 = vset.pattern.permute.xlu0 5
  %894 = vperm.xlu0 %893, %v891
  %v895 = vpop.permute.xlu0 %894
  %v897 = vmul.f32 %v889, %v895
  %v898 = vlaneseq
  %v899 = vshrl.u32 %v898, 7
  %v900 = vsub.s32 5, %v899
  %v901 = vrot.slane %v891, %v900
  %v902 = vmul.f32 %v889, %v901
  %v903 = vsel %vm657, %v902, 0.0
  %905 = vset.pattern.permute.xlu0 5
  %906 = vperm.xlu0 %905, %v903
  %v907 = vpop.permute.xlu0 %906
  %v909 = vlaneseq
  %v910 = vshrl.u32 %v909, 7
  %v911 = vsub.s32 5, %v910
  %v912 = vrot.slane %v897, %v911
  %v913 = vmul.f32 %v907, %v912
  %v914 = vsub.f32 %v889, %v913
  %v915 = vsel %vm665, 1, 0
  %vm916 = vcmp.eq.s32.totalorder %v915, 1
  %v917 = vsel %vm916, %v912, %v914
  %v918 = vmax.f32 %v917, 1e-12
  %v919 = vrsqrt.pop %v918
  %921 = vset.pattern.permute.xlu0 6
  %922 = vperm.xlu0 %921, %v919
  %v923 = vpop.permute.xlu0 %922
  %v925 = vmul.f32 %v917, %v923
  %v926 = vlaneseq
  %v927 = vshrl.u32 %v926, 7
  %v928 = vsub.s32 6, %v927
  %v929 = vrot.slane %v919, %v928
  %v930 = vmul.f32 %v917, %v929
  %v931 = vsel %vm658, %v930, 0.0
  %933 = vset.pattern.permute.xlu0 6
  %934 = vperm.xlu0 %933, %v931
  %v935 = vpop.permute.xlu0 %934
  %v937 = vlaneseq
  %v938 = vshrl.u32 %v937, 7
  %v939 = vsub.s32 6, %v938
  %v940 = vrot.slane %v925, %v939
  %v941 = vmul.f32 %v935, %v940
  %v942 = vsub.f32 %v917, %v941
  %v943 = vsel %vm666, 1, 0
  %vm944 = vcmp.eq.s32.totalorder %v943, 1
  %v945 = vsel %vm944, %v940, %v942
  %v946 = vmax.f32 %v945, 1e-12
  %v947 = vrsqrt.pop %v946
  %949 = vset.pattern.permute.xlu0 7
  %950 = vperm.xlu0 %949, %v947
  %v951 = vpop.permute.xlu0 %950
  %v953 = vmul.f32 %v945, %v951
  %v954 = vlaneseq
  %v955 = vshrl.u32 %v954, 7
  %v956 = vsub.s32 7, %v955
  %v957 = vrot.slane %v947, %v956
  %v958 = vmul.f32 %v945, %v957
  %v959 = vsel %vm659, %v958, 0.0
  %961 = vset.pattern.permute.xlu0 7
  %962 = vperm.xlu0 %961, %v959
  %v963 = vpop.permute.xlu0 %962
  %v965 = vlaneseq
  %v966 = vshrl.u32 %v965, 7
  %v967 = vsub.s32 7, %v966
  %v968 = vrot.slane %v953, %v967
  %v969 = vmul.f32 %v963, %v968
  %v970 = vsub.f32 %v945, %v969
  %v971 = vsel %vm667, 1, 0
  %vm972 = vcmp.eq.s32.totalorder %v971, 1
  %v973 = vsel %vm972, %v968, %v970
  %v974 = vsel %vm668, %v581, %v642
  %v976 = vsel %vm26, %v974, 0
  %978 = vmatprep.subr.mxu0 0.0
  %979 = vmatpush1.xpose.msra.mxu0 0.0
  %980 = vmatprep.subr.mxu0 0.0
  %981 = vmatpush1.xpose.msra.mxu0 0.0
  %982 = vmatprep.subr.mxu0 0.0
  %983 = vmatpush1.xpose.msra.mxu0 0.0
  %984 = vmatprep.subr.mxu0 0.0
  %985 = vmatpush1.xpose.msra.mxu0 0.0
  %986 = vmatprep.subr.mxu0 0.0
  %987 = vmatpush1.xpose.msra.mxu0 0.0
  %988 = vmatprep.subr.mxu0 0.0
  %989 = vmatpush1.xpose.msra.mxu0 0.0
  %990 = vmatprep.subr.mxu0 0.0
  %991 = vmatpush1.xpose.msra.mxu0 0.0
  %992 = vmatprep.subr.mxu0 0.0
  %993 = vmatpush1.xpose.msra.mxu0 0.0
  %994 = vmatprep.subr.mxu0 0.0
  %995 = vmatpush1.xpose.msra.mxu0 0.0
  %996 = vmatprep.subr.mxu0 0.0
  %997 = vmatpush1.xpose.msra.mxu0 0.0
  %998 = vmatprep.subr.mxu0 0.0
  %999 = vmatpush1.xpose.msra.mxu0 0.0
  %1000 = vmatprep.subr.mxu0 0.0
  %1001 = vmatpush1.xpose.msra.mxu0 0.0
  %1002 = vmatprep.subr.mxu0 0.0
  %1003 = vmatpush1.xpose.msra.mxu0 0.0
  %1004 = vmatprep.subr.mxu0 0.0
  %1005 = vmatpush1.xpose.msra.mxu0 0.0
  %1006 = vmatprep.subr.mxu0 0.0
  %1007 = vmatpush1.xpose.msra.mxu0 0.0
  %1008 = vmatprep.subr.mxu0 0.0
  %1009 = vmatpush1.xpose.msra.mxu0 %v976
  %1010 = vmatprep.subr.mxu0 0.0
  %1011 = vmatpush2.xpose.msra.mxu0 0.0
  %1012 = vmatprep.subr.mxu0 0.0
  %1013 = vmatpush2.xpose.msra.mxu0 0.0
  %1014 = vmatprep.subr.mxu0 0.0
  %1015 = vmatpush2.xpose.msra.mxu0 0.0
  %1016 = vmatprep.subr.mxu0 0.0
  %1017 = vmatpush2.xpose.msra.mxu0 0.0
  %1018 = vmatprep.subr.mxu0 0.0
  %1019 = vmatpush2.xpose.msra.mxu0 0.0
  %1020 = vmatprep.subr.mxu0 0.0
  %1021 = vmatpush2.xpose.msra.mxu0 0.0
  %1022 = vmatprep.subr.mxu0 0.0
  %1023 = vmatpush2.xpose.msra.mxu0 0.0
  %1024 = vmatprep.subr.mxu0 0.0
  %1025 = vmatpush2.xpose.msra.mxu0 0.0
  %1026 = vmatprep.subr.mxu0 0.0
  %1027 = vmatpush2.xpose.msra.mxu0 0.0
  %1028 = vmatprep.subr.mxu0 0.0
  %1029 = vmatpush2.xpose.msra.mxu0 0.0
  %1030 = vmatprep.subr.mxu0 0.0
  %1031 = vmatpush2.xpose.msra.mxu0 0.0
  %1032 = vmatprep.subr.mxu0 0.0
  %1033 = vmatpush2.xpose.msra.mxu0 0.0
  %1034 = vmatprep.subr.mxu0 0.0
  %1035 = vmatpush2.xpose.msra.mxu0 0.0
  %1036 = vmatprep.subr.mxu0 0.0
  %1037 = vmatpush2.xpose.msra.mxu0 0.0
  %1038 = vmatprep.subr.mxu0 0.0
  %1039 = vmatpush2.xpose.msra.mxu0 0.0
  %1040 = vmatprep.subr.mxu0 0.0
  %1041 = vmatpush2.xpose.msra.mxu0 0.0
  %1042 = vmatprep.mubr.f32.mxu0 0.0
  %1043 = vmatmul.mubr.f32.gmra.mxu0 %v976
  %v1044 = vpop.f32.mrf.mxu0
  %v1045 = vadd.f32 0.0, %v1044
  %v1046 = vpop.f32.mrf.mxu0
  %1047 = vdwg.mxu0
  %1049 = vrot.lane.b32.xlu0 %v642, 120
  %v1050 = vpop.permute.xlu0 %1049
  %1052 = vrot.lane.b32.xlu0 %v973, 112
  %v1053 = vpop.permute.xlu0 %1052
  %v1054 = vsel %vm668, %v1050, 0
  %v1056 = vsel %vm668, %v1053, 0
  %1058 = vmatprep.subr.mxu0 0.0
  %1059 = vmatpush1.xpose.msra.mxu0 0.0
  %1060 = vmatprep.subr.mxu0 0.0
  %1061 = vmatpush1.xpose.msra.mxu0 0.0
  %1062 = vmatprep.subr.mxu0 0.0
  %1063 = vmatpush1.xpose.msra.mxu0 0.0
  %1064 = vmatprep.subr.mxu0 0.0
  %1065 = vmatpush1.xpose.msra.mxu0 0.0
  %1066 = vmatprep.subr.mxu0 0.0
  %1067 = vmatpush1.xpose.msra.mxu0 0.0
  %1068 = vmatprep.subr.mxu0 0.0
  %1069 = vmatpush1.xpose.msra.mxu0 0.0
  %1070 = vmatprep.subr.mxu0 0.0
  %1071 = vmatpush1.xpose.msra.mxu0 0.0
  %1072 = vmatprep.subr.mxu0 0.0
  %1073 = vmatpush1.xpose.msra.mxu0 0.0
  %1074 = vmatprep.subr.mxu0 0.0
  %1075 = vmatpush1.xpose.msra.mxu0 0.0
  %1076 = vmatprep.subr.mxu0 0.0
  %1077 = vmatpush1.xpose.msra.mxu0 0.0
  %1078 = vmatprep.subr.mxu0 0.0
  %1079 = vmatpush1.xpose.msra.mxu0 0.0
  %1080 = vmatprep.subr.mxu0 0.0
  %1081 = vmatpush1.xpose.msra.mxu0 0.0
  %1082 = vmatprep.subr.mxu0 0.0
  %1083 = vmatpush1.xpose.msra.mxu0 0.0
  %1084 = vmatprep.subr.mxu0 0.0
  %1085 = vmatpush1.xpose.msra.mxu0 0.0
  %1086 = vmatprep.subr.mxu0 0.0
  %1087 = vmatpush1.xpose.msra.mxu0 0.0
  %1088 = vmatprep.subr.mxu0 0.0
  %1089 = vmatpush1.xpose.msra.mxu0 %v1056
  %1090 = vmatprep.subr.mxu0 0.0
  %1091 = vmatpush2.xpose.msra.mxu0 0.0
  %1092 = vmatprep.subr.mxu0 0.0
  %1093 = vmatpush2.xpose.msra.mxu0 0.0
  %1094 = vmatprep.subr.mxu0 0.0
  %1095 = vmatpush2.xpose.msra.mxu0 0.0
  %1096 = vmatprep.subr.mxu0 0.0
  %1097 = vmatpush2.xpose.msra.mxu0 0.0
  %1098 = vmatprep.subr.mxu0 0.0
  %1099 = vmatpush2.xpose.msra.mxu0 0.0
  %1100 = vmatprep.subr.mxu0 0.0
  %1101 = vmatpush2.xpose.msra.mxu0 0.0
  %1102 = vmatprep.subr.mxu0 0.0
  %1103 = vmatpush2.xpose.msra.mxu0 0.0
  %1104 = vmatprep.subr.mxu0 0.0
  %1105 = vmatpush2.xpose.msra.mxu0 0.0
  %1106 = vmatprep.subr.mxu0 0.0
  %1107 = vmatpush2.xpose.msra.mxu0 0.0
  %1108 = vmatprep.subr.mxu0 0.0
  %1109 = vmatpush2.xpose.msra.mxu0 0.0
  %1110 = vmatprep.subr.mxu0 0.0
  %1111 = vmatpush2.xpose.msra.mxu0 0.0
  %1112 = vmatprep.subr.mxu0 0.0
  %1113 = vmatpush2.xpose.msra.mxu0 0.0
  %1114 = vmatprep.subr.mxu0 0.0
  %1115 = vmatpush2.xpose.msra.mxu0 0.0
  %1116 = vmatprep.subr.mxu0 0.0
  %1117 = vmatpush2.xpose.msra.mxu0 0.0
  %1118 = vmatprep.subr.mxu0 0.0
  %1119 = vmatpush2.xpose.msra.mxu0 0.0
  %1120 = vmatprep.subr.mxu0 0.0
  %1121 = vmatpush2.xpose.msra.mxu0 0.0
  %1122 = vmatprep.mubr.f32.mxu0 0.0
  %1123 = vmatmul.mubr.f32.gmra.mxu0 %v1054
  %v1124 = vpop.f32.mrf.mxu0
  %v1125 = vadd.f32 0.0, %v1124
  %v1126 = vpop.f32.mrf.mxu0
  %1127 = vdwg.mxu0
  %v1129 = vsel %vm668, %v1125, 0
  %1131 = vmatprep.subr.mxu0 0.0
  %1132 = vmatpush1.xpose.msra.mxu0 0.0
  %1133 = vmatprep.subr.mxu0 0.0
  %1134 = vmatpush1.xpose.msra.mxu0 0.0
  %1135 = vmatprep.subr.mxu0 0.0
  %1136 = vmatpush1.xpose.msra.mxu0 0.0
  %1137 = vmatprep.subr.mxu0 0.0
  %1138 = vmatpush1.xpose.msra.mxu0 0.0
  %1139 = vmatprep.subr.mxu0 0.0
  %1140 = vmatpush1.xpose.msra.mxu0 0.0
  %1141 = vmatprep.subr.mxu0 0.0
  %1142 = vmatpush1.xpose.msra.mxu0 0.0
  %1143 = vmatprep.subr.mxu0 0.0
  %1144 = vmatpush1.xpose.msra.mxu0 0.0
  %1145 = vmatprep.subr.mxu0 0.0
  %1146 = vmatpush1.xpose.msra.mxu0 0.0
  %1147 = vmatprep.subr.mxu0 0.0
  %1148 = vmatpush1.xpose.msra.mxu0 0.0
  %1149 = vmatprep.subr.mxu0 0.0
  %1150 = vmatpush1.xpose.msra.mxu0 0.0
  %1151 = vmatprep.subr.mxu0 0.0
  %1152 = vmatpush1.xpose.msra.mxu0 0.0
  %1153 = vmatprep.subr.mxu0 0.0
  %1154 = vmatpush1.xpose.msra.mxu0 0.0
  %1155 = vmatprep.subr.mxu0 0.0
  %1156 = vmatpush1.xpose.msra.mxu0 0.0
  %1157 = vmatprep.subr.mxu0 0.0
  %1158 = vmatpush1.xpose.msra.mxu0 0.0
  %1159 = vmatprep.subr.mxu0 0.0
  %1160 = vmatpush1.xpose.msra.mxu0 0.0
  %1161 = vmatprep.subr.mxu0 0.0
  %1162 = vmatpush1.xpose.msra.mxu0 %v1129
  %1163 = vmatprep.subr.mxu0 0.0
  %1164 = vmatpush2.xpose.msra.mxu0 0.0
  %1165 = vmatprep.subr.mxu0 0.0
  %1166 = vmatpush2.xpose.msra.mxu0 0.0
  %1167 = vmatprep.subr.mxu0 0.0
  %1168 = vmatpush2.xpose.msra.mxu0 0.0
  %1169 = vmatprep.subr.mxu0 0.0
  %1170 = vmatpush2.xpose.msra.mxu0 0.0
  %1171 = vmatprep.subr.mxu0 0.0
  %1172 = vmatpush2.xpose.msra.mxu0 0.0
  %1173 = vmatprep.subr.mxu0 0.0
  %1174 = vmatpush2.xpose.msra.mxu0 0.0
  %1175 = vmatprep.subr.mxu0 0.0
  %1176 = vmatpush2.xpose.msra.mxu0 0.0
  %1177 = vmatprep.subr.mxu0 0.0
  %1178 = vmatpush2.xpose.msra.mxu0 0.0
  %1179 = vmatprep.subr.mxu0 0.0
  %1180 = vmatpush2.xpose.msra.mxu0 0.0
  %1181 = vmatprep.subr.mxu0 0.0
  %1182 = vmatpush2.xpose.msra.mxu0 0.0
  %1183 = vmatprep.subr.mxu0 0.0
  %1184 = vmatpush2.xpose.msra.mxu0 0.0
  %1185 = vmatprep.subr.mxu0 0.0
  %1186 = vmatpush2.xpose.msra.mxu0 0.0
  %1187 = vmatprep.subr.mxu0 0.0
  %1188 = vmatpush2.xpose.msra.mxu0 0.0
  %1189 = vmatprep.subr.mxu0 0.0
  %1190 = vmatpush2.xpose.msra.mxu0 0.0
  %1191 = vmatprep.subr.mxu0 0.0
  %1192 = vmatpush2.xpose.msra.mxu0 0.0
  %1193 = vmatprep.subr.mxu0 0.0
  %1194 = vmatpush2.xpose.msra.mxu0 0.0
  %1195 = vmatprep.mubr.f32.mxu0 0.0
  %1196 = vmatmul.mubr.f32.gmra.mxu0 %v1129
  %v1197 = vpop.f32.mrf.mxu0
  %v1198 = vadd.f32 0.0, %v1197
  %v1199 = vpop.f32.mrf.mxu0
  %1200 = vdwg.mxu0
  %1201 = vrot.lane.b32.xlu0 %v973, 120
  %v1202 = vpop.permute.xlu0 %1201
  %1204 = vmatprep.subr.mxu0 0.0
  %1205 = vmatpush1.msra.mxu0 0.0
  %1206 = vmatprep.subr.mxu0 0.0
  %1207 = vmatpush1.msra.mxu0 0.0
  %1208 = vmatprep.subr.mxu0 0.0
  %1209 = vmatpush1.msra.mxu0 0.0
  %1210 = vmatprep.subr.mxu0 0.0
  %1211 = vmatpush1.msra.mxu0 0.0
  %1212 = vmatprep.subr.mxu0 0.0
  %1213 = vmatpush1.msra.mxu0 0.0
  %1214 = vmatprep.subr.mxu0 0.0
  %1215 = vmatpush1.msra.mxu0 0.0
  %1216 = vmatprep.subr.mxu0 0.0
  %1217 = vmatpush1.msra.mxu0 0.0
  %1218 = vmatprep.subr.mxu0 0.0
  %1219 = vmatpush1.msra.mxu0 0.0
  %1220 = vmatprep.subr.mxu0 0.0
  %1221 = vmatpush1.msra.mxu0 0.0
  %1222 = vmatprep.subr.mxu0 0.0
  %1223 = vmatpush1.msra.mxu0 0.0
  %1224 = vmatprep.subr.mxu0 0.0
  %1225 = vmatpush1.msra.mxu0 0.0
  %1226 = vmatprep.subr.mxu0 0.0
  %1227 = vmatpush1.msra.mxu0 0.0
  %1228 = vmatprep.subr.mxu0 0.0
  %1229 = vmatpush1.msra.mxu0 0.0
  %1230 = vmatprep.subr.mxu0 0.0
  %1231 = vmatpush1.msra.mxu0 0.0
  %1232 = vmatprep.subr.mxu0 0.0
  %1233 = vmatpush1.msra.mxu0 0.0
  %1234 = vmatprep.subr.mxu0 0.0
  %1235 = vmatpush1.msra.mxu0 %v1202
  %1236 = vmatprep.subr.mxu0 0.0
  %1237 = vmatpush2.msra.mxu0 0.0
  %1238 = vmatprep.subr.mxu0 0.0
  %1239 = vmatpush2.msra.mxu0 0.0
  %1240 = vmatprep.subr.mxu0 0.0
  %1241 = vmatpush2.msra.mxu0 0.0
  %1242 = vmatprep.subr.mxu0 0.0
  %1243 = vmatpush2.msra.mxu0 0.0
  %1244 = vmatprep.subr.mxu0 0.0
  %1245 = vmatpush2.msra.mxu0 0.0
  %1246 = vmatprep.subr.mxu0 0.0
  %1247 = vmatpush2.msra.mxu0 0.0
  %1248 = vmatprep.subr.mxu0 0.0
  %1249 = vmatpush2.msra.mxu0 0.0
  %1250 = vmatprep.subr.mxu0 0.0
  %1251 = vmatpush2.msra.mxu0 0.0
  %1252 = vmatprep.subr.mxu0 0.0
  %1253 = vmatpush2.msra.mxu0 0.0
  %1254 = vmatprep.subr.mxu0 0.0
  %1255 = vmatpush2.msra.mxu0 0.0
  %1256 = vmatprep.subr.mxu0 0.0
  %1257 = vmatpush2.msra.mxu0 0.0
  %1258 = vmatprep.subr.mxu0 0.0
  %1259 = vmatpush2.msra.mxu0 0.0
  %1260 = vmatprep.subr.mxu0 0.0
  %1261 = vmatpush2.msra.mxu0 0.0
  %1262 = vmatprep.subr.mxu0 0.0
  %1263 = vmatpush2.msra.mxu0 0.0
  %1264 = vmatprep.subr.mxu0 0.0
  %1265 = vmatpush2.msra.mxu0 0.0
  %1266 = vmatprep.subr.mxu0 0.0
  %1267 = vmatpush2.msra.mxu0 0.0
  %1268 = vmatprep.mubr.f32.mxu0 0.0
  %1269 = vmatmul.mubr.f32.gmra.mxu0 %v1129
  %v1270 = vpop.f32.mrf.mxu0
  %v1271 = vadd.f32 0.0, %v1270
  %v1272 = vpop.f32.mrf.mxu0
  %1273 = vdwg.mxu0
  %v1274 = vsub.f32 %v1045, %v1198
  %v1275 = vadd.f32 %v1274, %v651
  %v1276 = vsub.f32 %v650, %v1271
  %1277 = vrot.lane.b32.xlu0 %v581, 8
  %v1278 = vpop.permute.xlu0 %1277
  %v1280 = vsel %vm668, %v1276, %v1278
  %1282 = vrot.lane.b32.xlu0 %v1280, 8
  %v1283 = vpop.permute.xlu0 %1282
  %v1285 = vsel %vm668, %v1275, %v1283
  %v1286 = vmax.f32 %v1285, 1e-12
  %v1287 = vrsqrt.pop %v1286
  %1289 = vset.pattern.permute.xlu0 0
  %1290 = vperm.xlu0 %1289, %v1287
  %v1291 = vpop.permute.xlu0 %1290
  %v1293 = vmul.f32 %v1285, %v1291
  %v1294 = vlaneseq
  %v1295 = vshrl.u32 %v1294, 7
  %v1296 = vsub.s32 0, %v1295
  %v1297 = vrot.slane %v1287, %v1296
  %v1298 = vmul.f32 %v1285, %v1297
  %v1299 = vsel %vm652, %v1298, 0.0
  %1301 = vset.pattern.permute.xlu0 0
  %1302 = vperm.xlu0 %1301, %v1299
  %v1303 = vpop.permute.xlu0 %1302
  %v1305 = vlaneseq
  %v1306 = vshrl.u32 %v1305, 7
  %v1307 = vsub.s32 0, %v1306
  %v1308 = vrot.slane %v1293, %v1307
  %v1309 = vmul.f32 %v1303, %v1308
  %v1310 = vsub.f32 %v1285, %v1309
  %v1311 = vsel %vm776, %v1308, %v1310
  %v1312 = vmax.f32 %v1311, 1e-12
  %v1313 = vrsqrt.pop %v1312
  %1315 = vset.pattern.permute.xlu0 1
  %1316 = vperm.xlu0 %1315, %v1313
  %v1317 = vpop.permute.xlu0 %1316
  %v1319 = vmul.f32 %v1311, %v1317
  %v1320 = vlaneseq
  %v1321 = vshrl.u32 %v1320, 7
  %v1322 = vsub.s32 1, %v1321
  %v1323 = vrot.slane %v1313, %v1322
  %v1324 = vmul.f32 %v1311, %v1323
  %v1325 = vsel %vm653, %v1324, 0.0
  %1327 = vset.pattern.permute.xlu0 1
  %1328 = vperm.xlu0 %1327, %v1325
  %v1329 = vpop.permute.xlu0 %1328
  %v1331 = vlaneseq
  %v1332 = vshrl.u32 %v1331, 7
  %v1333 = vsub.s32 1, %v1332
  %v1334 = vrot.slane %v1319, %v1333
  %v1335 = vmul.f32 %v1329, %v1334
  %v1336 = vsub.f32 %v1311, %v1335
  %v1337 = vsel %vm804, %v1334, %v1336
  %v1338 = vmax.f32 %v1337, 1e-12
  %v1339 = vrsqrt.pop %v1338
  %1341 = vset.pattern.permute.xlu0 2
  %1342 = vperm.xlu0 %1341, %v1339
  %v1343 = vpop.permute.xlu0 %1342
  %v1345 = vmul.f32 %v1337, %v1343
  %v1346 = vlaneseq
  %v1347 = vshrl.u32 %v1346, 7
  %v1348 = vsub.s32 2, %v1347
  %v1349 = vrot.slane %v1339, %v1348
  %v1350 = vmul.f32 %v1337, %v1349
  %v1351 = vsel %vm654, %v1350, 0.0
  %1353 = vset.pattern.permute.xlu0 2
  %1354 = vperm.xlu0 %1353, %v1351
  %v1355 = vpop.permute.xlu0 %1354
  %v1357 = vlaneseq
  %v1358 = vshrl.u32 %v1357, 7
  %v1359 = vsub.s32 2, %v1358
  %v1360 = vrot.slane %v1345, %v1359
  %v1361 = vmul.f32 %v1355, %v1360
  %v1362 = vsub.f32 %v1337, %v1361
  %v1363 = vsel %vm832, %v1360, %v1362
  %v1364 = vmax.f32 %v1363, 1e-12
  %v1365 = vrsqrt.pop %v1364
  %1367 = vset.pattern.permute.xlu0 3
  %1368 = vperm.xlu0 %1367, %v1365
  %v1369 = vpop.permute.xlu0 %1368
  %v1371 = vmul.f32 %v1363, %v1369
  %v1372 = vlaneseq
  %v1373 = vshrl.u32 %v1372, 7
  %v1374 = vsub.s32 3, %v1373
  %v1375 = vrot.slane %v1365, %v1374
  %v1376 = vmul.f32 %v1363, %v1375
  %v1377 = vsel %vm655, %v1376, 0.0
  %1379 = vset.pattern.permute.xlu0 3
  %1380 = vperm.xlu0 %1379, %v1377
  %v1381 = vpop.permute.xlu0 %1380
  %v1383 = vlaneseq
  %v1384 = vshrl.u32 %v1383, 7
  %v1385 = vsub.s32 3, %v1384
  %v1386 = vrot.slane %v1371, %v1385
  %v1387 = vmul.f32 %v1381, %v1386
  %v1388 = vsub.f32 %v1363, %v1387
  %v1389 = vsel %vm860, %v1386, %v1388
  %v1390 = vmax.f32 %v1389, 1e-12
  %v1391 = vrsqrt.pop %v1390
  %1393 = vset.pattern.permute.xlu0 4
  %1394 = vperm.xlu0 %1393, %v1391
  %v1395 = vpop.permute.xlu0 %1394
  %v1397 = vmul.f32 %v1389, %v1395
  %v1398 = vlaneseq
  %v1399 = vshrl.u32 %v1398, 7
  %v1400 = vsub.s32 4, %v1399
  %v1401 = vrot.slane %v1391, %v1400
  %v1402 = vmul.f32 %v1389, %v1401
  %v1403 = vsel %vm656, %v1402, 0.0
  %1405 = vset.pattern.permute.xlu0 4
  %1406 = vperm.xlu0 %1405, %v1403
  %v1407 = vpop.permute.xlu0 %1406
  %v1409 = vlaneseq
  %v1410 = vshrl.u32 %v1409, 7
  %v1411 = vsub.s32 4, %v1410
  %v1412 = vrot.slane %v1397, %v1411
  %v1413 = vmul.f32 %v1407, %v1412
  %v1414 = vsub.f32 %v1389, %v1413
  %v1415 = vsel %vm888, %v1412, %v1414
  %v1416 = vmax.f32 %v1415, 1e-12
  %v1417 = vrsqrt.pop %v1416
  %1419 = vset.pattern.permute.xlu0 5
  %1420 = vperm.xlu0 %1419, %v1417
  %v1421 = vpop.permute.xlu0 %1420
  %v1423 = vmul.f32 %v1415, %v1421
  %v1424 = vlaneseq
  %v1425 = vshrl.u32 %v1424, 7
  %v1426 = vsub.s32 5, %v1425
  %v1427 = vrot.slane %v1417, %v1426
  %v1428 = vmul.f32 %v1415, %v1427
  %v1429 = vsel %vm657, %v1428, 0.0
  %1431 = vset.pattern.permute.xlu0 5
  %1432 = vperm.xlu0 %1431, %v1429
  %v1433 = vpop.permute.xlu0 %1432
  %v1435 = vlaneseq
  %v1436 = vshrl.u32 %v1435, 7
  %v1437 = vsub.s32 5, %v1436
  %v1438 = vrot.slane %v1423, %v1437
  %v1439 = vmul.f32 %v1433, %v1438
  %v1440 = vsub.f32 %v1415, %v1439
  %v1441 = vsel %vm916, %v1438, %v1440
  %v1442 = vmax.f32 %v1441, 1e-12
  %v1443 = vrsqrt.pop %v1442
  %1445 = vset.pattern.permute.xlu0 6
  %1446 = vperm.xlu0 %1445, %v1443
  %v1447 = vpop.permute.xlu0 %1446
  %v1449 = vmul.f32 %v1441, %v1447
  %v1450 = vlaneseq
  %v1451 = vshrl.u32 %v1450, 7
  %v1452 = vsub.s32 6, %v1451
  %v1453 = vrot.slane %v1443, %v1452
  %v1454 = vmul.f32 %v1441, %v1453
  %v1455 = vsel %vm658, %v1454, 0.0
  %1457 = vset.pattern.permute.xlu0 6
  %1458 = vperm.xlu0 %1457, %v1455
  %v1459 = vpop.permute.xlu0 %1458
  %v1461 = vlaneseq
  %v1462 = vshrl.u32 %v1461, 7
  %v1463 = vsub.s32 6, %v1462
  %v1464 = vrot.slane %v1449, %v1463
  %v1465 = vmul.f32 %v1459, %v1464
  %v1466 = vsub.f32 %v1441, %v1465
  %v1467 = vsel %vm944, %v1464, %v1466
  %v1468 = vmax.f32 %v1467, 1e-12
  %v1469 = vrsqrt.pop %v1468
  %1471 = vset.pattern.permute.xlu0 7
  %1472 = vperm.xlu0 %1471, %v1469
  %v1473 = vpop.permute.xlu0 %1472
  %v1475 = vmul.f32 %v1467, %v1473
  %v1476 = vlaneseq
  %v1477 = vshrl.u32 %v1476, 7
  %v1478 = vsub.s32 7, %v1477
  %v1479 = vrot.slane %v1469, %v1478
  %v1480 = vmul.f32 %v1467, %v1479
  %v1481 = vsel %vm659, %v1480, 0.0
  %1483 = vset.pattern.permute.xlu0 7
  %1484 = vperm.xlu0 %1483, %v1481
  %v1485 = vpop.permute.xlu0 %1484
  %v1487 = vlaneseq
  %v1488 = vshrl.u32 %v1487, 7
  %v1489 = vsub.s32 7, %v1488
  %v1490 = vrot.slane %v1475, %v1489
  %v1491 = vmul.f32 %v1485, %v1490
  %v1492 = vsub.f32 %v1467, %v1491
  %v1493 = vsel %vm972, %v1490, %v1492
  %v1494 = vsel %vm668, %v586, %v643
  %v1496 = vsel %vm26, %v1494, 0
  %1498 = vmatprep.subr.mxu0 0.0
  %1499 = vmatpush1.xpose.msra.mxu0 0.0
  %1500 = vmatprep.subr.mxu0 0.0
  %1501 = vmatpush1.xpose.msra.mxu0 0.0
  %1502 = vmatprep.subr.mxu0 0.0
  %1503 = vmatpush1.xpose.msra.mxu0 0.0
  %1504 = vmatprep.subr.mxu0 0.0
  %1505 = vmatpush1.xpose.msra.mxu0 0.0
  %1506 = vmatprep.subr.mxu0 0.0
  %1507 = vmatpush1.xpose.msra.mxu0 0.0
  %1508 = vmatprep.subr.mxu0 0.0
  %1509 = vmatpush1.xpose.msra.mxu0 0.0
  %1510 = vmatprep.subr.mxu0 0.0
  %1511 = vmatpush1.xpose.msra.mxu0 0.0
  %1512 = vmatprep.subr.mxu0 0.0
  %1513 = vmatpush1.xpose.msra.mxu0 0.0
  %1514 = vmatprep.subr.mxu0 0.0
  %1515 = vmatpush1.xpose.msra.mxu0 0.0
  %1516 = vmatprep.subr.mxu0 0.0
  %1517 = vmatpush1.xpose.msra.mxu0 0.0
  %1518 = vmatprep.subr.mxu0 0.0
  %1519 = vmatpush1.xpose.msra.mxu0 0.0
  %1520 = vmatprep.subr.mxu0 0.0
  %1521 = vmatpush1.xpose.msra.mxu0 0.0
  %1522 = vmatprep.subr.mxu0 0.0
  %1523 = vmatpush1.xpose.msra.mxu0 0.0
  %1524 = vmatprep.subr.mxu0 0.0
  %1525 = vmatpush1.xpose.msra.mxu0 0.0
  %1526 = vmatprep.subr.mxu0 0.0
  %1527 = vmatpush1.xpose.msra.mxu0 0.0
  %1528 = vmatprep.subr.mxu0 0.0
  %1529 = vmatpush1.xpose.msra.mxu0 %v1496
  %1530 = vmatprep.subr.mxu0 0.0
  %1531 = vmatpush2.xpose.msra.mxu0 0.0
  %1532 = vmatprep.subr.mxu0 0.0
  %1533 = vmatpush2.xpose.msra.mxu0 0.0
  %1534 = vmatprep.subr.mxu0 0.0
  %1535 = vmatpush2.xpose.msra.mxu0 0.0
  %1536 = vmatprep.subr.mxu0 0.0
  %1537 = vmatpush2.xpose.msra.mxu0 0.0
  %1538 = vmatprep.subr.mxu0 0.0
  %1539 = vmatpush2.xpose.msra.mxu0 0.0
  %1540 = vmatprep.subr.mxu0 0.0
  %1541 = vmatpush2.xpose.msra.mxu0 0.0
  %1542 = vmatprep.subr.mxu0 0.0
  %1543 = vmatpush2.xpose.msra.mxu0 0.0
  %1544 = vmatprep.subr.mxu0 0.0
  %1545 = vmatpush2.xpose.msra.mxu0 0.0
  %1546 = vmatprep.subr.mxu0 0.0
  %1547 = vmatpush2.xpose.msra.mxu0 0.0
  %1548 = vmatprep.subr.mxu0 0.0
  %1549 = vmatpush2.xpose.msra.mxu0 0.0
  %1550 = vmatprep.subr.mxu0 0.0
  %1551 = vmatpush2.xpose.msra.mxu0 0.0
  %1552 = vmatprep.subr.mxu0 0.0
  %1553 = vmatpush2.xpose.msra.mxu0 0.0
  %1554 = vmatprep.subr.mxu0 0.0
  %1555 = vmatpush2.xpose.msra.mxu0 0.0
  %1556 = vmatprep.subr.mxu0 0.0
  %1557 = vmatpush2.xpose.msra.mxu0 0.0
  %1558 = vmatprep.subr.mxu0 0.0
  %1559 = vmatpush2.xpose.msra.mxu0 0.0
  %1560 = vmatprep.subr.mxu0 0.0
  %1561 = vmatpush2.xpose.msra.mxu0 0.0
  %1562 = vmatprep.mubr.f32.mxu0 0.0
  %1563 = vmatmul.mubr.f32.gmra.mxu0 %v1496
  %v1564 = vpop.f32.mrf.mxu0
  %v1565 = vadd.f32 0.0, %v1564
  %v1566 = vpop.f32.mrf.mxu0
  %1567 = vdwg.mxu0
  %1569 = vrot.lane.b32.xlu0 %v643, 120
  %v1570 = vpop.permute.xlu0 %1569
  %1572 = vrot.lane.b32.xlu0 %v1493, 112
  %v1573 = vpop.permute.xlu0 %1572
  %v1574 = vsel %vm668, %v1570, 0
  %v1576 = vsel %vm668, %v1573, 0
  %1578 = vmatprep.subr.mxu0 0.0
  %1579 = vmatpush1.xpose.msra.mxu0 0.0
  %1580 = vmatprep.subr.mxu0 0.0
  %1581 = vmatpush1.xpose.msra.mxu0 0.0
  %1582 = vmatprep.subr.mxu0 0.0
  %1583 = vmatpush1.xpose.msra.mxu0 0.0
  %1584 = vmatprep.subr.mxu0 0.0
  %1585 = vmatpush1.xpose.msra.mxu0 0.0
  %1586 = vmatprep.subr.mxu0 0.0
  %1587 = vmatpush1.xpose.msra.mxu0 0.0
  %1588 = vmatprep.subr.mxu0 0.0
  %1589 = vmatpush1.xpose.msra.mxu0 0.0
  %1590 = vmatprep.subr.mxu0 0.0
  %1591 = vmatpush1.xpose.msra.mxu0 0.0
  %1592 = vmatprep.subr.mxu0 0.0
  %1593 = vmatpush1.xpose.msra.mxu0 0.0
  %1594 = vmatprep.subr.mxu0 0.0
  %1595 = vmatpush1.xpose.msra.mxu0 0.0
  %1596 = vmatprep.subr.mxu0 0.0
  %1597 = vmatpush1.xpose.msra.mxu0 0.0
  %1598 = vmatprep.subr.mxu0 0.0
  %1599 = vmatpush1.xpose.msra.mxu0 0.0
  %1600 = vmatprep.subr.mxu0 0.0
  %1601 = vmatpush1.xpose.msra.mxu0 0.0
  %1602 = vmatprep.subr.mxu0 0.0
  %1603 = vmatpush1.xpose.msra.mxu0 0.0
  %1604 = vmatprep.subr.mxu0 0.0
  %1605 = vmatpush1.xpose.msra.mxu0 0.0
  %1606 = vmatprep.subr.mxu0 0.0
  %1607 = vmatpush1.xpose.msra.mxu0 0.0
  %1608 = vmatprep.subr.mxu0 0.0
  %1609 = vmatpush1.xpose.msra.mxu0 %v1576
  %1610 = vmatprep.subr.mxu0 0.0
  %1611 = vmatpush2.xpose.msra.mxu0 0.0
  %1612 = vmatprep.subr.mxu0 0.0
  %1613 = vmatpush2.xpose.msra.mxu0 0.0
  %1614 = vmatprep.subr.mxu0 0.0
  %1615 = vmatpush2.xpose.msra.mxu0 0.0
  %1616 = vmatprep.subr.mxu0 0.0
  %1617 = vmatpush2.xpose.msra.mxu0 0.0
  %1618 = vmatprep.subr.mxu0 0.0
  %1619 = vmatpush2.xpose.msra.mxu0 0.0
  %1620 = vmatprep.subr.mxu0 0.0
  %1621 = vmatpush2.xpose.msra.mxu0 0.0
  %1622 = vmatprep.subr.mxu0 0.0
  %1623 = vmatpush2.xpose.msra.mxu0 0.0
  %1624 = vmatprep.subr.mxu0 0.0
  %1625 = vmatpush2.xpose.msra.mxu0 0.0
  %1626 = vmatprep.subr.mxu0 0.0
  %1627 = vmatpush2.xpose.msra.mxu0 0.0
  %1628 = vmatprep.subr.mxu0 0.0
  %1629 = vmatpush2.xpose.msra.mxu0 0.0
  %1630 = vmatprep.subr.mxu0 0.0
  %1631 = vmatpush2.xpose.msra.mxu0 0.0
  %1632 = vmatprep.subr.mxu0 0.0
  %1633 = vmatpush2.xpose.msra.mxu0 0.0
  %1634 = vmatprep.subr.mxu0 0.0
  %1635 = vmatpush2.xpose.msra.mxu0 0.0
  %1636 = vmatprep.subr.mxu0 0.0
  %1637 = vmatpush2.xpose.msra.mxu0 0.0
  %1638 = vmatprep.subr.mxu0 0.0
  %1639 = vmatpush2.xpose.msra.mxu0 0.0
  %1640 = vmatprep.subr.mxu0 0.0
  %1641 = vmatpush2.xpose.msra.mxu0 0.0
  %1642 = vmatprep.mubr.f32.mxu0 0.0
  %1643 = vmatmul.mubr.f32.gmra.mxu0 %v1574
  %v1644 = vpop.f32.mrf.mxu0
  %v1645 = vadd.f32 0.0, %v1644
  %v1646 = vpop.f32.mrf.mxu0
  %1647 = vdwg.mxu0
  %v1649 = vsel %vm668, %v1645, 0
  %1651 = vmatprep.subr.mxu0 0.0
  %1652 = vmatpush1.xpose.msra.mxu0 0.0
  %1653 = vmatprep.subr.mxu0 0.0
  %1654 = vmatpush1.xpose.msra.mxu0 0.0
  %1655 = vmatprep.subr.mxu0 0.0
  %1656 = vmatpush1.xpose.msra.mxu0 0.0
  %1657 = vmatprep.subr.mxu0 0.0
  %1658 = vmatpush1.xpose.msra.mxu0 0.0
  %1659 = vmatprep.subr.mxu0 0.0
  %1660 = vmatpush1.xpose.msra.mxu0 0.0
  %1661 = vmatprep.subr.mxu0 0.0
  %1662 = vmatpush1.xpose.msra.mxu0 0.0
  %1663 = vmatprep.subr.mxu0 0.0
  %1664 = vmatpush1.xpose.msra.mxu0 0.0
  %1665 = vmatprep.subr.mxu0 0.0
  %1666 = vmatpush1.xpose.msra.mxu0 0.0
  %1667 = vmatprep.subr.mxu0 0.0
  %1668 = vmatpush1.xpose.msra.mxu0 0.0
  %1669 = vmatprep.subr.mxu0 0.0
  %1670 = vmatpush1.xpose.msra.mxu0 0.0
  %1671 = vmatprep.subr.mxu0 0.0
  %1672 = vmatpush1.xpose.msra.mxu0 0.0
  %1673 = vmatprep.subr.mxu0 0.0
  %1674 = vmatpush1.xpose.msra.mxu0 0.0
  %1675 = vmatprep.subr.mxu0 0.0
  %1676 = vmatpush1.xpose.msra.mxu0 0.0
  %1677 = vmatprep.subr.mxu0 0.0
  %1678 = vmatpush1.xpose.msra.mxu0 0.0
  %1679 = vmatprep.subr.mxu0 0.0
  %1680 = vmatpush1.xpose.msra.mxu0 0.0
  %1681 = vmatprep.subr.mxu0 0.0
  %1682 = vmatpush1.xpose.msra.mxu0 %v1649
  %1683 = vmatprep.subr.mxu0 0.0
  %1684 = vmatpush2.xpose.msra.mxu0 0.0
  %1685 = vmatprep.subr.mxu0 0.0
  %1686 = vmatpush2.xpose.msra.mxu0 0.0
  %1687 = vmatprep.subr.mxu0 0.0
  %1688 = vmatpush2.xpose.msra.mxu0 0.0
  %1689 = vmatprep.subr.mxu0 0.0
  %1690 = vmatpush2.xpose.msra.mxu0 0.0
  %1691 = vmatprep.subr.mxu0 0.0
  %1692 = vmatpush2.xpose.msra.mxu0 0.0
  %1693 = vmatprep.subr.mxu0 0.0
  %1694 = vmatpush2.xpose.msra.mxu0 0.0
  %1695 = vmatprep.subr.mxu0 0.0
  %1696 = vmatpush2.xpose.msra.mxu0 0.0
  %1697 = vmatprep.subr.mxu0 0.0
  %1698 = vmatpush2.xpose.msra.mxu0 0.0
  %1699 = vmatprep.subr.mxu0 0.0
  %1700 = vmatpush2.xpose.msra.mxu0 0.0
  %1701 = vmatprep.subr.mxu0 0.0
  %1702 = vmatpush2.xpose.msra.mxu0 0.0
  %1703 = vmatprep.subr.mxu0 0.0
  %1704 = vmatpush2.xpose.msra.mxu0 0.0
  %1705 = vmatprep.subr.mxu0 0.0
  %1706 = vmatpush2.xpose.msra.mxu0 0.0
  %1707 = vmatprep.subr.mxu0 0.0
  %1708 = vmatpush2.xpose.msra.mxu0 0.0
  %1709 = vmatprep.subr.mxu0 0.0
  %1710 = vmatpush2.xpose.msra.mxu0 0.0
  %1711 = vmatprep.subr.mxu0 0.0
  %1712 = vmatpush2.xpose.msra.mxu0 0.0
  %1713 = vmatprep.subr.mxu0 0.0
  %1714 = vmatpush2.xpose.msra.mxu0 0.0
  %1715 = vmatprep.mubr.f32.mxu0 0.0
  %1716 = vmatmul.mubr.f32.gmra.mxu0 %v1649
  %v1717 = vpop.f32.mrf.mxu0
  %v1718 = vadd.f32 0.0, %v1717
  %v1719 = vpop.f32.mrf.mxu0
  %1720 = vdwg.mxu0
  %1721 = vrot.lane.b32.xlu0 %v1493, 120
  %v1722 = vpop.permute.xlu0 %1721
  %1724 = vmatprep.subr.mxu0 0.0
  %1725 = vmatpush1.msra.mxu0 0.0
  %1726 = vmatprep.subr.mxu0 0.0
  %1727 = vmatpush1.msra.mxu0 0.0
  %1728 = vmatprep.subr.mxu0 0.0
  %1729 = vmatpush1.msra.mxu0 0.0
  %1730 = vmatprep.subr.mxu0 0.0
  %1731 = vmatpush1.msra.mxu0 0.0
  %1732 = vmatprep.subr.mxu0 0.0
  %1733 = vmatpush1.msra.mxu0 0.0
  %1734 = vmatprep.subr.mxu0 0.0
  %1735 = vmatpush1.msra.mxu0 0.0
  %1736 = vmatprep.subr.mxu0 0.0
  %1737 = vmatpush1.msra.mxu0 0.0
  %1738 = vmatprep.subr.mxu0 0.0
  %1739 = vmatpush1.msra.mxu0 0.0
  %1740 = vmatprep.subr.mxu0 0.0
  %1741 = vmatpush1.msra.mxu0 0.0
  %1742 = vmatprep.subr.mxu0 0.0
  %1743 = vmatpush1.msra.mxu0 0.0
  %1744 = vmatprep.subr.mxu0 0.0
  %1745 = vmatpush1.msra.mxu0 0.0
  %1746 = vmatprep.subr.mxu0 0.0
  %1747 = vmatpush1.msra.mxu0 0.0
  %1748 = vmatprep.subr.mxu0 0.0
  %1749 = vmatpush1.msra.mxu0 0.0
  %1750 = vmatprep.subr.mxu0 0.0
  %1751 = vmatpush1.msra.mxu0 0.0
  %1752 = vmatprep.subr.mxu0 0.0
  %1753 = vmatpush1.msra.mxu0 0.0
  %1754 = vmatprep.subr.mxu0 0.0
  %1755 = vmatpush1.msra.mxu0 %v1722
  %1756 = vmatprep.subr.mxu0 0.0
  %1757 = vmatpush2.msra.mxu0 0.0
  %1758 = vmatprep.subr.mxu0 0.0
  %1759 = vmatpush2.msra.mxu0 0.0
  %1760 = vmatprep.subr.mxu0 0.0
  %1761 = vmatpush2.msra.mxu0 0.0
  %1762 = vmatprep.subr.mxu0 0.0
  %1763 = vmatpush2.msra.mxu0 0.0
  %1764 = vmatprep.subr.mxu0 0.0
  %1765 = vmatpush2.msra.mxu0 0.0
  %1766 = vmatprep.subr.mxu0 0.0
  %1767 = vmatpush2.msra.mxu0 0.0
  %1768 = vmatprep.subr.mxu0 0.0
  %1769 = vmatpush2.msra.mxu0 0.0
  %1770 = vmatprep.subr.mxu0 0.0
  %1771 = vmatpush2.msra.mxu0 0.0
  %1772 = vmatprep.subr.mxu0 0.0
  %1773 = vmatpush2.msra.mxu0 0.0
  %1774 = vmatprep.subr.mxu0 0.0
  %1775 = vmatpush2.msra.mxu0 0.0
  %1776 = vmatprep.subr.mxu0 0.0
  %1777 = vmatpush2.msra.mxu0 0.0
  %1778 = vmatprep.subr.mxu0 0.0
  %1779 = vmatpush2.msra.mxu0 0.0
  %1780 = vmatprep.subr.mxu0 0.0
  %1781 = vmatpush2.msra.mxu0 0.0
  %1782 = vmatprep.subr.mxu0 0.0
  %1783 = vmatpush2.msra.mxu0 0.0
  %1784 = vmatprep.subr.mxu0 0.0
  %1785 = vmatpush2.msra.mxu0 0.0
  %1786 = vmatprep.subr.mxu0 0.0
  %1787 = vmatpush2.msra.mxu0 0.0
  %1788 = vmatprep.mubr.f32.mxu0 0.0
  %1789 = vmatmul.mubr.f32.gmra.mxu0 %v1649
  %v1790 = vpop.f32.mrf.mxu0
  %v1791 = vadd.f32 0.0, %v1790
  %v1792 = vpop.f32.mrf.mxu0
  %1793 = vdwg.mxu0
  %v1794 = vsub.f32 %v1565, %v1718
  %v1795 = vadd.f32 %v1794, %v651
  %v1796 = vsub.f32 %v650, %v1791
  %1797 = vrot.lane.b32.xlu0 %v586, 8
  %v1798 = vpop.permute.xlu0 %1797
  %v1800 = vsel %vm668, %v1796, %v1798
  %1802 = vrot.lane.b32.xlu0 %v1800, 8
  %v1803 = vpop.permute.xlu0 %1802
  %v1805 = vsel %vm668, %v1795, %v1803
  %v1806 = vmax.f32 %v1805, 1e-12
  %v1807 = vrsqrt.pop %v1806
  %1809 = vset.pattern.permute.xlu0 0
  %1810 = vperm.xlu0 %1809, %v1807
  %v1811 = vpop.permute.xlu0 %1810
  %v1813 = vmul.f32 %v1805, %v1811
  %v1814 = vlaneseq
  %v1815 = vshrl.u32 %v1814, 7
  %v1816 = vsub.s32 0, %v1815
  %v1817 = vrot.slane %v1807, %v1816
  %v1818 = vmul.f32 %v1805, %v1817
  %v1819 = vsel %vm652, %v1818, 0.0
  %1821 = vset.pattern.permute.xlu0 0
  %1822 = vperm.xlu0 %1821, %v1819
  %v1823 = vpop.permute.xlu0 %1822
  %v1825 = vlaneseq
  %v1826 = vshrl.u32 %v1825, 7
  %v1827 = vsub.s32 0, %v1826
  %v1828 = vrot.slane %v1813, %v1827
  %v1829 = vmul.f32 %v1823, %v1828
  %v1830 = vsub.f32 %v1805, %v1829
  %v1831 = vsel %vm776, %v1828, %v1830
  %v1832 = vmax.f32 %v1831, 1e-12
  %v1833 = vrsqrt.pop %v1832
  %1835 = vset.pattern.permute.xlu0 1
  %1836 = vperm.xlu0 %1835, %v1833
  %v1837 = vpop.permute.xlu0 %1836
  %v1839 = vmul.f32 %v1831, %v1837
  %v1840 = vlaneseq
  %v1841 = vshrl.u32 %v1840, 7
  %v1842 = vsub.s32 1, %v1841
  %v1843 = vrot.slane %v1833, %v1842
  %v1844 = vmul.f32 %v1831, %v1843
  %v1845 = vsel %vm653, %v1844, 0.0
  %1847 = vset.pattern.permute.xlu0 1
  %1848 = vperm.xlu0 %1847, %v1845
  %v1849 = vpop.permute.xlu0 %1848
  %v1851 = vlaneseq
  %v1852 = vshrl.u32 %v1851, 7
  %v1853 = vsub.s32 1, %v1852
  %v1854 = vrot.slane %v1839, %v1853
  %v1855 = vmul.f32 %v1849, %v1854
  %v1856 = vsub.f32 %v1831, %v1855
  %v1857 = vsel %vm804, %v1854, %v1856
  %v1858 = vmax.f32 %v1857, 1e-12
  %v1859 = vrsqrt.pop %v1858
  %1861 = vset.pattern.permute.xlu0 2
  %1862 = vperm.xlu0 %1861, %v1859
  %v1863 = vpop.permute.xlu0 %1862
  %v1865 = vmul.f32 %v1857, %v1863
  %v1866 = vlaneseq
  %v1867 = vshrl.u32 %v1866, 7
  %v1868 = vsub.s32 2, %v1867
  %v1869 = vrot.slane %v1859, %v1868
  %v1870 = vmul.f32 %v1857, %v1869
  %v1871 = vsel %vm654, %v1870, 0.0
  %1873 = vset.pattern.permute.xlu0 2
  %1874 = vperm.xlu0 %1873, %v1871
  %v1875 = vpop.permute.xlu0 %1874
  %v1877 = vlaneseq
  %v1878 = vshrl.u32 %v1877, 7
  %v1879 = vsub.s32 2, %v1878
  %v1880 = vrot.slane %v1865, %v1879
  %v1881 = vmul.f32 %v1875, %v1880
  %v1882 = vsub.f32 %v1857, %v1881
  %v1883 = vsel %vm832, %v1880, %v1882
  %v1884 = vmax.f32 %v1883, 1e-12
  %v1885 = vrsqrt.pop %v1884
  %1887 = vset.pattern.permute.xlu0 3
  %1888 = vperm.xlu0 %1887, %v1885
  %v1889 = vpop.permute.xlu0 %1888
  %v1891 = vmul.f32 %v1883, %v1889
  %v1892 = vlaneseq
  %v1893 = vshrl.u32 %v1892, 7
  %v1894 = vsub.s32 3, %v1893
  %v1895 = vrot.slane %v1885, %v1894
  %v1896 = vmul.f32 %v1883, %v1895
  %v1897 = vsel %vm655, %v1896, 0.0
  %1899 = vset.pattern.permute.xlu0 3
  %1900 = vperm.xlu0 %1899, %v1897
  %v1901 = vpop.permute.xlu0 %1900
  %v1903 = vlaneseq
  %v1904 = vshrl.u32 %v1903, 7
  %v1905 = vsub.s32 3, %v1904
  %v1906 = vrot.slane %v1891, %v1905
  %v1907 = vmul.f32 %v1901, %v1906
  %v1908 = vsub.f32 %v1883, %v1907
  %v1909 = vsel %vm860, %v1906, %v1908
  %v1910 = vmax.f32 %v1909, 1e-12
  %v1911 = vrsqrt.pop %v1910
  %1913 = vset.pattern.permute.xlu0 4
  %1914 = vperm.xlu0 %1913, %v1911
  %v1915 = vpop.permute.xlu0 %1914
  %v1917 = vmul.f32 %v1909, %v1915
  %v1918 = vlaneseq
  %v1919 = vshrl.u32 %v1918, 7
  %v1920 = vsub.s32 4, %v1919
  %v1921 = vrot.slane %v1911, %v1920
  %v1922 = vmul.f32 %v1909, %v1921
  %v1923 = vsel %vm656, %v1922, 0.0
  %1925 = vset.pattern.permute.xlu0 4
  %1926 = vperm.xlu0 %1925, %v1923
  %v1927 = vpop.permute.xlu0 %1926
  %v1929 = vlaneseq
  %v1930 = vshrl.u32 %v1929, 7
  %v1931 = vsub.s32 4, %v1930
  %v1932 = vrot.slane %v1917, %v1931
  %v1933 = vmul.f32 %v1927, %v1932
  %v1934 = vsub.f32 %v1909, %v1933
  %v1935 = vsel %vm888, %v1932, %v1934
  %v1936 = vmax.f32 %v1935, 1e-12
  %v1937 = vrsqrt.pop %v1936
  %1939 = vset.pattern.permute.xlu0 5
  %1940 = vperm.xlu0 %1939, %v1937
  %v1941 = vpop.permute.xlu0 %1940
  %v1943 = vmul.f32 %v1935, %v1941
  %v1944 = vlaneseq
  %v1945 = vshrl.u32 %v1944, 7
  %v1946 = vsub.s32 5, %v1945
  %v1947 = vrot.slane %v1937, %v1946
  %v1948 = vmul.f32 %v1935, %v1947
  %v1949 = vsel %vm657, %v1948, 0.0
  %1951 = vset.pattern.permute.xlu0 5
  %1952 = vperm.xlu0 %1951, %v1949
  %v1953 = vpop.permute.xlu0 %1952
  %v1955 = vlaneseq
  %v1956 = vshrl.u32 %v1955, 7
  %v1957 = vsub.s32 5, %v1956
  %v1958 = vrot.slane %v1943, %v1957
  %v1959 = vmul.f32 %v1953, %v1958
  %v1960 = vsub.f32 %v1935, %v1959
  %v1961 = vsel %vm916, %v1958, %v1960
  %v1962 = vmax.f32 %v1961, 1e-12
  %v1963 = vrsqrt.pop %v1962
  %1965 = vset.pattern.permute.xlu0 6
  %1966 = vperm.xlu0 %1965, %v1963
  %v1967 = vpop.permute.xlu0 %1966
  %v1969 = vmul.f32 %v1961, %v1967
  %v1970 = vlaneseq
  %v1971 = vshrl.u32 %v1970, 7
  %v1972 = vsub.s32 6, %v1971
  %v1973 = vrot.slane %v1963, %v1972
  %v1974 = vmul.f32 %v1961, %v1973
  %v1975 = vsel %vm658, %v1974, 0.0
  %1977 = vset.pattern.permute.xlu0 6
  %1978 = vperm.xlu0 %1977, %v1975
  %v1979 = vpop.permute.xlu0 %1978
  %v1981 = vlaneseq
  %v1982 = vshrl.u32 %v1981, 7
  %v1983 = vsub.s32 6, %v1982
  %v1984 = vrot.slane %v1969, %v1983
  %v1985 = vmul.f32 %v1979, %v1984
  %v1986 = vsub.f32 %v1961, %v1985
  %v1987 = vsel %vm944, %v1984, %v1986
  %v1988 = vmax.f32 %v1987, 1e-12
  %v1989 = vrsqrt.pop %v1988
  %1991 = vset.pattern.permute.xlu0 7
  %1992 = vperm.xlu0 %1991, %v1989
  %v1993 = vpop.permute.xlu0 %1992
  %v1995 = vmul.f32 %v1987, %v1993
  %v1996 = vlaneseq
  %v1997 = vshrl.u32 %v1996, 7
  %v1998 = vsub.s32 7, %v1997
  %v1999 = vrot.slane %v1989, %v1998
  %v2000 = vmul.f32 %v1987, %v1999
  %v2001 = vsel %vm659, %v2000, 0.0
  %2003 = vset.pattern.permute.xlu0 7
  %2004 = vperm.xlu0 %2003, %v2001
  %v2005 = vpop.permute.xlu0 %2004
  %v2007 = vlaneseq
  %v2008 = vshrl.u32 %v2007, 7
  %v2009 = vsub.s32 7, %v2008
  %v2010 = vrot.slane %v1995, %v2009
  %v2011 = vmul.f32 %v2005, %v2010
  %v2012 = vsub.f32 %v1987, %v2011
  %v2013 = vsel %vm972, %v2010, %v2012
  %v2014 = vsel %vm668, %v591, %v644
  %v2016 = vsel %vm26, %v2014, 0
  %2018 = vmatprep.subr.mxu0 0.0
  %2019 = vmatpush1.xpose.msra.mxu0 0.0
  %2020 = vmatprep.subr.mxu0 0.0
  %2021 = vmatpush1.xpose.msra.mxu0 0.0
  %2022 = vmatprep.subr.mxu0 0.0
  %2023 = vmatpush1.xpose.msra.mxu0 0.0
  %2024 = vmatprep.subr.mxu0 0.0
  %2025 = vmatpush1.xpose.msra.mxu0 0.0
  %2026 = vmatprep.subr.mxu0 0.0
  %2027 = vmatpush1.xpose.msra.mxu0 0.0
  %2028 = vmatprep.subr.mxu0 0.0
  %2029 = vmatpush1.xpose.msra.mxu0 0.0
  %2030 = vmatprep.subr.mxu0 0.0
  %2031 = vmatpush1.xpose.msra.mxu0 0.0
  %2032 = vmatprep.subr.mxu0 0.0
  %2033 = vmatpush1.xpose.msra.mxu0 0.0
  %2034 = vmatprep.subr.mxu0 0.0
  %2035 = vmatpush1.xpose.msra.mxu0 0.0
  %2036 = vmatprep.subr.mxu0 0.0
  %2037 = vmatpush1.xpose.msra.mxu0 0.0
  %2038 = vmatprep.subr.mxu0 0.0
  %2039 = vmatpush1.xpose.msra.mxu0 0.0
  %2040 = vmatprep.subr.mxu0 0.0
  %2041 = vmatpush1.xpose.msra.mxu0 0.0
  %2042 = vmatprep.subr.mxu0 0.0
  %2043 = vmatpush1.xpose.msra.mxu0 0.0
  %2044 = vmatprep.subr.mxu0 0.0
  %2045 = vmatpush1.xpose.msra.mxu0 0.0
  %2046 = vmatprep.subr.mxu0 0.0
  %2047 = vmatpush1.xpose.msra.mxu0 0.0
  %2048 = vmatprep.subr.mxu0 0.0
  %2049 = vmatpush1.xpose.msra.mxu0 %v2016
  %2050 = vmatprep.subr.mxu0 0.0
  %2051 = vmatpush2.xpose.msra.mxu0 0.0
  %2052 = vmatprep.subr.mxu0 0.0
  %2053 = vmatpush2.xpose.msra.mxu0 0.0
  %2054 = vmatprep.subr.mxu0 0.0
  %2055 = vmatpush2.xpose.msra.mxu0 0.0
  %2056 = vmatprep.subr.mxu0 0.0
  %2057 = vmatpush2.xpose.msra.mxu0 0.0
  %2058 = vmatprep.subr.mxu0 0.0
  %2059 = vmatpush2.xpose.msra.mxu0 0.0
  %2060 = vmatprep.subr.mxu0 0.0
  %2061 = vmatpush2.xpose.msra.mxu0 0.0
  %2062 = vmatprep.subr.mxu0 0.0
  %2063 = vmatpush2.xpose.msra.mxu0 0.0
  %2064 = vmatprep.subr.mxu0 0.0
  %2065 = vmatpush2.xpose.msra.mxu0 0.0
  %2066 = vmatprep.subr.mxu0 0.0
  %2067 = vmatpush2.xpose.msra.mxu0 0.0
  %2068 = vmatprep.subr.mxu0 0.0
  %2069 = vmatpush2.xpose.msra.mxu0 0.0
  %2070 = vmatprep.subr.mxu0 0.0
  %2071 = vmatpush2.xpose.msra.mxu0 0.0
  %2072 = vmatprep.subr.mxu0 0.0
  %2073 = vmatpush2.xpose.msra.mxu0 0.0
  %2074 = vmatprep.subr.mxu0 0.0
  %2075 = vmatpush2.xpose.msra.mxu0 0.0
  %2076 = vmatprep.subr.mxu0 0.0
  %2077 = vmatpush2.xpose.msra.mxu0 0.0
  %2078 = vmatprep.subr.mxu0 0.0
  %2079 = vmatpush2.xpose.msra.mxu0 0.0
  %2080 = vmatprep.subr.mxu0 0.0
  %2081 = vmatpush2.xpose.msra.mxu0 0.0
  %2082 = vmatprep.mubr.f32.mxu0 0.0
  %2083 = vmatmul.mubr.f32.gmra.mxu0 %v2016
  %v2084 = vpop.f32.mrf.mxu0
  %v2085 = vadd.f32 0.0, %v2084
  %v2086 = vpop.f32.mrf.mxu0
  %2087 = vdwg.mxu0
  %2089 = vrot.lane.b32.xlu0 %v644, 120
  %v2090 = vpop.permute.xlu0 %2089
  %2092 = vrot.lane.b32.xlu0 %v2013, 112
  %v2093 = vpop.permute.xlu0 %2092
  %v2094 = vsel %vm668, %v2090, 0
  %v2096 = vsel %vm668, %v2093, 0
  %2098 = vmatprep.subr.mxu0 0.0
  %2099 = vmatpush1.xpose.msra.mxu0 0.0
  %2100 = vmatprep.subr.mxu0 0.0
  %2101 = vmatpush1.xpose.msra.mxu0 0.0
  %2102 = vmatprep.subr.mxu0 0.0
  %2103 = vmatpush1.xpose.msra.mxu0 0.0
  %2104 = vmatprep.subr.mxu0 0.0
  %2105 = vmatpush1.xpose.msra.mxu0 0.0
  %2106 = vmatprep.subr.mxu0 0.0
  %2107 = vmatpush1.xpose.msra.mxu0 0.0
  %2108 = vmatprep.subr.mxu0 0.0
  %2109 = vmatpush1.xpose.msra.mxu0 0.0
  %2110 = vmatprep.subr.mxu0 0.0
  %2111 = vmatpush1.xpose.msra.mxu0 0.0
  %2112 = vmatprep.subr.mxu0 0.0
  %2113 = vmatpush1.xpose.msra.mxu0 0.0
  %2114 = vmatprep.subr.mxu0 0.0
  %2115 = vmatpush1.xpose.msra.mxu0 0.0
  %2116 = vmatprep.subr.mxu0 0.0
  %2117 = vmatpush1.xpose.msra.mxu0 0.0
  %2118 = vmatprep.subr.mxu0 0.0
  %2119 = vmatpush1.xpose.msra.mxu0 0.0
  %2120 = vmatprep.subr.mxu0 0.0
  %2121 = vmatpush1.xpose.msra.mxu0 0.0
  %2122 = vmatprep.subr.mxu0 0.0
  %2123 = vmatpush1.xpose.msra.mxu0 0.0
  %2124 = vmatprep.subr.mxu0 0.0
  %2125 = vmatpush1.xpose.msra.mxu0 0.0
  %2126 = vmatprep.subr.mxu0 0.0
  %2127 = vmatpush1.xpose.msra.mxu0 0.0
  %2128 = vmatprep.subr.mxu0 0.0
  %2129 = vmatpush1.xpose.msra.mxu0 %v2096
  %2130 = vmatprep.subr.mxu0 0.0
  %2131 = vmatpush2.xpose.msra.mxu0 0.0
  %2132 = vmatprep.subr.mxu0 0.0
  %2133 = vmatpush2.xpose.msra.mxu0 0.0
  %2134 = vmatprep.subr.mxu0 0.0
  %2135 = vmatpush2.xpose.msra.mxu0 0.0
  %2136 = vmatprep.subr.mxu0 0.0
  %2137 = vmatpush2.xpose.msra.mxu0 0.0
  %2138 = vmatprep.subr.mxu0 0.0
  %2139 = vmatpush2.xpose.msra.mxu0 0.0
  %2140 = vmatprep.subr.mxu0 0.0
  %2141 = vmatpush2.xpose.msra.mxu0 0.0
  %2142 = vmatprep.subr.mxu0 0.0
  %2143 = vmatpush2.xpose.msra.mxu0 0.0
  %2144 = vmatprep.subr.mxu0 0.0
  %2145 = vmatpush2.xpose.msra.mxu0 0.0
  %2146 = vmatprep.subr.mxu0 0.0
  %2147 = vmatpush2.xpose.msra.mxu0 0.0
  %2148 = vmatprep.subr.mxu0 0.0
  %2149 = vmatpush2.xpose.msra.mxu0 0.0
  %2150 = vmatprep.subr.mxu0 0.0
  %2151 = vmatpush2.xpose.msra.mxu0 0.0
  %2152 = vmatprep.subr.mxu0 0.0
  %2153 = vmatpush2.xpose.msra.mxu0 0.0
  %2154 = vmatprep.subr.mxu0 0.0
  %2155 = vmatpush2.xpose.msra.mxu0 0.0
  %2156 = vmatprep.subr.mxu0 0.0
  %2157 = vmatpush2.xpose.msra.mxu0 0.0
  %2158 = vmatprep.subr.mxu0 0.0
  %2159 = vmatpush2.xpose.msra.mxu0 0.0
  %2160 = vmatprep.subr.mxu0 0.0
  %2161 = vmatpush2.xpose.msra.mxu0 0.0
  %2162 = vmatprep.mubr.f32.mxu0 0.0
  %2163 = vmatmul.mubr.f32.gmra.mxu0 %v2094
  %v2164 = vpop.f32.mrf.mxu0
  %v2165 = vadd.f32 0.0, %v2164
  %v2166 = vpop.f32.mrf.mxu0
  %2167 = vdwg.mxu0
  %v2169 = vsel %vm668, %v2165, 0
  %2171 = vmatprep.subr.mxu0 0.0
  %2172 = vmatpush1.xpose.msra.mxu0 0.0
  %2173 = vmatprep.subr.mxu0 0.0
  %2174 = vmatpush1.xpose.msra.mxu0 0.0
  %2175 = vmatprep.subr.mxu0 0.0
  %2176 = vmatpush1.xpose.msra.mxu0 0.0
  %2177 = vmatprep.subr.mxu0 0.0
  %2178 = vmatpush1.xpose.msra.mxu0 0.0
  %2179 = vmatprep.subr.mxu0 0.0
  %2180 = vmatpush1.xpose.msra.mxu0 0.0
  %2181 = vmatprep.subr.mxu0 0.0
  %2182 = vmatpush1.xpose.msra.mxu0 0.0
  %2183 = vmatprep.subr.mxu0 0.0
  %2184 = vmatpush1.xpose.msra.mxu0 0.0
  %2185 = vmatprep.subr.mxu0 0.0
  %2186 = vmatpush1.xpose.msra.mxu0 0.0
  %2187 = vmatprep.subr.mxu0 0.0
  %2188 = vmatpush1.xpose.msra.mxu0 0.0
  %2189 = vmatprep.subr.mxu0 0.0
  %2190 = vmatpush1.xpose.msra.mxu0 0.0
  %2191 = vmatprep.subr.mxu0 0.0
  %2192 = vmatpush1.xpose.msra.mxu0 0.0
  %2193 = vmatprep.subr.mxu0 0.0
  %2194 = vmatpush1.xpose.msra.mxu0 0.0
  %2195 = vmatprep.subr.mxu0 0.0
  %2196 = vmatpush1.xpose.msra.mxu0 0.0
  %2197 = vmatprep.subr.mxu0 0.0
  %2198 = vmatpush1.xpose.msra.mxu0 0.0
  %2199 = vmatprep.subr.mxu0 0.0
  %2200 = vmatpush1.xpose.msra.mxu0 0.0
  %2201 = vmatprep.subr.mxu0 0.0
  %2202 = vmatpush1.xpose.msra.mxu0 %v2169
  %2203 = vmatprep.subr.mxu0 0.0
  %2204 = vmatpush2.xpose.msra.mxu0 0.0
  %2205 = vmatprep.subr.mxu0 0.0
  %2206 = vmatpush2.xpose.msra.mxu0 0.0
  %2207 = vmatprep.subr.mxu0 0.0
  %2208 = vmatpush2.xpose.msra.mxu0 0.0
  %2209 = vmatprep.subr.mxu0 0.0
  %2210 = vmatpush2.xpose.msra.mxu0 0.0
  %2211 = vmatprep.subr.mxu0 0.0
  %2212 = vmatpush2.xpose.msra.mxu0 0.0
  %2213 = vmatprep.subr.mxu0 0.0
  %2214 = vmatpush2.xpose.msra.mxu0 0.0
  %2215 = vmatprep.subr.mxu0 0.0
  %2216 = vmatpush2.xpose.msra.mxu0 0.0
  %2217 = vmatprep.subr.mxu0 0.0
  %2218 = vmatpush2.xpose.msra.mxu0 0.0
  %2219 = vmatprep.subr.mxu0 0.0
  %2220 = vmatpush2.xpose.msra.mxu0 0.0
  %2221 = vmatprep.subr.mxu0 0.0
  %2222 = vmatpush2.xpose.msra.mxu0 0.0
  %2223 = vmatprep.subr.mxu0 0.0
  %2224 = vmatpush2.xpose.msra.mxu0 0.0
  %2225 = vmatprep.subr.mxu0 0.0
  %2226 = vmatpush2.xpose.msra.mxu0 0.0
  %2227 = vmatprep.subr.mxu0 0.0
  %2228 = vmatpush2.xpose.msra.mxu0 0.0
  %2229 = vmatprep.subr.mxu0 0.0
  %2230 = vmatpush2.xpose.msra.mxu0 0.0
  %2231 = vmatprep.subr.mxu0 0.0
  %2232 = vmatpush2.xpose.msra.mxu0 0.0
  %2233 = vmatprep.subr.mxu0 0.0
  %2234 = vmatpush2.xpose.msra.mxu0 0.0
  %2235 = vmatprep.mubr.f32.mxu0 0.0
  %2236 = vmatmul.mubr.f32.gmra.mxu0 %v2169
  %v2237 = vpop.f32.mrf.mxu0
  %v2238 = vadd.f32 0.0, %v2237
  %v2239 = vpop.f32.mrf.mxu0
  %2240 = vdwg.mxu0
  %2241 = vrot.lane.b32.xlu0 %v2013, 120
  %v2242 = vpop.permute.xlu0 %2241
  %2244 = vmatprep.subr.mxu0 0.0
  %2245 = vmatpush1.msra.mxu0 0.0
  %2246 = vmatprep.subr.mxu0 0.0
  %2247 = vmatpush1.msra.mxu0 0.0
  %2248 = vmatprep.subr.mxu0 0.0
  %2249 = vmatpush1.msra.mxu0 0.0
  %2250 = vmatprep.subr.mxu0 0.0
  %2251 = vmatpush1.msra.mxu0 0.0
  %2252 = vmatprep.subr.mxu0 0.0
  %2253 = vmatpush1.msra.mxu0 0.0
  %2254 = vmatprep.subr.mxu0 0.0
  %2255 = vmatpush1.msra.mxu0 0.0
  %2256 = vmatprep.subr.mxu0 0.0
  %2257 = vmatpush1.msra.mxu0 0.0
  %2258 = vmatprep.subr.mxu0 0.0
  %2259 = vmatpush1.msra.mxu0 0.0
  %2260 = vmatprep.subr.mxu0 0.0
  %2261 = vmatpush1.msra.mxu0 0.0
  %2262 = vmatprep.subr.mxu0 0.0
  %2263 = vmatpush1.msra.mxu0 0.0
  %2264 = vmatprep.subr.mxu0 0.0
  %2265 = vmatpush1.msra.mxu0 0.0
  %2266 = vmatprep.subr.mxu0 0.0
  %2267 = vmatpush1.msra.mxu0 0.0
  %2268 = vmatprep.subr.mxu0 0.0
  %2269 = vmatpush1.msra.mxu0 0.0
  %2270 = vmatprep.subr.mxu0 0.0
  %2271 = vmatpush1.msra.mxu0 0.0
  %2272 = vmatprep.subr.mxu0 0.0
  %2273 = vmatpush1.msra.mxu0 0.0
  %2274 = vmatprep.subr.mxu0 0.0
  %2275 = vmatpush1.msra.mxu0 %v2242
  %2276 = vmatprep.subr.mxu0 0.0
  %2277 = vmatpush2.msra.mxu0 0.0
  %2278 = vmatprep.subr.mxu0 0.0
  %2279 = vmatpush2.msra.mxu0 0.0
  %2280 = vmatprep.subr.mxu0 0.0
  %2281 = vmatpush2.msra.mxu0 0.0
  %2282 = vmatprep.subr.mxu0 0.0
  %2283 = vmatpush2.msra.mxu0 0.0
  %2284 = vmatprep.subr.mxu0 0.0
  %2285 = vmatpush2.msra.mxu0 0.0
  %2286 = vmatprep.subr.mxu0 0.0
  %2287 = vmatpush2.msra.mxu0 0.0
  %2288 = vmatprep.subr.mxu0 0.0
  %2289 = vmatpush2.msra.mxu0 0.0
  %2290 = vmatprep.subr.mxu0 0.0
  %2291 = vmatpush2.msra.mxu0 0.0
  %2292 = vmatprep.subr.mxu0 0.0
  %2293 = vmatpush2.msra.mxu0 0.0
  %2294 = vmatprep.subr.mxu0 0.0
  %2295 = vmatpush2.msra.mxu0 0.0
  %2296 = vmatprep.subr.mxu0 0.0
  %2297 = vmatpush2.msra.mxu0 0.0
  %2298 = vmatprep.subr.mxu0 0.0
  %2299 = vmatpush2.msra.mxu0 0.0
  %2300 = vmatprep.subr.mxu0 0.0
  %2301 = vmatpush2.msra.mxu0 0.0
  %2302 = vmatprep.subr.mxu0 0.0
  %2303 = vmatpush2.msra.mxu0 0.0
  %2304 = vmatprep.subr.mxu0 0.0
  %2305 = vmatpush2.msra.mxu0 0.0
  %2306 = vmatprep.subr.mxu0 0.0
  %2307 = vmatpush2.msra.mxu0 0.0
  %2308 = vmatprep.mubr.f32.mxu0 0.0
  %2309 = vmatmul.mubr.f32.gmra.mxu0 %v2169
  %v2310 = vpop.f32.mrf.mxu0
  %v2311 = vadd.f32 0.0, %v2310
  %v2312 = vpop.f32.mrf.mxu0
  %2313 = vdwg.mxu0
  %v2314 = vsub.f32 %v2085, %v2238
  %v2315 = vadd.f32 %v2314, %v651
  %v2316 = vsub.f32 %v650, %v2311
  %2317 = vrot.lane.b32.xlu0 %v591, 8
  %v2318 = vpop.permute.xlu0 %2317
  %v2320 = vsel %vm668, %v2316, %v2318
  %2322 = vrot.lane.b32.xlu0 %v2320, 8
  %v2323 = vpop.permute.xlu0 %2322
  %v2325 = vsel %vm668, %v2315, %v2323
  %v2326 = vmax.f32 %v2325, 1e-12
  %v2327 = vrsqrt.pop %v2326
  %2329 = vset.pattern.permute.xlu0 0
  %2330 = vperm.xlu0 %2329, %v2327
  %v2331 = vpop.permute.xlu0 %2330
  %v2333 = vmul.f32 %v2325, %v2331
  %v2334 = vlaneseq
  %v2335 = vshrl.u32 %v2334, 7
  %v2336 = vsub.s32 0, %v2335
  %v2337 = vrot.slane %v2327, %v2336
  %v2338 = vmul.f32 %v2325, %v2337
  %v2339 = vsel %vm652, %v2338, 0.0
  %2341 = vset.pattern.permute.xlu0 0
  %2342 = vperm.xlu0 %2341, %v2339
  %v2343 = vpop.permute.xlu0 %2342
  %v2345 = vlaneseq
  %v2346 = vshrl.u32 %v2345, 7
  %v2347 = vsub.s32 0, %v2346
  %v2348 = vrot.slane %v2333, %v2347
  %v2349 = vmul.f32 %v2343, %v2348
  %v2350 = vsub.f32 %v2325, %v2349
  %v2351 = vsel %vm776, %v2348, %v2350
  %v2352 = vmax.f32 %v2351, 1e-12
  %v2353 = vrsqrt.pop %v2352
  %2355 = vset.pattern.permute.xlu0 1
  %2356 = vperm.xlu0 %2355, %v2353
  %v2357 = vpop.permute.xlu0 %2356
  %v2359 = vmul.f32 %v2351, %v2357
  %v2360 = vlaneseq
  %v2361 = vshrl.u32 %v2360, 7
  %v2362 = vsub.s32 1, %v2361
  %v2363 = vrot.slane %v2353, %v2362
  %v2364 = vmul.f32 %v2351, %v2363
  %v2365 = vsel %vm653, %v2364, 0.0
  %2367 = vset.pattern.permute.xlu0 1
  %2368 = vperm.xlu0 %2367, %v2365
  %v2369 = vpop.permute.xlu0 %2368
  %v2371 = vlaneseq
  %v2372 = vshrl.u32 %v2371, 7
  %v2373 = vsub.s32 1, %v2372
  %v2374 = vrot.slane %v2359, %v2373
  %v2375 = vmul.f32 %v2369, %v2374
  %v2376 = vsub.f32 %v2351, %v2375
  %v2377 = vsel %vm804, %v2374, %v2376
  %v2378 = vmax.f32 %v2377, 1e-12
  %v2379 = vrsqrt.pop %v2378
  %2381 = vset.pattern.permute.xlu0 2
  %2382 = vperm.xlu0 %2381, %v2379
  %v2383 = vpop.permute.xlu0 %2382
  %v2385 = vmul.f32 %v2377, %v2383
  %v2386 = vlaneseq
  %v2387 = vshrl.u32 %v2386, 7
  %v2388 = vsub.s32 2, %v2387
  %v2389 = vrot.slane %v2379, %v2388
  %v2390 = vmul.f32 %v2377, %v2389
  %v2391 = vsel %vm654, %v2390, 0.0
  %2393 = vset.pattern.permute.xlu0 2
  %2394 = vperm.xlu0 %2393, %v2391
  %v2395 = vpop.permute.xlu0 %2394
  %v2397 = vlaneseq
  %v2398 = vshrl.u32 %v2397, 7
  %v2399 = vsub.s32 2, %v2398
  %v2400 = vrot.slane %v2385, %v2399
  %v2401 = vmul.f32 %v2395, %v2400
  %v2402 = vsub.f32 %v2377, %v2401
  %v2403 = vsel %vm832, %v2400, %v2402
  %v2404 = vmax.f32 %v2403, 1e-12
  %v2405 = vrsqrt.pop %v2404
  %2407 = vset.pattern.permute.xlu0 3
  %2408 = vperm.xlu0 %2407, %v2405
  %v2409 = vpop.permute.xlu0 %2408
  %v2411 = vmul.f32 %v2403, %v2409
  %v2412 = vlaneseq
  %v2413 = vshrl.u32 %v2412, 7
  %v2414 = vsub.s32 3, %v2413
  %v2415 = vrot.slane %v2405, %v2414
  %v2416 = vmul.f32 %v2403, %v2415
  %v2417 = vsel %vm655, %v2416, 0.0
  %2419 = vset.pattern.permute.xlu0 3
  %2420 = vperm.xlu0 %2419, %v2417
  %v2421 = vpop.permute.xlu0 %2420
  %v2423 = vlaneseq
  %v2424 = vshrl.u32 %v2423, 7
  %v2425 = vsub.s32 3, %v2424
  %v2426 = vrot.slane %v2411, %v2425
  %v2427 = vmul.f32 %v2421, %v2426
  %v2428 = vsub.f32 %v2403, %v2427
  %v2429 = vsel %vm860, %v2426, %v2428
  %v2430 = vmax.f32 %v2429, 1e-12
  %v2431 = vrsqrt.pop %v2430
  %2433 = vset.pattern.permute.xlu0 4
  %2434 = vperm.xlu0 %2433, %v2431
  %v2435 = vpop.permute.xlu0 %2434
  %v2437 = vmul.f32 %v2429, %v2435
  %v2438 = vlaneseq
  %v2439 = vshrl.u32 %v2438, 7
  %v2440 = vsub.s32 4, %v2439
  %v2441 = vrot.slane %v2431, %v2440
  %v2442 = vmul.f32 %v2429, %v2441
  %v2443 = vsel %vm656, %v2442, 0.0
  %2445 = vset.pattern.permute.xlu0 4
  %2446 = vperm.xlu0 %2445, %v2443
  %v2447 = vpop.permute.xlu0 %2446
  %v2449 = vlaneseq
  %v2450 = vshrl.u32 %v2449, 7
  %v2451 = vsub.s32 4, %v2450
  %v2452 = vrot.slane %v2437, %v2451
  %v2453 = vmul.f32 %v2447, %v2452
  %v2454 = vsub.f32 %v2429, %v2453
  %v2455 = vsel %vm888, %v2452, %v2454
  %v2456 = vmax.f32 %v2455, 1e-12
  %v2457 = vrsqrt.pop %v2456
  %2459 = vset.pattern.permute.xlu0 5
  %2460 = vperm.xlu0 %2459, %v2457
  %v2461 = vpop.permute.xlu0 %2460
  %v2463 = vmul.f32 %v2455, %v2461
  %v2464 = vlaneseq
  %v2465 = vshrl.u32 %v2464, 7
  %v2466 = vsub.s32 5, %v2465
  %v2467 = vrot.slane %v2457, %v2466
  %v2468 = vmul.f32 %v2455, %v2467
  %v2469 = vsel %vm657, %v2468, 0.0
  %2471 = vset.pattern.permute.xlu0 5
  %2472 = vperm.xlu0 %2471, %v2469
  %v2473 = vpop.permute.xlu0 %2472
  %v2475 = vlaneseq
  %v2476 = vshrl.u32 %v2475, 7
  %v2477 = vsub.s32 5, %v2476
  %v2478 = vrot.slane %v2463, %v2477
  %v2479 = vmul.f32 %v2473, %v2478
  %v2480 = vsub.f32 %v2455, %v2479
  %v2481 = vsel %vm916, %v2478, %v2480
  %v2482 = vmax.f32 %v2481, 1e-12
  %v2483 = vrsqrt.pop %v2482
  %2485 = vset.pattern.permute.xlu0 6
  %2486 = vperm.xlu0 %2485, %v2483
  %v2487 = vpop.permute.xlu0 %2486
  %v2489 = vmul.f32 %v2481, %v2487
  %v2490 = vlaneseq
  %v2491 = vshrl.u32 %v2490, 7
  %v2492 = vsub.s32 6, %v2491
  %v2493 = vrot.slane %v2483, %v2492
  %v2494 = vmul.f32 %v2481, %v2493
  %v2495 = vsel %vm658, %v2494, 0.0
  %2497 = vset.pattern.permute.xlu0 6
  %2498 = vperm.xlu0 %2497, %v2495
  %v2499 = vpop.permute.xlu0 %2498
  %v2501 = vlaneseq
  %v2502 = vshrl.u32 %v2501, 7
  %v2503 = vsub.s32 6, %v2502
  %v2504 = vrot.slane %v2489, %v2503
  %v2505 = vmul.f32 %v2499, %v2504
  %v2506 = vsub.f32 %v2481, %v2505
  %v2507 = vsel %vm944, %v2504, %v2506
  %v2508 = vmax.f32 %v2507, 1e-12
  %v2509 = vrsqrt.pop %v2508
  %2511 = vset.pattern.permute.xlu0 7
  %2512 = vperm.xlu0 %2511, %v2509
  %v2513 = vpop.permute.xlu0 %2512
  %v2515 = vmul.f32 %v2507, %v2513
  %v2516 = vlaneseq
  %v2517 = vshrl.u32 %v2516, 7
  %v2518 = vsub.s32 7, %v2517
  %v2519 = vrot.slane %v2509, %v2518
  %v2520 = vmul.f32 %v2507, %v2519
  %v2521 = vsel %vm659, %v2520, 0.0
  %2523 = vset.pattern.permute.xlu0 7
  %2524 = vperm.xlu0 %2523, %v2521
  %v2525 = vpop.permute.xlu0 %2524
  %v2527 = vlaneseq
  %v2528 = vshrl.u32 %v2527, 7
  %v2529 = vsub.s32 7, %v2528
  %v2530 = vrot.slane %v2515, %v2529
  %v2531 = vmul.f32 %v2525, %v2530
  %v2532 = vsub.f32 %v2507, %v2531
  %v2533 = vsel %vm972, %v2530, %v2532
  %v2534 = vsel %vm668, %v596, %v645
  %v2536 = vsel %vm26, %v2534, 0
  %2538 = vmatprep.subr.mxu0 0.0
  %2539 = vmatpush1.xpose.msra.mxu0 0.0
  %2540 = vmatprep.subr.mxu0 0.0
  %2541 = vmatpush1.xpose.msra.mxu0 0.0
  %2542 = vmatprep.subr.mxu0 0.0
  %2543 = vmatpush1.xpose.msra.mxu0 0.0
  %2544 = vmatprep.subr.mxu0 0.0
  %2545 = vmatpush1.xpose.msra.mxu0 0.0
  %2546 = vmatprep.subr.mxu0 0.0
  %2547 = vmatpush1.xpose.msra.mxu0 0.0
  %2548 = vmatprep.subr.mxu0 0.0
  %2549 = vmatpush1.xpose.msra.mxu0 0.0
  %2550 = vmatprep.subr.mxu0 0.0
  %2551 = vmatpush1.xpose.msra.mxu0 0.0
  %2552 = vmatprep.subr.mxu0 0.0
  %2553 = vmatpush1.xpose.msra.mxu0 0.0
  %2554 = vmatprep.subr.mxu0 0.0
  %2555 = vmatpush1.xpose.msra.mxu0 0.0
  %2556 = vmatprep.subr.mxu0 0.0
  %2557 = vmatpush1.xpose.msra.mxu0 0.0
  %2558 = vmatprep.subr.mxu0 0.0
  %2559 = vmatpush1.xpose.msra.mxu0 0.0
  %2560 = vmatprep.subr.mxu0 0.0
  %2561 = vmatpush1.xpose.msra.mxu0 0.0
  %2562 = vmatprep.subr.mxu0 0.0
  %2563 = vmatpush1.xpose.msra.mxu0 0.0
  %2564 = vmatprep.subr.mxu0 0.0
  %2565 = vmatpush1.xpose.msra.mxu0 0.0
  %2566 = vmatprep.subr.mxu0 0.0
  %2567 = vmatpush1.xpose.msra.mxu0 0.0
  %2568 = vmatprep.subr.mxu0 0.0
  %2569 = vmatpush1.xpose.msra.mxu0 %v2536
  %2570 = vmatprep.subr.mxu0 0.0
  %2571 = vmatpush2.xpose.msra.mxu0 0.0
  %2572 = vmatprep.subr.mxu0 0.0
  %2573 = vmatpush2.xpose.msra.mxu0 0.0
  %2574 = vmatprep.subr.mxu0 0.0
  %2575 = vmatpush2.xpose.msra.mxu0 0.0
  %2576 = vmatprep.subr.mxu0 0.0
  %2577 = vmatpush2.xpose.msra.mxu0 0.0
  %2578 = vmatprep.subr.mxu0 0.0
  %2579 = vmatpush2.xpose.msra.mxu0 0.0
  %2580 = vmatprep.subr.mxu0 0.0
  %2581 = vmatpush2.xpose.msra.mxu0 0.0
  %2582 = vmatprep.subr.mxu0 0.0
  %2583 = vmatpush2.xpose.msra.mxu0 0.0
  %2584 = vmatprep.subr.mxu0 0.0
  %2585 = vmatpush2.xpose.msra.mxu0 0.0
  %2586 = vmatprep.subr.mxu0 0.0
  %2587 = vmatpush2.xpose.msra.mxu0 0.0
  %2588 = vmatprep.subr.mxu0 0.0
  %2589 = vmatpush2.xpose.msra.mxu0 0.0
  %2590 = vmatprep.subr.mxu0 0.0
  %2591 = vmatpush2.xpose.msra.mxu0 0.0
  %2592 = vmatprep.subr.mxu0 0.0
  %2593 = vmatpush2.xpose.msra.mxu0 0.0
  %2594 = vmatprep.subr.mxu0 0.0
  %2595 = vmatpush2.xpose.msra.mxu0 0.0
  %2596 = vmatprep.subr.mxu0 0.0
  %2597 = vmatpush2.xpose.msra.mxu0 0.0
  %2598 = vmatprep.subr.mxu0 0.0
  %2599 = vmatpush2.xpose.msra.mxu0 0.0
  %2600 = vmatprep.subr.mxu0 0.0
  %2601 = vmatpush2.xpose.msra.mxu0 0.0
  %2602 = vmatprep.mubr.f32.mxu0 0.0
  %2603 = vmatmul.mubr.f32.gmra.mxu0 %v2536
  %v2604 = vpop.f32.mrf.mxu0
  %v2605 = vadd.f32 0.0, %v2604
  %v2606 = vpop.f32.mrf.mxu0
  %2607 = vdwg.mxu0
  %2609 = vrot.lane.b32.xlu0 %v645, 120
  %v2610 = vpop.permute.xlu0 %2609
  %2612 = vrot.lane.b32.xlu0 %v2533, 112
  %v2613 = vpop.permute.xlu0 %2612
  %v2614 = vsel %vm668, %v2610, 0
  %v2616 = vsel %vm668, %v2613, 0
  %2618 = vmatprep.subr.mxu0 0.0
  %2619 = vmatpush1.xpose.msra.mxu0 0.0
  %2620 = vmatprep.subr.mxu0 0.0
  %2621 = vmatpush1.xpose.msra.mxu0 0.0
  %2622 = vmatprep.subr.mxu0 0.0
  %2623 = vmatpush1.xpose.msra.mxu0 0.0
  %2624 = vmatprep.subr.mxu0 0.0
  %2625 = vmatpush1.xpose.msra.mxu0 0.0
  %2626 = vmatprep.subr.mxu0 0.0
  %2627 = vmatpush1.xpose.msra.mxu0 0.0
  %2628 = vmatprep.subr.mxu0 0.0
  %2629 = vmatpush1.xpose.msra.mxu0 0.0
  %2630 = vmatprep.subr.mxu0 0.0
  %2631 = vmatpush1.xpose.msra.mxu0 0.0
  %2632 = vmatprep.subr.mxu0 0.0
  %2633 = vmatpush1.xpose.msra.mxu0 0.0
  %2634 = vmatprep.subr.mxu0 0.0
  %2635 = vmatpush1.xpose.msra.mxu0 0.0
  %2636 = vmatprep.subr.mxu0 0.0
  %2637 = vmatpush1.xpose.msra.mxu0 0.0
  %2638 = vmatprep.subr.mxu0 0.0
  %2639 = vmatpush1.xpose.msra.mxu0 0.0
  %2640 = vmatprep.subr.mxu0 0.0
  %2641 = vmatpush1.xpose.msra.mxu0 0.0
  %2642 = vmatprep.subr.mxu0 0.0
  %2643 = vmatpush1.xpose.msra.mxu0 0.0
  %2644 = vmatprep.subr.mxu0 0.0
  %2645 = vmatpush1.xpose.msra.mxu0 0.0
  %2646 = vmatprep.subr.mxu0 0.0
  %2647 = vmatpush1.xpose.msra.mxu0 0.0
  %2648 = vmatprep.subr.mxu0 0.0
  %2649 = vmatpush1.xpose.msra.mxu0 %v2616
  %2650 = vmatprep.subr.mxu0 0.0
  %2651 = vmatpush2.xpose.msra.mxu0 0.0
  %2652 = vmatprep.subr.mxu0 0.0
  %2653 = vmatpush2.xpose.msra.mxu0 0.0
  %2654 = vmatprep.subr.mxu0 0.0
  %2655 = vmatpush2.xpose.msra.mxu0 0.0
  %2656 = vmatprep.subr.mxu0 0.0
  %2657 = vmatpush2.xpose.msra.mxu0 0.0
  %2658 = vmatprep.subr.mxu0 0.0
  %2659 = vmatpush2.xpose.msra.mxu0 0.0
  %2660 = vmatprep.subr.mxu0 0.0
  %2661 = vmatpush2.xpose.msra.mxu0 0.0
  %2662 = vmatprep.subr.mxu0 0.0
  %2663 = vmatpush2.xpose.msra.mxu0 0.0
  %2664 = vmatprep.subr.mxu0 0.0
  %2665 = vmatpush2.xpose.msra.mxu0 0.0
  %2666 = vmatprep.subr.mxu0 0.0
  %2667 = vmatpush2.xpose.msra.mxu0 0.0
  %2668 = vmatprep.subr.mxu0 0.0
  %2669 = vmatpush2.xpose.msra.mxu0 0.0
  %2670 = vmatprep.subr.mxu0 0.0
  %2671 = vmatpush2.xpose.msra.mxu0 0.0
  %2672 = vmatprep.subr.mxu0 0.0
  %2673 = vmatpush2.xpose.msra.mxu0 0.0
  %2674 = vmatprep.subr.mxu0 0.0
  %2675 = vmatpush2.xpose.msra.mxu0 0.0
  %2676 = vmatprep.subr.mxu0 0.0
  %2677 = vmatpush2.xpose.msra.mxu0 0.0
  %2678 = vmatprep.subr.mxu0 0.0
  %2679 = vmatpush2.xpose.msra.mxu0 0.0
  %2680 = vmatprep.subr.mxu0 0.0
  %2681 = vmatpush2.xpose.msra.mxu0 0.0
  %2682 = vmatprep.mubr.f32.mxu0 0.0
  %2683 = vmatmul.mubr.f32.gmra.mxu0 %v2614
  %v2684 = vpop.f32.mrf.mxu0
  %v2685 = vadd.f32 0.0, %v2684
  %v2686 = vpop.f32.mrf.mxu0
  %2687 = vdwg.mxu0
  %v2689 = vsel %vm668, %v2685, 0
  %2691 = vmatprep.subr.mxu0 0.0
  %2692 = vmatpush1.xpose.msra.mxu0 0.0
  %2693 = vmatprep.subr.mxu0 0.0
  %2694 = vmatpush1.xpose.msra.mxu0 0.0
  %2695 = vmatprep.subr.mxu0 0.0
  %2696 = vmatpush1.xpose.msra.mxu0 0.0
  %2697 = vmatprep.subr.mxu0 0.0
  %2698 = vmatpush1.xpose.msra.mxu0 0.0
  %2699 = vmatprep.subr.mxu0 0.0
  %2700 = vmatpush1.xpose.msra.mxu0 0.0
  %2701 = vmatprep.subr.mxu0 0.0
  %2702 = vmatpush1.xpose.msra.mxu0 0.0
  %2703 = vmatprep.subr.mxu0 0.0
  %2704 = vmatpush1.xpose.msra.mxu0 0.0
  %2705 = vmatprep.subr.mxu0 0.0
  %2706 = vmatpush1.xpose.msra.mxu0 0.0
  %2707 = vmatprep.subr.mxu0 0.0
  %2708 = vmatpush1.xpose.msra.mxu0 0.0
  %2709 = vmatprep.subr.mxu0 0.0
  %2710 = vmatpush1.xpose.msra.mxu0 0.0
  %2711 = vmatprep.subr.mxu0 0.0
  %2712 = vmatpush1.xpose.msra.mxu0 0.0
  %2713 = vmatprep.subr.mxu0 0.0
  %2714 = vmatpush1.xpose.msra.mxu0 0.0
  %2715 = vmatprep.subr.mxu0 0.0
  %2716 = vmatpush1.xpose.msra.mxu0 0.0
  %2717 = vmatprep.subr.mxu0 0.0
  %2718 = vmatpush1.xpose.msra.mxu0 0.0
  %2719 = vmatprep.subr.mxu0 0.0
  %2720 = vmatpush1.xpose.msra.mxu0 0.0
  %2721 = vmatprep.subr.mxu0 0.0
  %2722 = vmatpush1.xpose.msra.mxu0 %v2689
  %2723 = vmatprep.subr.mxu0 0.0
  %2724 = vmatpush2.xpose.msra.mxu0 0.0
  %2725 = vmatprep.subr.mxu0 0.0
  %2726 = vmatpush2.xpose.msra.mxu0 0.0
  %2727 = vmatprep.subr.mxu0 0.0
  %2728 = vmatpush2.xpose.msra.mxu0 0.0
  %2729 = vmatprep.subr.mxu0 0.0
  %2730 = vmatpush2.xpose.msra.mxu0 0.0
  %2731 = vmatprep.subr.mxu0 0.0
  %2732 = vmatpush2.xpose.msra.mxu0 0.0
  %2733 = vmatprep.subr.mxu0 0.0
  %2734 = vmatpush2.xpose.msra.mxu0 0.0
  %2735 = vmatprep.subr.mxu0 0.0
  %2736 = vmatpush2.xpose.msra.mxu0 0.0
  %2737 = vmatprep.subr.mxu0 0.0
  %2738 = vmatpush2.xpose.msra.mxu0 0.0
  %2739 = vmatprep.subr.mxu0 0.0
  %2740 = vmatpush2.xpose.msra.mxu0 0.0
  %2741 = vmatprep.subr.mxu0 0.0
  %2742 = vmatpush2.xpose.msra.mxu0 0.0
  %2743 = vmatprep.subr.mxu0 0.0
  %2744 = vmatpush2.xpose.msra.mxu0 0.0
  %2745 = vmatprep.subr.mxu0 0.0
  %2746 = vmatpush2.xpose.msra.mxu0 0.0
  %2747 = vmatprep.subr.mxu0 0.0
  %2748 = vmatpush2.xpose.msra.mxu0 0.0
  %2749 = vmatprep.subr.mxu0 0.0
  %2750 = vmatpush2.xpose.msra.mxu0 0.0
  %2751 = vmatprep.subr.mxu0 0.0
  %2752 = vmatpush2.xpose.msra.mxu0 0.0
  %2753 = vmatprep.subr.mxu0 0.0
  %2754 = vmatpush2.xpose.msra.mxu0 0.0
  %2755 = vmatprep.mubr.f32.mxu0 0.0
  %2756 = vmatmul.mubr.f32.gmra.mxu0 %v2689
  %v2757 = vpop.f32.mrf.mxu0
  %v2758 = vadd.f32 0.0, %v2757
  %v2759 = vpop.f32.mrf.mxu0
  %2760 = vdwg.mxu0
  %2761 = vrot.lane.b32.xlu0 %v2533, 120
  %v2762 = vpop.permute.xlu0 %2761
  %2764 = vmatprep.subr.mxu0 0.0
  %2765 = vmatpush1.msra.mxu0 0.0
  %2766 = vmatprep.subr.mxu0 0.0
  %2767 = vmatpush1.msra.mxu0 0.0
  %2768 = vmatprep.subr.mxu0 0.0
  %2769 = vmatpush1.msra.mxu0 0.0
  %2770 = vmatprep.subr.mxu0 0.0
  %2771 = vmatpush1.msra.mxu0 0.0
  %2772 = vmatprep.subr.mxu0 0.0
  %2773 = vmatpush1.msra.mxu0 0.0
  %2774 = vmatprep.subr.mxu0 0.0
  %2775 = vmatpush1.msra.mxu0 0.0
  %2776 = vmatprep.subr.mxu0 0.0
  %2777 = vmatpush1.msra.mxu0 0.0
  %2778 = vmatprep.subr.mxu0 0.0
  %2779 = vmatpush1.msra.mxu0 0.0
  %2780 = vmatprep.subr.mxu0 0.0
  %2781 = vmatpush1.msra.mxu0 0.0
  %2782 = vmatprep.subr.mxu0 0.0
  %2783 = vmatpush1.msra.mxu0 0.0
  %2784 = vmatprep.subr.mxu0 0.0
  %2785 = vmatpush1.msra.mxu0 0.0
  %2786 = vmatprep.subr.mxu0 0.0
  %2787 = vmatpush1.msra.mxu0 0.0
  %2788 = vmatprep.subr.mxu0 0.0
  %2789 = vmatpush1.msra.mxu0 0.0
  %2790 = vmatprep.subr.mxu0 0.0
  %2791 = vmatpush1.msra.mxu0 0.0
  %2792 = vmatprep.subr.mxu0 0.0
  %2793 = vmatpush1.msra.mxu0 0.0
  %2794 = vmatprep.subr.mxu0 0.0
  %2795 = vmatpush1.msra.mxu0 %v2762
  %2796 = vmatprep.subr.mxu0 0.0
  %2797 = vmatpush2.msra.mxu0 0.0
  %2798 = vmatprep.subr.mxu0 0.0
  %2799 = vmatpush2.msra.mxu0 0.0
  %2800 = vmatprep.subr.mxu0 0.0
  %2801 = vmatpush2.msra.mxu0 0.0
  %2802 = vmatprep.subr.mxu0 0.0
  %2803 = vmatpush2.msra.mxu0 0.0
  %2804 = vmatprep.subr.mxu0 0.0
  %2805 = vmatpush2.msra.mxu0 0.0
  %2806 = vmatprep.subr.mxu0 0.0
  %2807 = vmatpush2.msra.mxu0 0.0
  %2808 = vmatprep.subr.mxu0 0.0
  %2809 = vmatpush2.msra.mxu0 0.0
  %2810 = vmatprep.subr.mxu0 0.0
  %2811 = vmatpush2.msra.mxu0 0.0
  %2812 = vmatprep.subr.mxu0 0.0
  %2813 = vmatpush2.msra.mxu0 0.0
  %2814 = vmatprep.subr.mxu0 0.0
  %2815 = vmatpush2.msra.mxu0 0.0
  %2816 = vmatprep.subr.mxu0 0.0
  %2817 = vmatpush2.msra.mxu0 0.0
  %2818 = vmatprep.subr.mxu0 0.0
  %2819 = vmatpush2.msra.mxu0 0.0
  %2820 = vmatprep.subr.mxu0 0.0
  %2821 = vmatpush2.msra.mxu0 0.0
  %2822 = vmatprep.subr.mxu0 0.0
  %2823 = vmatpush2.msra.mxu0 0.0
  %2824 = vmatprep.subr.mxu0 0.0
  %2825 = vmatpush2.msra.mxu0 0.0
  %2826 = vmatprep.subr.mxu0 0.0
  %2827 = vmatpush2.msra.mxu0 0.0
  %2828 = vmatprep.mubr.f32.mxu0 0.0
  %2829 = vmatmul.mubr.f32.gmra.mxu0 %v2689
  %v2830 = vpop.f32.mrf.mxu0
  %v2831 = vadd.f32 0.0, %v2830
  %v2832 = vpop.f32.mrf.mxu0
  %2833 = vdwg.mxu0
  %v2834 = vsub.f32 %v2605, %v2758
  %v2835 = vadd.f32 %v2834, %v651
  %v2836 = vsub.f32 %v650, %v2831
  %2837 = vrot.lane.b32.xlu0 %v596, 8
  %v2838 = vpop.permute.xlu0 %2837
  %v2840 = vsel %vm668, %v2836, %v2838
  %2842 = vrot.lane.b32.xlu0 %v2840, 8
  %v2843 = vpop.permute.xlu0 %2842
  %v2845 = vsel %vm668, %v2835, %v2843
  %v2846 = vmax.f32 %v2845, 1e-12
  %v2847 = vrsqrt.pop %v2846
  %2849 = vset.pattern.permute.xlu0 0
  %2850 = vperm.xlu0 %2849, %v2847
  %v2851 = vpop.permute.xlu0 %2850
  %v2853 = vmul.f32 %v2845, %v2851
  %v2854 = vlaneseq
  %v2855 = vshrl.u32 %v2854, 7
  %v2856 = vsub.s32 0, %v2855
  %v2857 = vrot.slane %v2847, %v2856
  %v2858 = vmul.f32 %v2845, %v2857
  %v2859 = vsel %vm652, %v2858, 0.0
  %2861 = vset.pattern.permute.xlu0 0
  %2862 = vperm.xlu0 %2861, %v2859
  %v2863 = vpop.permute.xlu0 %2862
  %v2865 = vlaneseq
  %v2866 = vshrl.u32 %v2865, 7
  %v2867 = vsub.s32 0, %v2866
  %v2868 = vrot.slane %v2853, %v2867
  %v2869 = vmul.f32 %v2863, %v2868
  %v2870 = vsub.f32 %v2845, %v2869
  %v2871 = vsel %vm776, %v2868, %v2870
  %v2872 = vmax.f32 %v2871, 1e-12
  %v2873 = vrsqrt.pop %v2872
  %2875 = vset.pattern.permute.xlu0 1
  %2876 = vperm.xlu0 %2875, %v2873
  %v2877 = vpop.permute.xlu0 %2876
  %v2879 = vmul.f32 %v2871, %v2877
  %v2880 = vlaneseq
  %v2881 = vshrl.u32 %v2880, 7
  %v2882 = vsub.s32 1, %v2881
  %v2883 = vrot.slane %v2873, %v2882
  %v2884 = vmul.f32 %v2871, %v2883
  %v2885 = vsel %vm653, %v2884, 0.0
  %2887 = vset.pattern.permute.xlu0 1
  %2888 = vperm.xlu0 %2887, %v2885
  %v2889 = vpop.permute.xlu0 %2888
  %v2891 = vlaneseq
  %v2892 = vshrl.u32 %v2891, 7
  %v2893 = vsub.s32 1, %v2892
  %v2894 = vrot.slane %v2879, %v2893
  %v2895 = vmul.f32 %v2889, %v2894
  %v2896 = vsub.f32 %v2871, %v2895
  %v2897 = vsel %vm804, %v2894, %v2896
  %v2898 = vmax.f32 %v2897, 1e-12
  %v2899 = vrsqrt.pop %v2898
  %2901 = vset.pattern.permute.xlu0 2
  %2902 = vperm.xlu0 %2901, %v2899
  %v2903 = vpop.permute.xlu0 %2902
  %v2905 = vmul.f32 %v2897, %v2903
  %v2906 = vlaneseq
  %v2907 = vshrl.u32 %v2906, 7
  %v2908 = vsub.s32 2, %v2907
  %v2909 = vrot.slane %v2899, %v2908
  %v2910 = vmul.f32 %v2897, %v2909
  %v2911 = vsel %vm654, %v2910, 0.0
  %2913 = vset.pattern.permute.xlu0 2
  %2914 = vperm.xlu0 %2913, %v2911
  %v2915 = vpop.permute.xlu0 %2914
  %v2917 = vlaneseq
  %v2918 = vshrl.u32 %v2917, 7
  %v2919 = vsub.s32 2, %v2918
  %v2920 = vrot.slane %v2905, %v2919
  %v2921 = vmul.f32 %v2915, %v2920
  %v2922 = vsub.f32 %v2897, %v2921
  %v2923 = vsel %vm832, %v2920, %v2922
  %v2924 = vmax.f32 %v2923, 1e-12
  %v2925 = vrsqrt.pop %v2924
  %2927 = vset.pattern.permute.xlu0 3
  %2928 = vperm.xlu0 %2927, %v2925
  %v2929 = vpop.permute.xlu0 %2928
  %v2931 = vmul.f32 %v2923, %v2929
  %v2932 = vlaneseq
  %v2933 = vshrl.u32 %v2932, 7
  %v2934 = vsub.s32 3, %v2933
  %v2935 = vrot.slane %v2925, %v2934
  %v2936 = vmul.f32 %v2923, %v2935
  %v2937 = vsel %vm655, %v2936, 0.0
  %2939 = vset.pattern.permute.xlu0 3
  %2940 = vperm.xlu0 %2939, %v2937
  %v2941 = vpop.permute.xlu0 %2940
  %v2943 = vlaneseq
  %v2944 = vshrl.u32 %v2943, 7
  %v2945 = vsub.s32 3, %v2944
  %v2946 = vrot.slane %v2931, %v2945
  %v2947 = vmul.f32 %v2941, %v2946
  %v2948 = vsub.f32 %v2923, %v2947
  %v2949 = vsel %vm860, %v2946, %v2948
  %v2950 = vmax.f32 %v2949, 1e-12
  %v2951 = vrsqrt.pop %v2950
  %2953 = vset.pattern.permute.xlu0 4
  %2954 = vperm.xlu0 %2953, %v2951
  %v2955 = vpop.permute.xlu0 %2954
  %v2957 = vmul.f32 %v2949, %v2955
  %v2958 = vlaneseq
  %v2959 = vshrl.u32 %v2958, 7
  %v2960 = vsub.s32 4, %v2959
  %v2961 = vrot.slane %v2951, %v2960
  %v2962 = vmul.f32 %v2949, %v2961
  %v2963 = vsel %vm656, %v2962, 0.0
  %2965 = vset.pattern.permute.xlu0 4
  %2966 = vperm.xlu0 %2965, %v2963
  %v2967 = vpop.permute.xlu0 %2966
  %v2969 = vlaneseq
  %v2970 = vshrl.u32 %v2969, 7
  %v2971 = vsub.s32 4, %v2970
  %v2972 = vrot.slane %v2957, %v2971
  %v2973 = vmul.f32 %v2967, %v2972
  %v2974 = vsub.f32 %v2949, %v2973
  %v2975 = vsel %vm888, %v2972, %v2974
  %v2976 = vmax.f32 %v2975, 1e-12
  %v2977 = vrsqrt.pop %v2976
  %2979 = vset.pattern.permute.xlu0 5
  %2980 = vperm.xlu0 %2979, %v2977
  %v2981 = vpop.permute.xlu0 %2980
  %v2983 = vmul.f32 %v2975, %v2981
  %v2984 = vlaneseq
  %v2985 = vshrl.u32 %v2984, 7
  %v2986 = vsub.s32 5, %v2985
  %v2987 = vrot.slane %v2977, %v2986
  %v2988 = vmul.f32 %v2975, %v2987
  %v2989 = vsel %vm657, %v2988, 0.0
  %2991 = vset.pattern.permute.xlu0 5
  %2992 = vperm.xlu0 %2991, %v2989
  %v2993 = vpop.permute.xlu0 %2992
  %v2995 = vlaneseq
  %v2996 = vshrl.u32 %v2995, 7
  %v2997 = vsub.s32 5, %v2996
  %v2998 = vrot.slane %v2983, %v2997
  %v2999 = vmul.f32 %v2993, %v2998
  %v3000 = vsub.f32 %v2975, %v2999
  %v3001 = vsel %vm916, %v2998, %v3000
  %v3002 = vmax.f32 %v3001, 1e-12
  %v3003 = vrsqrt.pop %v3002
  %3005 = vset.pattern.permute.xlu0 6
  %3006 = vperm.xlu0 %3005, %v3003
  %v3007 = vpop.permute.xlu0 %3006
  %v3009 = vmul.f32 %v3001, %v3007
  %v3010 = vlaneseq
  %v3011 = vshrl.u32 %v3010, 7
  %v3012 = vsub.s32 6, %v3011
  %v3013 = vrot.slane %v3003, %v3012
  %v3014 = vmul.f32 %v3001, %v3013
  %v3015 = vsel %vm658, %v3014, 0.0
  %3017 = vset.pattern.permute.xlu0 6
  %3018 = vperm.xlu0 %3017, %v3015
  %v3019 = vpop.permute.xlu0 %3018
  %v3021 = vlaneseq
  %v3022 = vshrl.u32 %v3021, 7
  %v3023 = vsub.s32 6, %v3022
  %v3024 = vrot.slane %v3009, %v3023
  %v3025 = vmul.f32 %v3019, %v3024
  %v3026 = vsub.f32 %v3001, %v3025
  %v3027 = vsel %vm944, %v3024, %v3026
  %v3028 = vmax.f32 %v3027, 1e-12
  %v3029 = vrsqrt.pop %v3028
  %3031 = vset.pattern.permute.xlu0 7
  %3032 = vperm.xlu0 %3031, %v3029
  %v3033 = vpop.permute.xlu0 %3032
  %v3035 = vmul.f32 %v3027, %v3033
  %v3036 = vlaneseq
  %v3037 = vshrl.u32 %v3036, 7
  %v3038 = vsub.s32 7, %v3037
  %v3039 = vrot.slane %v3029, %v3038
  %v3040 = vmul.f32 %v3027, %v3039
  %v3041 = vsel %vm659, %v3040, 0.0
  %3043 = vset.pattern.permute.xlu0 7
  %3044 = vperm.xlu0 %3043, %v3041
  %v3045 = vpop.permute.xlu0 %3044
  %v3047 = vlaneseq
  %v3048 = vshrl.u32 %v3047, 7
  %v3049 = vsub.s32 7, %v3048
  %v3050 = vrot.slane %v3035, %v3049
  %v3051 = vmul.f32 %v3045, %v3050
  %v3052 = vsub.f32 %v3027, %v3051
  %v3053 = vsel %vm972, %v3050, %v3052
  %v3054 = vsel %vm668, %v601, %v646
  %v3056 = vsel %vm26, %v3054, 0
  %3058 = vmatprep.subr.mxu0 0.0
  %3059 = vmatpush1.xpose.msra.mxu0 0.0
  %3060 = vmatprep.subr.mxu0 0.0
  %3061 = vmatpush1.xpose.msra.mxu0 0.0
  %3062 = vmatprep.subr.mxu0 0.0
  %3063 = vmatpush1.xpose.msra.mxu0 0.0
  %3064 = vmatprep.subr.mxu0 0.0
  %3065 = vmatpush1.xpose.msra.mxu0 0.0
  %3066 = vmatprep.subr.mxu0 0.0
  %3067 = vmatpush1.xpose.msra.mxu0 0.0
  %3068 = vmatprep.subr.mxu0 0.0
  %3069 = vmatpush1.xpose.msra.mxu0 0.0
  %3070 = vmatprep.subr.mxu0 0.0
  %3071 = vmatpush1.xpose.msra.mxu0 0.0
  %3072 = vmatprep.subr.mxu0 0.0
  %3073 = vmatpush1.xpose.msra.mxu0 0.0
  %3074 = vmatprep.subr.mxu0 0.0
  %3075 = vmatpush1.xpose.msra.mxu0 0.0
  %3076 = vmatprep.subr.mxu0 0.0
  %3077 = vmatpush1.xpose.msra.mxu0 0.0
  %3078 = vmatprep.subr.mxu0 0.0
  %3079 = vmatpush1.xpose.msra.mxu0 0.0
  %3080 = vmatprep.subr.mxu0 0.0
  %3081 = vmatpush1.xpose.msra.mxu0 0.0
  %3082 = vmatprep.subr.mxu0 0.0
  %3083 = vmatpush1.xpose.msra.mxu0 0.0
  %3084 = vmatprep.subr.mxu0 0.0
  %3085 = vmatpush1.xpose.msra.mxu0 0.0
  %3086 = vmatprep.subr.mxu0 0.0
  %3087 = vmatpush1.xpose.msra.mxu0 0.0
  %3088 = vmatprep.subr.mxu0 0.0
  %3089 = vmatpush1.xpose.msra.mxu0 %v3056
  %3090 = vmatprep.subr.mxu0 0.0
  %3091 = vmatpush2.xpose.msra.mxu0 0.0
  %3092 = vmatprep.subr.mxu0 0.0
  %3093 = vmatpush2.xpose.msra.mxu0 0.0
  %3094 = vmatprep.subr.mxu0 0.0
  %3095 = vmatpush2.xpose.msra.mxu0 0.0
  %3096 = vmatprep.subr.mxu0 0.0
  %3097 = vmatpush2.xpose.msra.mxu0 0.0
  %3098 = vmatprep.subr.mxu0 0.0
  %3099 = vmatpush2.xpose.msra.mxu0 0.0
  %3100 = vmatprep.subr.mxu0 0.0
  %3101 = vmatpush2.xpose.msra.mxu0 0.0
  %3102 = vmatprep.subr.mxu0 0.0
  %3103 = vmatpush2.xpose.msra.mxu0 0.0
  %3104 = vmatprep.subr.mxu0 0.0
  %3105 = vmatpush2.xpose.msra.mxu0 0.0
  %3106 = vmatprep.subr.mxu0 0.0
  %3107 = vmatpush2.xpose.msra.mxu0 0.0
  %3108 = vmatprep.subr.mxu0 0.0
  %3109 = vmatpush2.xpose.msra.mxu0 0.0
  %3110 = vmatprep.subr.mxu0 0.0
  %3111 = vmatpush2.xpose.msra.mxu0 0.0
  %3112 = vmatprep.subr.mxu0 0.0
  %3113 = vmatpush2.xpose.msra.mxu0 0.0
  %3114 = vmatprep.subr.mxu0 0.0
  %3115 = vmatpush2.xpose.msra.mxu0 0.0
  %3116 = vmatprep.subr.mxu0 0.0
  %3117 = vmatpush2.xpose.msra.mxu0 0.0
  %3118 = vmatprep.subr.mxu0 0.0
  %3119 = vmatpush2.xpose.msra.mxu0 0.0
  %3120 = vmatprep.subr.mxu0 0.0
  %3121 = vmatpush2.xpose.msra.mxu0 0.0
  %3122 = vmatprep.mubr.f32.mxu0 0.0
  %3123 = vmatmul.mubr.f32.gmra.mxu0 %v3056
  %v3124 = vpop.f32.mrf.mxu0
  %v3125 = vadd.f32 0.0, %v3124
  %v3126 = vpop.f32.mrf.mxu0
  %3127 = vdwg.mxu0
  %3129 = vrot.lane.b32.xlu0 %v646, 120
  %v3130 = vpop.permute.xlu0 %3129
  %3132 = vrot.lane.b32.xlu0 %v3053, 112
  %v3133 = vpop.permute.xlu0 %3132
  %v3134 = vsel %vm668, %v3130, 0
  %v3136 = vsel %vm668, %v3133, 0
  %3138 = vmatprep.subr.mxu0 0.0
  %3139 = vmatpush1.xpose.msra.mxu0 0.0
  %3140 = vmatprep.subr.mxu0 0.0
  %3141 = vmatpush1.xpose.msra.mxu0 0.0
  %3142 = vmatprep.subr.mxu0 0.0
  %3143 = vmatpush1.xpose.msra.mxu0 0.0
  %3144 = vmatprep.subr.mxu0 0.0
  %3145 = vmatpush1.xpose.msra.mxu0 0.0
  %3146 = vmatprep.subr.mxu0 0.0
  %3147 = vmatpush1.xpose.msra.mxu0 0.0
  %3148 = vmatprep.subr.mxu0 0.0
  %3149 = vmatpush1.xpose.msra.mxu0 0.0
  %3150 = vmatprep.subr.mxu0 0.0
  %3151 = vmatpush1.xpose.msra.mxu0 0.0
  %3152 = vmatprep.subr.mxu0 0.0
  %3153 = vmatpush1.xpose.msra.mxu0 0.0
  %3154 = vmatprep.subr.mxu0 0.0
  %3155 = vmatpush1.xpose.msra.mxu0 0.0
  %3156 = vmatprep.subr.mxu0 0.0
  %3157 = vmatpush1.xpose.msra.mxu0 0.0
  %3158 = vmatprep.subr.mxu0 0.0
  %3159 = vmatpush1.xpose.msra.mxu0 0.0
  %3160 = vmatprep.subr.mxu0 0.0
  %3161 = vmatpush1.xpose.msra.mxu0 0.0
  %3162 = vmatprep.subr.mxu0 0.0
  %3163 = vmatpush1.xpose.msra.mxu0 0.0
  %3164 = vmatprep.subr.mxu0 0.0
  %3165 = vmatpush1.xpose.msra.mxu0 0.0
  %3166 = vmatprep.subr.mxu0 0.0
  %3167 = vmatpush1.xpose.msra.mxu0 0.0
  %3168 = vmatprep.subr.mxu0 0.0
  %3169 = vmatpush1.xpose.msra.mxu0 %v3136
  %3170 = vmatprep.subr.mxu0 0.0
  %3171 = vmatpush2.xpose.msra.mxu0 0.0
  %3172 = vmatprep.subr.mxu0 0.0
  %3173 = vmatpush2.xpose.msra.mxu0 0.0
  %3174 = vmatprep.subr.mxu0 0.0
  %3175 = vmatpush2.xpose.msra.mxu0 0.0
  %3176 = vmatprep.subr.mxu0 0.0
  %3177 = vmatpush2.xpose.msra.mxu0 0.0
  %3178 = vmatprep.subr.mxu0 0.0
  %3179 = vmatpush2.xpose.msra.mxu0 0.0
  %3180 = vmatprep.subr.mxu0 0.0
  %3181 = vmatpush2.xpose.msra.mxu0 0.0
  %3182 = vmatprep.subr.mxu0 0.0
  %3183 = vmatpush2.xpose.msra.mxu0 0.0
  %3184 = vmatprep.subr.mxu0 0.0
  %3185 = vmatpush2.xpose.msra.mxu0 0.0
  %3186 = vmatprep.subr.mxu0 0.0
  %3187 = vmatpush2.xpose.msra.mxu0 0.0
  %3188 = vmatprep.subr.mxu0 0.0
  %3189 = vmatpush2.xpose.msra.mxu0 0.0
  %3190 = vmatprep.subr.mxu0 0.0
  %3191 = vmatpush2.xpose.msra.mxu0 0.0
  %3192 = vmatprep.subr.mxu0 0.0
  %3193 = vmatpush2.xpose.msra.mxu0 0.0
  %3194 = vmatprep.subr.mxu0 0.0
  %3195 = vmatpush2.xpose.msra.mxu0 0.0
  %3196 = vmatprep.subr.mxu0 0.0
  %3197 = vmatpush2.xpose.msra.mxu0 0.0
  %3198 = vmatprep.subr.mxu0 0.0
  %3199 = vmatpush2.xpose.msra.mxu0 0.0
  %3200 = vmatprep.subr.mxu0 0.0
  %3201 = vmatpush2.xpose.msra.mxu0 0.0
  %3202 = vmatprep.mubr.f32.mxu0 0.0
  %3203 = vmatmul.mubr.f32.gmra.mxu0 %v3134
  %v3204 = vpop.f32.mrf.mxu0
  %v3205 = vadd.f32 0.0, %v3204
  %v3206 = vpop.f32.mrf.mxu0
  %3207 = vdwg.mxu0
  %v3209 = vsel %vm668, %v3205, 0
  %3211 = vmatprep.subr.mxu0 0.0
  %3212 = vmatpush1.xpose.msra.mxu0 0.0
  %3213 = vmatprep.subr.mxu0 0.0
  %3214 = vmatpush1.xpose.msra.mxu0 0.0
  %3215 = vmatprep.subr.mxu0 0.0
  %3216 = vmatpush1.xpose.msra.mxu0 0.0
  %3217 = vmatprep.subr.mxu0 0.0
  %3218 = vmatpush1.xpose.msra.mxu0 0.0
  %3219 = vmatprep.subr.mxu0 0.0
  %3220 = vmatpush1.xpose.msra.mxu0 0.0
  %3221 = vmatprep.subr.mxu0 0.0
  %3222 = vmatpush1.xpose.msra.mxu0 0.0
  %3223 = vmatprep.subr.mxu0 0.0
  %3224 = vmatpush1.xpose.msra.mxu0 0.0
  %3225 = vmatprep.subr.mxu0 0.0
  %3226 = vmatpush1.xpose.msra.mxu0 0.0
  %3227 = vmatprep.subr.mxu0 0.0
  %3228 = vmatpush1.xpose.msra.mxu0 0.0
  %3229 = vmatprep.subr.mxu0 0.0
  %3230 = vmatpush1.xpose.msra.mxu0 0.0
  %3231 = vmatprep.subr.mxu0 0.0
  %3232 = vmatpush1.xpose.msra.mxu0 0.0
  %3233 = vmatprep.subr.mxu0 0.0
  %3234 = vmatpush1.xpose.msra.mxu0 0.0
  %3235 = vmatprep.subr.mxu0 0.0
  %3236 = vmatpush1.xpose.msra.mxu0 0.0
  %3237 = vmatprep.subr.mxu0 0.0
  %3238 = vmatpush1.xpose.msra.mxu0 0.0
  %3239 = vmatprep.subr.mxu0 0.0
  %3240 = vmatpush1.xpose.msra.mxu0 0.0
  %3241 = vmatprep.subr.mxu0 0.0
  %3242 = vmatpush1.xpose.msra.mxu0 %v3209
  %3243 = vmatprep.subr.mxu0 0.0
  %3244 = vmatpush2.xpose.msra.mxu0 0.0
  %3245 = vmatprep.subr.mxu0 0.0
  %3246 = vmatpush2.xpose.msra.mxu0 0.0
  %3247 = vmatprep.subr.mxu0 0.0
  %3248 = vmatpush2.xpose.msra.mxu0 0.0
  %3249 = vmatprep.subr.mxu0 0.0
  %3250 = vmatpush2.xpose.msra.mxu0 0.0
  %3251 = vmatprep.subr.mxu0 0.0
  %3252 = vmatpush2.xpose.msra.mxu0 0.0
  %3253 = vmatprep.subr.mxu0 0.0
  %3254 = vmatpush2.xpose.msra.mxu0 0.0
  %3255 = vmatprep.subr.mxu0 0.0
  %3256 = vmatpush2.xpose.msra.mxu0 0.0
  %3257 = vmatprep.subr.mxu0 0.0
  %3258 = vmatpush2.xpose.msra.mxu0 0.0
  %3259 = vmatprep.subr.mxu0 0.0
  %3260 = vmatpush2.xpose.msra.mxu0 0.0
  %3261 = vmatprep.subr.mxu0 0.0
  %3262 = vmatpush2.xpose.msra.mxu0 0.0
  %3263 = vmatprep.subr.mxu0 0.0
  %3264 = vmatpush2.xpose.msra.mxu0 0.0
  %3265 = vmatprep.subr.mxu0 0.0
  %3266 = vmatpush2.xpose.msra.mxu0 0.0
  %3267 = vmatprep.subr.mxu0 0.0
  %3268 = vmatpush2.xpose.msra.mxu0 0.0
  %3269 = vmatprep.subr.mxu0 0.0
  %3270 = vmatpush2.xpose.msra.mxu0 0.0
  %3271 = vmatprep.subr.mxu0 0.0
  %3272 = vmatpush2.xpose.msra.mxu0 0.0
  %3273 = vmatprep.subr.mxu0 0.0
  %3274 = vmatpush2.xpose.msra.mxu0 0.0
  %3275 = vmatprep.mubr.f32.mxu0 0.0
  %3276 = vmatmul.mubr.f32.gmra.mxu0 %v3209
  %v3277 = vpop.f32.mrf.mxu0
  %v3278 = vadd.f32 0.0, %v3277
  %v3279 = vpop.f32.mrf.mxu0
  %3280 = vdwg.mxu0
  %3281 = vrot.lane.b32.xlu0 %v3053, 120
  %v3282 = vpop.permute.xlu0 %3281
  %3284 = vmatprep.subr.mxu0 0.0
  %3285 = vmatpush1.msra.mxu0 0.0
  %3286 = vmatprep.subr.mxu0 0.0
  %3287 = vmatpush1.msra.mxu0 0.0
  %3288 = vmatprep.subr.mxu0 0.0
  %3289 = vmatpush1.msra.mxu0 0.0
  %3290 = vmatprep.subr.mxu0 0.0
  %3291 = vmatpush1.msra.mxu0 0.0
  %3292 = vmatprep.subr.mxu0 0.0
  %3293 = vmatpush1.msra.mxu0 0.0
  %3294 = vmatprep.subr.mxu0 0.0
  %3295 = vmatpush1.msra.mxu0 0.0
  %3296 = vmatprep.subr.mxu0 0.0
  %3297 = vmatpush1.msra.mxu0 0.0
  %3298 = vmatprep.subr.mxu0 0.0
  %3299 = vmatpush1.msra.mxu0 0.0
  %3300 = vmatprep.subr.mxu0 0.0
  %3301 = vmatpush1.msra.mxu0 0.0
  %3302 = vmatprep.subr.mxu0 0.0
  %3303 = vmatpush1.msra.mxu0 0.0
  %3304 = vmatprep.subr.mxu0 0.0
  %3305 = vmatpush1.msra.mxu0 0.0
  %3306 = vmatprep.subr.mxu0 0.0
  %3307 = vmatpush1.msra.mxu0 0.0
  %3308 = vmatprep.subr.mxu0 0.0
  %3309 = vmatpush1.msra.mxu0 0.0
  %3310 = vmatprep.subr.mxu0 0.0
  %3311 = vmatpush1.msra.mxu0 0.0
  %3312 = vmatprep.subr.mxu0 0.0
  %3313 = vmatpush1.msra.mxu0 0.0
  %3314 = vmatprep.subr.mxu0 0.0
  %3315 = vmatpush1.msra.mxu0 %v3282
  %3316 = vmatprep.subr.mxu0 0.0
  %3317 = vmatpush2.msra.mxu0 0.0
  %3318 = vmatprep.subr.mxu0 0.0
  %3319 = vmatpush2.msra.mxu0 0.0
  %3320 = vmatprep.subr.mxu0 0.0
  %3321 = vmatpush2.msra.mxu0 0.0
  %3322 = vmatprep.subr.mxu0 0.0
  %3323 = vmatpush2.msra.mxu0 0.0
  %3324 = vmatprep.subr.mxu0 0.0
  %3325 = vmatpush2.msra.mxu0 0.0
  %3326 = vmatprep.subr.mxu0 0.0
  %3327 = vmatpush2.msra.mxu0 0.0
  %3328 = vmatprep.subr.mxu0 0.0
  %3329 = vmatpush2.msra.mxu0 0.0
  %3330 = vmatprep.subr.mxu0 0.0
  %3331 = vmatpush2.msra.mxu0 0.0
  %3332 = vmatprep.subr.mxu0 0.0
  %3333 = vmatpush2.msra.mxu0 0.0
  %3334 = vmatprep.subr.mxu0 0.0
  %3335 = vmatpush2.msra.mxu0 0.0
  %3336 = vmatprep.subr.mxu0 0.0
  %3337 = vmatpush2.msra.mxu0 0.0
  %3338 = vmatprep.subr.mxu0 0.0
  %3339 = vmatpush2.msra.mxu0 0.0
  %3340 = vmatprep.subr.mxu0 0.0
  %3341 = vmatpush2.msra.mxu0 0.0
  %3342 = vmatprep.subr.mxu0 0.0
  %3343 = vmatpush2.msra.mxu0 0.0
  %3344 = vmatprep.subr.mxu0 0.0
  %3345 = vmatpush2.msra.mxu0 0.0
  %3346 = vmatprep.subr.mxu0 0.0
  %3347 = vmatpush2.msra.mxu0 0.0
  %3348 = vmatprep.mubr.f32.mxu0 0.0
  %3349 = vmatmul.mubr.f32.gmra.mxu0 %v3209
  %v3350 = vpop.f32.mrf.mxu0
  %v3351 = vadd.f32 0.0, %v3350
  %v3352 = vpop.f32.mrf.mxu0
  %3353 = vdwg.mxu0
  %v3354 = vsub.f32 %v3125, %v3278
  %v3355 = vadd.f32 %v3354, %v651
  %v3356 = vsub.f32 %v650, %v3351
  %3357 = vrot.lane.b32.xlu0 %v601, 8
  %v3358 = vpop.permute.xlu0 %3357
  %v3360 = vsel %vm668, %v3356, %v3358
  %3362 = vrot.lane.b32.xlu0 %v3360, 8
  %v3363 = vpop.permute.xlu0 %3362
  %v3365 = vsel %vm668, %v3355, %v3363
  %v3366 = vmax.f32 %v3365, 1e-12
  %v3367 = vrsqrt.pop %v3366
  %3369 = vset.pattern.permute.xlu0 0
  %3370 = vperm.xlu0 %3369, %v3367
  %v3371 = vpop.permute.xlu0 %3370
  %v3373 = vmul.f32 %v3365, %v3371
  %v3374 = vlaneseq
  %v3375 = vshrl.u32 %v3374, 7
  %v3376 = vsub.s32 0, %v3375
  %v3377 = vrot.slane %v3367, %v3376
  %v3378 = vmul.f32 %v3365, %v3377
  %v3379 = vsel %vm652, %v3378, 0.0
  %3381 = vset.pattern.permute.xlu0 0
  %3382 = vperm.xlu0 %3381, %v3379
  %v3383 = vpop.permute.xlu0 %3382
  %v3385 = vlaneseq
  %v3386 = vshrl.u32 %v3385, 7
  %v3387 = vsub.s32 0, %v3386
  %v3388 = vrot.slane %v3373, %v3387
  %v3389 = vmul.f32 %v3383, %v3388
  %v3390 = vsub.f32 %v3365, %v3389
  %v3391 = vsel %vm776, %v3388, %v3390
  %v3392 = vmax.f32 %v3391, 1e-12
  %v3393 = vrsqrt.pop %v3392
  %3395 = vset.pattern.permute.xlu0 1
  %3396 = vperm.xlu0 %3395, %v3393
  %v3397 = vpop.permute.xlu0 %3396
  %v3399 = vmul.f32 %v3391, %v3397
  %v3400 = vlaneseq
  %v3401 = vshrl.u32 %v3400, 7
  %v3402 = vsub.s32 1, %v3401
  %v3403 = vrot.slane %v3393, %v3402
  %v3404 = vmul.f32 %v3391, %v3403
  %v3405 = vsel %vm653, %v3404, 0.0
  %3407 = vset.pattern.permute.xlu0 1
  %3408 = vperm.xlu0 %3407, %v3405
  %v3409 = vpop.permute.xlu0 %3408
  %v3411 = vlaneseq
  %v3412 = vshrl.u32 %v3411, 7
  %v3413 = vsub.s32 1, %v3412
  %v3414 = vrot.slane %v3399, %v3413
  %v3415 = vmul.f32 %v3409, %v3414
  %v3416 = vsub.f32 %v3391, %v3415
  %v3417 = vsel %vm804, %v3414, %v3416
  %v3418 = vmax.f32 %v3417, 1e-12
  %v3419 = vrsqrt.pop %v3418
  %3421 = vset.pattern.permute.xlu0 2
  %3422 = vperm.xlu0 %3421, %v3419
  %v3423 = vpop.permute.xlu0 %3422
  %v3425 = vmul.f32 %v3417, %v3423
  %v3426 = vlaneseq
  %v3427 = vshrl.u32 %v3426, 7
  %v3428 = vsub.s32 2, %v3427
  %v3429 = vrot.slane %v3419, %v3428
  %v3430 = vmul.f32 %v3417, %v3429
  %v3431 = vsel %vm654, %v3430, 0.0
  %3433 = vset.pattern.permute.xlu0 2
  %3434 = vperm.xlu0 %3433, %v3431
  %v3435 = vpop.permute.xlu0 %3434
  %v3437 = vlaneseq
  %v3438 = vshrl.u32 %v3437, 7
  %v3439 = vsub.s32 2, %v3438
  %v3440 = vrot.slane %v3425, %v3439
  %v3441 = vmul.f32 %v3435, %v3440
  %v3442 = vsub.f32 %v3417, %v3441
  %v3443 = vsel %vm832, %v3440, %v3442
  %v3444 = vmax.f32 %v3443, 1e-12
  %v3445 = vrsqrt.pop %v3444
  %3447 = vset.pattern.permute.xlu0 3
  %3448 = vperm.xlu0 %3447, %v3445
  %v3449 = vpop.permute.xlu0 %3448
  %v3451 = vmul.f32 %v3443, %v3449
  %v3452 = vlaneseq
  %v3453 = vshrl.u32 %v3452, 7
  %v3454 = vsub.s32 3, %v3453
  %v3455 = vrot.slane %v3445, %v3454
  %v3456 = vmul.f32 %v3443, %v3455
  %v3457 = vsel %vm655, %v3456, 0.0
  %3459 = vset.pattern.permute.xlu0 3
  %3460 = vperm.xlu0 %3459, %v3457
  %v3461 = vpop.permute.xlu0 %3460
  %v3463 = vlaneseq
  %v3464 = vshrl.u32 %v3463, 7
  %v3465 = vsub.s32 3, %v3464
  %v3466 = vrot.slane %v3451, %v3465
  %v3467 = vmul.f32 %v3461, %v3466
  %v3468 = vsub.f32 %v3443, %v3467
  %v3469 = vsel %vm860, %v3466, %v3468
  %v3470 = vmax.f32 %v3469, 1e-12
  %v3471 = vrsqrt.pop %v3470
  %3473 = vset.pattern.permute.xlu0 4
  %3474 = vperm.xlu0 %3473, %v3471
  %v3475 = vpop.permute.xlu0 %3474
  %v3477 = vmul.f32 %v3469, %v3475
  %v3478 = vlaneseq
  %v3479 = vshrl.u32 %v3478, 7
  %v3480 = vsub.s32 4, %v3479
  %v3481 = vrot.slane %v3471, %v3480
  %v3482 = vmul.f32 %v3469, %v3481
  %v3483 = vsel %vm656, %v3482, 0.0
  %3485 = vset.pattern.permute.xlu0 4
  %3486 = vperm.xlu0 %3485, %v3483
  %v3487 = vpop.permute.xlu0 %3486
  %v3489 = vlaneseq
  %v3490 = vshrl.u32 %v3489, 7
  %v3491 = vsub.s32 4, %v3490
  %v3492 = vrot.slane %v3477, %v3491
  %v3493 = vmul.f32 %v3487, %v3492
  %v3494 = vsub.f32 %v3469, %v3493
  %v3495 = vsel %vm888, %v3492, %v3494
  %v3496 = vmax.f32 %v3495, 1e-12
  %v3497 = vrsqrt.pop %v3496
  %3499 = vset.pattern.permute.xlu0 5
  %3500 = vperm.xlu0 %3499, %v3497
  %v3501 = vpop.permute.xlu0 %3500
  %v3503 = vmul.f32 %v3495, %v3501
  %v3504 = vlaneseq
  %v3505 = vshrl.u32 %v3504, 7
  %v3506 = vsub.s32 5, %v3505
  %v3507 = vrot.slane %v3497, %v3506
  %v3508 = vmul.f32 %v3495, %v3507
  %v3509 = vsel %vm657, %v3508, 0.0
  %3511 = vset.pattern.permute.xlu0 5
  %3512 = vperm.xlu0 %3511, %v3509
  %v3513 = vpop.permute.xlu0 %3512
  %v3515 = vlaneseq
  %v3516 = vshrl.u32 %v3515, 7
  %v3517 = vsub.s32 5, %v3516
  %v3518 = vrot.slane %v3503, %v3517
  %v3519 = vmul.f32 %v3513, %v3518
  %v3520 = vsub.f32 %v3495, %v3519
  %v3521 = vsel %vm916, %v3518, %v3520
  %v3522 = vmax.f32 %v3521, 1e-12
  %v3523 = vrsqrt.pop %v3522
  %3525 = vset.pattern.permute.xlu0 6
  %3526 = vperm.xlu0 %3525, %v3523
  %v3527 = vpop.permute.xlu0 %3526
  %v3529 = vmul.f32 %v3521, %v3527
  %v3530 = vlaneseq
  %v3531 = vshrl.u32 %v3530, 7
  %v3532 = vsub.s32 6, %v3531
  %v3533 = vrot.slane %v3523, %v3532
  %v3534 = vmul.f32 %v3521, %v3533
  %v3535 = vsel %vm658, %v3534, 0.0
  %3537 = vset.pattern.permute.xlu0 6
  %3538 = vperm.xlu0 %3537, %v3535
  %v3539 = vpop.permute.xlu0 %3538
  %v3541 = vlaneseq
  %v3542 = vshrl.u32 %v3541, 7
  %v3543 = vsub.s32 6, %v3542
  %v3544 = vrot.slane %v3529, %v3543
  %v3545 = vmul.f32 %v3539, %v3544
  %v3546 = vsub.f32 %v3521, %v3545
  %v3547 = vsel %vm944, %v3544, %v3546
  %v3548 = vmax.f32 %v3547, 1e-12
  %v3549 = vrsqrt.pop %v3548
  %3551 = vset.pattern.permute.xlu0 7
  %3552 = vperm.xlu0 %3551, %v3549
  %v3553 = vpop.permute.xlu0 %3552
  %v3555 = vmul.f32 %v3547, %v3553
  %v3556 = vlaneseq
  %v3557 = vshrl.u32 %v3556, 7
  %v3558 = vsub.s32 7, %v3557
  %v3559 = vrot.slane %v3549, %v3558
  %v3560 = vmul.f32 %v3547, %v3559
  %v3561 = vsel %vm659, %v3560, 0.0
  %3563 = vset.pattern.permute.xlu0 7
  %3564 = vperm.xlu0 %3563, %v3561
  %v3565 = vpop.permute.xlu0 %3564
  %v3567 = vlaneseq
  %v3568 = vshrl.u32 %v3567, 7
  %v3569 = vsub.s32 7, %v3568
  %v3570 = vrot.slane %v3555, %v3569
  %v3571 = vmul.f32 %v3565, %v3570
  %v3572 = vsub.f32 %v3547, %v3571
  %v3573 = vsel %vm972, %v3570, %v3572
  %v3574 = vsel %vm668, %v606, %v647
  %v3576 = vsel %vm26, %v3574, 0
  %3578 = vmatprep.subr.mxu0 0.0
  %3579 = vmatpush1.xpose.msra.mxu0 0.0
  %3580 = vmatprep.subr.mxu0 0.0
  %3581 = vmatpush1.xpose.msra.mxu0 0.0
  %3582 = vmatprep.subr.mxu0 0.0
  %3583 = vmatpush1.xpose.msra.mxu0 0.0
  %3584 = vmatprep.subr.mxu0 0.0
  %3585 = vmatpush1.xpose.msra.mxu0 0.0
  %3586 = vmatprep.subr.mxu0 0.0
  %3587 = vmatpush1.xpose.msra.mxu0 0.0
  %3588 = vmatprep.subr.mxu0 0.0
  %3589 = vmatpush1.xpose.msra.mxu0 0.0
  %3590 = vmatprep.subr.mxu0 0.0
  %3591 = vmatpush1.xpose.msra.mxu0 0.0
  %3592 = vmatprep.subr.mxu0 0.0
  %3593 = vmatpush1.xpose.msra.mxu0 0.0
  %3594 = vmatprep.subr.mxu0 0.0
  %3595 = vmatpush1.xpose.msra.mxu0 0.0
  %3596 = vmatprep.subr.mxu0 0.0
  %3597 = vmatpush1.xpose.msra.mxu0 0.0
  %3598 = vmatprep.subr.mxu0 0.0
  %3599 = vmatpush1.xpose.msra.mxu0 0.0
  %3600 = vmatprep.subr.mxu0 0.0
  %3601 = vmatpush1.xpose.msra.mxu0 0.0
  %3602 = vmatprep.subr.mxu0 0.0
  %3603 = vmatpush1.xpose.msra.mxu0 0.0
  %3604 = vmatprep.subr.mxu0 0.0
  %3605 = vmatpush1.xpose.msra.mxu0 0.0
  %3606 = vmatprep.subr.mxu0 0.0
  %3607 = vmatpush1.xpose.msra.mxu0 0.0
  %3608 = vmatprep.subr.mxu0 0.0
  %3609 = vmatpush1.xpose.msra.mxu0 %v3576
  %3610 = vmatprep.subr.mxu0 0.0
  %3611 = vmatpush2.xpose.msra.mxu0 0.0
  %3612 = vmatprep.subr.mxu0 0.0
  %3613 = vmatpush2.xpose.msra.mxu0 0.0
  %3614 = vmatprep.subr.mxu0 0.0
  %3615 = vmatpush2.xpose.msra.mxu0 0.0
  %3616 = vmatprep.subr.mxu0 0.0
  %3617 = vmatpush2.xpose.msra.mxu0 0.0
  %3618 = vmatprep.subr.mxu0 0.0
  %3619 = vmatpush2.xpose.msra.mxu0 0.0
  %3620 = vmatprep.subr.mxu0 0.0
  %3621 = vmatpush2.xpose.msra.mxu0 0.0
  %3622 = vmatprep.subr.mxu0 0.0
  %3623 = vmatpush2.xpose.msra.mxu0 0.0
  %3624 = vmatprep.subr.mxu0 0.0
  %3625 = vmatpush2.xpose.msra.mxu0 0.0
  %3626 = vmatprep.subr.mxu0 0.0
  %3627 = vmatpush2.xpose.msra.mxu0 0.0
  %3628 = vmatprep.subr.mxu0 0.0
  %3629 = vmatpush2.xpose.msra.mxu0 0.0
  %3630 = vmatprep.subr.mxu0 0.0
  %3631 = vmatpush2.xpose.msra.mxu0 0.0
  %3632 = vmatprep.subr.mxu0 0.0
  %3633 = vmatpush2.xpose.msra.mxu0 0.0
  %3634 = vmatprep.subr.mxu0 0.0
  %3635 = vmatpush2.xpose.msra.mxu0 0.0
  %3636 = vmatprep.subr.mxu0 0.0
  %3637 = vmatpush2.xpose.msra.mxu0 0.0
  %3638 = vmatprep.subr.mxu0 0.0
  %3639 = vmatpush2.xpose.msra.mxu0 0.0
  %3640 = vmatprep.subr.mxu0 0.0
  %3641 = vmatpush2.xpose.msra.mxu0 0.0
  %3642 = vmatprep.mubr.f32.mxu0 0.0
  %3643 = vmatmul.mubr.f32.gmra.mxu0 %v3576
  %v3644 = vpop.f32.mrf.mxu0
  %v3645 = vadd.f32 0.0, %v3644
  %v3646 = vpop.f32.mrf.mxu0
  %3647 = vdwg.mxu0
  %3649 = vrot.lane.b32.xlu0 %v647, 120
  %v3650 = vpop.permute.xlu0 %3649
  %3652 = vrot.lane.b32.xlu0 %v3573, 112
  %v3653 = vpop.permute.xlu0 %3652
  %v3654 = vsel %vm668, %v3650, 0
  %v3656 = vsel %vm668, %v3653, 0
  %3658 = vmatprep.subr.mxu0 0.0
  %3659 = vmatpush1.xpose.msra.mxu0 0.0
  %3660 = vmatprep.subr.mxu0 0.0
  %3661 = vmatpush1.xpose.msra.mxu0 0.0
  %3662 = vmatprep.subr.mxu0 0.0
  %3663 = vmatpush1.xpose.msra.mxu0 0.0
  %3664 = vmatprep.subr.mxu0 0.0
  %3665 = vmatpush1.xpose.msra.mxu0 0.0
  %3666 = vmatprep.subr.mxu0 0.0
  %3667 = vmatpush1.xpose.msra.mxu0 0.0
  %3668 = vmatprep.subr.mxu0 0.0
  %3669 = vmatpush1.xpose.msra.mxu0 0.0
  %3670 = vmatprep.subr.mxu0 0.0
  %3671 = vmatpush1.xpose.msra.mxu0 0.0
  %3672 = vmatprep.subr.mxu0 0.0
  %3673 = vmatpush1.xpose.msra.mxu0 0.0
  %3674 = vmatprep.subr.mxu0 0.0
  %3675 = vmatpush1.xpose.msra.mxu0 0.0
  %3676 = vmatprep.subr.mxu0 0.0
  %3677 = vmatpush1.xpose.msra.mxu0 0.0
  %3678 = vmatprep.subr.mxu0 0.0
  %3679 = vmatpush1.xpose.msra.mxu0 0.0
  %3680 = vmatprep.subr.mxu0 0.0
  %3681 = vmatpush1.xpose.msra.mxu0 0.0
  %3682 = vmatprep.subr.mxu0 0.0
  %3683 = vmatpush1.xpose.msra.mxu0 0.0
  %3684 = vmatprep.subr.mxu0 0.0
  %3685 = vmatpush1.xpose.msra.mxu0 0.0
  %3686 = vmatprep.subr.mxu0 0.0
  %3687 = vmatpush1.xpose.msra.mxu0 0.0
  %3688 = vmatprep.subr.mxu0 0.0
  %3689 = vmatpush1.xpose.msra.mxu0 %v3656
  %3690 = vmatprep.subr.mxu0 0.0
  %3691 = vmatpush2.xpose.msra.mxu0 0.0
  %3692 = vmatprep.subr.mxu0 0.0
  %3693 = vmatpush2.xpose.msra.mxu0 0.0
  %3694 = vmatprep.subr.mxu0 0.0
  %3695 = vmatpush2.xpose.msra.mxu0 0.0
  %3696 = vmatprep.subr.mxu0 0.0
  %3697 = vmatpush2.xpose.msra.mxu0 0.0
  %3698 = vmatprep.subr.mxu0 0.0
  %3699 = vmatpush2.xpose.msra.mxu0 0.0
  %3700 = vmatprep.subr.mxu0 0.0
  %3701 = vmatpush2.xpose.msra.mxu0 0.0
  %3702 = vmatprep.subr.mxu0 0.0
  %3703 = vmatpush2.xpose.msra.mxu0 0.0
  %3704 = vmatprep.subr.mxu0 0.0
  %3705 = vmatpush2.xpose.msra.mxu0 0.0
  %3706 = vmatprep.subr.mxu0 0.0
  %3707 = vmatpush2.xpose.msra.mxu0 0.0
  %3708 = vmatprep.subr.mxu0 0.0
  %3709 = vmatpush2.xpose.msra.mxu0 0.0
  %3710 = vmatprep.subr.mxu0 0.0
  %3711 = vmatpush2.xpose.msra.mxu0 0.0
  %3712 = vmatprep.subr.mxu0 0.0
  %3713 = vmatpush2.xpose.msra.mxu0 0.0
  %3714 = vmatprep.subr.mxu0 0.0
  %3715 = vmatpush2.xpose.msra.mxu0 0.0
  %3716 = vmatprep.subr.mxu0 0.0
  %3717 = vmatpush2.xpose.msra.mxu0 0.0
  %3718 = vmatprep.subr.mxu0 0.0
  %3719 = vmatpush2.xpose.msra.mxu0 0.0
  %3720 = vmatprep.subr.mxu0 0.0
  %3721 = vmatpush2.xpose.msra.mxu0 0.0
  %3722 = vmatprep.mubr.f32.mxu0 0.0
  %3723 = vmatmul.mubr.f32.gmra.mxu0 %v3654
  %v3724 = vpop.f32.mrf.mxu0
  %v3725 = vadd.f32 0.0, %v3724
  %v3726 = vpop.f32.mrf.mxu0
  %3727 = vdwg.mxu0
  %v3729 = vsel %vm668, %v3725, 0
  %3731 = vmatprep.subr.mxu0 0.0
  %3732 = vmatpush1.xpose.msra.mxu0 0.0
  %3733 = vmatprep.subr.mxu0 0.0
  %3734 = vmatpush1.xpose.msra.mxu0 0.0
  %3735 = vmatprep.subr.mxu0 0.0
  %3736 = vmatpush1.xpose.msra.mxu0 0.0
  %3737 = vmatprep.subr.mxu0 0.0
  %3738 = vmatpush1.xpose.msra.mxu0 0.0
  %3739 = vmatprep.subr.mxu0 0.0
  %3740 = vmatpush1.xpose.msra.mxu0 0.0
  %3741 = vmatprep.subr.mxu0 0.0
  %3742 = vmatpush1.xpose.msra.mxu0 0.0
  %3743 = vmatprep.subr.mxu0 0.0
  %3744 = vmatpush1.xpose.msra.mxu0 0.0
  %3745 = vmatprep.subr.mxu0 0.0
  %3746 = vmatpush1.xpose.msra.mxu0 0.0
  %3747 = vmatprep.subr.mxu0 0.0
  %3748 = vmatpush1.xpose.msra.mxu0 0.0
  %3749 = vmatprep.subr.mxu0 0.0
  %3750 = vmatpush1.xpose.msra.mxu0 0.0
  %3751 = vmatprep.subr.mxu0 0.0
  %3752 = vmatpush1.xpose.msra.mxu0 0.0
  %3753 = vmatprep.subr.mxu0 0.0
  %3754 = vmatpush1.xpose.msra.mxu0 0.0
  %3755 = vmatprep.subr.mxu0 0.0
  %3756 = vmatpush1.xpose.msra.mxu0 0.0
  %3757 = vmatprep.subr.mxu0 0.0
  %3758 = vmatpush1.xpose.msra.mxu0 0.0
  %3759 = vmatprep.subr.mxu0 0.0
  %3760 = vmatpush1.xpose.msra.mxu0 0.0
  %3761 = vmatprep.subr.mxu0 0.0
  %3762 = vmatpush1.xpose.msra.mxu0 %v3729
  %3763 = vmatprep.subr.mxu0 0.0
  %3764 = vmatpush2.xpose.msra.mxu0 0.0
  %3765 = vmatprep.subr.mxu0 0.0
  %3766 = vmatpush2.xpose.msra.mxu0 0.0
  %3767 = vmatprep.subr.mxu0 0.0
  %3768 = vmatpush2.xpose.msra.mxu0 0.0
  %3769 = vmatprep.subr.mxu0 0.0
  %3770 = vmatpush2.xpose.msra.mxu0 0.0
  %3771 = vmatprep.subr.mxu0 0.0
  %3772 = vmatpush2.xpose.msra.mxu0 0.0
  %3773 = vmatprep.subr.mxu0 0.0
  %3774 = vmatpush2.xpose.msra.mxu0 0.0
  %3775 = vmatprep.subr.mxu0 0.0
  %3776 = vmatpush2.xpose.msra.mxu0 0.0
  %3777 = vmatprep.subr.mxu0 0.0
  %3778 = vmatpush2.xpose.msra.mxu0 0.0
  %3779 = vmatprep.subr.mxu0 0.0
  %3780 = vmatpush2.xpose.msra.mxu0 0.0
  %3781 = vmatprep.subr.mxu0 0.0
  %3782 = vmatpush2.xpose.msra.mxu0 0.0
  %3783 = vmatprep.subr.mxu0 0.0
  %3784 = vmatpush2.xpose.msra.mxu0 0.0
  %3785 = vmatprep.subr.mxu0 0.0
  %3786 = vmatpush2.xpose.msra.mxu0 0.0
  %3787 = vmatprep.subr.mxu0 0.0
  %3788 = vmatpush2.xpose.msra.mxu0 0.0
  %3789 = vmatprep.subr.mxu0 0.0
  %3790 = vmatpush2.xpose.msra.mxu0 0.0
  %3791 = vmatprep.subr.mxu0 0.0
  %3792 = vmatpush2.xpose.msra.mxu0 0.0
  %3793 = vmatprep.subr.mxu0 0.0
  %3794 = vmatpush2.xpose.msra.mxu0 0.0
  %3795 = vmatprep.mubr.f32.mxu0 0.0
  %3796 = vmatmul.mubr.f32.gmra.mxu0 %v3729
  %v3797 = vpop.f32.mrf.mxu0
  %v3798 = vadd.f32 0.0, %v3797
  %v3799 = vpop.f32.mrf.mxu0
  %3800 = vdwg.mxu0
  %3801 = vrot.lane.b32.xlu0 %v3573, 120
  %v3802 = vpop.permute.xlu0 %3801
  %3804 = vmatprep.subr.mxu0 0.0
  %3805 = vmatpush1.msra.mxu0 0.0
  %3806 = vmatprep.subr.mxu0 0.0
  %3807 = vmatpush1.msra.mxu0 0.0
  %3808 = vmatprep.subr.mxu0 0.0
  %3809 = vmatpush1.msra.mxu0 0.0
  %3810 = vmatprep.subr.mxu0 0.0
  %3811 = vmatpush1.msra.mxu0 0.0
  %3812 = vmatprep.subr.mxu0 0.0
  %3813 = vmatpush1.msra.mxu0 0.0
  %3814 = vmatprep.subr.mxu0 0.0
  %3815 = vmatpush1.msra.mxu0 0.0
  %3816 = vmatprep.subr.mxu0 0.0
  %3817 = vmatpush1.msra.mxu0 0.0
  %3818 = vmatprep.subr.mxu0 0.0
  %3819 = vmatpush1.msra.mxu0 0.0
  %3820 = vmatprep.subr.mxu0 0.0
  %3821 = vmatpush1.msra.mxu0 0.0
  %3822 = vmatprep.subr.mxu0 0.0
  %3823 = vmatpush1.msra.mxu0 0.0
  %3824 = vmatprep.subr.mxu0 0.0
  %3825 = vmatpush1.msra.mxu0 0.0
  %3826 = vmatprep.subr.mxu0 0.0
  %3827 = vmatpush1.msra.mxu0 0.0
  %3828 = vmatprep.subr.mxu0 0.0
  %3829 = vmatpush1.msra.mxu0 0.0
  %3830 = vmatprep.subr.mxu0 0.0
  %3831 = vmatpush1.msra.mxu0 0.0
  %3832 = vmatprep.subr.mxu0 0.0
  %3833 = vmatpush1.msra.mxu0 0.0
  %3834 = vmatprep.subr.mxu0 0.0
  %3835 = vmatpush1.msra.mxu0 %v3802
  %3836 = vmatprep.subr.mxu0 0.0
  %3837 = vmatpush2.msra.mxu0 0.0
  %3838 = vmatprep.subr.mxu0 0.0
  %3839 = vmatpush2.msra.mxu0 0.0
  %3840 = vmatprep.subr.mxu0 0.0
  %3841 = vmatpush2.msra.mxu0 0.0
  %3842 = vmatprep.subr.mxu0 0.0
  %3843 = vmatpush2.msra.mxu0 0.0
  %3844 = vmatprep.subr.mxu0 0.0
  %3845 = vmatpush2.msra.mxu0 0.0
  %3846 = vmatprep.subr.mxu0 0.0
  %3847 = vmatpush2.msra.mxu0 0.0
  %3848 = vmatprep.subr.mxu0 0.0
  %3849 = vmatpush2.msra.mxu0 0.0
  %3850 = vmatprep.subr.mxu0 0.0
  %3851 = vmatpush2.msra.mxu0 0.0
  %3852 = vmatprep.subr.mxu0 0.0
  %3853 = vmatpush2.msra.mxu0 0.0
  %3854 = vmatprep.subr.mxu0 0.0
  %3855 = vmatpush2.msra.mxu0 0.0
  %3856 = vmatprep.subr.mxu0 0.0
  %3857 = vmatpush2.msra.mxu0 0.0
  %3858 = vmatprep.subr.mxu0 0.0
  %3859 = vmatpush2.msra.mxu0 0.0
  %3860 = vmatprep.subr.mxu0 0.0
  %3861 = vmatpush2.msra.mxu0 0.0
  %3862 = vmatprep.subr.mxu0 0.0
  %3863 = vmatpush2.msra.mxu0 0.0
  %3864 = vmatprep.subr.mxu0 0.0
  %3865 = vmatpush2.msra.mxu0 0.0
  %3866 = vmatprep.subr.mxu0 0.0
  %3867 = vmatpush2.msra.mxu0 0.0
  %3868 = vmatprep.mubr.f32.mxu0 0.0
  %3869 = vmatmul.mubr.f32.gmra.mxu0 %v3729
  %v3870 = vpop.f32.mrf.mxu0
  %v3871 = vadd.f32 0.0, %v3870
  %v3872 = vpop.f32.mrf.mxu0
  %3873 = vdwg.mxu0
  %v3874 = vsub.f32 %v3645, %v3798
  %v3875 = vadd.f32 %v3874, %v651
  %v3876 = vsub.f32 %v650, %v3871
  %3877 = vrot.lane.b32.xlu0 %v606, 8
  %v3878 = vpop.permute.xlu0 %3877
  %v3880 = vsel %vm668, %v3876, %v3878
  %3882 = vrot.lane.b32.xlu0 %v3880, 8
  %v3883 = vpop.permute.xlu0 %3882
  %v3885 = vsel %vm668, %v3875, %v3883
  %v3886 = vmax.f32 %v3885, 1e-12
  %v3887 = vrsqrt.pop %v3886
  %3889 = vset.pattern.permute.xlu0 0
  %3890 = vperm.xlu0 %3889, %v3887
  %v3891 = vpop.permute.xlu0 %3890
  %v3893 = vmul.f32 %v3885, %v3891
  %v3894 = vlaneseq
  %v3895 = vshrl.u32 %v3894, 7
  %v3896 = vsub.s32 0, %v3895
  %v3897 = vrot.slane %v3887, %v3896
  %v3898 = vmul.f32 %v3885, %v3897
  %v3899 = vsel %vm652, %v3898, 0.0
  %3901 = vset.pattern.permute.xlu0 0
  %3902 = vperm.xlu0 %3901, %v3899
  %v3903 = vpop.permute.xlu0 %3902
  %v3905 = vlaneseq
  %v3906 = vshrl.u32 %v3905, 7
  %v3907 = vsub.s32 0, %v3906
  %v3908 = vrot.slane %v3893, %v3907
  %v3909 = vmul.f32 %v3903, %v3908
  %v3910 = vsub.f32 %v3885, %v3909
  %v3911 = vsel %vm776, %v3908, %v3910
  %v3912 = vmax.f32 %v3911, 1e-12
  %v3913 = vrsqrt.pop %v3912
  %3915 = vset.pattern.permute.xlu0 1
  %3916 = vperm.xlu0 %3915, %v3913
  %v3917 = vpop.permute.xlu0 %3916
  %v3919 = vmul.f32 %v3911, %v3917
  %v3920 = vlaneseq
  %v3921 = vshrl.u32 %v3920, 7
  %v3922 = vsub.s32 1, %v3921
  %v3923 = vrot.slane %v3913, %v3922
  %v3924 = vmul.f32 %v3911, %v3923
  %v3925 = vsel %vm653, %v3924, 0.0
  %3927 = vset.pattern.permute.xlu0 1
  %3928 = vperm.xlu0 %3927, %v3925
  %v3929 = vpop.permute.xlu0 %3928
  %v3931 = vlaneseq
  %v3932 = vshrl.u32 %v3931, 7
  %v3933 = vsub.s32 1, %v3932
  %v3934 = vrot.slane %v3919, %v3933
  %v3935 = vmul.f32 %v3929, %v3934
  %v3936 = vsub.f32 %v3911, %v3935
  %v3937 = vsel %vm804, %v3934, %v3936
  %v3938 = vmax.f32 %v3937, 1e-12
  %v3939 = vrsqrt.pop %v3938
  %3941 = vset.pattern.permute.xlu0 2
  %3942 = vperm.xlu0 %3941, %v3939
  %v3943 = vpop.permute.xlu0 %3942
  %v3945 = vmul.f32 %v3937, %v3943
  %v3946 = vlaneseq
  %v3947 = vshrl.u32 %v3946, 7
  %v3948 = vsub.s32 2, %v3947
  %v3949 = vrot.slane %v3939, %v3948
  %v3950 = vmul.f32 %v3937, %v3949
  %v3951 = vsel %vm654, %v3950, 0.0
  %3953 = vset.pattern.permute.xlu0 2
  %3954 = vperm.xlu0 %3953, %v3951
  %v3955 = vpop.permute.xlu0 %3954
  %v3957 = vlaneseq
  %v3958 = vshrl.u32 %v3957, 7
  %v3959 = vsub.s32 2, %v3958
  %v3960 = vrot.slane %v3945, %v3959
  %v3961 = vmul.f32 %v3955, %v3960
  %v3962 = vsub.f32 %v3937, %v3961
  %v3963 = vsel %vm832, %v3960, %v3962
  %v3964 = vmax.f32 %v3963, 1e-12
  %v3965 = vrsqrt.pop %v3964
  %3967 = vset.pattern.permute.xlu0 3
  %3968 = vperm.xlu0 %3967, %v3965
  %v3969 = vpop.permute.xlu0 %3968
  %v3971 = vmul.f32 %v3963, %v3969
  %v3972 = vlaneseq
  %v3973 = vshrl.u32 %v3972, 7
  %v3974 = vsub.s32 3, %v3973
  %v3975 = vrot.slane %v3965, %v3974
  %v3976 = vmul.f32 %v3963, %v3975
  %v3977 = vsel %vm655, %v3976, 0.0
  %3979 = vset.pattern.permute.xlu0 3
  %3980 = vperm.xlu0 %3979, %v3977
  %v3981 = vpop.permute.xlu0 %3980
  %v3983 = vlaneseq
  %v3984 = vshrl.u32 %v3983, 7
  %v3985 = vsub.s32 3, %v3984
  %v3986 = vrot.slane %v3971, %v3985
  %v3987 = vmul.f32 %v3981, %v3986
  %v3988 = vsub.f32 %v3963, %v3987
  %v3989 = vsel %vm860, %v3986, %v3988
  %v3990 = vmax.f32 %v3989, 1e-12
  %v3991 = vrsqrt.pop %v3990
  %3993 = vset.pattern.permute.xlu0 4
  %3994 = vperm.xlu0 %3993, %v3991
  %v3995 = vpop.permute.xlu0 %3994
  %v3997 = vmul.f32 %v3989, %v3995
  %v3998 = vlaneseq
  %v3999 = vshrl.u32 %v3998, 7
  %v4000 = vsub.s32 4, %v3999
  %v4001 = vrot.slane %v3991, %v4000
  %v4002 = vmul.f32 %v3989, %v4001
  %v4003 = vsel %vm656, %v4002, 0.0
  %4005 = vset.pattern.permute.xlu0 4
  %4006 = vperm.xlu0 %4005, %v4003
  %v4007 = vpop.permute.xlu0 %4006
  %v4009 = vlaneseq
  %v4010 = vshrl.u32 %v4009, 7
  %v4011 = vsub.s32 4, %v4010
  %v4012 = vrot.slane %v3997, %v4011
  %v4013 = vmul.f32 %v4007, %v4012
  %v4014 = vsub.f32 %v3989, %v4013
  %v4015 = vsel %vm888, %v4012, %v4014
  %v4016 = vmax.f32 %v4015, 1e-12
  %v4017 = vrsqrt.pop %v4016
  %4019 = vset.pattern.permute.xlu0 5
  %4020 = vperm.xlu0 %4019, %v4017
  %v4021 = vpop.permute.xlu0 %4020
  %v4023 = vmul.f32 %v4015, %v4021
  %v4024 = vlaneseq
  %v4025 = vshrl.u32 %v4024, 7
  %v4026 = vsub.s32 5, %v4025
  %v4027 = vrot.slane %v4017, %v4026
  %v4028 = vmul.f32 %v4015, %v4027
  %v4029 = vsel %vm657, %v4028, 0.0
  %4031 = vset.pattern.permute.xlu0 5
  %4032 = vperm.xlu0 %4031, %v4029
  %v4033 = vpop.permute.xlu0 %4032
  %v4035 = vlaneseq
  %v4036 = vshrl.u32 %v4035, 7
  %v4037 = vsub.s32 5, %v4036
  %v4038 = vrot.slane %v4023, %v4037
  %v4039 = vmul.f32 %v4033, %v4038
  %v4040 = vsub.f32 %v4015, %v4039
  %v4041 = vsel %vm916, %v4038, %v4040
  %v4042 = vmax.f32 %v4041, 1e-12
  %v4043 = vrsqrt.pop %v4042
  %4045 = vset.pattern.permute.xlu0 6
  %4046 = vperm.xlu0 %4045, %v4043
  %v4047 = vpop.permute.xlu0 %4046
  %v4049 = vmul.f32 %v4041, %v4047
  %v4050 = vlaneseq
  %v4051 = vshrl.u32 %v4050, 7
  %v4052 = vsub.s32 6, %v4051
  %v4053 = vrot.slane %v4043, %v4052
  %v4054 = vmul.f32 %v4041, %v4053
  %v4055 = vsel %vm658, %v4054, 0.0
  %4057 = vset.pattern.permute.xlu0 6
  %4058 = vperm.xlu0 %4057, %v4055
  %v4059 = vpop.permute.xlu0 %4058
  %v4061 = vlaneseq
  %v4062 = vshrl.u32 %v4061, 7
  %v4063 = vsub.s32 6, %v4062
  %v4064 = vrot.slane %v4049, %v4063
  %v4065 = vmul.f32 %v4059, %v4064
  %v4066 = vsub.f32 %v4041, %v4065
  %v4067 = vsel %vm944, %v4064, %v4066
  %v4068 = vmax.f32 %v4067, 1e-12
  %v4069 = vrsqrt.pop %v4068
  %4071 = vset.pattern.permute.xlu0 7
  %4072 = vperm.xlu0 %4071, %v4069
  %v4073 = vpop.permute.xlu0 %4072
  %v4075 = vmul.f32 %v4067, %v4073
  %v4076 = vlaneseq
  %v4077 = vshrl.u32 %v4076, 7
  %v4078 = vsub.s32 7, %v4077
  %v4079 = vrot.slane %v4069, %v4078
  %v4080 = vmul.f32 %v4067, %v4079
  %v4081 = vsel %vm659, %v4080, 0.0
  %4083 = vset.pattern.permute.xlu0 7
  %4084 = vperm.xlu0 %4083, %v4081
  %v4085 = vpop.permute.xlu0 %4084
  %v4087 = vlaneseq
  %v4088 = vshrl.u32 %v4087, 7
  %v4089 = vsub.s32 7, %v4088
  %v4090 = vrot.slane %v4075, %v4089
  %v4091 = vmul.f32 %v4085, %v4090
  %v4092 = vsub.f32 %v4067, %v4091
  %v4093 = vsel %vm972, %v4090, %v4092
  %v4094 = vsel %vm668, %v611, %v648
  %v4096 = vsel %vm26, %v4094, 0
  %4098 = vmatprep.subr.mxu0 0.0
  %4099 = vmatpush1.xpose.msra.mxu0 0.0
  %4100 = vmatprep.subr.mxu0 0.0
  %4101 = vmatpush1.xpose.msra.mxu0 0.0
  %4102 = vmatprep.subr.mxu0 0.0
  %4103 = vmatpush1.xpose.msra.mxu0 0.0
  %4104 = vmatprep.subr.mxu0 0.0
  %4105 = vmatpush1.xpose.msra.mxu0 0.0
  %4106 = vmatprep.subr.mxu0 0.0
  %4107 = vmatpush1.xpose.msra.mxu0 0.0
  %4108 = vmatprep.subr.mxu0 0.0
  %4109 = vmatpush1.xpose.msra.mxu0 0.0
  %4110 = vmatprep.subr.mxu0 0.0
  %4111 = vmatpush1.xpose.msra.mxu0 0.0
  %4112 = vmatprep.subr.mxu0 0.0
  %4113 = vmatpush1.xpose.msra.mxu0 0.0
  %4114 = vmatprep.subr.mxu0 0.0
  %4115 = vmatpush1.xpose.msra.mxu0 0.0
  %4116 = vmatprep.subr.mxu0 0.0
  %4117 = vmatpush1.xpose.msra.mxu0 0.0
  %4118 = vmatprep.subr.mxu0 0.0
  %4119 = vmatpush1.xpose.msra.mxu0 0.0
  %4120 = vmatprep.subr.mxu0 0.0
  %4121 = vmatpush1.xpose.msra.mxu0 0.0
  %4122 = vmatprep.subr.mxu0 0.0
  %4123 = vmatpush1.xpose.msra.mxu0 0.0
  %4124 = vmatprep.subr.mxu0 0.0
  %4125 = vmatpush1.xpose.msra.mxu0 0.0
  %4126 = vmatprep.subr.mxu0 0.0
  %4127 = vmatpush1.xpose.msra.mxu0 0.0
  %4128 = vmatprep.subr.mxu0 0.0
  %4129 = vmatpush1.xpose.msra.mxu0 %v4096
  %4130 = vmatprep.subr.mxu0 0.0
  %4131 = vmatpush2.xpose.msra.mxu0 0.0
  %4132 = vmatprep.subr.mxu0 0.0
  %4133 = vmatpush2.xpose.msra.mxu0 0.0
  %4134 = vmatprep.subr.mxu0 0.0
  %4135 = vmatpush2.xpose.msra.mxu0 0.0
  %4136 = vmatprep.subr.mxu0 0.0
  %4137 = vmatpush2.xpose.msra.mxu0 0.0
  %4138 = vmatprep.subr.mxu0 0.0
  %4139 = vmatpush2.xpose.msra.mxu0 0.0
  %4140 = vmatprep.subr.mxu0 0.0
  %4141 = vmatpush2.xpose.msra.mxu0 0.0
  %4142 = vmatprep.subr.mxu0 0.0
  %4143 = vmatpush2.xpose.msra.mxu0 0.0
  %4144 = vmatprep.subr.mxu0 0.0
  %4145 = vmatpush2.xpose.msra.mxu0 0.0
  %4146 = vmatprep.subr.mxu0 0.0
  %4147 = vmatpush2.xpose.msra.mxu0 0.0
  %4148 = vmatprep.subr.mxu0 0.0
  %4149 = vmatpush2.xpose.msra.mxu0 0.0
  %4150 = vmatprep.subr.mxu0 0.0
  %4151 = vmatpush2.xpose.msra.mxu0 0.0
  %4152 = vmatprep.subr.mxu0 0.0
  %4153 = vmatpush2.xpose.msra.mxu0 0.0
  %4154 = vmatprep.subr.mxu0 0.0
  %4155 = vmatpush2.xpose.msra.mxu0 0.0
  %4156 = vmatprep.subr.mxu0 0.0
  %4157 = vmatpush2.xpose.msra.mxu0 0.0
  %4158 = vmatprep.subr.mxu0 0.0
  %4159 = vmatpush2.xpose.msra.mxu0 0.0
  %4160 = vmatprep.subr.mxu0 0.0
  %4161 = vmatpush2.xpose.msra.mxu0 0.0
  %4162 = vmatprep.mubr.f32.mxu0 0.0
  %4163 = vmatmul.mubr.f32.gmra.mxu0 %v4096
  %v4164 = vpop.f32.mrf.mxu0
  %v4165 = vadd.f32 0.0, %v4164
  %v4166 = vpop.f32.mrf.mxu0
  %4167 = vdwg.mxu0
  %4169 = vrot.lane.b32.xlu0 %v648, 120
  %v4170 = vpop.permute.xlu0 %4169
  %4172 = vrot.lane.b32.xlu0 %v4093, 112
  %v4173 = vpop.permute.xlu0 %4172
  %v4174 = vsel %vm668, %v4170, 0
  %v4176 = vsel %vm668, %v4173, 0
  %4178 = vmatprep.subr.mxu0 0.0
  %4179 = vmatpush1.xpose.msra.mxu0 0.0
  %4180 = vmatprep.subr.mxu0 0.0
  %4181 = vmatpush1.xpose.msra.mxu0 0.0
  %4182 = vmatprep.subr.mxu0 0.0
  %4183 = vmatpush1.xpose.msra.mxu0 0.0
  %4184 = vmatprep.subr.mxu0 0.0
  %4185 = vmatpush1.xpose.msra.mxu0 0.0
  %4186 = vmatprep.subr.mxu0 0.0
  %4187 = vmatpush1.xpose.msra.mxu0 0.0
  %4188 = vmatprep.subr.mxu0 0.0
  %4189 = vmatpush1.xpose.msra.mxu0 0.0
  %4190 = vmatprep.subr.mxu0 0.0
  %4191 = vmatpush1.xpose.msra.mxu0 0.0
  %4192 = vmatprep.subr.mxu0 0.0
  %4193 = vmatpush1.xpose.msra.mxu0 0.0
  %4194 = vmatprep.subr.mxu0 0.0
  %4195 = vmatpush1.xpose.msra.mxu0 0.0
  %4196 = vmatprep.subr.mxu0 0.0
  %4197 = vmatpush1.xpose.msra.mxu0 0.0
  %4198 = vmatprep.subr.mxu0 0.0
  %4199 = vmatpush1.xpose.msra.mxu0 0.0
  %4200 = vmatprep.subr.mxu0 0.0
  %4201 = vmatpush1.xpose.msra.mxu0 0.0
  %4202 = vmatprep.subr.mxu0 0.0
  %4203 = vmatpush1.xpose.msra.mxu0 0.0
  %4204 = vmatprep.subr.mxu0 0.0
  %4205 = vmatpush1.xpose.msra.mxu0 0.0
  %4206 = vmatprep.subr.mxu0 0.0
  %4207 = vmatpush1.xpose.msra.mxu0 0.0
  %4208 = vmatprep.subr.mxu0 0.0
  %4209 = vmatpush1.xpose.msra.mxu0 %v4176
  %4210 = vmatprep.subr.mxu0 0.0
  %4211 = vmatpush2.xpose.msra.mxu0 0.0
  %4212 = vmatprep.subr.mxu0 0.0
  %4213 = vmatpush2.xpose.msra.mxu0 0.0
  %4214 = vmatprep.subr.mxu0 0.0
  %4215 = vmatpush2.xpose.msra.mxu0 0.0
  %4216 = vmatprep.subr.mxu0 0.0
  %4217 = vmatpush2.xpose.msra.mxu0 0.0
  %4218 = vmatprep.subr.mxu0 0.0
  %4219 = vmatpush2.xpose.msra.mxu0 0.0
  %4220 = vmatprep.subr.mxu0 0.0
  %4221 = vmatpush2.xpose.msra.mxu0 0.0
  %4222 = vmatprep.subr.mxu0 0.0
  %4223 = vmatpush2.xpose.msra.mxu0 0.0
  %4224 = vmatprep.subr.mxu0 0.0
  %4225 = vmatpush2.xpose.msra.mxu0 0.0
  %4226 = vmatprep.subr.mxu0 0.0
  %4227 = vmatpush2.xpose.msra.mxu0 0.0
  %4228 = vmatprep.subr.mxu0 0.0
  %4229 = vmatpush2.xpose.msra.mxu0 0.0
  %4230 = vmatprep.subr.mxu0 0.0
  %4231 = vmatpush2.xpose.msra.mxu0 0.0
  %4232 = vmatprep.subr.mxu0 0.0
  %4233 = vmatpush2.xpose.msra.mxu0 0.0
  %4234 = vmatprep.subr.mxu0 0.0
  %4235 = vmatpush2.xpose.msra.mxu0 0.0
  %4236 = vmatprep.subr.mxu0 0.0
  %4237 = vmatpush2.xpose.msra.mxu0 0.0
  %4238 = vmatprep.subr.mxu0 0.0
  %4239 = vmatpush2.xpose.msra.mxu0 0.0
  %4240 = vmatprep.subr.mxu0 0.0
  %4241 = vmatpush2.xpose.msra.mxu0 0.0
  %4242 = vmatprep.mubr.f32.mxu0 0.0
  %4243 = vmatmul.mubr.f32.gmra.mxu0 %v4174
  %v4244 = vpop.f32.mrf.mxu0
  %v4245 = vadd.f32 0.0, %v4244
  %v4246 = vpop.f32.mrf.mxu0
  %4247 = vdwg.mxu0
  %v4249 = vsel %vm668, %v4245, 0
  %4251 = vmatprep.subr.mxu0 0.0
  %4252 = vmatpush1.xpose.msra.mxu0 0.0
  %4253 = vmatprep.subr.mxu0 0.0
  %4254 = vmatpush1.xpose.msra.mxu0 0.0
  %4255 = vmatprep.subr.mxu0 0.0
  %4256 = vmatpush1.xpose.msra.mxu0 0.0
  %4257 = vmatprep.subr.mxu0 0.0
  %4258 = vmatpush1.xpose.msra.mxu0 0.0
  %4259 = vmatprep.subr.mxu0 0.0
  %4260 = vmatpush1.xpose.msra.mxu0 0.0
  %4261 = vmatprep.subr.mxu0 0.0
  %4262 = vmatpush1.xpose.msra.mxu0 0.0
  %4263 = vmatprep.subr.mxu0 0.0
  %4264 = vmatpush1.xpose.msra.mxu0 0.0
  %4265 = vmatprep.subr.mxu0 0.0
  %4266 = vmatpush1.xpose.msra.mxu0 0.0
  %4267 = vmatprep.subr.mxu0 0.0
  %4268 = vmatpush1.xpose.msra.mxu0 0.0
  %4269 = vmatprep.subr.mxu0 0.0
  %4270 = vmatpush1.xpose.msra.mxu0 0.0
  %4271 = vmatprep.subr.mxu0 0.0
  %4272 = vmatpush1.xpose.msra.mxu0 0.0
  %4273 = vmatprep.subr.mxu0 0.0
  %4274 = vmatpush1.xpose.msra.mxu0 0.0
  %4275 = vmatprep.subr.mxu0 0.0
  %4276 = vmatpush1.xpose.msra.mxu0 0.0
  %4277 = vmatprep.subr.mxu0 0.0
  %4278 = vmatpush1.xpose.msra.mxu0 0.0
  %4279 = vmatprep.subr.mxu0 0.0
  %4280 = vmatpush1.xpose.msra.mxu0 0.0
  %4281 = vmatprep.subr.mxu0 0.0
  %4282 = vmatpush1.xpose.msra.mxu0 %v4249
  %4283 = vmatprep.subr.mxu0 0.0
  %4284 = vmatpush2.xpose.msra.mxu0 0.0
  %4285 = vmatprep.subr.mxu0 0.0
  %4286 = vmatpush2.xpose.msra.mxu0 0.0
  %4287 = vmatprep.subr.mxu0 0.0
  %4288 = vmatpush2.xpose.msra.mxu0 0.0
  %4289 = vmatprep.subr.mxu0 0.0
  %4290 = vmatpush2.xpose.msra.mxu0 0.0
  %4291 = vmatprep.subr.mxu0 0.0
  %4292 = vmatpush2.xpose.msra.mxu0 0.0
  %4293 = vmatprep.subr.mxu0 0.0
  %4294 = vmatpush2.xpose.msra.mxu0 0.0
  %4295 = vmatprep.subr.mxu0 0.0
  %4296 = vmatpush2.xpose.msra.mxu0 0.0
  %4297 = vmatprep.subr.mxu0 0.0
  %4298 = vmatpush2.xpose.msra.mxu0 0.0
  %4299 = vmatprep.subr.mxu0 0.0
  %4300 = vmatpush2.xpose.msra.mxu0 0.0
  %4301 = vmatprep.subr.mxu0 0.0
  %4302 = vmatpush2.xpose.msra.mxu0 0.0
  %4303 = vmatprep.subr.mxu0 0.0
  %4304 = vmatpush2.xpose.msra.mxu0 0.0
  %4305 = vmatprep.subr.mxu0 0.0
  %4306 = vmatpush2.xpose.msra.mxu0 0.0
  %4307 = vmatprep.subr.mxu0 0.0
  %4308 = vmatpush2.xpose.msra.mxu0 0.0
  %4309 = vmatprep.subr.mxu0 0.0
  %4310 = vmatpush2.xpose.msra.mxu0 0.0
  %4311 = vmatprep.subr.mxu0 0.0
  %4312 = vmatpush2.xpose.msra.mxu0 0.0
  %4313 = vmatprep.subr.mxu0 0.0
  %4314 = vmatpush2.xpose.msra.mxu0 0.0
  %4315 = vmatprep.mubr.f32.mxu0 0.0
  %4316 = vmatmul.mubr.f32.gmra.mxu0 %v4249
  %v4317 = vpop.f32.mrf.mxu0
  %v4318 = vadd.f32 0.0, %v4317
  %v4319 = vpop.f32.mrf.mxu0
  %4320 = vdwg.mxu0
  %4321 = vrot.lane.b32.xlu0 %v4093, 120
  %v4322 = vpop.permute.xlu0 %4321
  %4324 = vmatprep.subr.mxu0 0.0
  %4325 = vmatpush1.msra.mxu0 0.0
  %4326 = vmatprep.subr.mxu0 0.0
  %4327 = vmatpush1.msra.mxu0 0.0
  %4328 = vmatprep.subr.mxu0 0.0
  %4329 = vmatpush1.msra.mxu0 0.0
  %4330 = vmatprep.subr.mxu0 0.0
  %4331 = vmatpush1.msra.mxu0 0.0
  %4332 = vmatprep.subr.mxu0 0.0
  %4333 = vmatpush1.msra.mxu0 0.0
  %4334 = vmatprep.subr.mxu0 0.0
  %4335 = vmatpush1.msra.mxu0 0.0
  %4336 = vmatprep.subr.mxu0 0.0
  %4337 = vmatpush1.msra.mxu0 0.0
  %4338 = vmatprep.subr.mxu0 0.0
  %4339 = vmatpush1.msra.mxu0 0.0
  %4340 = vmatprep.subr.mxu0 0.0
  %4341 = vmatpush1.msra.mxu0 0.0
  %4342 = vmatprep.subr.mxu0 0.0
  %4343 = vmatpush1.msra.mxu0 0.0
  %4344 = vmatprep.subr.mxu0 0.0
  %4345 = vmatpush1.msra.mxu0 0.0
  %4346 = vmatprep.subr.mxu0 0.0
  %4347 = vmatpush1.msra.mxu0 0.0
  %4348 = vmatprep.subr.mxu0 0.0
  %4349 = vmatpush1.msra.mxu0 0.0
  %4350 = vmatprep.subr.mxu0 0.0
  %4351 = vmatpush1.msra.mxu0 0.0
  %4352 = vmatprep.subr.mxu0 0.0
  %4353 = vmatpush1.msra.mxu0 0.0
  %4354 = vmatprep.subr.mxu0 0.0
  %4355 = vmatpush1.msra.mxu0 %v4322
  %4356 = vmatprep.subr.mxu0 0.0
  %4357 = vmatpush2.msra.mxu0 0.0
  %4358 = vmatprep.subr.mxu0 0.0
  %4359 = vmatpush2.msra.mxu0 0.0
  %4360 = vmatprep.subr.mxu0 0.0
  %4361 = vmatpush2.msra.mxu0 0.0
  %4362 = vmatprep.subr.mxu0 0.0
  %4363 = vmatpush2.msra.mxu0 0.0
  %4364 = vmatprep.subr.mxu0 0.0
  %4365 = vmatpush2.msra.mxu0 0.0
  %4366 = vmatprep.subr.mxu0 0.0
  %4367 = vmatpush2.msra.mxu0 0.0
  %4368 = vmatprep.subr.mxu0 0.0
  %4369 = vmatpush2.msra.mxu0 0.0
  %4370 = vmatprep.subr.mxu0 0.0
  %4371 = vmatpush2.msra.mxu0 0.0
  %4372 = vmatprep.subr.mxu0 0.0
  %4373 = vmatpush2.msra.mxu0 0.0
  %4374 = vmatprep.subr.mxu0 0.0
  %4375 = vmatpush2.msra.mxu0 0.0
  %4376 = vmatprep.subr.mxu0 0.0
  %4377 = vmatpush2.msra.mxu0 0.0
  %4378 = vmatprep.subr.mxu0 0.0
  %4379 = vmatpush2.msra.mxu0 0.0
  %4380 = vmatprep.subr.mxu0 0.0
  %4381 = vmatpush2.msra.mxu0 0.0
  %4382 = vmatprep.subr.mxu0 0.0
  %4383 = vmatpush2.msra.mxu0 0.0
  %4384 = vmatprep.subr.mxu0 0.0
  %4385 = vmatpush2.msra.mxu0 0.0
  %4386 = vmatprep.subr.mxu0 0.0
  %4387 = vmatpush2.msra.mxu0 0.0
  %4388 = vmatprep.mubr.f32.mxu0 0.0
  %4389 = vmatmul.mubr.f32.gmra.mxu0 %v4249
  %v4390 = vpop.f32.mrf.mxu0
  %v4391 = vadd.f32 0.0, %v4390
  %v4392 = vpop.f32.mrf.mxu0
  %4393 = vdwg.mxu0
  %v4394 = vsub.f32 %v4165, %v4318
  %v4395 = vadd.f32 %v4394, %v651
  %v4396 = vsub.f32 %v650, %v4391
  %4398 = vrot.lane.b32.xlu0 %v611, 8
  %v4399 = vpop.permute.xlu0 %4398
  %v4401 = vsel %vm668, %v4396, %v4399
  %4403 = vrot.lane.b32.xlu0 %v4401, 8
  %v4404 = vpop.permute.xlu0 %4403
  %v4406 = vsel %vm668, %v4395, %v4404
  %v4407 = vmax.f32 %v4406, 1e-12
  %v4408 = vrsqrt.pop %v4407
  %4410 = vset.pattern.permute.xlu0 0
  %4411 = vperm.xlu0 %4410, %v4408
  %v4412 = vpop.permute.xlu0 %4411
  %v4414 = vmul.f32 %v4406, %v4412
  %v4415 = vlaneseq
  %v4416 = vshrl.u32 %v4415, 7
  %v4417 = vsub.s32 0, %v4416
  %v4418 = vrot.slane %v4408, %v4417
  %v4419 = vmul.f32 %v4406, %v4418
  %v4420 = vsel %vm652, %v4419, 0.0
  %4422 = vset.pattern.permute.xlu0 0
  %4423 = vperm.xlu0 %4422, %v4420
  %v4424 = vpop.permute.xlu0 %4423
  %v4426 = vlaneseq
  %v4427 = vshrl.u32 %v4426, 7
  %v4428 = vsub.s32 0, %v4427
  %v4429 = vrot.slane %v4414, %v4428
  %v4430 = vmul.f32 %v4424, %v4429
  %v4431 = vsub.f32 %v4406, %v4430
  %v4432 = vsel %vm776, %v4429, %v4431
  %v4433 = vmax.f32 %v4432, 1e-12
  %v4434 = vrsqrt.pop %v4433
  %4436 = vset.pattern.permute.xlu0 1
  %4437 = vperm.xlu0 %4436, %v4434
  %v4438 = vpop.permute.xlu0 %4437
  %v4440 = vmul.f32 %v4432, %v4438
  %v4441 = vlaneseq
  %v4442 = vshrl.u32 %v4441, 7
  %v4443 = vsub.s32 1, %v4442
  %v4444 = vrot.slane %v4434, %v4443
  %v4445 = vmul.f32 %v4432, %v4444
  %v4446 = vsel %vm653, %v4445, 0.0
  %4448 = vset.pattern.permute.xlu0 1
  %4449 = vperm.xlu0 %4448, %v4446
  %v4450 = vpop.permute.xlu0 %4449
  %v4452 = vlaneseq
  %v4453 = vshrl.u32 %v4452, 7
  %v4454 = vsub.s32 1, %v4453
  %v4455 = vrot.slane %v4440, %v4454
  %v4456 = vmul.f32 %v4450, %v4455
  %v4457 = vsub.f32 %v4432, %v4456
  %v4458 = vsel %vm804, %v4455, %v4457
  %v4459 = vmax.f32 %v4458, 1e-12
  %v4460 = vrsqrt.pop %v4459
  %4462 = vset.pattern.permute.xlu0 2
  %4463 = vperm.xlu0 %4462, %v4460
  %v4464 = vpop.permute.xlu0 %4463
  %v4466 = vmul.f32 %v4458, %v4464
  %v4467 = vlaneseq
  %v4468 = vshrl.u32 %v4467, 7
  %v4469 = vsub.s32 2, %v4468
  %v4470 = vrot.slane %v4460, %v4469
  %v4471 = vmul.f32 %v4458, %v4470
  %v4472 = vsel %vm654, %v4471, 0.0
  %4474 = vset.pattern.permute.xlu0 2
  %4475 = vperm.xlu0 %4474, %v4472
  %v4476 = vpop.permute.xlu0 %4475
  %v4478 = vlaneseq
  %v4479 = vshrl.u32 %v4478, 7
  %v4480 = vsub.s32 2, %v4479
  %v4481 = vrot.slane %v4466, %v4480
  %v4482 = vmul.f32 %v4476, %v4481
  %v4483 = vsub.f32 %v4458, %v4482
  %v4484 = vsel %vm832, %v4481, %v4483
  %v4485 = vmax.f32 %v4484, 1e-12
  %v4486 = vrsqrt.pop %v4485
  %4488 = vset.pattern.permute.xlu0 3
  %4489 = vperm.xlu0 %4488, %v4486
  %v4490 = vpop.permute.xlu0 %4489
  %v4492 = vmul.f32 %v4484, %v4490
  %v4493 = vlaneseq
  %v4494 = vshrl.u32 %v4493, 7
  %v4495 = vsub.s32 3, %v4494
  %v4496 = vrot.slane %v4486, %v4495
  %v4497 = vmul.f32 %v4484, %v4496
  %v4498 = vsel %vm655, %v4497, 0.0
  %4500 = vset.pattern.permute.xlu0 3
  %4501 = vperm.xlu0 %4500, %v4498
  %v4502 = vpop.permute.xlu0 %4501
  %v4504 = vlaneseq
  %v4505 = vshrl.u32 %v4504, 7
  %v4506 = vsub.s32 3, %v4505
  %v4507 = vrot.slane %v4492, %v4506
  %v4508 = vmul.f32 %v4502, %v4507
  %v4509 = vsub.f32 %v4484, %v4508
  %v4510 = vsel %vm860, %v4507, %v4509
  %v4511 = vmax.f32 %v4510, 1e-12
  %v4512 = vrsqrt.pop %v4511
  %4514 = vset.pattern.permute.xlu0 4
  %4515 = vperm.xlu0 %4514, %v4512
  %v4516 = vpop.permute.xlu0 %4515
  %v4518 = vmul.f32 %v4510, %v4516
  %v4519 = vlaneseq
  %v4520 = vshrl.u32 %v4519, 7
  %v4521 = vsub.s32 4, %v4520
  %v4522 = vrot.slane %v4512, %v4521
  %v4523 = vmul.f32 %v4510, %v4522
  %v4524 = vsel %vm656, %v4523, 0.0
  %4526 = vset.pattern.permute.xlu0 4
  %4527 = vperm.xlu0 %4526, %v4524
  %v4528 = vpop.permute.xlu0 %4527
  %v4530 = vlaneseq
  %v4531 = vshrl.u32 %v4530, 7
  %v4532 = vsub.s32 4, %v4531
  %v4533 = vrot.slane %v4518, %v4532
  %v4534 = vmul.f32 %v4528, %v4533
  %v4535 = vsub.f32 %v4510, %v4534
  %v4536 = vsel %vm888, %v4533, %v4535
  %v4537 = vmax.f32 %v4536, 1e-12
  %v4538 = vrsqrt.pop %v4537
  %4540 = vset.pattern.permute.xlu0 5
  %4541 = vperm.xlu0 %4540, %v4538
  %v4542 = vpop.permute.xlu0 %4541
  %v4544 = vmul.f32 %v4536, %v4542
  %v4545 = vlaneseq
  %v4546 = vshrl.u32 %v4545, 7
  %v4547 = vsub.s32 5, %v4546
  %v4548 = vrot.slane %v4538, %v4547
  %v4549 = vmul.f32 %v4536, %v4548
  %v4550 = vsel %vm657, %v4549, 0.0
  %4552 = vset.pattern.permute.xlu0 5
  %4553 = vperm.xlu0 %4552, %v4550
  %v4554 = vpop.permute.xlu0 %4553
  %v4556 = vlaneseq
  %v4557 = vshrl.u32 %v4556, 7
  %v4558 = vsub.s32 5, %v4557
  %v4559 = vrot.slane %v4544, %v4558
  %v4560 = vmul.f32 %v4554, %v4559
  %v4561 = vsub.f32 %v4536, %v4560
  %v4562 = vsel %vm916, %v4559, %v4561
  %v4563 = vmax.f32 %v4562, 1e-12
  %v4564 = vrsqrt.pop %v4563
  %4566 = vset.pattern.permute.xlu0 6
  %4567 = vperm.xlu0 %4566, %v4564
  %v4568 = vpop.permute.xlu0 %4567
  %v4570 = vmul.f32 %v4562, %v4568
  %v4571 = vlaneseq
  %v4572 = vshrl.u32 %v4571, 7
  %v4573 = vsub.s32 6, %v4572
  %v4574 = vrot.slane %v4564, %v4573
  %v4575 = vmul.f32 %v4562, %v4574
  %v4576 = vsel %vm658, %v4575, 0.0
  %4578 = vset.pattern.permute.xlu0 6
  %4579 = vperm.xlu0 %4578, %v4576
  %v4580 = vpop.permute.xlu0 %4579
  %v4582 = vlaneseq
  %v4583 = vshrl.u32 %v4582, 7
  %v4584 = vsub.s32 6, %v4583
  %v4585 = vrot.slane %v4570, %v4584
  %v4586 = vmul.f32 %v4580, %v4585
  %v4587 = vsub.f32 %v4562, %v4586
  %v4588 = vsel %vm944, %v4585, %v4587
  %v4589 = vmax.f32 %v4588, 1e-12
  %v4590 = vrsqrt.pop %v4589
  %4592 = vset.pattern.permute.xlu0 7
  %4593 = vperm.xlu0 %4592, %v4590
  %v4594 = vpop.permute.xlu0 %4593
  %v4596 = vmul.f32 %v4588, %v4594
  %v4597 = vlaneseq
  %v4598 = vshrl.u32 %v4597, 7
  %v4599 = vsub.s32 7, %v4598
  %v4600 = vrot.slane %v4590, %v4599
  %v4601 = vmul.f32 %v4588, %v4600
  %v4602 = vsel %vm659, %v4601, 0.0
  %4604 = vset.pattern.permute.xlu0 7
  %4605 = vperm.xlu0 %4604, %v4602
  %v4606 = vpop.permute.xlu0 %4605
  %v4608 = vlaneseq
  %v4609 = vshrl.u32 %v4608, 7
  %v4610 = vsub.s32 7, %v4609
  %v4611 = vrot.slane %v4596, %v4610
  %v4612 = vmul.f32 %v4606, %v4611
  %v4613 = vsub.f32 %v4588, %v4612
  %v4614 = vsel %vm972, %v4611, %v4613
  %v4615 = vsub.f32 %v973, 1e-05
  %v4616 = vsub.f32 %v1493, 1e-05
  %v4617 = vsub.f32 %v2013, 1e-05
  %v4618 = vsub.f32 %v2533, 1e-05
  %v4619 = vsub.f32 %v3053, 1e-05
  %v4620 = vsub.f32 %v3573, 1e-05
  %v4621 = vsub.f32 %v4093, 1e-05
  %v4622 = vsub.f32 %v4614, 1e-05
  %v4623 = vmax.f32 %v4615, 0.0
  %v4624 = vmax.f32 %v4616, 0.0
  %v4625 = vmax.f32 %v4617, 0.0
  %v4626 = vmax.f32 %v4618, 0.0
  %v4627 = vmax.f32 %v4619, 0.0
  %v4628 = vmax.f32 %v4620, 0.0
  %v4629 = vmax.f32 %v4621, 0.0
  %v4630 = vmax.f32 %v4622, 0.0
  %v4631 = vadd.f32 %v4623, 1e-05
  %v4632 = vadd.f32 %v4624, 1e-05
  %v4633 = vadd.f32 %v4625, 1e-05
  %v4634 = vadd.f32 %v4626, 1e-05
  %v4635 = vadd.f32 %v4627, 1e-05
  %v4636 = vadd.f32 %v4628, 1e-05
  %v4637 = vadd.f32 %v4629, 1e-05
  %v4638 = vadd.f32 %v4630, 1e-05
  %4639 = vrot.lane.b32.xlu0 %v17, 112
  %v4640 = vpop.permute.xlu0 %4639
  %4642 = vrot.lane.b32.xlu0 %v17, 120
  %v4643 = vpop.permute.xlu0 %4642
  %4645 = vrot.lane.b32.xlu0 %v17, 8
  %v4646 = vpop.permute.xlu0 %4645
  %4648 = vrot.lane.b32.xlu0 %v17, 16
  %v4649 = vpop.permute.xlu0 %4648
  %4651 = vrot.lane.b32.xlu0 %v17, 24
  %v4652 = vpop.permute.xlu0 %4651
  %4654 = vrot.lane.b32.xlu0 %v17, 32
  %v4655 = vpop.permute.xlu0 %4654
  %4657 = vrot.lane.b32.xlu0 %v17, 40
  %v4658 = vpop.permute.xlu0 %4657
  %v4660 = vsel %vm668, %v4640, %v4643
  %v4661 = vsel %vm26, %v4660, %v17
  %vm4662 = vcmask 195584
  %v4663 = vsel %vm4662, %v4661, %v4646
  %v4664 = vsel %vm402, %v4663, %v4649
  %vm4665 = vcmask 326656
  %v4666 = vsel %vm4665, %v4664, %v4652
  %v4667 = vsel %vm411, %v4666, %v4655
  %vm4668 = vcmask 457728
  %v4669 = vsel %vm4668, %v4667, %v4658
  %v4670 = vshra.s32 %v457, 3
  %vm4671 = vcmp.eq.s32.totalorder %v4670, %v459
  %v4672 = vsel %vm4671, %v4669, 0.0
  %4681 = vrot.lane.b32.xlu0 %v4631, 120
  %v4682 = vpop.permute.xlu0 %4681
  %4683 = vrot.lane.b32.xlu0 %v4632, 120
  %v4684 = vpop.permute.xlu0 %4683
  %4685 = vrot.lane.b32.xlu0 %v4633, 120
  %v4686 = vpop.permute.xlu0 %4685
  %4687 = vrot.lane.b32.xlu0 %v4634, 120
  %v4688 = vpop.permute.xlu0 %4687
  %4689 = vrot.lane.b32.xlu0 %v4635, 120
  %v4690 = vpop.permute.xlu0 %4689
  %4691 = vrot.lane.b32.xlu0 %v4636, 120
  %v4692 = vpop.permute.xlu0 %4691
  %4693 = vrot.lane.b32.xlu0 %v4637, 120
  %v4694 = vpop.permute.xlu0 %4693
  %4695 = vrot.lane.b32.xlu0 %v4638, 120
  %v4696 = vpop.permute.xlu0 %4695
  %v4706 = vsel %vm420, %v4672, 0
  %4708 = vmatprep.subr.mxu0 0.0
  %4709 = vmatpush1.msra.mxu0 0.0
  %4710 = vmatprep.subr.mxu0 0.0
  %4711 = vmatpush1.msra.mxu0 0.0
  %4712 = vmatprep.subr.mxu0 0.0
  %4713 = vmatpush1.msra.mxu0 0.0
  %4714 = vmatprep.subr.mxu0 0.0
  %4715 = vmatpush1.msra.mxu0 0.0
  %4716 = vmatprep.subr.mxu0 0.0
  %4717 = vmatpush1.msra.mxu0 0.0
  %4718 = vmatprep.subr.mxu0 0.0
  %4719 = vmatpush1.msra.mxu0 0.0
  %4720 = vmatprep.subr.mxu0 0.0
  %4721 = vmatpush1.msra.mxu0 0.0
  %4722 = vmatprep.subr.mxu0 0.0
  %4723 = vmatpush1.msra.mxu0 0.0
  %4724 = vmatprep.subr.mxu0 0.0
  %4725 = vmatpush1.msra.mxu0 %v4696
  %4726 = vmatprep.subr.mxu0 0.0
  %4727 = vmatpush1.msra.mxu0 %v4694
  %4728 = vmatprep.subr.mxu0 0.0
  %4729 = vmatpush1.msra.mxu0 %v4692
  %4730 = vmatprep.subr.mxu0 0.0
  %4731 = vmatpush1.msra.mxu0 %v4690
  %4732 = vmatprep.subr.mxu0 0.0
  %4733 = vmatpush1.msra.mxu0 %v4688
  %4734 = vmatprep.subr.mxu0 0.0
  %4735 = vmatpush1.msra.mxu0 %v4686
  %4736 = vmatprep.subr.mxu0 0.0
  %4737 = vmatpush1.msra.mxu0 %v4684
  %4738 = vmatprep.subr.mxu0 0.0
  %4739 = vmatpush1.msra.mxu0 %v4682
  %4740 = vmatprep.subr.mxu0 0.0
  %4741 = vmatpush2.msra.mxu0 0.0
  %4742 = vmatprep.subr.mxu0 0.0
  %4743 = vmatpush2.msra.mxu0 0.0
  %4744 = vmatprep.subr.mxu0 0.0
  %4745 = vmatpush2.msra.mxu0 0.0
  %4746 = vmatprep.subr.mxu0 0.0
  %4747 = vmatpush2.msra.mxu0 0.0
  %4748 = vmatprep.subr.mxu0 0.0
  %4749 = vmatpush2.msra.mxu0 0.0
  %4750 = vmatprep.subr.mxu0 0.0
  %4751 = vmatpush2.msra.mxu0 0.0
  %4752 = vmatprep.subr.mxu0 0.0
  %4753 = vmatpush2.msra.mxu0 0.0
  %4754 = vmatprep.subr.mxu0 0.0
  %4755 = vmatpush2.msra.mxu0 0.0
  %4756 = vmatprep.subr.mxu0 0.0
  %4757 = vmatpush2.msra.mxu0 0.0
  %4758 = vmatprep.subr.mxu0 0.0
  %4759 = vmatpush2.msra.mxu0 0.0
  %4760 = vmatprep.subr.mxu0 0.0
  %4761 = vmatpush2.msra.mxu0 0.0
  %4762 = vmatprep.subr.mxu0 0.0
  %4763 = vmatpush2.msra.mxu0 0.0
  %4764 = vmatprep.subr.mxu0 0.0
  %4765 = vmatpush2.msra.mxu0 0.0
  %4766 = vmatprep.subr.mxu0 0.0
  %4767 = vmatpush2.msra.mxu0 0.0
  %4768 = vmatprep.subr.mxu0 0.0
  %4769 = vmatpush2.msra.mxu0 0.0
  %4770 = vmatprep.subr.mxu0 0.0
  %4771 = vmatpush2.msra.mxu0 0.0
  %4772 = vmatprep.mubr.f32.mxu0 0.0
  %4773 = vmatmul.mubr.f32.gmra.mxu0 %v4706
  %v4774 = vpop.f32.mrf.mxu0
  %v4775 = vadd.f32 0.0, %v4774
  %v4776 = vpop.f32.mrf.mxu0
  %4777 = vdwg.mxu0
  %v4778 = vadd.f32 %v183, %v4775
  %vm4779 = vcmp.eq.s32.totalorder %v468, %v457
  %vm4780 = vcmp.eq.s32.totalorder %v469, %v457
  %vm4781 = vcmp.eq.s32.totalorder %v470, %v457
  %vm4782 = vcmp.eq.s32.totalorder %v471, %v457
  %vm4783 = vcmp.eq.s32.totalorder %v472, %v457
  %vm4784 = vcmp.eq.s32.totalorder %v473, %v457
  %vm4785 = vcmp.eq.s32.totalorder %v474, %v457
  %vm4786 = vcmp.eq.s32.totalorder %v475, %v457
  %v4787 = vsel %vm4779, %v4682, 1.0
  %v4788 = vsel %vm4780, %v4684, 1.0
  %v4789 = vsel %vm4781, %v4686, 1.0
  %v4790 = vsel %vm4782, %v4688, 1.0
  %v4791 = vsel %vm4783, %v4690, 1.0
  %v4792 = vsel %vm4784, %v4692, 1.0
  %v4793 = vsel %vm4785, %v4694, 1.0
  %v4794 = vsel %vm4786, %v4696, 1.0
  %v4795 = vlog2.pop %v4787
  %v4796 = vmul.f32 %v4795, 0.6931472
  %v4797 = vlog2.pop %v4788
  %v4798 = vmul.f32 %v4797, 0.6931472
  %v4799 = vlog2.pop %v4789
  %v4800 = vmul.f32 %v4799, 0.6931472
  %v4801 = vlog2.pop %v4790
  %v4802 = vmul.f32 %v4801, 0.6931472
  %v4803 = vlog2.pop %v4791
  %v4804 = vmul.f32 %v4803, 0.6931472
  %v4805 = vlog2.pop %v4792
  %v4806 = vmul.f32 %v4805, 0.6931472
  %v4807 = vlog2.pop %v4793
  %v4808 = vmul.f32 %v4807, 0.6931472
  %v4809 = vlog2.pop %v4794
  %v4810 = vmul.f32 %v4809, 0.6931472
  %v4811 = vsel %vm668, %v4796, 0.0
  %4812 = vadd.xlane.f32.xlu0 %v4811
  %v4813 = vpop.xlane.xlu0 %4812
  %v4814 = vsel %vm668, %v4798, 0.0
  %4815 = vadd.xlane.f32.xlu0 %v4814
  %v4816 = vpop.xlane.xlu0 %4815
  %v4817 = vsel %vm668, %v4800, 0.0
  %4818 = vadd.xlane.f32.xlu0 %v4817
  %v4819 = vpop.xlane.xlu0 %4818
  %v4820 = vsel %vm668, %v4802, 0.0
  %4821 = vadd.xlane.f32.xlu0 %v4820
  %v4822 = vpop.xlane.xlu0 %4821
  %v4823 = vsel %vm668, %v4804, 0.0
  %4824 = vadd.xlane.f32.xlu0 %v4823
  %v4825 = vpop.xlane.xlu0 %4824
  %v4826 = vsel %vm668, %v4806, 0.0
  %4827 = vadd.xlane.f32.xlu0 %v4826
  %v4828 = vpop.xlane.xlu0 %4827
  %v4829 = vsel %vm668, %v4808, 0.0
  %4830 = vadd.xlane.f32.xlu0 %v4829
  %v4831 = vpop.xlane.xlu0 %4830
  %v4832 = vsel %vm668, %v4810, 0.0
  %4833 = vadd.xlane.f32.xlu0 %v4832
  %v4834 = vpop.xlane.xlu0 %4833
  %v4835 = vsub.f32 0.0, %v4813
  %v4836 = vsub.f32 0.0, %v4816
  %v4837 = vsub.f32 0.0, %v4819
  %v4838 = vsub.f32 0.0, %v4822
  %v4839 = vsub.f32 0.0, %v4825
  %v4840 = vsub.f32 0.0, %v4828
  %v4841 = vsub.f32 0.0, %v4831
  %v4842 = vsub.f32 0.0, %v4834
  %v4843 = vadd.f32 %v4835, %v4836
  %v4844 = vadd.f32 %v4843, %v4837
  %v4845 = vadd.f32 %v4844, %v4838
  %v4846 = vadd.f32 %v4845, %v4839
  %v4847 = vadd.f32 %v4846, %v4840
  %v4848 = vadd.f32 %v4847, %v4841
  %v4849 = vadd.f32 %v4848, %v4842
  %v4850 = vrot.slane %v4849, 4
  %v4851 = vadd.f32 %v4849, %v4850
  %v4852 = vrot.slane %v4851, 2
  %v4853 = vadd.f32 %v4851, %v4852
  %v4854 = vrot.slane %v4853, 1
  %v4855 = vadd.f32 %v4853, %v4854
  %v4856 = vadd.f32 %v4855, 181.62413
  %v4857 = vsel %vm668, %v4778, %v4856
  %v4858 = vsel %vm26, %v4857, 0.0
  %4859 = vst [vmem:[%s4] sm:$0xff] %v4858
  // Predicated region
  $region18: #{sequential_vae_forward.1} parent=0 // pred_check
    _
  $region19: #{sequential_vae_forward.1} parent=0 // pred_check_branch
    %4861 = sbr.rel (0) target = $region21
  $region20: #{sequential_vae_forward.1} parent=0 // pred_region
    _
  $region21: #{sequential_vae_forward.1} parent=0 // pred_fallthru
    _
  // Predicated region
  $region22: #{sequential_vae_forward.1} parent=0 // pred_check
    _
  $region23: #{sequential_vae_forward.1} parent=0 // pred_check_branch
    %4863 = sbr.rel (0) target = $region25
  $region24: #{sequential_vae_forward.1} parent=0 // pred_region
    _
  $region25: #{sequential_vae_forward.1} parent=0 // pred_fallthru
    _

</llo_original>
